<compile_context>
chip_gen: v7x
topology: tpu7x:2x2x1
jax: 0.10.0
libtpu: 0.0.40
codegen_flags: <defaults>
</compile_context>

<pallas_src>
import functools

import jax
import jax.numpy as jnp
from jax import lax
from jax.experimental import pallas as pl
from jax.experimental.pallas import tpu as pltpu


_VMEM_LIMIT = 32 * 1024 * 1024


# ------------------------------ small helpers --------------------------------

def rup(n, m):
    return ((n + m - 1) // m) * m


def pad2(x, rows, cols):
    x = jnp.asarray(x, jnp.float32)
    return jnp.pad(x, ((0, rows - x.shape[0]), (0, cols - x.shape[1])))


def pad1(x, n):
    x = jnp.asarray(x, jnp.float32)
    return jnp.pad(x, (0, n - x.shape[0]))


# ------------------------------ Pallas kernels --------------------------------

def _mlp_kernel(x_ref, w0_ref, b0_ref, g_ref, be_ref, w1_ref, b1_ref, o_ref,
                *, hid_true, final_relu, l2norm):
    """Fused Linear -> LayerNorm -> ReLU -> Linear [-> ReLU] [-> L2-norm]."""
    x = x_ref[...]
    h = jnp.dot(x.astype(jnp.bfloat16), w0_ref[...],
                preferred_element_type=jnp.float32) + b0_ref[...]          # [tB, Hp]
    # LayerNorm over the *true* hidden width; padded columns of h are exactly 0
    # (padded W0 columns / b0 entries are zero), gamma/beta are zero there too.
    inv_n = 1.0 / float(hid_true)
    mu = jnp.sum(h, axis=-1, keepdims=True) * inv_n
    var = jnp.maximum(jnp.sum(h * h, axis=-1, keepdims=True) * inv_n - mu * mu, 0.0)
    hn = (h - mu) * lax.rsqrt(var + 1e-5) * g_ref[...] + be_ref[...]
    hn = jnp.maximum(hn, 0.0)
    y = jnp.dot(hn.astype(jnp.bfloat16), w1_ref[...],
                preferred_element_type=jnp.float32) + b1_ref[...]          # [tB, Dp]
    if final_relu:
        y = jnp.maximum(y, 0.0)
    if l2norm:
        y = y * lax.rsqrt(jnp.maximum(jnp.sum(y * y, axis=-1, keepdims=True), 1e-24))
    o_ref[...] = y


def mlp_batched(x_stack, mp, *, hid_true, final_relu, l2norm=False, share_x=False):
    """x_stack: [1 or nb, Bp, Din_p] f32 -> [nb, Bp, Dout_p] f32 (one fused call).

    If share_x, x_stack has a leading dim of 1 and every branch reads the same
    tile (index_map ignores the branch index -> no 3x HBM copy).
    """
    nb = mp["W0"].shape[0]
    _, Bp, Din_p = x_stack.shape
    Hid_p = mp["W0"].shape[-1]
    Dout_p = mp["W1"].shape[-1]
    tB = min(128, Bp)
    grid = (Bp // tB, nb)                       # batch outer, branch inner (x resident)
    if share_x:
        x_map = lambda i, b: (0, i, 0)
    else:
        x_map = lambda i, b: (b, i, 0)
    kern = functools.partial(_mlp_kernel, hid_true=hid_true,
                             final_relu=final_relu, l2norm=l2norm)
    return pl.pallas_call(
        kern,
        out_shape=jax.ShapeDtypeStruct((nb, Bp, Dout_p), jnp.float32),
        grid=grid,
        in_specs=[
            pl.BlockSpec((None, tB, Din_p), x_map),
            pl.BlockSpec((None, Din_p, Hid_p), lambda i, b: (b, 0, 0)),
            pl.BlockSpec((None, 1, Hid_p), lambda i, b: (b, 0, 0)),
            pl.BlockSpec((None, 1, Hid_p), lambda i, b: (b, 0, 0)),
            pl.BlockSpec((None, 1, Hid_p), lambda i, b: (b, 0, 0)),
            pl.BlockSpec((None, Hid_p, Dout_p), lambda i, b: (b, 0, 0)),
            pl.BlockSpec((None, 1, Dout_p), lambda i, b: (b, 0, 0)),
        ],
        out_specs=pl.BlockSpec((None, tB, Dout_p), lambda i, b: (b, i, 0)),
        compiler_params=pltpu.CompilerParams(
            dimension_semantics=("parallel", "parallel"),
            vmem_limit_bytes=_VMEM_LIMIT),
    )(x_stack, mp["W0"], mp["b0"], mp["g"], mp["be"], mp["W1"], mp["b1"])


def _relation_kernel(a_ref, pv_ref, w1a_ref, w2_ref, b2_ref, o_ref, pa_sc,
                     *, bc, nc):
    """score[b, n] = sigmoid(relu(pa[b] + pv[n]) . w2 + b2) on a (tB, tN) tile.

    pv (= v @ W1v + b1) is precomputed offline; pa (= a @ W1a) is computed once
    per (branch, batch-tile) under pl.when(class_tile == 0) into VMEM scratch.
    Output is written in full-lane-width [bc, tN] row slabs (no masked stores).
    """
    @pl.when(pl.program_id(2) == 0)
    def _():
        pa_sc[...] = jnp.dot(a_ref[...].astype(jnp.bfloat16), w1a_ref[...],
                             preferred_element_type=jnp.float32)           # [tB, Hp]

    tB, tN = o_ref.shape
    w2 = w2_ref[...]                                                       # [1, Hp]
    b2 = b2_ref[...]                                                       # [1, 1]

    @pl.loop(0, tB // bc)
    def _(bi):
        r0 = pl.multiple_of(bi * bc, bc)
        pa_c = pa_sc[pl.ds(r0, bc), :]                                     # [bc, Hp]
        pa_b = pa_c[:, None, :]                                            # [bc, 1, Hp]
        cols = []
        for ci in range(tN // nc):
            pv_c = pv_ref[ci * nc:(ci + 1) * nc, :]                        # [nc, Hp]
            h = jnp.maximum(pa_b + pv_c[None, :, :], 0.0)                  # [bc, nc, Hp]
            cols.append(jnp.sum(h * w2, axis=-1))                          # [bc, nc]
        row = jnp.concatenate(cols, axis=-1) + b2                          # [bc, tN]
        o_ref[pl.ds(r0, bc), :] = jax.nn.sigmoid(row)


def relation_batched(a_stack, rp, *, bc=8, nc=8):
    """a_stack: [nb, Bp, Dp] f32; rp['pv']: [nb, Np, Hp] f32 -> [nb, Bp, Np] f32."""
    nb, Bp, Dp = a_stack.shape
    Np, Hp = rp["pv"].shape[1], rp["pv"].shape[2]
    tB = min(128, Bp)
    tN = min(128, Np)
    grid = (nb, Bp // tB, Np // tN)
    kern = functools.partial(_relation_kernel, bc=bc, nc=nc)
    flops = int(2 * nb * Bp * Dp * Hp + 3 * nb * Bp * Np * Hp)
    bytes_acc = int(
        a_stack.size * 4
        + sum(int(rp[k].size) * rp[k].dtype.itemsize
              for k in ("pv", "W1a", "W2", "b2"))
        + nb * Bp * Np * 4)
    return pl.pallas_call(
        kern,
        out_shape=jax.ShapeDtypeStruct((nb, Bp, Np), jnp.float32),
        grid=grid,
        in_specs=[
            pl.BlockSpec((None, tB, Dp), lambda i, j, k: (i, j, 0)),
            pl.BlockSpec((None, tN, Hp), lambda i, j, k: (i, k, 0)),
            pl.BlockSpec((None, Dp, Hp), lambda i, j, k: (i, 0, 0)),
            pl.BlockSpec((None, 1, Hp), lambda i, j, k: (i, 0, 0)),
            pl.BlockSpec((None, 1, 1), lambda i, j, k: (i, 0, 0)),
        ],
        out_specs=pl.BlockSpec((None, tB, tN), lambda i, j, k: (i, j, k)),
        scratch_shapes=[pltpu.VMEM((tB, Hp), jnp.float32)],
        compiler_params=pltpu.CompilerParams(
            dimension_semantics=("parallel", "parallel", "arbitrary"),
            vmem_limit_bytes=_VMEM_LIMIT),
        cost_estimate=pl.CostEstimate(flops=flops,
                                      transcendentals=int(nb * Bp * Np),
                                      bytes_accessed=bytes_acc),
    )(a_stack, rp["pv"], rp["W1a"], rp["W2"], rp["b2"])


def _pair_kernel(wc_ref, va_ref, o_ref, wcn_sc):
    """Cosine scores: normalize(w_c_x) once per batch tile (pl.when(j==0) into
    scratch), v_ao arrives pre-normalized -> pure bf16 NT matmul per tile."""
    @pl.when(pl.program_id(1) == 0)
    def _():
        wc = wc_ref[...]
        wc = wc * lax.rsqrt(jnp.maximum(jnp.sum(wc * wc, -1, keepdims=True), 1e-24))
        wcn_sc[...] = wc.astype(jnp.bfloat16)
    o_ref[...] = lax.dot_general(
        wcn_sc[...], va_ref[...].astype(jnp.bfloat16),
        (((1,), (1,)), ((), ())), preferred_element_type=jnp.float32)


def pair_scores(wc_pad, va_pad):
    Bp, Ep = wc_pad.shape
    Pp = va_pad.shape[0]
    tB = min(128, Bp)
    tP = min(128, Pp)
    grid = (Bp // tB, Pp // tP)
    return pl.pallas_call(
        _pair_kernel,
        out_shape=jax.ShapeDtypeStruct((Bp, Pp), jnp.float32),
        grid=grid,
        in_specs=[pl.BlockSpec((tB, Ep), lambda i, j: (i, 0)),
                  pl.BlockSpec((tP, Ep), lambda i, j: (j, 0))],
        out_specs=pl.BlockSpec((tB, tP), lambda i, j: (i, j)),
        scratch_shapes=[pltpu.VMEM((tB, Ep), jnp.bfloat16)],
        compiler_params=pltpu.CompilerParams(
            dimension_semantics=("parallel", "arbitrary"),
            vmem_limit_bytes=_VMEM_LIMIT),
    )(wc_pad, va_pad)


# ------------------------- raw param init (torch-like) ------------------------

def init_linear(key, din, dout):
    k1, k2 = jax.random.split(key)
    bound = 1.0 / float(din) ** 0.5
    w = jax.random.uniform(k1, (din, dout), jnp.float32, -bound, bound)
    b = jax.random.uniform(k2, (dout,), jnp.float32, -bound, bound)
    return w, b


def init_mlp(key, din, hidden, dout):
    k0, k1 = jax.random.split(key)
    w0, b0 = init_linear(k0, din, hidden)
    w1, b1 = init_linear(k1, hidden, dout)
    return dict(W0=w0, b0=b0, g0=jnp.ones((hidden,), jnp.float32),
                be0=jnp.zeros((hidden,), jnp.float32), W1=w1, b1=b1)


def init_relation(key, din, hidden=400):
    k0, k1 = jax.random.split(key)
    w1, b1 = init_linear(k0, din, hidden)
    w2, b2 = init_linear(k1, hidden, 1)
    return dict(W1=w1, b1=b1, W2=w2, b2=b2)


# ------------------ one-time parameter padding / stacking ---------------------

def prepare_params(params, cfg):
    attr_tab = jnp.asarray(params["attr_emb"], jnp.float32)
    obj_tab = jnp.asarray(params["obj_emb"], jnp.float32)
    A, EMB = attr_tab.shape
    O = obj_tab.shape[0]
    FEAT = params["img_both"]["W0"].shape[0]
    H = params["score_obj"]["W1"].shape[1]
    pa_idx = cfg["pair_attr_idx"]
    po_idx = cfg["pair_obj_idx"]
    P = int(pa_idx.shape[0])

    E_pad = rup(EMB, 128)
    FEAT_pad = rup(FEAT, 128)
    CDIN_pad = rup(FEAT + EMB, 128)
    CAT2_pad = rup(2 * EMB, 128)
    H_pad = rup(H, 128)                  # 400 -> 512, lane-aligned hidden
    N_pad = rup(max(A, O), 128)
    P_pad = rup(P, 128)

    def prep_mlp(plist, din_pad, hid_pad, dout_pad):
        return dict(
            W0=jnp.stack([pad2(p["W0"], din_pad, hid_pad) for p in plist]
                         ).astype(jnp.bfloat16),
            b0=jnp.stack([pad1(p["b0"], hid_pad).reshape(1, hid_pad) for p in plist]),
            g=jnp.stack([pad1(p["g0"], hid_pad).reshape(1, hid_pad) for p in plist]),
            be=jnp.stack([pad1(p["be0"], hid_pad).reshape(1, hid_pad) for p in plist]),
            W1=jnp.stack([pad2(p["W1"], hid_pad, dout_pad) for p in plist]
                         ).astype(jnp.bfloat16),
            b1=jnp.stack([pad1(p["b1"], dout_pad).reshape(1, dout_pad) for p in plist]),
        )

    def prep_rel(plist, vlist, emb, d_pad, h_pad, n_pad):
        # pa side: W1[:emb] only (bf16).  Class side pv = v @ W1[emb:] + b1 is
        # hoisted here (f32, one-time) -- the relation kernel never touches W1v.
        w1a = jnp.stack([pad2(p["W1"][:emb, :], d_pad, h_pad) for p in plist]
                        ).astype(jnp.bfloat16)
        pv = jnp.stack([
            pad2(jnp.asarray(v, jnp.float32)
                 @ jnp.asarray(p["W1"][emb:, :], jnp.float32)
                 + jnp.asarray(p["b1"], jnp.float32)[None, :], n_pad, h_pad)
            for p, v in zip(plist, vlist)])
        w2 = jnp.stack([pad1(p["W2"][:, 0], h_pad).reshape(1, h_pad) for p in plist])
        b2 = jnp.stack([jnp.asarray(p["b2"], jnp.float32).reshape(1, 1)
                        for p in plist])
        return dict(W1a=w1a, pv=pv, W2=w2, b2=b2)

    trident = prep_mlp([params["img_attr_2"], params["img_both"],
                        params["img_obj_1"]], FEAT_pad, E_pad, E_pad)
    compose = prep_mlp([params["img_obj_compose"], params["img_attr_compose"]],
                       CDIN_pad, E_pad, E_pad)
    projection = prep_mlp([params["projection"]], CAT2_pad, E_pad, E_pad)

    rel1 = prep_rel([params["score_obj"], params["score_attr"]],
                    [obj_tab, attr_tab], EMB, E_pad, H_pad, N_pad)
    rel2 = prep_rel([params["pred_attr_con"], params["pred_obj_con"]],
                    [attr_tab, obj_tab], EMB, E_pad, H_pad, N_pad)

    pair_in = pad2(jnp.concatenate([attr_tab[pa_idx], obj_tab[po_idx]], axis=-1),
                   P_pad, CAT2_pad)

    dims = dict(A=A, O=O, P=P, EMB=EMB, FEAT=FEAT, FEAT_pad=FEAT_pad,
                CDIN_pad=CDIN_pad, CAT2_pad=CAT2_pad, E_pad=E_pad,
                H_pad=H_pad, N_pad=N_pad, P_pad=P_pad)
    return dict(dims=dims, attr_tab=attr_tab, obj_tab=obj_tab,
                trident=trident, compose=compose, projection=projection,
                rel1=rel1, rel2=rel2, pair_in=pair_in)


# ---------------------------------- forward -----------------------------------

def cscnet_val_forward(x, prep, cfg):
    """CSCNet.val_forward; returns the combined per-pair score matrix [B, P]."""
    d = prep["dims"]
    B = x.shape[0]
    A, O, P, EMB = d["A"], d["O"], d["P"], d["EMB"]
    alpha = cfg["alpha"]
    Bp = rup(B, 128)                               # 128-row batch tiles everywhere

    # 1) "trident": the three image-embedder MLPs on the shared x -> one call;
    #    x is passed once and aliased across the branch grid axis.
    xp = pad2(x, Bp, d["FEAT_pad"])[None]                       # [1, Bp, FEAT_pad]
    tri = mlp_batched(xp, prep["trident"], hid_true=EMB,
                      final_relu=False, share_x=True)
    w_a_x_2, w_c_x, w_o_x_1 = tri[0], tri[1], tri[2]            # [Bp, E_pad]

    # 2) independent relation nets score_obj / score_attr fused into one call.
    r1 = relation_batched(jnp.stack([w_o_x_1, w_a_x_2]), prep["rel1"])
    score_obj_ori = r1[0, :B, :O]
    score_attr_ori = r1[1, :B, :A]

    o_star = jnp.argmax(score_obj_ori, axis=-1)
    a_star = jnp.argmax(score_attr_ori, axis=-1)
    v_o_star = prep["obj_tab"][o_star]                          # [B, EMB]
    v_a_star = prep["attr_tab"][a_star]

    # 3) the two compose MLPs (different inputs & weights) fused into one call.
    cat1 = pad2(jnp.concatenate([x, v_o_star], axis=-1), Bp, d["CDIN_pad"])
    cat2 = pad2(jnp.concatenate([x, v_a_star], axis=-1), Bp, d["CDIN_pad"])
    comp = mlp_batched(jnp.stack([cat1, cat2]), prep["compose"],
                       hid_true=EMB, final_relu=True)
    beta, beta2 = comp[0], comp[1]

    # 4) independent relation nets pred_attr_con / pred_obj_con fused.
    r2 = relation_batched(jnp.stack([beta, beta2]), prep["rel2"])
    score_attr_con = r2[0, :B, :A]
    score_obj_con = r2[1, :B, :O]

    # 5) pair branch: projection MLP (with fused L2-normalize epilogue) on the
    #    (attr,obj) pair table + pure-matmul cosine kernel.
    v_ao = mlp_batched(prep["pair_in"][None], prep["projection"],
                       hid_true=EMB, final_relu=True, l2norm=True)[0]   # [P_pad, E_pad]
    score_pair = pair_scores(w_c_x, v_ao)[:B, :P]

    pa_idx = cfg["pair_attr_idx"]
    po_idx = cfg["pair_obj_idx"]
    sa_ori = score_attr_ori[:, pa_idx]
    sa_con = score_attr_con[:, pa_idx]
    so_ori = score_obj_ori[:, po_idx]
    so_con = score_obj_con[:, po_idx]
    return ((1.0 - alpha) * score_pair
            + alpha * (sa_ori * so_con)
            + alpha * (sa_con * so_ori))


# ----------------------- pure-JAX references (for checks) ---------------------

def _bdot(a, b):
    return jnp.dot(a.astype(jnp.bfloat16), b.astype(jnp.bfloat16),
                   preferred_element_type=jnp.float32)


def ref_mlp(x, p, final_relu):
    h = _bdot(x, p["W0"]) + p["b0"]
    mu = h.mean(-1, keepdims=True)
    var = ((h - mu) ** 2).mean(-1, keepdims=True)
    h = jnp.maximum((h - mu) / jnp.sqrt(var + 1e-5) * p["g0"] + p["be0"], 0.0)
    y = _bdot(h, p["W1"]) + p["b1"]
    return jnp.maximum(y, 0.0) if final_relu else y


def ref_relation(a, v, rp):
    B, D = a.shape
    N = v.shape[0]
    cat = jnp.concatenate(
        [jnp.repeat(a[:, None, :], N, axis=1),
         jnp.repeat(v[None, :, :], B, axis=0)], axis=-1).reshape(B * N, 2 * D)
    h = jnp.maximum(_bdot(cat, rp["W1"]) + rp["b1"], 0.0)
    return jax.nn.sigmoid(h @ rp["W2"] + rp["b2"]).reshape(B, N)


# ------------------------------------ main -------------------------------------

if __name__ == "__main__":
    B, FEAT, EMB = 2, 32, 16           # batch, dset.feat_dim, emb_dim
    NUM_ATTR, NUM_OBJ = 5, 6           # synthetic attribute / object vocabularies
    HID = 400                          # RelationNetwork hidden size (as in the module)

    key = jax.random.PRNGKey(0)
    ks = jax.random.split(key, 14)

    params = dict(
        attr_emb=jax.random.normal(ks[0], (NUM_ATTR, EMB), jnp.float32) * 0.1,
        obj_emb=jax.random.normal(ks[1], (NUM_OBJ, EMB), jnp.float32) * 0.1,
        img_attr_2=init_mlp(ks[2], FEAT, EMB, EMB),
        img_both=init_mlp(ks[3], FEAT, EMB, EMB),
        img_obj_1=init_mlp(ks[4], FEAT, EMB, EMB),
        score_attr=init_relation(ks[5], 2 * EMB, HID),
        score_obj=init_relation(ks[6], 2 * EMB, HID),
        pred_attr_con=init_relation(ks[7], 2 * EMB, HID),
        pred_obj_con=init_relation(ks[8], 2 * EMB, HID),
        projection=init_mlp(ks[9], 2 * EMB, EMB, EMB),
        img_obj_compose=init_mlp(ks[10], EMB + FEAT, EMB, EMB),
        img_attr_compose=init_mlp(ks[11], EMB + FEAT, EMB, EMB),
    )

    # all attribute-object pairs (dset.pairs)
    pa, po = jnp.meshgrid(jnp.arange(NUM_ATTR), jnp.arange(NUM_OBJ), indexing="ij")
    cfg = dict(alpha=0.3,
               pair_attr_idx=pa.reshape(-1),
               pair_obj_idx=po.reshape(-1))

    x = jax.random.normal(ks[12], (B, FEAT), jnp.float32)

    prep = prepare_params(params, cfg)
    fwd = jax.jit(lambda xx: cscnet_val_forward(xx, prep, cfg))
    scores = fwd(x)
    jax.block_until_ready(scores)
    assert scores.shape == (B, NUM_ATTR * NUM_OBJ)
    assert bool(jnp.all(jnp.isfinite(scores)))

    # lightweight kernel-vs-reference checks (no argmax branching involved).
    Bp = rup(B, 128)
    xp = pad2(x, Bp, prep["dims"]["FEAT_pad"])[None]
    tri = mlp_batched(xp, prep["trident"], hid_true=EMB,
                      final_relu=False, share_x=True)
    mlp_ref = ref_mlp(x, params["img_attr_2"], False)
    assert float(jnp.max(jnp.abs(tri[0, :B, :EMB] - mlp_ref))) < 5e-2
    r1 = relation_batched(jnp.stack([tri[2], tri[0]]), prep["rel1"])
    rel_ref = ref_relation(tri[2, :B, :EMB], params["obj_emb"], params["score_obj"])
    assert float(jnp.max(jnp.abs(r1[0, :B, :NUM_OBJ] - rel_ref))) < 5e-2

    print("KERNEL_OK")
</pallas_src>

<mosaic_0001>
module attributes {stable_mosaic.version = 11 : i64} {
  func.func @_mlp_kernel(%arg0: i32, %arg1: i32, %arg2: memref<1x128x128xf32, #tpu.memory_space<vmem>>, %arg3: memref<1x128x128xbf16, #tpu.memory_space<vmem>>, %arg4: memref<1x1x128xf32, #tpu.memory_space<vmem>>, %arg5: memref<1x1x128xf32, #tpu.memory_space<vmem>>, %arg6: memref<1x1x128xf32, #tpu.memory_space<vmem>>, %arg7: memref<1x128x128xbf16, #tpu.memory_space<vmem>>, %arg8: memref<1x1x128xf32, #tpu.memory_space<vmem>>, %arg9: memref<1x128x128xf32, #tpu.memory_space<vmem>>) attributes {dimension_semantics = [#tpu.dimension_semantics<parallel>, #tpu.dimension_semantics<parallel>], iteration_bounds = array<i64: 1, 1>, scalar_prefetch = 0 : i64, scratch_operands = 0 : i64, tpu.core_type = #tpu.core_type<tc>, window_params = [{transform_indices = @transform_0, window_bounds = array<i64: 1, 128, 128>}, {transform_indices = @transform_1, window_bounds = array<i64: 1, 128, 128>}, {transform_indices = @transform_2, window_bounds = array<i64: 1, 1, 128>}, {transform_indices = @transform_3, window_bounds = array<i64: 1, 1, 128>}, {transform_indices = @transform_4, window_bounds = array<i64: 1, 1, 128>}, {transform_indices = @transform_5, window_bounds = array<i64: 1, 128, 128>}, {transform_indices = @transform_6, window_bounds = array<i64: 1, 1, 128>}, {transform_indices = @transform_7, window_bounds = array<i64: 1, 128, 128>}]} {
    %c0 = arith.constant 0 : index
    %c0_0 = arith.constant 0 : index
    %c0_1 = arith.constant 0 : index
    %0 = vector.load %arg2[%c0, %c0_0, %c0_1] : memref<1x128x128xf32, #tpu.memory_space<vmem>>, vector<1x128x128xf32>
    %1 = vector.shape_cast %0 : vector<1x128x128xf32> to vector<128x128xf32>
    %2 = arith.truncf %1 : vector<128x128xf32> to vector<128x128xbf16>
    %c0_2 = arith.constant 0 : index
    %c0_3 = arith.constant 0 : index
    %c0_4 = arith.constant 0 : index
    %3 = vector.load %arg3[%c0_2, %c0_3, %c0_4] : memref<1x128x128xbf16, #tpu.memory_space<vmem>>, vector<1x128x128xbf16>
    %4 = vector.shape_cast %3 : vector<1x128x128xbf16> to vector<128x128xbf16>
    %cst = arith.constant dense<0.000000e+00> : vector<128x128xf32>
    %5 = tpu.matmul %2, %4, %cst {dimension_numbers = #tpu.dot_dimension_numbers<[1], [0], [0], [1], [0, 0, 1, 1], [], []>} : vector<128x128xbf16>, vector<128x128xbf16>, vector<128x128xf32> -> vector<128x128xf32>
    %c0_5 = arith.constant 0 : index
    %c0_6 = arith.constant 0 : index
    %c0_7 = arith.constant 0 : index
    %6 = vector.load %arg4[%c0_5, %c0_6, %c0_7] : memref<1x1x128xf32, #tpu.memory_space<vmem>>, vector<1x1x128xf32>
    %7 = vector.shape_cast %6 : vector<1x1x128xf32> to vector<1x128xf32>
    %8 = vector.broadcast %7 : vector<1x128xf32> to vector<128x128xf32>
    %9 = arith.addf %5, %8 : vector<128x128xf32>
    %cst_8 = arith.constant dense<0.000000e+00> : vector<128xf32>
    %10 = vector.multi_reduction <add>, %9, %cst_8 [1] : vector<128x128xf32> to vector<128xf32>
    %11 = vector.shape_cast %10 : vector<128xf32> to vector<128x1xf32>
    %cst_9 = arith.constant 6.250000e-02 : f32
    %12 = vector.broadcast %cst_9 : f32 to vector<128x1xf32>
    %13 = arith.mulf %11, %12 : vector<128x1xf32>
    %14 = arith.mulf %9, %9 : vector<128x128xf32>
    %cst_10 = arith.constant dense<0.000000e+00> : vector<128xf32>
    %15 = vector.multi_reduction <add>, %14, %cst_10 [1] : vector<128x128xf32> to vector<128xf32>
    %16 = vector.shape_cast %15 : vector<128xf32> to vector<128x1xf32>
    %cst_11 = arith.constant 6.250000e-02 : f32
    %17 = vector.broadcast %cst_11 : f32 to vector<128x1xf32>
    %18 = arith.mulf %16, %17 : vector<128x1xf32>
    %19 = arith.mulf %13, %13 : vector<128x1xf32>
    %20 = arith.subf %18, %19 : vector<128x1xf32>
    %cst_12 = arith.constant 0.000000e+00 : f32
    %21 = vector.broadcast %cst_12 : f32 to vector<128x1xf32>
    %22 = arith.maximumf %20, %21 : vector<128x1xf32>
    %23 = vector.broadcast %13 : vector<128x1xf32> to vector<128x128xf32>
    %24 = arith.subf %9, %23 : vector<128x128xf32>
    %cst_13 = arith.constant 9.99999974E-6 : f32
    %25 = vector.broadcast %cst_13 : f32 to vector<128x1xf32>
    %26 = arith.addf %22, %25 : vector<128x1xf32>
    %27 = math.rsqrt %26 : vector<128x1xf32>
    %28 = vector.broadcast %27 : vector<128x1xf32> to vector<128x128xf32>
    %29 = arith.mulf %24, %28 : vector<128x128xf32>
    %c0_14 = arith.constant 0 : index
    %c0_15 = arith.constant 0 : index
    %c0_16 = arith.constant 0 : index
    %30 = vector.load %arg5[%c0_14, %c0_15, %c0_16] : memref<1x1x128xf32, #tpu.memory_space<vmem>>, vector<1x1x128xf32>
    %31 = vector.shape_cast %30 : vector<1x1x128xf32> to vector<1x128xf32>
    %32 = vector.broadcast %31 : vector<1x128xf32> to vector<128x128xf32>
    %33 = arith.mulf %29, %32 : vector<128x128xf32>
    %c0_17 = arith.constant 0 : index
    %c0_18 = arith.constant 0 : index
    %c0_19 = arith.constant 0 : index
    %34 = vector.load %arg6[%c0_17, %c0_18, %c0_19] : memref<1x1x128xf32, #tpu.memory_space<vmem>>, vector<1x1x128xf32>
    %35 = vector.shape_cast %34 : vector<1x1x128xf32> to vector<1x128xf32>
    %36 = vector.broadcast %35 : vector<1x128xf32> to vector<128x128xf32>
    %37 = arith.addf %33, %36 : vector<128x128xf32>
    %cst_20 = arith.constant 0.000000e+00 : f32
    %38 = vector.broadcast %cst_20 : f32 to vector<128x128xf32>
    %39 = arith.maximumf %37, %38 : vector<128x128xf32>
    %40 = arith.truncf %39 : vector<128x128xf32> to vector<128x128xbf16>
    %c0_21 = arith.constant 0 : index
    %c0_22 = arith.constant 0 : index
    %c0_23 = arith.constant 0 : index
    %41 = vector.load %arg7[%c0_21, %c0_22, %c0_23] : memref<1x128x128xbf16, #tpu.memory_space<vmem>>, vector<1x128x128xbf16>
    %42 = vector.shape_cast %41 : vector<1x128x128xbf16> to vector<128x128xbf16>
    %cst_24 = arith.constant dense<0.000000e+00> : vector<128x128xf32>
    %43 = tpu.matmul %40, %42, %cst_24 {dimension_numbers = #tpu.dot_dimension_numbers<[1], [0], [0], [1], [0, 0, 1, 1], [], []>} : vector<128x128xbf16>, vector<128x128xbf16>, vector<128x128xf32> -> vector<128x128xf32>
    %c0_25 = arith.constant 0 : index
    %c0_26 = arith.constant 0 : index
    %c0_27 = arith.constant 0 : index
    %44 = vector.load %arg8[%c0_25, %c0_26, %c0_27] : memref<1x1x128xf32, #tpu.memory_space<vmem>>, vector<1x1x128xf32>
    %45 = vector.shape_cast %44 : vector<1x1x128xf32> to vector<1x128xf32>
    %46 = vector.broadcast %45 : vector<1x128xf32> to vector<128x128xf32>
    %47 = arith.addf %43, %46 : vector<128x128xf32>
    %cst_28 = arith.constant 0.000000e+00 : f32
    %48 = vector.broadcast %cst_28 : f32 to vector<128x128xf32>
    %49 = arith.maximumf %47, %48 : vector<128x128xf32>
    %50 = arith.mulf %49, %49 : vector<128x128xf32>
    %cst_29 = arith.constant dense<0.000000e+00> : vector<128xf32>
    %51 = vector.multi_reduction <add>, %50, %cst_29 [1] : vector<128x128xf32> to vector<128xf32>
    %52 = vector.shape_cast %51 : vector<128xf32> to vector<128x1xf32>
    %cst_30 = arith.constant 1.000000e-24 : f32
    %53 = vector.broadcast %cst_30 : f32 to vector<128x1xf32>
    %54 = arith.maximumf %52, %53 : vector<128x1xf32>
    %55 = math.rsqrt %54 : vector<128x1xf32>
    %56 = vector.broadcast %55 : vector<128x1xf32> to vector<128x128xf32>
    %57 = arith.mulf %49, %56 : vector<128x128xf32>
    %c0_31 = arith.constant 0 : index
    %c0_32 = arith.constant 0 : index
    %c0_33 = arith.constant 0 : index
    %58 = vector.load %arg9[%c0_31, %c0_32, %c0_33] : memref<1x128x128xf32, #tpu.memory_space<vmem>>, vector<1x128x128xf32>
    %59 = vector.shape_cast %58 : vector<1x128x128xf32> to vector<128x128xf32>
    %60 = vector.shape_cast %57 : vector<128x128xf32> to vector<1x128x128xf32>
    tpu.vector_store %arg9[%c0_31, %c0_32, %c0_33], %60 {strides = array<i32>} : memref<1x128x128xf32, #tpu.memory_space<vmem>>, vector<1x128x128xf32>,
    return
  }
  func.func @transform_0(%arg0: i32, %arg1: i32) -> (i32, i32, i32) {
    %c0_i32 = arith.constant 0 : i32
    %c0_i32_0 = arith.constant 0 : i32
    return %arg1, %arg0, %c0_i32 : i32, i32, i32
  }
  func.func @transform_1(%arg0: i32, %arg1: i32) -> (i32, i32, i32) {
    %c0_i32 = arith.constant 0 : i32
    %c0_i32_0 = arith.constant 0 : i32
    %c0_i32_1 = arith.constant 0 : i32
    return %arg1, %c0_i32, %c0_i32_0 : i32, i32, i32
  }
  func.func @transform_2(%arg0: i32, %arg1: i32) -> (i32, i32, i32) {
    %c0_i32 = arith.constant 0 : i32
    %c0_i32_0 = arith.constant 0 : i32
    %c0_i32_1 = arith.constant 0 : i32
    return %arg1, %c0_i32, %c0_i32_0 : i32, i32, i32
  }
  func.func @transform_3(%arg0: i32, %arg1: i32) -> (i32, i32, i32) {
    %c0_i32 = arith.constant 0 : i32
    %c0_i32_0 = arith.constant 0 : i32
    %c0_i32_1 = arith.constant 0 : i32
    return %arg1, %c0_i32, %c0_i32_0 : i32, i32, i32
  }
  func.func @transform_4(%arg0: i32, %arg1: i32) -> (i32, i32, i32) {
    %c0_i32 = arith.constant 0 : i32
    %c0_i32_0 = arith.constant 0 : i32
    %c0_i32_1 = arith.constant 0 : i32
    return %arg1, %c0_i32, %c0_i32_0 : i32, i32, i32
  }
  func.func @transform_5(%arg0: i32, %arg1: i32) -> (i32, i32, i32) {
    %c0_i32 = arith.constant 0 : i32
    %c0_i32_0 = arith.constant 0 : i32
    %c0_i32_1 = arith.constant 0 : i32
    return %arg1, %c0_i32, %c0_i32_0 : i32, i32, i32
  }
  func.func @transform_6(%arg0: i32, %arg1: i32) -> (i32, i32, i32) {
    %c0_i32 = arith.constant 0 : i32
    %c0_i32_0 = arith.constant 0 : i32
    %c0_i32_1 = arith.constant 0 : i32
    return %arg1, %c0_i32, %c0_i32_0 : i32, i32, i32
  }
  func.func @transform_7(%arg0: i32, %arg1: i32) -> (i32, i32, i32) {
    %c0_i32 = arith.constant 0 : i32
    %c0_i32_0 = arith.constant 0 : i32
    return %arg1, %arg0, %c0_i32 : i32, i32, i32
  }
}

module attributes {stable_mosaic.version = 11 : i64} {
  func.func @_mlp_kernel(%arg0: i32, %arg1: i32, %arg2: memref<1x128x128xf32, #tpu.memory_space<vmem>>, %arg3: memref<1x128x128xbf16, #tpu.memory_space<vmem>>, %arg4: memref<1x1x128xf32, #tpu.memory_space<vmem>>, %arg5: memref<1x1x128xf32, #tpu.memory_space<vmem>>, %arg6: memref<1x1x128xf32, #tpu.memory_space<vmem>>, %arg7: memref<1x128x128xbf16, #tpu.memory_space<vmem>>, %arg8: memref<1x1x128xf32, #tpu.memory_space<vmem>>, %arg9: memref<1x128x128xf32, #tpu.memory_space<vmem>>) attributes {dimension_semantics = [#tpu.dimension_semantics<parallel>, #tpu.dimension_semantics<parallel>], iteration_bounds = array<i64: 1, 3>, scalar_prefetch = 0 : i64, scratch_operands = 0 : i64, tpu.core_type = #tpu.core_type<tc>, window_params = [{transform_indices = @transform_0, window_bounds = array<i64: 1, 128, 128>}, {transform_indices = @transform_1, window_bounds = array<i64: 1, 128, 128>}, {transform_indices = @transform_2, window_bounds = array<i64: 1, 1, 128>}, {transform_indices = @transform_3, window_bounds = array<i64: 1, 1, 128>}, {transform_indices = @transform_4, window_bounds = array<i64: 1, 1, 128>}, {transform_indices = @transform_5, window_bounds = array<i64: 1, 128, 128>}, {transform_indices = @transform_6, window_bounds = array<i64: 1, 1, 128>}, {transform_indices = @transform_7, window_bounds = array<i64: 1, 128, 128>}]} {
    %c0 = arith.constant 0 : index
    %c0_0 = arith.constant 0 : index
    %c0_1 = arith.constant 0 : index
    %0 = vector.load %arg2[%c0, %c0_0, %c0_1] : memref<1x128x128xf32, #tpu.memory_space<vmem>>, vector<1x128x128xf32>
    %1 = vector.shape_cast %0 : vector<1x128x128xf32> to vector<128x128xf32>
    %2 = arith.truncf %1 : vector<128x128xf32> to vector<128x128xbf16>
    %c0_2 = arith.constant 0 : index
    %c0_3 = arith.constant 0 : index
    %c0_4 = arith.constant 0 : index
    %3 = vector.load %arg3[%c0_2, %c0_3, %c0_4] : memref<1x128x128xbf16, #tpu.memory_space<vmem>>, vector<1x128x128xbf16>
    %4 = vector.shape_cast %3 : vector<1x128x128xbf16> to vector<128x128xbf16>
    %cst = arith.constant dense<0.000000e+00> : vector<128x128xf32>
    %5 = tpu.matmul %2, %4, %cst {dimension_numbers = #tpu.dot_dimension_numbers<[1], [0], [0], [1], [0, 0, 1, 1], [], []>} : vector<128x128xbf16>, vector<128x128xbf16>, vector<128x128xf32> -> vector<128x128xf32>
    %c0_5 = arith.constant 0 : index
    %c0_6 = arith.constant 0 : index
    %c0_7 = arith.constant 0 : index
    %6 = vector.load %arg4[%c0_5, %c0_6, %c0_7] : memref<1x1x128xf32, #tpu.memory_space<vmem>>, vector<1x1x128xf32>
    %7 = vector.shape_cast %6 : vector<1x1x128xf32> to vector<1x128xf32>
    %8 = vector.broadcast %7 : vector<1x128xf32> to vector<128x128xf32>
    %9 = arith.addf %5, %8 : vector<128x128xf32>
    %cst_8 = arith.constant dense<0.000000e+00> : vector<128xf32>
    %10 = vector.multi_reduction <add>, %9, %cst_8 [1] : vector<128x128xf32> to vector<128xf32>
    %11 = vector.shape_cast %10 : vector<128xf32> to vector<128x1xf32>
    %cst_9 = arith.constant 6.250000e-02 : f32
    %12 = vector.broadcast %cst_9 : f32 to vector<128x1xf32>
    %13 = arith.mulf %11, %12 : vector<128x1xf32>
    %14 = arith.mulf %9, %9 : vector<128x128xf32>
    %cst_10 = arith.constant dense<0.000000e+00> : vector<128xf32>
    %15 = vector.multi_reduction <add>, %14, %cst_10 [1] : vector<128x128xf32> to vector<128xf32>
    %16 = vector.shape_cast %15 : vector<128xf32> to vector<128x1xf32>
    %cst_11 = arith.constant 6.250000e-02 : f32
    %17 = vector.broadcast %cst_11 : f32 to vector<128x1xf32>
    %18 = arith.mulf %16, %17 : vector<128x1xf32>
    %19 = arith.mulf %13, %13 : vector<128x1xf32>
    %20 = arith.subf %18, %19 : vector<128x1xf32>
    %cst_12 = arith.constant 0.000000e+00 : f32
    %21 = vector.broadcast %cst_12 : f32 to vector<128x1xf32>
    %22 = arith.maximumf %20, %21 : vector<128x1xf32>
    %23 = vector.broadcast %13 : vector<128x1xf32> to vector<128x128xf32>
    %24 = arith.subf %9, %23 : vector<128x128xf32>
    %cst_13 = arith.constant 9.99999974E-6 : f32
    %25 = vector.broadcast %cst_13 : f32 to vector<128x1xf32>
    %26 = arith.addf %22, %25 : vector<128x1xf32>
    %27 = math.rsqrt %26 : vector<128x1xf32>
    %28 = vector.broadcast %27 : vector<128x1xf32> to vector<128x128xf32>
    %29 = arith.mulf %24, %28 : vector<128x128xf32>
    %c0_14 = arith.constant 0 : index
    %c0_15 = arith.constant 0 : index
    %c0_16 = arith.constant 0 : index
    %30 = vector.load %arg5[%c0_14, %c0_15, %c0_16] : memref<1x1x128xf32, #tpu.memory_space<vmem>>, vector<1x1x128xf32>
    %31 = vector.shape_cast %30 : vector<1x1x128xf32> to vector<1x128xf32>
    %32 = vector.broadcast %31 : vector<1x128xf32> to vector<128x128xf32>
    %33 = arith.mulf %29, %32 : vector<128x128xf32>
    %c0_17 = arith.constant 0 : index
    %c0_18 = arith.constant 0 : index
    %c0_19 = arith.constant 0 : index
    %34 = vector.load %arg6[%c0_17, %c0_18, %c0_19] : memref<1x1x128xf32, #tpu.memory_space<vmem>>, vector<1x1x128xf32>
    %35 = vector.shape_cast %34 : vector<1x1x128xf32> to vector<1x128xf32>
    %36 = vector.broadcast %35 : vector<1x128xf32> to vector<128x128xf32>
    %37 = arith.addf %33, %36 : vector<128x128xf32>
    %cst_20 = arith.constant 0.000000e+00 : f32
    %38 = vector.broadcast %cst_20 : f32 to vector<128x128xf32>
    %39 = arith.maximumf %37, %38 : vector<128x128xf32>
    %40 = arith.truncf %39 : vector<128x128xf32> to vector<128x128xbf16>
    %c0_21 = arith.constant 0 : index
    %c0_22 = arith.constant 0 : index
    %c0_23 = arith.constant 0 : index
    %41 = vector.load %arg7[%c0_21, %c0_22, %c0_23] : memref<1x128x128xbf16, #tpu.memory_space<vmem>>, vector<1x128x128xbf16>
    %42 = vector.shape_cast %41 : vector<1x128x128xbf16> to vector<128x128xbf16>
    %cst_24 = arith.constant dense<0.000000e+00> : vector<128x128xf32>
    %43 = tpu.matmul %40, %42, %cst_24 {dimension_numbers = #tpu.dot_dimension_numbers<[1], [0], [0], [1], [0, 0, 1, 1], [], []>} : vector<128x128xbf16>, vector<128x128xbf16>, vector<128x128xf32> -> vector<128x128xf32>
    %c0_25 = arith.constant 0 : index
    %c0_26 = arith.constant 0 : index
    %c0_27 = arith.constant 0 : index
    %44 = vector.load %arg8[%c0_25, %c0_26, %c0_27] : memref<1x1x128xf32, #tpu.memory_space<vmem>>, vector<1x1x128xf32>
    %45 = vector.shape_cast %44 : vector<1x1x128xf32> to vector<1x128xf32>
    %46 = vector.broadcast %45 : vector<1x128xf32> to vector<128x128xf32>
    %47 = arith.addf %43, %46 : vector<128x128xf32>
    %c0_28 = arith.constant 0 : index
    %c0_29 = arith.constant 0 : index
    %c0_30 = arith.constant 0 : index
    %48 = vector.load %arg9[%c0_28, %c0_29, %c0_30] : memref<1x128x128xf32, #tpu.memory_space<vmem>>, vector<1x128x128xf32>
    %49 = vector.shape_cast %48 : vector<1x128x128xf32> to vector<128x128xf32>
    %50 = vector.shape_cast %47 : vector<128x128xf32> to vector<1x128x128xf32>
    tpu.vector_store %arg9[%c0_28, %c0_29, %c0_30], %50 {strides = array<i32>} : memref<1x128x128xf32, #tpu.memory_space<vmem>>, vector<1x128x128xf32>,
    return
  }
  func.func @transform_0(%arg0: i32, %arg1: i32) -> (i32, i32, i32) {
    %c0_i32 = arith.constant 0 : i32
    %c0_i32_0 = arith.constant 0 : i32
    %c0_i32_1 = arith.constant 0 : i32
    return %c0_i32, %arg0, %c0_i32_0 : i32, i32, i32
  }
  func.func @transform_1(%arg0: i32, %arg1: i32) -> (i32, i32, i32) {
    %c0_i32 = arith.constant 0 : i32
    %c0_i32_0 = arith.constant 0 : i32
    %c0_i32_1 = arith.constant 0 : i32
    return %arg1, %c0_i32, %c0_i32_0 : i32, i32, i32
  }
  func.func @transform_2(%arg0: i32, %arg1: i32) -> (i32, i32, i32) {
    %c0_i32 = arith.constant 0 : i32
    %c0_i32_0 = arith.constant 0 : i32
    %c0_i32_1 = arith.constant 0 : i32
    return %arg1, %c0_i32, %c0_i32_0 : i32, i32, i32
  }
  func.func @transform_3(%arg0: i32, %arg1: i32) -> (i32, i32, i32) {
    %c0_i32 = arith.constant 0 : i32
    %c0_i32_0 = arith.constant 0 : i32
    %c0_i32_1 = arith.constant 0 : i32
    return %arg1, %c0_i32, %c0_i32_0 : i32, i32, i32
  }
  func.func @transform_4(%arg0: i32, %arg1: i32) -> (i32, i32, i32) {
    %c0_i32 = arith.constant 0 : i32
    %c0_i32_0 = arith.constant 0 : i32
    %c0_i32_1 = arith.constant 0 : i32
    return %arg1, %c0_i32, %c0_i32_0 : i32, i32, i32
  }
  func.func @transform_5(%arg0: i32, %arg1: i32) -> (i32, i32, i32) {
    %c0_i32 = arith.constant 0 : i32
    %c0_i32_0 = arith.constant 0 : i32
    %c0_i32_1 = arith.constant 0 : i32
    return %arg1, %c0_i32, %c0_i32_0 : i32, i32, i32
  }
  func.func @transform_6(%arg0: i32, %arg1: i32) -> (i32, i32, i32) {
    %c0_i32 = arith.constant 0 : i32
    %c0_i32_0 = arith.constant 0 : i32
    %c0_i32_1 = arith.constant 0 : i32
    return %arg1, %c0_i32, %c0_i32_0 : i32, i32, i32
  }
  func.func @transform_7(%arg0: i32, %arg1: i32) -> (i32, i32, i32) {
    %c0_i32 = arith.constant 0 : i32
    %c0_i32_0 = arith.constant 0 : i32
    return %arg1, %arg0, %c0_i32 : i32, i32, i32
  }
}

module attributes {stable_mosaic.version = 11 : i64} {
  func.func @_pair_kernel(%arg0: i32, %arg1: i32, %arg2: memref<128x128xf32, #tpu.memory_space<vmem>>, %arg3: memref<128x128xf32, #tpu.memory_space<vmem>>, %arg4: memref<128x128xf32, #tpu.memory_space<vmem>>, %arg5: memref<128x128xbf16, #tpu.memory_space<vmem>>) attributes {dimension_semantics = [#tpu.dimension_semantics<parallel>, #tpu.dimension_semantics<arbitrary>], iteration_bounds = array<i64: 1, 1>, scalar_prefetch = 0 : i64, scratch_operands = 1 : i64, tpu.core_type = #tpu.core_type<tc>, window_params = [{transform_indices = @transform_0, window_bounds = array<i64: 128, 128>}, {transform_indices = @transform_1, window_bounds = array<i64: 128, 128>}, {transform_indices = @transform_2, window_bounds = array<i64: 128, 128>}]} {
    %c0_i32 = arith.constant 0 : i32
    %0 = arith.cmpi eq, %arg1, %c0_i32 : i32
    %1 = arith.extui %0 : i1 to i32
    %c0_i32_0 = arith.constant 0 : i32
    %2 = arith.cmpi ne, %1, %c0_i32_0 : i32
    scf.if %2 {
      %c0_6 = arith.constant 0 : index
      %c0_7 = arith.constant 0 : index
      %8 = vector.load %arg2[%c0_6, %c0_7] : memref<128x128xf32, #tpu.memory_space<vmem>>, vector<128x128xf32>
      %9 = arith.mulf %8, %8 : vector<128x128xf32>
      %cst_8 = arith.constant dense<0.000000e+00> : vector<128xf32>
      %10 = vector.multi_reduction <add>, %9, %cst_8 [1] : vector<128x128xf32> to vector<128xf32>
      %11 = vector.shape_cast %10 : vector<128xf32> to vector<128x1xf32>
      %cst_9 = arith.constant 1.000000e-24 : f32
      %12 = vector.broadcast %cst_9 : f32 to vector<128x1xf32>
      %13 = arith.maximumf %11, %12 : vector<128x1xf32>
      %14 = math.rsqrt %13 : vector<128x1xf32>
      %15 = vector.broadcast %14 : vector<128x1xf32> to vector<128x128xf32>
      %16 = arith.mulf %8, %15 : vector<128x128xf32>
      %17 = arith.truncf %16 : vector<128x128xf32> to vector<128x128xbf16>
      %c0_10 = arith.constant 0 : index
      %c0_11 = arith.constant 0 : index
      %18 = vector.load %arg5[%c0_10, %c0_11] : memref<128x128xbf16, #tpu.memory_space<vmem>>, vector<128x128xbf16>
      tpu.vector_store %arg5[%c0_10, %c0_11], %17 {strides = array<i32>} : memref<128x128xbf16, #tpu.memory_space<vmem>>, vector<128x128xbf16>,
    } else {
    }
    %c0 = arith.constant 0 : index
    %c0_1 = arith.constant 0 : index
    %3 = vector.load %arg5[%c0, %c0_1] : memref<128x128xbf16, #tpu.memory_space<vmem>>, vector<128x128xbf16>
    %c0_2 = arith.constant 0 : index
    %c0_3 = arith.constant 0 : index
    %4 = vector.load %arg3[%c0_2, %c0_3] : memref<128x128xf32, #tpu.memory_space<vmem>>, vector<128x128xf32>
    %5 = arith.truncf %4 : vector<128x128xf32> to vector<128x128xbf16>
    %cst = arith.constant dense<0.000000e+00> : vector<128x128xf32>
    %6 = tpu.matmul %3, %5, %cst {dimension_numbers = #tpu.dot_dimension_numbers<[1], [1], [0], [0], [0, 0, 1, 0], [], []>} : vector<128x128xbf16>, vector<128x128xbf16>, vector<128x128xf32> -> vector<128x128xf32>
    %c0_4 = arith.constant 0 : index
    %c0_5 = arith.constant 0 : index
    %7 = vector.load %arg4[%c0_4, %c0_5] : memref<128x128xf32, #tpu.memory_space<vmem>>, vector<128x128xf32>
    tpu.vector_store %arg4[%c0_4, %c0_5], %6 {strides = array<i32>} : memref<128x128xf32, #tpu.memory_space<vmem>>, vector<128x128xf32>,
    return
  }
  func.func @transform_0(%arg0: i32, %arg1: i32) -> (i32, i32) {
    %c0_i32 = arith.constant 0 : i32
    %c0_i32_0 = arith.constant 0 : i32
    return %arg0, %c0_i32 : i32, i32
  }
  func.func @transform_1(%arg0: i32, %arg1: i32) -> (i32, i32) {
    %c0_i32 = arith.constant 0 : i32
    %c0_i32_0 = arith.constant 0 : i32
    return %arg1, %c0_i32 : i32, i32
  }
  func.func @transform_2(%arg0: i32, %arg1: i32) -> (i32, i32) {
    %c0_i32 = arith.constant 0 : i32
    return %arg0, %arg1 : i32, i32
  }
}

module attributes {stable_mosaic.version = 11 : i64} {
  func.func @_relation_kernel(%arg0: i32, %arg1: i32, %arg2: i32, %arg3: memref<1x128x128xf32, #tpu.memory_space<vmem>>, %arg4: memref<1x128x512xf32, #tpu.memory_space<vmem>>, %arg5: memref<1x128x512xbf16, #tpu.memory_space<vmem>>, %arg6: memref<1x1x512xf32, #tpu.memory_space<vmem>>, %arg7: memref<1x1x1xf32, #tpu.memory_space<vmem>>, %arg8: memref<1x128x128xf32, #tpu.memory_space<vmem>>, %arg9: memref<128x512xf32, #tpu.memory_space<vmem>>) attributes {dimension_semantics = [#tpu.dimension_semantics<parallel>, #tpu.dimension_semantics<parallel>, #tpu.dimension_semantics<arbitrary>], iteration_bounds = array<i64: 2, 1, 1>, scalar_prefetch = 0 : i64, scratch_operands = 1 : i64, tpu.core_type = #tpu.core_type<tc>, window_params = [{transform_indices = @transform_0, window_bounds = array<i64: 1, 128, 128>}, {transform_indices = @transform_1, window_bounds = array<i64: 1, 128, 512>}, {transform_indices = @transform_2, window_bounds = array<i64: 1, 128, 512>}, {transform_indices = @transform_3, window_bounds = array<i64: 1, 1, 512>}, {transform_indices = @transform_4, window_bounds = array<i64: 1, 1, 1>}, {transform_indices = @transform_5, window_bounds = array<i64: 1, 128, 128>}]} {
    %c0_i32 = arith.constant 0 : i32
    %0 = arith.cmpi eq, %arg2, %c0_i32 : i32
    %1 = arith.extui %0 : i1 to i32
    %c0_i32_0 = arith.constant 0 : i32
    %2 = arith.cmpi ne, %1, %c0_i32_0 : i32
    scf.if %2 {
      %c0_8 = arith.constant 0 : index
      %c0_9 = arith.constant 0 : index
      %c0_10 = arith.constant 0 : index
      %8 = vector.load %arg3[%c0_8, %c0_9, %c0_10] : memref<1x128x128xf32, #tpu.memory_space<vmem>>, vector<1x128x128xf32>
      %9 = vector.shape_cast %8 : vector<1x128x128xf32> to vector<128x128xf32>
      %10 = arith.truncf %9 : vector<128x128xf32> to vector<128x128xbf16>
      %c0_11 = arith.constant 0 : index
      %c0_12 = arith.constant 0 : index
      %c0_13 = arith.constant 0 : index
      %11 = vector.load %arg5[%c0_11, %c0_12, %c0_13] : memref<1x128x512xbf16, #tpu.memory_space<vmem>>, vector<1x128x512xbf16>
      %12 = vector.shape_cast %11 : vector<1x128x512xbf16> to vector<128x512xbf16>
      %cst = arith.constant dense<0.000000e+00> : vector<128x512xf32>
      %13 = tpu.matmul %10, %12, %cst {dimension_numbers = #tpu.dot_dimension_numbers<[1], [0], [0], [1], [0, 0, 1, 1], [], []>} : vector<128x128xbf16>, vector<128x512xbf16>, vector<128x512xf32> -> vector<128x512xf32>
      %c0_14 = arith.constant 0 : index
      %c0_15 = arith.constant 0 : index
      %14 = vector.load %arg9[%c0_14, %c0_15] : memref<128x512xf32, #tpu.memory_space<vmem>>, vector<128x512xf32>
      tpu.vector_store %arg9[%c0_14, %c0_15], %13 {strides = array<i32>} : memref<128x512xf32, #tpu.memory_space<vmem>>, vector<128x512xf32>,
    } else {
    }
    %c0 = arith.constant 0 : index
    %c0_1 = arith.constant 0 : index
    %c0_2 = arith.constant 0 : index
    %3 = vector.load %arg6[%c0, %c0_1, %c0_2] : memref<1x1x512xf32, #tpu.memory_space<vmem>>, vector<1x1x512xf32>
    %4 = vector.shape_cast %3 : vector<1x1x512xf32> to vector<1x512xf32>
    %c0_3 = arith.constant 0 : index
    %c0_4 = arith.constant 0 : index
    %c0_5 = arith.constant 0 : index
    %5 = vector.load %arg7[%c0_3, %c0_4, %c0_5] : memref<1x1x1xf32, #tpu.memory_space<vmem>>, vector<1x1x1xf32>
    %6 = vector.shape_cast %5 : vector<1x1x1xf32> to vector<1x1xf32>
    %c0_i32_6 = arith.constant 0 : i32
    %c16_i32 = arith.constant 16 : i32
    %7 = arith.addi %c0_i32_6, %c16_i32 : i32
    %c1_i32 = arith.constant 1 : i32
    scf.for %arg10 = %c0_i32_6 to %7 step %c1_i32  : i32 {
      %c1_i32_8 = arith.constant 1 : i32
      %8 = arith.muli %arg10, %c1_i32_8 : i32
      %c0_i32_9 = arith.constant 0 : i32
      %9 = arith.addi %c0_i32_9, %8 : i32
      %c8_i32 = arith.constant 8 : i32
      %10 = arith.muli %9, %c8_i32 : i32
      %11 = tpu.assume_multiple %10, 8 : i32
      %12 = arith.index_cast %11 : i32 to index
      %c0_10 = arith.constant 0 : index
      %13 = vector.load %arg9[%12, %c0_10] : memref<128x512xf32, #tpu.memory_space<vmem>>, vector<8x512xf32>
      %14 = vector.shape_cast %13 : vector<8x512xf32> to vector<8x1x512xf32>
      %c0_11 = arith.constant 0 : index
      %c0_12 = arith.constant 0 : index
      %c0_13 = arith.constant 0 : index
      %15 = vector.load %arg4[%c0_11, %c0_12, %c0_13] : memref<1x128x512xf32, #tpu.memory_space<vmem>>, vector<1x8x512xf32>
      %16 = vector.shape_cast %15 : vector<1x8x512xf32> to vector<8x512xf32>
      %17 = vector.shape_cast %16 : vector<8x512xf32> to vector<1x8x512xf32>
      %18 = vector.broadcast %14 : vector<8x1x512xf32> to vector<8x8x512xf32>
      %19 = vector.broadcast %17 : vector<1x8x512xf32> to vector<8x8x512xf32>
      %20 = arith.addf %18, %19 : vector<8x8x512xf32>
      %cst = arith.constant 0.000000e+00 : f32
      %21 = vector.broadcast %cst : f32 to vector<8x8x512xf32>
      %22 = arith.maximumf %20, %21 : vector<8x8x512xf32>
      %23 = vector.shape_cast %4 : vector<1x512xf32> to vector<1x1x512xf32>
      %24 = vector.broadcast %23 : vector<1x1x512xf32> to vector<8x8x512xf32>
      %25 = arith.mulf %22, %24 : vector<8x8x512xf32>
      %cst_14 = arith.constant dense<0.000000e+00> : vector<8x8xf32>
      %26 = vector.multi_reduction <add>, %25, %cst_14 [2] : vector<8x8x512xf32> to vector<8x8xf32>
      %c0_15 = arith.constant 0 : index
      %c8 = arith.constant 8 : index
      %c0_16 = arith.constant 0 : index
      %27 = vector.load %arg4[%c0_15, %c8, %c0_16] : memref<1x128x512xf32, #tpu.memory_space<vmem>>, vector<1x8x512xf32>
      %28 = vector.shape_cast %27 : vector<1x8x512xf32> to vector<8x512xf32>
      %29 = vector.shape_cast %28 : vector<8x512xf32> to vector<1x8x512xf32>
      %30 = vector.broadcast %14 : vector<8x1x512xf32> to vector<8x8x512xf32>
      %31 = vector.broadcast %29 : vector<1x8x512xf32> to vector<8x8x512xf32>
      %32 = arith.addf %30, %31 : vector<8x8x512xf32>
      %cst_17 = arith.constant 0.000000e+00 : f32
      %33 = vector.broadcast %cst_17 : f32 to vector<8x8x512xf32>
      %34 = arith.maximumf %32, %33 : vector<8x8x512xf32>
      %35 = vector.shape_cast %4 : vector<1x512xf32> to vector<1x1x512xf32>
      %36 = vector.broadcast %35 : vector<1x1x512xf32> to vector<8x8x512xf32>
      %37 = arith.mulf %34, %36 : vector<8x8x512xf32>
      %cst_18 = arith.constant dense<0.000000e+00> : vector<8x8xf32>
      %38 = vector.multi_reduction <add>, %37, %cst_18 [2] : vector<8x8x512xf32> to vector<8x8xf32>
      %c0_19 = arith.constant 0 : index
      %c16 = arith.constant 16 : index
      %c0_20 = arith.constant 0 : index
      %39 = vector.load %arg4[%c0_19, %c16, %c0_20] : memref<1x128x512xf32, #tpu.memory_space<vmem>>, vector<1x8x512xf32>
      %40 = vector.shape_cast %39 : vector<1x8x512xf32> to vector<8x512xf32>
      %41 = vector.shape_cast %40 : vector<8x512xf32> to vector<1x8x512xf32>
      %42 = vector.broadcast %14 : vector<8x1x512xf32> to vector<8x8x512xf32>
      %43 = vector.broadcast %41 : vector<1x8x512xf32> to vector<8x8x512xf32>
      %44 = arith.addf %42, %43 : vector<8x8x512xf32>
      %cst_21 = arith.constant 0.000000e+00 : f32
      %45 = vector.broadcast %cst_21 : f32 to vector<8x8x512xf32>
      %46 = arith.maximumf %44, %45 : vector<8x8x512xf32>
      %47 = vector.shape_cast %4 : vector<1x512xf32> to vector<1x1x512xf32>
      %48 = vector.broadcast %47 : vector<1x1x512xf32> to vector<8x8x512xf32>
      %49 = arith.mulf %46, %48 : vector<8x8x512xf32>
      %cst_22 = arith.constant dense<0.000000e+00> : vector<8x8xf32>
      %50 = vector.multi_reduction <add>, %49, %cst_22 [2] : vector<8x8x512xf32> to vector<8x8xf32>
      %c0_23 = arith.constant 0 : index
      %c24 = arith.constant 24 : index
      %c0_24 = arith.constant 0 : index
      %51 = vector.load %arg4[%c0_23, %c24, %c0_24] : memref<1x128x512xf32, #tpu.memory_space<vmem>>, vector<1x8x512xf32>
      %52 = vector.shape_cast %51 : vector<1x8x512xf32> to vector<8x512xf32>
      %53 = vector.shape_cast %52 : vector<8x512xf32> to vector<1x8x512xf32>
      %54 = vector.broadcast %14 : vector<8x1x512xf32> to vector<8x8x512xf32>
      %55 = vector.broadcast %53 : vector<1x8x512xf32> to vector<8x8x512xf32>
      %56 = arith.addf %54, %55 : vector<8x8x512xf32>
      %cst_25 = arith.constant 0.000000e+00 : f32
      %57 = vector.broadcast %cst_25 : f32 to vector<8x8x512xf32>
      %58 = arith.maximumf %56, %57 : vector<8x8x512xf32>
      %59 = vector.shape_cast %4 : vector<1x512xf32> to vector<1x1x512xf32>
      %60 = vector.broadcast %59 : vector<1x1x512xf32> to vector<8x8x512xf32>
      %61 = arith.mulf %58, %60 : vector<8x8x512xf32>
      %cst_26 = arith.constant dense<0.000000e+00> : vector<8x8xf32>
      %62 = vector.multi_reduction <add>, %61, %cst_26 [2] : vector<8x8x512xf32> to vector<8x8xf32>
      %c0_27 = arith.constant 0 : index
      %c32 = arith.constant 32 : index
      %c0_28 = arith.constant 0 : index
      %63 = vector.load %arg4[%c0_27, %c32, %c0_28] : memref<1x128x512xf32, #tpu.memory_space<vmem>>, vector<1x8x512xf32>
      %64 = vector.shape_cast %63 : vector<1x8x512xf32> to vector<8x512xf32>
      %65 = vector.shape_cast %64 : vector<8x512xf32> to vector<1x8x512xf32>
      %66 = vector.broadcast %14 : vector<8x1x512xf32> to vector<8x8x512xf32>
      %67 = vector.broadcast %65 : vector<1x8x512xf32> to vector<8x8x512xf32>
      %68 = arith.addf %66, %67 : vector<8x8x512xf32>
      %cst_29 = arith.constant 0.000000e+00 : f32
      %69 = vector.broadcast %cst_29 : f32 to vector<8x8x512xf32>
      %70 = arith.maximumf %68, %69 : vector<8x8x512xf32>
      %71 = vector.shape_cast %4 : vector<1x512xf32> to vector<1x1x512xf32>
      %72 = vector.broadcast %71 : vector<1x1x512xf32> to vector<8x8x512xf32>
      %73 = arith.mulf %70, %72 : vector<8x8x512xf32>
      %cst_30 = arith.constant dense<0.000000e+00> : vector<8x8xf32>
      %74 = vector.multi_reduction <add>, %73, %cst_30 [2] : vector<8x8x512xf32> to vector<8x8xf32>
      %c0_31 = arith.constant 0 : index
      %c40 = arith.constant 40 : index
      %c0_32 = arith.constant 0 : index
      %75 = vector.load %arg4[%c0_31, %c40, %c0_32] : memref<1x128x512xf32, #tpu.memory_space<vmem>>, vector<1x8x512xf32>
      %76 = vector.shape_cast %75 : vector<1x8x512xf32> to vector<8x512xf32>
      %77 = vector.shape_cast %76 : vector<8x512xf32> to vector<1x8x512xf32>
      %78 = vector.broadcast %14 : vector<8x1x512xf32> to vector<8x8x512xf32>
      %79 = vector.broadcast %77 : vector<1x8x512xf32> to vector<8x8x512xf32>
      %80 = arith.addf %78, %79 : vector<8x8x512xf32>
      %cst_33 = arith.constant 0.000000e+00 : f32
      %81 = vector.broadcast %cst_33 : f32 to vector<8x8x512xf32>
      %82 = arith.maximumf %80, %81 : vector<8x8x512xf32>
      %83 = vector.shape_cast %4 : vector<1x512xf32> to vector<1x1x512xf32>
      %84 = vector.broadcast %83 : vector<1x1x512xf32> to vector<8x8x512xf32>
      %85 = arith.mulf %82, %84 : vector<8x8x512xf32>
      %cst_34 = arith.constant dense<0.000000e+00> : vector<8x8xf32>
      %86 = vector.multi_reduction <add>, %85, %cst_34 [2] : vector<8x8x512xf32> to vector<8x8xf32>
      %c0_35 = arith.constant 0 : index
      %c48 = arith.constant 48 : index
      %c0_36 = arith.constant 0 : index
      %87 = vector.load %arg4[%c0_35, %c48, %c0_36] : memref<1x128x512xf32, #tpu.memory_space<vmem>>, vector<1x8x512xf32>
      %88 = vector.shape_cast %87 : vector<1x8x512xf32> to vector<8x512xf32>
      %89 = vector.shape_cast %88 : vector<8x512xf32> to vector<1x8x512xf32>
      %90 = vector.broadcast %14 : vector<8x1x512xf32> to vector<8x8x512xf32>
      %91 = vector.broadcast %89 : vector<1x8x512xf32> to vector<8x8x512xf32>
      %92 = arith.addf %90, %91 : vector<8x8x512xf32>
      %cst_37 = arith.constant 0.000000e+00 : f32
      %93 = vector.broadcast %cst_37 : f32 to vector<8x8x512xf32>
      %94 = arith.maximumf %92, %93 : vector<8x8x512xf32>
      %95 = vector.shape_cast %4 : vector<1x512xf32> to vector<1x1x512xf32>
      %96 = vector.broadcast %95 : vector<1x1x512xf32> to vector<8x8x512xf32>
      %97 = arith.mulf %94, %96 : vector<8x8x512xf32>
      %cst_38 = arith.constant dense<0.000000e+00> : vector<8x8xf32>
      %98 = vector.multi_reduction <add>, %97, %cst_38 [2] : vector<8x8x512xf32> to vector<8x8xf32>
      %c0_39 = arith.constant 0 : index
      %c56 = arith.constant 56 : index
      %c0_40 = arith.constant 0 : index
      %99 = vector.load %arg4[%c0_39, %c56, %c0_40] : memref<1x128x512xf32, #tpu.memory_space<vmem>>, vector<1x8x512xf32>
      %100 = vector.shape_cast %99 : vector<1x8x512xf32> to vector<8x512xf32>
      %101 = vector.shape_cast %100 : vector<8x512xf32> to vector<1x8x512xf32>
      %102 = vector.broadcast %14 : vector<8x1x512xf32> to vector<8x8x512xf32>
      %103 = vector.broadcast %101 : vector<1x8x512xf32> to vector<8x8x512xf32>
      %104 = arith.addf %102, %103 : vector<8x8x512xf32>
      %cst_41 = arith.constant 0.000000e+00 : f32
      %105 = vector.broadcast %cst_41 : f32 to vector<8x8x512xf32>
      %106 = arith.maximumf %104, %105 : vector<8x8x512xf32>
      %107 = vector.shape_cast %4 : vector<1x512xf32> to vector<1x1x512xf32>
      %108 = vector.broadcast %107 : vector<1x1x512xf32> to vector<8x8x512xf32>
      %109 = arith.mulf %106, %108 : vector<8x8x512xf32>
      %cst_42 = arith.constant dense<0.000000e+00> : vector<8x8xf32>
      %110 = vector.multi_reduction <add>, %109, %cst_42 [2] : vector<8x8x512xf32> to vector<8x8xf32>
      %c0_43 = arith.constant 0 : index
      %c64 = arith.constant 64 : index
      %c0_44 = arith.constant 0 : index
      %111 = vector.load %arg4[%c0_43, %c64, %c0_44] : memref<1x128x512xf32, #tpu.memory_space<vmem>>, vector<1x8x512xf32>
      %112 = vector.shape_cast %111 : vector<1x8x512xf32> to vector<8x512xf32>
      %113 = vector.shape_cast %112 : vector<8x512xf32> to vector<1x8x512xf32>
      %114 = vector.broadcast %14 : vector<8x1x512xf32> to vector<8x8x512xf32>
      %115 = vector.broadcast %113 : vector<1x8x512xf32> to vector<8x8x512xf32>
      %116 = arith.addf %114, %115 : vector<8x8x512xf32>
      %cst_45 = arith.constant 0.000000e+00 : f32
      %117 = vector.broadcast %cst_45 : f32 to vector<8x8x512xf32>
      %118 = arith.maximumf %116, %117 : vector<8x8x512xf32>
      %119 = vector.shape_cast %4 : vector<1x512xf32> to vector<1x1x512xf32>
      %120 = vector.broadcast %119 : vector<1x1x512xf32> to vector<8x8x512xf32>
      %121 = arith.mulf %118, %120 : vector<8x8x512xf32>
      %cst_46 = arith.constant dense<0.000000e+00> : vector<8x8xf32>
      %122 = vector.multi_reduction <add>, %121, %cst_46 [2] : vector<8x8x512xf32> to vector<8x8xf32>
      %c0_47 = arith.constant 0 : index
      %c72 = arith.constant 72 : index
      %c0_48 = arith.constant 0 : index
      %123 = vector.load %arg4[%c0_47, %c72, %c0_48] : memref<1x128x512xf32, #tpu.memory_space<vmem>>, vector<1x8x512xf32>
      %124 = vector.shape_cast %123 : vector<1x8x512xf32> to vector<8x512xf32>
      %125 = vector.shape_cast %124 : vector<8x512xf32> to vector<1x8x512xf32>
      %126 = vector.broadcast %14 : vector<8x1x512xf32> to vector<8x8x512xf32>
      %127 = vector.broadcast %125 : vector<1x8x512xf32> to vector<8x8x512xf32>
      %128 = arith.addf %126, %127 : vector<8x8x512xf32>
      %cst_49 = arith.constant 0.000000e+00 : f32
      %129 = vector.broadcast %cst_49 : f32 to vector<8x8x512xf32>
      %130 = arith.maximumf %128, %129 : vector<8x8x512xf32>
      %131 = vector.shape_cast %4 : vector<1x512xf32> to vector<1x1x512xf32>
      %132 = vector.broadcast %131 : vector<1x1x512xf32> to vector<8x8x512xf32>
      %133 = arith.mulf %130, %132 : vector<8x8x512xf32>
      %cst_50 = arith.constant dense<0.000000e+00> : vector<8x8xf32>
      %134 = vector.multi_reduction <add>, %133, %cst_50 [2] : vector<8x8x512xf32> to vector<8x8xf32>
      %c0_51 = arith.constant 0 : index
      %c80 = arith.constant 80 : index
      %c0_52 = arith.constant 0 : index
      %135 = vector.load %arg4[%c0_51, %c80, %c0_52] : memref<1x128x512xf32, #tpu.memory_space<vmem>>, vector<1x8x512xf32>
      %136 = vector.shape_cast %135 : vector<1x8x512xf32> to vector<8x512xf32>
      %137 = vector.shape_cast %136 : vector<8x512xf32> to vector<1x8x512xf32>
      %138 = vector.broadcast %14 : vector<8x1x512xf32> to vector<8x8x512xf32>
      %139 = vector.broadcast %137 : vector<1x8x512xf32> to vector<8x8x512xf32>
      %140 = arith.addf %138, %139 : vector<8x8x512xf32>
      %cst_53 = arith.constant 0.000000e+00 : f32
      %141 = vector.broadcast %cst_53 : f32 to vector<8x8x512xf32>
      %142 = arith.maximumf %140, %141 : vector<8x8x512xf32>
      %143 = vector.shape_cast %4 : vector<1x512xf32> to vector<1x1x512xf32>
      %144 = vector.broadcast %143 : vector<1x1x512xf32> to vector<8x8x512xf32>
      %145 = arith.mulf %142, %144 : vector<8x8x512xf32>
      %cst_54 = arith.constant dense<0.000000e+00> : vector<8x8xf32>
      %146 = vector.multi_reduction <add>, %145, %cst_54 [2] : vector<8x8x512xf32> to vector<8x8xf32>
      %c0_55 = arith.constant 0 : index
      %c88 = arith.constant 88 : index
      %c0_56 = arith.constant 0 : index
      %147 = vector.load %arg4[%c0_55, %c88, %c0_56] : memref<1x128x512xf32, #tpu.memory_space<vmem>>, vector<1x8x512xf32>
      %148 = vector.shape_cast %147 : vector<1x8x512xf32> to vector<8x512xf32>
      %149 = vector.shape_cast %148 : vector<8x512xf32> to vector<1x8x512xf32>
      %150 = vector.broadcast %14 : vector<8x1x512xf32> to vector<8x8x512xf32>
      %151 = vector.broadcast %149 : vector<1x8x512xf32> to vector<8x8x512xf32>
      %152 = arith.addf %150, %151 : vector<8x8x512xf32>
      %cst_57 = arith.constant 0.000000e+00 : f32
      %153 = vector.broadcast %cst_57 : f32 to vector<8x8x512xf32>
      %154 = arith.maximumf %152, %153 : vector<8x8x512xf32>
      %155 = vector.shape_cast %4 : vector<1x512xf32> to vector<1x1x512xf32>
      %156 = vector.broadcast %155 : vector<1x1x512xf32> to vector<8x8x512xf32>
      %157 = arith.mulf %154, %156 : vector<8x8x512xf32>
      %cst_58 = arith.constant dense<0.000000e+00> : vector<8x8xf32>
      %158 = vector.multi_reduction <add>, %157, %cst_58 [2] : vector<8x8x512xf32> to vector<8x8xf32>
      %c0_59 = arith.constant 0 : index
      %c96 = arith.constant 96 : index
      %c0_60 = arith.constant 0 : index
      %159 = vector.load %arg4[%c0_59, %c96, %c0_60] : memref<1x128x512xf32, #tpu.memory_space<vmem>>, vector<1x8x512xf32>
      %160 = vector.shape_cast %159 : vector<1x8x512xf32> to vector<8x512xf32>
      %161 = vector.shape_cast %160 : vector<8x512xf32> to vector<1x8x512xf32>
      %162 = vector.broadcast %14 : vector<8x1x512xf32> to vector<8x8x512xf32>
      %163 = vector.broadcast %161 : vector<1x8x512xf32> to vector<8x8x512xf32>
      %164 = arith.addf %162, %163 : vector<8x8x512xf32>
      %cst_61 = arith.constant 0.000000e+00 : f32
      %165 = vector.broadcast %cst_61 : f32 to vector<8x8x512xf32>
      %166 = arith.maximumf %164, %165 : vector<8x8x512xf32>
      %167 = vector.shape_cast %4 : vector<1x512xf32> to vector<1x1x512xf32>
      %168 = vector.broadcast %167 : vector<1x1x512xf32> to vector<8x8x512xf32>
      %169 = arith.mulf %166, %168 : vector<8x8x512xf32>
      %cst_62 = arith.constant dense<0.000000e+00> : vector<8x8xf32>
      %170 = vector.multi_reduction <add>, %169, %cst_62 [2] : vector<8x8x512xf32> to vector<8x8xf32>
      %c0_63 = arith.constant 0 : index
      %c104 = arith.constant 104 : index
      %c0_64 = arith.constant 0 : index
      %171 = vector.load %arg4[%c0_63, %c104, %c0_64] : memref<1x128x512xf32, #tpu.memory_space<vmem>>, vector<1x8x512xf32>
      %172 = vector.shape_cast %171 : vector<1x8x512xf32> to vector<8x512xf32>
      %173 = vector.shape_cast %172 : vector<8x512xf32> to vector<1x8x512xf32>
      %174 = vector.broadcast %14 : vector<8x1x512xf32> to vector<8x8x512xf32>
      %175 = vector.broadcast %173 : vector<1x8x512xf32> to vector<8x8x512xf32>
      %176 = arith.addf %174, %175 : vector<8x8x512xf32>
      %cst_65 = arith.constant 0.000000e+00 : f32
      %177 = vector.broadcast %cst_65 : f32 to vector<8x8x512xf32>
      %178 = arith.maximumf %176, %177 : vector<8x8x512xf32>
      %179 = vector.shape_cast %4 : vector<1x512xf32> to vector<1x1x512xf32>
      %180 = vector.broadcast %179 : vector<1x1x512xf32> to vector<8x8x512xf32>
      %181 = arith.mulf %178, %180 : vector<8x8x512xf32>
      %cst_66 = arith.constant dense<0.000000e+00> : vector<8x8xf32>
      %182 = vector.multi_reduction <add>, %181, %cst_66 [2] : vector<8x8x512xf32> to vector<8x8xf32>
      %c0_67 = arith.constant 0 : index
      %c112 = arith.constant 112 : index
      %c0_68 = arith.constant 0 : index
      %183 = vector.load %arg4[%c0_67, %c112, %c0_68] : memref<1x128x512xf32, #tpu.memory_space<vmem>>, vector<1x8x512xf32>
      %184 = vector.shape_cast %183 : vector<1x8x512xf32> to vector<8x512xf32>
      %185 = vector.shape_cast %184 : vector<8x512xf32> to vector<1x8x512xf32>
      %186 = vector.broadcast %14 : vector<8x1x512xf32> to vector<8x8x512xf32>
      %187 = vector.broadcast %185 : vector<1x8x512xf32> to vector<8x8x512xf32>
      %188 = arith.addf %186, %187 : vector<8x8x512xf32>
      %cst_69 = arith.constant 0.000000e+00 : f32
      %189 = vector.broadcast %cst_69 : f32 to vector<8x8x512xf32>
      %190 = arith.maximumf %188, %189 : vector<8x8x512xf32>
      %191 = vector.shape_cast %4 : vector<1x512xf32> to vector<1x1x512xf32>
      %192 = vector.broadcast %191 : vector<1x1x512xf32> to vector<8x8x512xf32>
      %193 = arith.mulf %190, %192 : vector<8x8x512xf32>
      %cst_70 = arith.constant dense<0.000000e+00> : vector<8x8xf32>
      %194 = vector.multi_reduction <add>, %193, %cst_70 [2] : vector<8x8x512xf32> to vector<8x8xf32>
      %c0_71 = arith.constant 0 : index
      %c120 = arith.constant 120 : index
      %c0_72 = arith.constant 0 : index
      %195 = vector.load %arg4[%c0_71, %c120, %c0_72] : memref<1x128x512xf32, #tpu.memory_space<vmem>>, vector<1x8x512xf32>
      %196 = vector.shape_cast %195 : vector<1x8x512xf32> to vector<8x512xf32>
      %197 = vector.shape_cast %196 : vector<8x512xf32> to vector<1x8x512xf32>
      %198 = vector.broadcast %14 : vector<8x1x512xf32> to vector<8x8x512xf32>
      %199 = vector.broadcast %197 : vector<1x8x512xf32> to vector<8x8x512xf32>
      %200 = arith.addf %198, %199 : vector<8x8x512xf32>
      %cst_73 = arith.constant 0.000000e+00 : f32
      %201 = vector.broadcast %cst_73 : f32 to vector<8x8x512xf32>
      %202 = arith.maximumf %200, %201 : vector<8x8x512xf32>
      %203 = vector.shape_cast %4 : vector<1x512xf32> to vector<1x1x512xf32>
      %204 = vector.broadcast %203 : vector<1x1x512xf32> to vector<8x8x512xf32>
      %205 = arith.mulf %202, %204 : vector<8x8x512xf32>
      %cst_74 = arith.constant dense<0.000000e+00> : vector<8x8xf32>
      %206 = vector.multi_reduction <add>, %205, %cst_74 [2] : vector<8x8x512xf32> to vector<8x8xf32>
      %207 = tpu.concatenate %26, %38, %50, %62, %74, %86, %98, %110, %122, %134, %146, %158, %170, %182, %194, %206 in 1 : vector<8x8xf32>, vector<8x8xf32>, vector<8x8xf32>, vector<8x8xf32>, vector<8x8xf32>, vector<8x8xf32>, vector<8x8xf32>, vector<8x8xf32>, vector<8x8xf32>, vector<8x8xf32>, vector<8x8xf32>, vector<8x8xf32>, vector<8x8xf32>, vector<8x8xf32>, vector<8x8xf32>, vector<8x8xf32> -> vector<8x128xf32>
      %208 = vector.broadcast %6 : vector<1x1xf32> to vector<8x128xf32>
      %209 = arith.addf %207, %208 : vector<8x128xf32>
      %210 = arith.negf %209 : vector<8x128xf32>
      %211 = math.exp %210 : vector<8x128xf32>
      %cst_75 = arith.constant 1.000000e+00 : f32
      %212 = vector.broadcast %cst_75 : f32 to vector<8x128xf32>
      %213 = arith.addf %212, %211 : vector<8x128xf32>
      %214 = arith.divf %212, %213 : vector<8x128xf32>
      %c0_76 = arith.constant 0 : index
      %215 = arith.index_cast %11 : i32 to index
      %c0_77 = arith.constant 0 : index
      %216 = vector.load %arg8[%c0_76, %215, %c0_77] : memref<1x128x128xf32, #tpu.memory_space<vmem>>, vector<1x8x128xf32>
      %217 = vector.shape_cast %216 : vector<1x8x128xf32> to vector<8x128xf32>
      %218 = vector.shape_cast %214 : vector<8x128xf32> to vector<1x8x128xf32>
      tpu.vector_store %arg8[%c0_76, %215, %c0_77], %218 {strides = array<i32>} : memref<1x128x128xf32, #tpu.memory_space<vmem>>, vector<1x8x128xf32>,
    }
    %c16_i32_7 = arith.constant 16 : i32
    return
  }
  func.func @transform_0(%arg0: i32, %arg1: i32, %arg2: i32) -> (i32, i32, i32) {
    %c0_i32 = arith.constant 0 : i32
    %c0_i32_0 = arith.constant 0 : i32
    return %arg0, %arg1, %c0_i32 : i32, i32, i32
  }
  func.func @transform_1(%arg0: i32, %arg1: i32, %arg2: i32) -> (i32, i32, i32) {
    %c0_i32 = arith.constant 0 : i32
    %c0_i32_0 = arith.constant 0 : i32
    return %arg0, %arg2, %c0_i32 : i32, i32, i32
  }
  func.func @transform_2(%arg0: i32, %arg1: i32, %arg2: i32) -> (i32, i32, i32) {
    %c0_i32 = arith.constant 0 : i32
    %c0_i32_0 = arith.constant 0 : i32
    %c0_i32_1 = arith.constant 0 : i32
    return %arg0, %c0_i32, %c0_i32_0 : i32, i32, i32
  }
  func.func @transform_3(%arg0: i32, %arg1: i32, %arg2: i32) -> (i32, i32, i32) {
    %c0_i32 = arith.constant 0 : i32
    %c0_i32_0 = arith.constant 0 : i32
    %c0_i32_1 = arith.constant 0 : i32
    return %arg0, %c0_i32, %c0_i32_0 : i32, i32, i32
  }
  func.func @transform_4(%arg0: i32, %arg1: i32, %arg2: i32) -> (i32, i32, i32) {
    %c0_i32 = arith.constant 0 : i32
    %c0_i32_0 = arith.constant 0 : i32
    %c0_i32_1 = arith.constant 0 : i32
    return %arg0, %c0_i32, %c0_i32_0 : i32, i32, i32
  }
  func.func @transform_5(%arg0: i32, %arg1: i32, %arg2: i32) -> (i32, i32, i32) {
    %c0_i32 = arith.constant 0 : i32
    return %arg0, %arg1, %arg2 : i32, i32, i32
  }
}

module attributes {stable_mosaic.version = 11 : i64} {
  func.func @_mlp_kernel(%arg0: i32, %arg1: i32, %arg2: memref<1x128x128xf32, #tpu.memory_space<vmem>>, %arg3: memref<1x128x128xbf16, #tpu.memory_space<vmem>>, %arg4: memref<1x1x128xf32, #tpu.memory_space<vmem>>, %arg5: memref<1x1x128xf32, #tpu.memory_space<vmem>>, %arg6: memref<1x1x128xf32, #tpu.memory_space<vmem>>, %arg7: memref<1x128x128xbf16, #tpu.memory_space<vmem>>, %arg8: memref<1x1x128xf32, #tpu.memory_space<vmem>>, %arg9: memref<1x128x128xf32, #tpu.memory_space<vmem>>) attributes {dimension_semantics = [#tpu.dimension_semantics<parallel>, #tpu.dimension_semantics<parallel>], iteration_bounds = array<i64: 1, 2>, scalar_prefetch = 0 : i64, scratch_operands = 0 : i64, tpu.core_type = #tpu.core_type<tc>, window_params = [{transform_indices = @transform_0, window_bounds = array<i64: 1, 128, 128>}, {transform_indices = @transform_1, window_bounds = array<i64: 1, 128, 128>}, {transform_indices = @transform_2, window_bounds = array<i64: 1, 1, 128>}, {transform_indices = @transform_3, window_bounds = array<i64: 1, 1, 128>}, {transform_indices = @transform_4, window_bounds = array<i64: 1, 1, 128>}, {transform_indices = @transform_5, window_bounds = array<i64: 1, 128, 128>}, {transform_indices = @transform_6, window_bounds = array<i64: 1, 1, 128>}, {transform_indices = @transform_7, window_bounds = array<i64: 1, 128, 128>}]} {
    %c0 = arith.constant 0 : index
    %c0_0 = arith.constant 0 : index
    %c0_1 = arith.constant 0 : index
    %0 = vector.load %arg2[%c0, %c0_0, %c0_1] : memref<1x128x128xf32, #tpu.memory_space<vmem>>, vector<1x128x128xf32>
    %1 = vector.shape_cast %0 : vector<1x128x128xf32> to vector<128x128xf32>
    %2 = arith.truncf %1 : vector<128x128xf32> to vector<128x128xbf16>
    %c0_2 = arith.constant 0 : index
    %c0_3 = arith.constant 0 : index
    %c0_4 = arith.constant 0 : index
    %3 = vector.load %arg3[%c0_2, %c0_3, %c0_4] : memref<1x128x128xbf16, #tpu.memory_space<vmem>>, vector<1x128x128xbf16>
    %4 = vector.shape_cast %3 : vector<1x128x128xbf16> to vector<128x128xbf16>
    %cst = arith.constant dense<0.000000e+00> : vector<128x128xf32>
    %5 = tpu.matmul %2, %4, %cst {dimension_numbers = #tpu.dot_dimension_numbers<[1], [0], [0], [1], [0, 0, 1, 1], [], []>} : vector<128x128xbf16>, vector<128x128xbf16>, vector<128x128xf32> -> vector<128x128xf32>
    %c0_5 = arith.constant 0 : index
    %c0_6 = arith.constant 0 : index
    %c0_7 = arith.constant 0 : index
    %6 = vector.load %arg4[%c0_5, %c0_6, %c0_7] : memref<1x1x128xf32, #tpu.memory_space<vmem>>, vector<1x1x128xf32>
    %7 = vector.shape_cast %6 : vector<1x1x128xf32> to vector<1x128xf32>
    %8 = vector.broadcast %7 : vector<1x128xf32> to vector<128x128xf32>
    %9 = arith.addf %5, %8 : vector<128x128xf32>
    %cst_8 = arith.constant dense<0.000000e+00> : vector<128xf32>
    %10 = vector.multi_reduction <add>, %9, %cst_8 [1] : vector<128x128xf32> to vector<128xf32>
    %11 = vector.shape_cast %10 : vector<128xf32> to vector<128x1xf32>
    %cst_9 = arith.constant 6.250000e-02 : f32
    %12 = vector.broadcast %cst_9 : f32 to vector<128x1xf32>
    %13 = arith.mulf %11, %12 : vector<128x1xf32>
    %14 = arith.mulf %9, %9 : vector<128x128xf32>
    %cst_10 = arith.constant dense<0.000000e+00> : vector<128xf32>
    %15 = vector.multi_reduction <add>, %14, %cst_10 [1] : vector<128x128xf32> to vector<128xf32>
    %16 = vector.shape_cast %15 : vector<128xf32> to vector<128x1xf32>
    %cst_11 = arith.constant 6.250000e-02 : f32
    %17 = vector.broadcast %cst_11 : f32 to vector<128x1xf32>
    %18 = arith.mulf %16, %17 : vector<128x1xf32>
    %19 = arith.mulf %13, %13 : vector<128x1xf32>
    %20 = arith.subf %18, %19 : vector<128x1xf32>
    %cst_12 = arith.constant 0.000000e+00 : f32
    %21 = vector.broadcast %cst_12 : f32 to vector<128x1xf32>
    %22 = arith.maximumf %20, %21 : vector<128x1xf32>
    %23 = vector.broadcast %13 : vector<128x1xf32> to vector<128x128xf32>
    %24 = arith.subf %9, %23 : vector<128x128xf32>
    %cst_13 = arith.constant 9.99999974E-6 : f32
    %25 = vector.broadcast %cst_13 : f32 to vector<128x1xf32>
    %26 = arith.addf %22, %25 : vector<128x1xf32>
    %27 = math.rsqrt %26 : vector<128x1xf32>
    %28 = vector.broadcast %27 : vector<128x1xf32> to vector<128x128xf32>
    %29 = arith.mulf %24, %28 : vector<128x128xf32>
    %c0_14 = arith.constant 0 : index
    %c0_15 = arith.constant 0 : index
    %c0_16 = arith.constant 0 : index
    %30 = vector.load %arg5[%c0_14, %c0_15, %c0_16] : memref<1x1x128xf32, #tpu.memory_space<vmem>>, vector<1x1x128xf32>
    %31 = vector.shape_cast %30 : vector<1x1x128xf32> to vector<1x128xf32>
    %32 = vector.broadcast %31 : vector<1x128xf32> to vector<128x128xf32>
    %33 = arith.mulf %29, %32 : vector<128x128xf32>
    %c0_17 = arith.constant 0 : index
    %c0_18 = arith.constant 0 : index
    %c0_19 = arith.constant 0 : index
    %34 = vector.load %arg6[%c0_17, %c0_18, %c0_19] : memref<1x1x128xf32, #tpu.memory_space<vmem>>, vector<1x1x128xf32>
    %35 = vector.shape_cast %34 : vector<1x1x128xf32> to vector<1x128xf32>
    %36 = vector.broadcast %35 : vector<1x128xf32> to vector<128x128xf32>
    %37 = arith.addf %33, %36 : vector<128x128xf32>
    %cst_20 = arith.constant 0.000000e+00 : f32
    %38 = vector.broadcast %cst_20 : f32 to vector<128x128xf32>
    %39 = arith.maximumf %37, %38 : vector<128x128xf32>
    %40 = arith.truncf %39 : vector<128x128xf32> to vector<128x128xbf16>
    %c0_21 = arith.constant 0 : index
    %c0_22 = arith.constant 0 : index
    %c0_23 = arith.constant 0 : index
    %41 = vector.load %arg7[%c0_21, %c0_22, %c0_23] : memref<1x128x128xbf16, #tpu.memory_space<vmem>>, vector<1x128x128xbf16>
    %42 = vector.shape_cast %41 : vector<1x128x128xbf16> to vector<128x128xbf16>
    %cst_24 = arith.constant dense<0.000000e+00> : vector<128x128xf32>
    %43 = tpu.matmul %40, %42, %cst_24 {dimension_numbers = #tpu.dot_dimension_numbers<[1], [0], [0], [1], [0, 0, 1, 1], [], []>} : vector<128x128xbf16>, vector<128x128xbf16>, vector<128x128xf32> -> vector<128x128xf32>
    %c0_25 = arith.constant 0 : index
    %c0_26 = arith.constant 0 : index
    %c0_27 = arith.constant 0 : index
    %44 = vector.load %arg8[%c0_25, %c0_26, %c0_27] : memref<1x1x128xf32, #tpu.memory_space<vmem>>, vector<1x1x128xf32>
    %45 = vector.shape_cast %44 : vector<1x1x128xf32> to vector<1x128xf32>
    %46 = vector.broadcast %45 : vector<1x128xf32> to vector<128x128xf32>
    %47 = arith.addf %43, %46 : vector<128x128xf32>
    %cst_28 = arith.constant 0.000000e+00 : f32
    %48 = vector.broadcast %cst_28 : f32 to vector<128x128xf32>
    %49 = arith.maximumf %47, %48 : vector<128x128xf32>
    %c0_29 = arith.constant 0 : index
    %c0_30 = arith.constant 0 : index
    %c0_31 = arith.constant 0 : index
    %50 = vector.load %arg9[%c0_29, %c0_30, %c0_31] : memref<1x128x128xf32, #tpu.memory_space<vmem>>, vector<1x128x128xf32>
    %51 = vector.shape_cast %50 : vector<1x128x128xf32> to vector<128x128xf32>
    %52 = vector.shape_cast %49 : vector<128x128xf32> to vector<1x128x128xf32>
    tpu.vector_store %arg9[%c0_29, %c0_30, %c0_31], %52 {strides = array<i32>} : memref<1x128x128xf32, #tpu.memory_space<vmem>>, vector<1x128x128xf32>,
    return
  }
  func.func @transform_0(%arg0: i32, %arg1: i32) -> (i32, i32, i32) {
    %c0_i32 = arith.constant 0 : i32
    %c0_i32_0 = arith.constant 0 : i32
    return %arg1, %arg0, %c0_i32 : i32, i32, i32
  }
  func.func @transform_1(%arg0: i32, %arg1: i32) -> (i32, i32, i32) {
    %c0_i32 = arith.constant 0 : i32
    %c0_i32_0 = arith.constant 0 : i32
    %c0_i32_1 = arith.constant 0 : i32
    return %arg1, %c0_i32, %c0_i32_0 : i32, i32, i32
  }
  func.func @transform_2(%arg0: i32, %arg1: i32) -> (i32, i32, i32) {
    %c0_i32 = arith.constant 0 : i32
    %c0_i32_0 = arith.constant 0 : i32
    %c0_i32_1 = arith.constant 0 : i32
    return %arg1, %c0_i32, %c0_i32_0 : i32, i32, i32
  }
  func.func @transform_3(%arg0: i32, %arg1: i32) -> (i32, i32, i32) {
    %c0_i32 = arith.constant 0 : i32
    %c0_i32_0 = arith.constant 0 : i32
    %c0_i32_1 = arith.constant 0 : i32
    return %arg1, %c0_i32, %c0_i32_0 : i32, i32, i32
  }
  func.func @transform_4(%arg0: i32, %arg1: i32) -> (i32, i32, i32) {
    %c0_i32 = arith.constant 0 : i32
    %c0_i32_0 = arith.constant 0 : i32
    %c0_i32_1 = arith.constant 0 : i32
    return %arg1, %c0_i32, %c0_i32_0 : i32, i32, i32
  }
  func.func @transform_5(%arg0: i32, %arg1: i32) -> (i32, i32, i32) {
    %c0_i32 = arith.constant 0 : i32
    %c0_i32_0 = arith.constant 0 : i32
    %c0_i32_1 = arith.constant 0 : i32
    return %arg1, %c0_i32, %c0_i32_0 : i32, i32, i32
  }
  func.func @transform_6(%arg0: i32, %arg1: i32) -> (i32, i32, i32) {
    %c0_i32 = arith.constant 0 : i32
    %c0_i32_0 = arith.constant 0 : i32
    %c0_i32_1 = arith.constant 0 : i32
    return %arg1, %c0_i32, %c0_i32_0 : i32, i32, i32
  }
  func.func @transform_7(%arg0: i32, %arg1: i32) -> (i32, i32, i32) {
    %c0_i32 = arith.constant 0 : i32
    %c0_i32_0 = arith.constant 0 : i32
    return %arg1, %arg0, %c0_i32 : i32, i32, i32
  }
}

</mosaic_0001>

<llo_original>
// kernel: _lambda_.6
$region0: #{_lambda_.6}
  #allocation0 [shape = 'u32[]', space=smem, size = 0x4, offset = 0x4, fixed_abs, tag = 'smem constant byte address 0x4 - core index']
  #allocation1 [shape = 'u32[144,128]{1,0:T(1,128)}', space=vmem, size = 0x12000, scoped, tag = 'internal scratch']
  %s0 = inlined_call_operand.vmem [shape: f32[1,128,128], index: 0, kind: input, shape index: {}]
  %s1 = inlined_call_operand.vmem [shape: bf16[3,128,128], index: 1, kind: input, shape index: {}]
  %s2 = inlined_call_operand.vmem [shape: f32[3,1,128], index: 2, kind: input, shape index: {}]
  %s3 = inlined_call_operand.vmem [shape: f32[3,1,128], index: 3, kind: input, shape index: {}]
  %s4 = inlined_call_operand.vmem [shape: f32[3,1,128], index: 4, kind: input, shape index: {}]
  %s5 = inlined_call_operand.vmem [shape: bf16[3,128,128], index: 5, kind: input, shape index: {}]
  %s6 = inlined_call_operand.vmem [shape: f32[3,1,128], index: 6, kind: input, shape index: {}]
  %s7 = inlined_call_operand.vmem [shape: f32[3,128,128], index: 7, kind: output, shape index: {}]
  %s8 = sld [smem:[#allocation0]]
  $region61: #{_lambda_.6} parent=0
    _
  %s10 = ssub.s32 1, %s8
  %s11 = scalar_select 0, %s10, %s8
  loop: start=0, step=1, limit=5
  $region2: #{_lambda_.6} parent=0 // loop_pre_header
    _
  $region3: #{_lambda_.6} parent=0 // loop_header
    %s13 = sphi 0, %s17
    %p14 = scmp.ge.s32.totalorder %s13, 5
    %s20 = sphi 0, %s32
    %s21 = sphi 0, %s28
    %s22 = sphi 0, %s20
    %s23 = sphi 0, %s21
    %s24 = sphi 0, %s22
    %s25 = sphi 0, %s23
    %s35 = sphi 0, %s37
    %s38 = sphi 0, %s35
    %s39 = sphi 0, %s38
    %s55 = sphi 0, %s39
    %s61 = sphi 0, %s63
    %s64 = sphi 0, %s61
    %s65 = sphi 0, %s64
    %s81 = sphi 0, %s65
    %s87 = sphi 0, %s89
    %s90 = sphi 0, %s87
    %s91 = sphi 0, %s90
    %s107 = sphi 0, %s91
    %s113 = sphi 0, %s115
    %s116 = sphi 0, %s113
    %s117 = sphi 0, %s116
    %s133 = sphi 0, %s117
    %s139 = sphi 0, %s141
    %s142 = sphi 0, %s139
    %s143 = sphi 0, %s142
    %s159 = sphi 0, %s143
    %s165 = sphi 0, %s167
    %s168 = sphi 0, %s165
    %s169 = sphi 0, %s168
    %s185 = sphi 0, %s169
    %s191 = sphi 0, %s193
    %s194 = sphi 0, %s191
    %s195 = sphi 0, %s194
    %s211 = sphi 0, %s195
    %s219 = sphi 0, %s221
    %s222 = sphi 0, %s219
    %s223 = sphi 0, %s222
    %s239 = sphi 0, %s223
  $region4: #{_lambda_.6} parent=0 // loop_header_branch
    %16 = sbr.rel (%p14) target = $region8
  $region5: #{_lambda_.6} parent=0 // loop_body
    %s18 = ssub.s32 %s13, 1
    %s19 = ssub.s32 %s13, 2
    %s26 = sadd.s32 1, %s21
    %p27 = scmp.ge.s32.totalorder %s26, 3
    %s28 = scalar_select %p27, 0, %s26
    %s29 = sadd.s32 1, %s20
    %s30 = scalar_select %p27, %s29, %s20
    %p31 = scmp.ge.s32.totalorder %s30, 1
    %s32 = scalar_select %p31, 0, %s30
    %s33 = ssub.s32 %s20, %s32
    %p34 = scmp.eq.s32.totalorder %s33, 0
    %s36 = sadd.s32 %s35, 1
    %s37 = scalar_select %p34, %s35, %s36
    %p40 = pneg %p34
    %p41 = scmp.eq.s32.totalorder %s13, 2
    %p42 = por %p40, %p41
    %p43 = scmp.ne.s32.totalorder %s35, %s38
    %p44 = scmp.eq.s32.totalorder %s13, 0
    %p45 = por %p43, %p44
    %p46 = scmp.ne.s32.totalorder %s35, %s38
    %p47 = scmp.eq.s32.totalorder %s18, 2
    %p48 = por %p46, %p47
    %p49 = scmp.ne.s32.totalorder %s38, %s39
    %p50 = scmp.eq.s32.totalorder %s18, 0
    %p51 = por %p49, %p50
    %p52 = scmp.ne.s32.totalorder %s38, %s39
    %p53 = scmp.eq.s32.totalorder %s19, 2
    %p54 = por %p52, %p53
    %p56 = scmp.ne.s32.totalorder %s39, %s55
    %p57 = scmp.eq.s32.totalorder %s19, 0
    %p58 = por %p56, %p57
    %s59 = ssub.s32 %s21, %s28
    %p60 = scmp.eq.s32.totalorder %s59, 0
    %s62 = sadd.s32 %s61, 1
    %s63 = scalar_select %p60, %s61, %s62
    %p66 = pneg %p60
    %p67 = scmp.eq.s32.totalorder %s13, 2
    %p68 = por %p66, %p67
    %p69 = scmp.ne.s32.totalorder %s61, %s64
    %p70 = scmp.eq.s32.totalorder %s13, 0
    %p71 = por %p69, %p70
    %p72 = scmp.ne.s32.totalorder %s61, %s64
    %p73 = scmp.eq.s32.totalorder %s18, 2
    %p74 = por %p72, %p73
    %p75 = scmp.ne.s32.totalorder %s64, %s65
    %p76 = scmp.eq.s32.totalorder %s18, 0
    %p77 = por %p75, %p76
    %p78 = scmp.ne.s32.totalorder %s64, %s65
    %p79 = scmp.eq.s32.totalorder %s19, 2
    %p80 = por %p78, %p79
    %p82 = scmp.ne.s32.totalorder %s65, %s81
    %p83 = scmp.eq.s32.totalorder %s19, 0
    %p84 = por %p82, %p83
    %s85 = ssub.s32 %s21, %s28
    %p86 = scmp.eq.s32.totalorder %s85, 0
    %s88 = sadd.s32 %s87, 1
    %s89 = scalar_select %p86, %s87, %s88
    %p92 = pneg %p86
    %p93 = scmp.eq.s32.totalorder %s13, 2
    %p94 = por %p92, %p93
    %p95 = scmp.ne.s32.totalorder %s87, %s90
    %p96 = scmp.eq.s32.totalorder %s13, 0
    %p97 = por %p95, %p96
    %p98 = scmp.ne.s32.totalorder %s87, %s90
    %p99 = scmp.eq.s32.totalorder %s18, 2
    %p100 = por %p98, %p99
    %p101 = scmp.ne.s32.totalorder %s90, %s91
    %p102 = scmp.eq.s32.totalorder %s18, 0
    %p103 = por %p101, %p102
    %p104 = scmp.ne.s32.totalorder %s90, %s91
    %p105 = scmp.eq.s32.totalorder %s19, 2
    %p106 = por %p104, %p105
    %p108 = scmp.ne.s32.totalorder %s91, %s107
    %p109 = scmp.eq.s32.totalorder %s19, 0
    %p110 = por %p108, %p109
    %s111 = ssub.s32 %s21, %s28
    %p112 = scmp.eq.s32.totalorder %s111, 0
    %s114 = sadd.s32 %s113, 1
    %s115 = scalar_select %p112, %s113, %s114
    %p118 = pneg %p112
    %p119 = scmp.eq.s32.totalorder %s13, 2
    %p120 = por %p118, %p119
    %p121 = scmp.ne.s32.totalorder %s113, %s116
    %p122 = scmp.eq.s32.totalorder %s13, 0
    %p123 = por %p121, %p122
    %p124 = scmp.ne.s32.totalorder %s113, %s116
    %p125 = scmp.eq.s32.totalorder %s18, 2
    %p126 = por %p124, %p125
    %p127 = scmp.ne.s32.totalorder %s116, %s117
    %p128 = scmp.eq.s32.totalorder %s18, 0
    %p129 = por %p127, %p128
    %p130 = scmp.ne.s32.totalorder %s116, %s117
    %p131 = scmp.eq.s32.totalorder %s19, 2
    %p132 = por %p130, %p131
    %p134 = scmp.ne.s32.totalorder %s117, %s133
    %p135 = scmp.eq.s32.totalorder %s19, 0
    %p136 = por %p134, %p135
    %s137 = ssub.s32 %s21, %s28
    %p138 = scmp.eq.s32.totalorder %s137, 0
    %s140 = sadd.s32 %s139, 1
    %s141 = scalar_select %p138, %s139, %s140
    %p144 = pneg %p138
    %p145 = scmp.eq.s32.totalorder %s13, 2
    %p146 = por %p144, %p145
    %p147 = scmp.ne.s32.totalorder %s139, %s142
    %p148 = scmp.eq.s32.totalorder %s13, 0
    %p149 = por %p147, %p148
    %p150 = scmp.ne.s32.totalorder %s139, %s142
    %p151 = scmp.eq.s32.totalorder %s18, 2
    %p152 = por %p150, %p151
    %p153 = scmp.ne.s32.totalorder %s142, %s143
    %p154 = scmp.eq.s32.totalorder %s18, 0
    %p155 = por %p153, %p154
    %p156 = scmp.ne.s32.totalorder %s142, %s143
    %p157 = scmp.eq.s32.totalorder %s19, 2
    %p158 = por %p156, %p157
    %p160 = scmp.ne.s32.totalorder %s143, %s159
    %p161 = scmp.eq.s32.totalorder %s19, 0
    %p162 = por %p160, %p161
    %s163 = ssub.s32 %s21, %s28
    %p164 = scmp.eq.s32.totalorder %s163, 0
    %s166 = sadd.s32 %s165, 1
    %s167 = scalar_select %p164, %s165, %s166
    %p170 = pneg %p164
    %p171 = scmp.eq.s32.totalorder %s13, 2
    %p172 = por %p170, %p171
    %p173 = scmp.ne.s32.totalorder %s165, %s168
    %p174 = scmp.eq.s32.totalorder %s13, 0
    %p175 = por %p173, %p174
    %p176 = scmp.ne.s32.totalorder %s165, %s168
    %p177 = scmp.eq.s32.totalorder %s18, 2
    %p178 = por %p176, %p177
    %p179 = scmp.ne.s32.totalorder %s168, %s169
    %p180 = scmp.eq.s32.totalorder %s18, 0
    %p181 = por %p179, %p180
    %p182 = scmp.ne.s32.totalorder %s168, %s169
    %p183 = scmp.eq.s32.totalorder %s19, 2
    %p184 = por %p182, %p183
    %p186 = scmp.ne.s32.totalorder %s169, %s185
    %p187 = scmp.eq.s32.totalorder %s19, 0
    %p188 = por %p186, %p187
    %s189 = ssub.s32 %s21, %s28
    %p190 = scmp.eq.s32.totalorder %s189, 0
    %s192 = sadd.s32 %s191, 1
    %s193 = scalar_select %p190, %s191, %s192
    %p196 = pneg %p190
    %p197 = scmp.eq.s32.totalorder %s13, 2
    %p198 = por %p196, %p197
    %p199 = scmp.ne.s32.totalorder %s191, %s194
    %p200 = scmp.eq.s32.totalorder %s13, 0
    %p201 = por %p199, %p200
    %p202 = scmp.ne.s32.totalorder %s191, %s194
    %p203 = scmp.eq.s32.totalorder %s18, 2
    %p204 = por %p202, %p203
    %p205 = scmp.ne.s32.totalorder %s194, %s195
    %p206 = scmp.eq.s32.totalorder %s18, 0
    %p207 = por %p205, %p206
    %p208 = scmp.ne.s32.totalorder %s194, %s195
    %p209 = scmp.eq.s32.totalorder %s19, 2
    %p210 = por %p208, %p209
    %p212 = scmp.ne.s32.totalorder %s195, %s211
    %p213 = scmp.eq.s32.totalorder %s19, 0
    %p214 = por %p212, %p213
    %s215 = ssub.s32 %s21, %s28
    %s216 = ssub.s32 %s20, %s32
    %s217 = sor.u32 %s215, %s216
    %p218 = scmp.eq.s32.totalorder %s217, 0
    %s220 = sadd.s32 %s219, 1
    %s221 = scalar_select %p218, %s219, %s220
    %p224 = pneg %p218
    %p225 = scmp.eq.s32.totalorder %s13, 2
    %p226 = por %p224, %p225
    %p227 = scmp.ne.s32.totalorder %s219, %s222
    %p228 = scmp.eq.s32.totalorder %s13, 0
    %p229 = por %p227, %p228
    %p230 = scmp.ne.s32.totalorder %s219, %s222
    %p231 = scmp.eq.s32.totalorder %s18, 2
    %p232 = por %p230, %p231
    %p233 = scmp.ne.s32.totalorder %s222, %s223
    %p234 = scmp.eq.s32.totalorder %s18, 0
    %p235 = por %p233, %p234
    %p236 = scmp.ne.s32.totalorder %s222, %s223
    %p237 = scmp.eq.s32.totalorder %s19, 2
    %p238 = por %p236, %p237
    %p240 = scmp.ne.s32.totalorder %s223, %s239
    %p241 = scmp.eq.s32.totalorder %s19, 0
    %p242 = por %p240, %p241
    %p243 = scmp.le.s32.totalorder 1, %s13
    %p244 = scmp.lt.s32.totalorder %s13, 4
    %p245 = pnand %p243, %p244
    %p246 = pneg %p245
    // Predicated region
    $region9: #{_lambda_.6} parent=5 // pred_check
      _
    $region10: #{_lambda_.6} parent=5 // pred_check_branch
      %248 = sbr.rel (%p245) target = $region12
    $region11: #{_lambda_.6} parent=5 // pred_region
      %s249 = ssub.s32 %s13, 1
      // Predicated region
      $region13: #{_lambda_.6} parent=11 // pred_check
        %p250 = pneg %p51
      $region14: #{_lambda_.6} parent=11 // pred_check_branch
        %252 = sbr.rel (%p250) target = $region16
      $region15: #{_lambda_.6} parent=11 // pred_region
        %s253 = smul.u32 16, %s22
        %p254 = scmp.lt.s32.totalorder %s253, 15
        %s255 = scalar_select %p254, %s253, 15
        %s256 = smul.addr %s255, 8
        %s257 = scalar_lea.vmem %s0, %s256
        %s258 = smul.u32 16, %s22
      $region16: #{_lambda_.6} parent=11 // pred_fallthru
        _
    $region12: #{_lambda_.6} parent=5 // pred_fallthru
      _
    %p259 = scmp.lt.s32.totalorder %s13, 3
    // Predicated region
    $region17: #{_lambda_.6} parent=5 // pred_check
      %p260 = pneg %p259
    $region18: #{_lambda_.6} parent=5 // pred_check_branch
      %262 = sbr.rel (%p260) target = $region20
    $region19: #{_lambda_.6} parent=5 // pred_region
      // Predicated region
      $region21: #{_lambda_.6} parent=19 // pred_check
        %p263 = pneg %p71
      $region22: #{_lambda_.6} parent=19 // pred_check_branch
        %265 = sbr.rel (%p263) target = $region24
      $region23: #{_lambda_.6} parent=19 // pred_region
        %p266 = scmp.lt.s32.totalorder %s21, 2
        %s267 = scalar_select %p266, %s21, 2
        %s268 = smul.addr %s267, 16
        %s269 = smul.addr %s268, 4
        %s270 = scalar_lea.vmem %s1, %s269
      $region24: #{_lambda_.6} parent=19 // pred_fallthru
        _
      // Predicated region
      $region25: #{_lambda_.6} parent=19 // pred_check
        %p271 = pneg %p97
      $region26: #{_lambda_.6} parent=19 // pred_check_branch
        %273 = sbr.rel (%p271) target = $region28
      $region27: #{_lambda_.6} parent=19 // pred_region
        %p274 = scmp.lt.s32.totalorder %s21, 2
        %s275 = scalar_select %p274, %s21, 2
        %s276 = scalar_lea.vmem %s2, %s275
      $region28: #{_lambda_.6} parent=19 // pred_fallthru
        _
      // Predicated region
      $region29: #{_lambda_.6} parent=19 // pred_check
        %p277 = pneg %p123
      $region30: #{_lambda_.6} parent=19 // pred_check_branch
        %279 = sbr.rel (%p277) target = $region32
      $region31: #{_lambda_.6} parent=19 // pred_region
        %p280 = scmp.lt.s32.totalorder %s21, 2
        %s281 = scalar_select %p280, %s21, 2
        %s282 = scalar_lea.vmem %s3, %s281
      $region32: #{_lambda_.6} parent=19 // pred_fallthru
        _
      // Predicated region
      $region33: #{_lambda_.6} parent=19 // pred_check
        %p283 = pneg %p149
      $region34: #{_lambda_.6} parent=19 // pred_check_branch
        %285 = sbr.rel (%p283) target = $region36
      $region35: #{_lambda_.6} parent=19 // pred_region
        %p286 = scmp.lt.s32.totalorder %s21, 2
        %s287 = scalar_select %p286, %s21, 2
        %s288 = scalar_lea.vmem %s4, %s287
      $region36: #{_lambda_.6} parent=19 // pred_fallthru
        _
      // Predicated region
      $region37: #{_lambda_.6} parent=19 // pred_check
        %p289 = pneg %p175
      $region38: #{_lambda_.6} parent=19 // pred_check_branch
        %291 = sbr.rel (%p289) target = $region40
      $region39: #{_lambda_.6} parent=19 // pred_region
        %p292 = scmp.lt.s32.totalorder %s21, 2
        %s293 = scalar_select %p292, %s21, 2
        %s294 = smul.addr %s293, 16
        %s295 = smul.addr %s294, 4
        %s296 = scalar_lea.vmem %s5, %s295
      $region40: #{_lambda_.6} parent=19 // pred_fallthru
        _
      // Predicated region
      $region41: #{_lambda_.6} parent=19 // pred_check
        %p297 = pneg %p201
      $region42: #{_lambda_.6} parent=19 // pred_check_branch
        %299 = sbr.rel (%p297) target = $region44
      $region43: #{_lambda_.6} parent=19 // pred_region
        %p300 = scmp.lt.s32.totalorder %s21, 2
        %s301 = scalar_select %p300, %s21, 2
        %s302 = scalar_lea.vmem %s6, %s301
      $region44: #{_lambda_.6} parent=19 // pred_fallthru
        _
    $region20: #{_lambda_.6} parent=5 // pred_fallthru
      _
    %p303 = scmp.le.s32.totalorder 1, %s13
    %p304 = scmp.lt.s32.totalorder %s13, 4
    %p305 = pnand %p303, %p304
    %p306 = pneg %p305
    // Predicated region
    $region45: #{_lambda_.6} parent=5 // pred_check
      _
    $region46: #{_lambda_.6} parent=5 // pred_check_branch
      %308 = sbr.rel (%p305) target = $region48
    $region47: #{_lambda_.6} parent=5 // pred_region
      %s309 = ssub.s32 %s13, 1
      %s310 = smul.u32 16, %s22
      %p311 = scmp.lt.s32.totalorder %s310, 15
      %s312 = scalar_select %p311, %s310, 15
      %s313 = smul.addr %s312, 8
      %s314 = scalar_lea.vmem %s0, %s313
      %p315 = pneg %p51
      %p316 = pneg %p48
      %p317 = scmp.lt.s32.totalorder %s23, 2
      %s318 = scalar_select %p317, %s23, 2
      %s319 = smul.addr %s318, 16
      %s320 = smul.addr %s319, 4
      %s321 = scalar_lea.vmem %s1, %s320
      %p322 = pneg %p77
      %p323 = pneg %p74
      %p324 = scmp.lt.s32.totalorder %s23, 2
      %s325 = scalar_select %p324, %s23, 2
      %s326 = scalar_lea.vmem %s2, %s325
      %p327 = pneg %p103
      %p328 = pneg %p100
      %p329 = scmp.lt.s32.totalorder %s23, 2
      %s330 = scalar_select %p329, %s23, 2
      %s331 = scalar_lea.vmem %s3, %s330
      %p332 = pneg %p129
      %p333 = pneg %p126
      %p334 = scmp.lt.s32.totalorder %s23, 2
      %s335 = scalar_select %p334, %s23, 2
      %s336 = scalar_lea.vmem %s4, %s335
      %p337 = pneg %p155
      %p338 = pneg %p152
      %p339 = scmp.lt.s32.totalorder %s23, 2
      %s340 = scalar_select %p339, %s23, 2
      %s341 = smul.addr %s340, 16
      %s342 = smul.addr %s341, 4
      %s343 = scalar_lea.vmem %s5, %s342
      %p344 = pneg %p181
      %p345 = pneg %p178
      %p346 = scmp.lt.s32.totalorder %s23, 2
      %s347 = scalar_select %p346, %s23, 2
      %s348 = scalar_lea.vmem %s6, %s347
      %p349 = pneg %p207
      %p350 = pneg %p204
      %p351 = pneg %p235
      %p352 = pneg %p232
      %s353 = smul.u32 16, %s22
      %p354 = scmp.lt.s32.totalorder %s23, 2
      %s355 = scalar_select %p354, %s23, 2
      %p356 = scmp.lt.s32.totalorder %s353, 15
      %s357 = scalar_select %p356, %s353, 15
      %s358 = smul.addr %s355, 16
      %s359 = sadd.s32 %s357, %s358
      %s360 = smul.addr %s359, 8
      %s361 = scalar_lea.vmem %s7, %s360
      %s362 = smul.u32 16, %s22
      %p363 = scmp.lt.s32.totalorder %s362, 15
      %s364 = scalar_select %p363, %s362, 15
      %s365 = smul.addr %s364, 8
      %s366 = scalar_lea.vmem %s0, %s365
      %s367 = smul.u32 16, %s22
      %p368 = scmp.lt.s32.totalorder %s23, 2
      %s369 = scalar_select %p368, %s23, 2
      %s370 = smul.addr %s369, 16
      %s371 = smul.addr %s370, 4
      %s372 = scalar_lea.vmem %s1, %s371
      %p373 = scmp.lt.s32.totalorder %s23, 2
      %s374 = scalar_select %p373, %s23, 2
      %s375 = scalar_lea.vmem %s2, %s374
      %p376 = scmp.lt.s32.totalorder %s23, 2
      %s377 = scalar_select %p376, %s23, 2
      %s378 = scalar_lea.vmem %s3, %s377
      %p379 = scmp.lt.s32.totalorder %s23, 2
      %s380 = scalar_select %p379, %s23, 2
      %s381 = scalar_lea.vmem %s4, %s380
      %p382 = scmp.lt.s32.totalorder %s23, 2
      %s383 = scalar_select %p382, %s23, 2
      %s384 = smul.addr %s383, 16
      %s385 = smul.addr %s384, 4
      %s386 = scalar_lea.vmem %s5, %s385
      %p387 = scmp.lt.s32.totalorder %s23, 2
      %s388 = scalar_select %p387, %s23, 2
      %s389 = scalar_lea.vmem %s6, %s388
      %s390 = smul.u32 16, %s22
      %p391 = scmp.lt.s32.totalorder %s23, 2
      %s392 = scalar_select %p391, %s23, 2
      %p393 = scmp.lt.s32.totalorder %s390, 15
      %s394 = scalar_select %p393, %s390, 15
      %s395 = smul.addr %s392, 16
      %s396 = sadd.s32 %s394, %s395
      %s397 = smul.addr %s396, 8
      %s398 = scalar_lea.vmem %s7, %s397
      %s399 = smul.u32 16, %s22
      %v401 = vld [vmem:[%s366] sm:$0xff]
      %v402 = vld [vmem:[%s366 + $0x8] sm:$0xff]
      %v403 = vld [vmem:[%s366 + $0x10] sm:$0xff]
      %v404 = vld [vmem:[%s366 + $0x18] sm:$0xff]
      %v405 = vld [vmem:[%s366 + $0x20] sm:$0xff]
      %v406 = vld [vmem:[%s366 + $0x28] sm:$0xff]
      %v407 = vld [vmem:[%s366 + $0x30] sm:$0xff]
      %v408 = vld [vmem:[%s366 + $0x38] sm:$0xff]
      %v409 = vld [vmem:[%s366 + $0x40] sm:$0xff]
      %v410 = vld [vmem:[%s366 + $0x48] sm:$0xff]
      %v411 = vld [vmem:[%s366 + $0x50] sm:$0xff]
      %v412 = vld [vmem:[%s366 + $0x58] sm:$0xff]
      %v413 = vld [vmem:[%s366 + $0x60] sm:$0xff]
      %v414 = vld [vmem:[%s366 + $0x68] sm:$0xff]
      %v415 = vld [vmem:[%s366 + $0x70] sm:$0xff]
      %v416 = vld [vmem:[%s366 + $0x78] sm:$0xff]
      %v417 = vpack.c.bf16 %v402, %v401
      %v418 = vpack.c.bf16 %v404, %v403
      %v419 = vpack.c.bf16 %v406, %v405
      %v420 = vpack.c.bf16 %v408, %v407
      %v421 = vpack.c.bf16 %v410, %v409
      %v422 = vpack.c.bf16 %v412, %v411
      %v423 = vpack.c.bf16 %v414, %v413
      %v424 = vpack.c.bf16 %v416, %v415
      %v425 = vld [vmem:[%s372] sm:$0xf]
      %v426 = vld [vmem:[%s372 + $0x4] sm:$0xf]
      %v427 = vld [vmem:[%s372 + $0x8] sm:$0xf]
      %v428 = vld [vmem:[%s372 + $0xc] sm:$0xf]
      %v429 = vld [vmem:[%s372 + $0x10] sm:$0xf]
      %v430 = vld [vmem:[%s372 + $0x14] sm:$0xf]
      %v431 = vld [vmem:[%s372 + $0x18] sm:$0xf]
      %v432 = vld [vmem:[%s372 + $0x1c] sm:$0xf]
      %v433 = vld [vmem:[%s372 + $0x20] sm:$0xf]
      %v434 = vld [vmem:[%s372 + $0x24] sm:$0xf]
      %v435 = vld [vmem:[%s372 + $0x28] sm:$0xf]
      %v436 = vld [vmem:[%s372 + $0x2c] sm:$0xf]
      %v437 = vld [vmem:[%s372 + $0x30] sm:$0xf]
      %v438 = vld [vmem:[%s372 + $0x34] sm:$0xf]
      %v439 = vld [vmem:[%s372 + $0x38] sm:$0xf]
      %v440 = vld [vmem:[%s372 + $0x3c] sm:$0xf]
      %v441 = vld [vmem:[%s375] sm:$0x1]
      %v443 = vlaneseq
      %v444 = vshrl.u32 %v443, 7
      %v445 = vsub.s32 0, %v444
      %v446 = vrot.slane %v441, %v445
      %v464 = vunpack.c.l.b16 %v425
      %v465 = vunpack.c.l.b16 %v426
      %v466 = vunpack.c.l.b16 %v427
      %v467 = vunpack.c.l.b16 %v428
      %v468 = vunpack.c.l.b16 %v429
      %v469 = vunpack.c.l.b16 %v430
      %v470 = vunpack.c.l.b16 %v431
      %v471 = vunpack.c.l.b16 %v432
      %v472 = vunpack.c.l.b16 %v433
      %v473 = vunpack.c.l.b16 %v434
      %v474 = vunpack.c.l.b16 %v435
      %v475 = vunpack.c.l.b16 %v436
      %v476 = vunpack.c.l.b16 %v437
      %v477 = vunpack.c.l.b16 %v438
      %v478 = vunpack.c.l.b16 %v439
      %v479 = vunpack.c.l.b16 %v440
      %v480 = vpack.c.b16 %v465, %v464
      %v481 = vpack.c.b16 %v467, %v466
      %v482 = vpack.c.b16 %v469, %v468
      %v483 = vpack.c.b16 %v471, %v470
      %v484 = vpack.c.b16 %v473, %v472
      %v485 = vpack.c.b16 %v475, %v474
      %v486 = vpack.c.b16 %v477, %v476
      %v487 = vpack.c.b16 %v479, %v478
      %496 = vmatprep.subr.bf16.mxu0 0
      %497 = vmatpush1.bf16.msra.mxu0 %v480
      %498 = vmatprep.subr.bf16.mxu0 0
      %499 = vmatpush1.bf16.msra.mxu0 %v481
      %500 = vmatprep.subr.bf16.mxu0 0
      %501 = vmatpush1.bf16.msra.mxu0 %v482
      %502 = vmatprep.subr.bf16.mxu0 0
      %503 = vmatpush1.bf16.msra.mxu0 %v483
      %504 = vmatprep.subr.bf16.mxu0 0
      %505 = vmatpush1.bf16.msra.mxu0 %v484
      %506 = vmatprep.subr.bf16.mxu0 0
      %507 = vmatpush1.bf16.msra.mxu0 %v485
      %508 = vmatprep.subr.bf16.mxu0 0
      %509 = vmatpush1.bf16.msra.mxu0 %v486
      %510 = vmatprep.subr.bf16.mxu0 0
      %511 = vmatpush1.bf16.msra.mxu0 %v487
      %512 = vmatprep.subr.bf16.mxu0 0
      %513 = vmatpush1.bf16.msra.mxu0 0
      %514 = vmatprep.subr.bf16.mxu0 0
      %515 = vmatpush1.bf16.msra.mxu0 0
      %516 = vmatprep.subr.bf16.mxu0 0
      %517 = vmatpush1.bf16.msra.mxu0 0
      %518 = vmatprep.subr.bf16.mxu0 0
      %519 = vmatpush1.bf16.msra.mxu0 0
      %520 = vmatprep.subr.bf16.mxu0 0
      %521 = vmatpush1.bf16.msra.mxu0 0
      %522 = vmatprep.subr.bf16.mxu0 0
      %523 = vmatpush1.bf16.msra.mxu0 0
      %524 = vmatprep.subr.bf16.mxu0 0
      %525 = vmatpush1.bf16.msra.mxu0 0
      %526 = vmatprep.subr.bf16.mxu0 0
      %527 = vmatpush1.bf16.msra.mxu0 0
      %528 = vmatprep.mubr.bf16.mxu0 0
      %529 = vmatmul.mubr.bf16.gmra.mrb[0].mxu0 %v417
      %v530 = vpop.f32.mrb[0].mxu0
      %v531 = vadd.f32 %v446, %v530
      %v532 = vpop.f32.mrb[0].mxu0
      %v533 = vpop.f32.mrb[0].mxu0
      %v534 = vadd.f32 %v446, %v533
      %v535 = vpop.f32.mrb[0].mxu0
      %536 = vmatprep.mubr.bf16.mxu0 0
      %537 = vmatmul.mubr.bf16.gmra.mrb[0].mxu0 %v418
      %v538 = vpop.f32.mrb[0].mxu0
      %v539 = vadd.f32 %v446, %v538
      %v540 = vpop.f32.mrb[0].mxu0
      %v541 = vpop.f32.mrb[0].mxu0
      %v542 = vadd.f32 %v446, %v541
      %v543 = vpop.f32.mrb[0].mxu0
      %544 = vmatprep.mubr.bf16.mxu0 0
      %545 = vmatmul.mubr.bf16.gmra.mrb[0].mxu0 %v419
      %v546 = vpop.f32.mrb[0].mxu0
      %v547 = vadd.f32 %v446, %v546
      %v548 = vpop.f32.mrb[0].mxu0
      %v549 = vpop.f32.mrb[0].mxu0
      %v550 = vadd.f32 %v446, %v549
      %v551 = vpop.f32.mrb[0].mxu0
      %552 = vmatprep.mubr.bf16.mxu0 0
      %553 = vmatmul.mubr.bf16.gmra.mrb[0].mxu0 %v420
      %v554 = vpop.f32.mrb[0].mxu0
      %v555 = vadd.f32 %v446, %v554
      %v556 = vpop.f32.mrb[0].mxu0
      %v557 = vpop.f32.mrb[0].mxu0
      %v558 = vadd.f32 %v446, %v557
      %v559 = vpop.f32.mrb[0].mxu0
      %560 = vmatprep.mubr.bf16.mxu0 0
      %561 = vmatmul.mubr.bf16.gmra.mrb[0].mxu0 %v421
      %v562 = vpop.f32.mrb[0].mxu0
      %v563 = vadd.f32 %v446, %v562
      %v564 = vpop.f32.mrb[0].mxu0
      %v565 = vpop.f32.mrb[0].mxu0
      %v566 = vadd.f32 %v446, %v565
      %v567 = vpop.f32.mrb[0].mxu0
      %568 = vmatprep.mubr.bf16.mxu0 0
      %569 = vmatmul.mubr.bf16.gmra.mrb[0].mxu0 %v422
      %v570 = vpop.f32.mrb[0].mxu0
      %v571 = vadd.f32 %v446, %v570
      %v572 = vpop.f32.mrb[0].mxu0
      %v573 = vpop.f32.mrb[0].mxu0
      %v574 = vadd.f32 %v446, %v573
      %v575 = vpop.f32.mrb[0].mxu0
      %576 = vmatprep.mubr.bf16.mxu0 0
      %577 = vmatmul.mubr.bf16.gmra.mrb[0].mxu0 %v423
      %v578 = vpop.f32.mrb[0].mxu0
      %v579 = vadd.f32 %v446, %v578
      %v580 = vpop.f32.mrb[0].mxu0
      %v581 = vpop.f32.mrb[0].mxu0
      %v582 = vadd.f32 %v446, %v581
      %v583 = vpop.f32.mrb[0].mxu0
      %584 = vmatprep.mubr.bf16.mxu0 0
      %585 = vmatmul.mubr.bf16.gmra.mrb[0].mxu0 %v424
      %v586 = vpop.f32.mrb[0].mxu0
      %v587 = vadd.f32 %v446, %v586
      %v588 = vpop.f32.mrb[0].mxu0
      %v589 = vpop.f32.mrb[0].mxu0
      %v590 = vadd.f32 %v446, %v589
      %v591 = vpop.f32.mrb[0].mxu0
      %592 = vdwg.mxu0
      %593 = vadd.xlane.f32.xlu0 %v531
      %v594 = vpop.xlane.xlu0 %593
      %595 = vadd.xlane.f32.xlu0 %v534
      %v596 = vpop.xlane.xlu0 %595
      %597 = vadd.xlane.f32.xlu0 %v539
      %v598 = vpop.xlane.xlu0 %597
      %599 = vadd.xlane.f32.xlu0 %v542
      %v600 = vpop.xlane.xlu0 %599
      %601 = vadd.xlane.f32.xlu0 %v547
      %v602 = vpop.xlane.xlu0 %601
      %603 = vadd.xlane.f32.xlu0 %v550
      %v604 = vpop.xlane.xlu0 %603
      %605 = vadd.xlane.f32.xlu0 %v555
      %v606 = vpop.xlane.xlu0 %605
      %607 = vadd.xlane.f32.xlu0 %v558
      %v608 = vpop.xlane.xlu0 %607
      %609 = vadd.xlane.f32.xlu0 %v563
      %v610 = vpop.xlane.xlu0 %609
      %611 = vadd.xlane.f32.xlu0 %v566
      %v612 = vpop.xlane.xlu0 %611
      %613 = vadd.xlane.f32.xlu0 %v571
      %v614 = vpop.xlane.xlu0 %613
      %615 = vadd.xlane.f32.xlu0 %v574
      %v616 = vpop.xlane.xlu0 %615
      %617 = vadd.xlane.f32.xlu0 %v579
      %v618 = vpop.xlane.xlu0 %617
      %619 = vadd.xlane.f32.xlu0 %v582
      %v620 = vpop.xlane.xlu0 %619
      %621 = vadd.xlane.f32.xlu0 %v587
      %v622 = vpop.xlane.xlu0 %621
      %623 = vadd.xlane.f32.xlu0 %v590
      %v624 = vpop.xlane.xlu0 %623
      %v625 = vmul.f32 %v594, 0.0625
      %v626 = vmul.f32 %v596, 0.0625
      %v627 = vmul.f32 %v598, 0.0625
      %v628 = vmul.f32 %v600, 0.0625
      %v629 = vmul.f32 %v602, 0.0625
      %v630 = vmul.f32 %v604, 0.0625
      %v631 = vmul.f32 %v606, 0.0625
      %v632 = vmul.f32 %v608, 0.0625
      %v633 = vmul.f32 %v610, 0.0625
      %v634 = vmul.f32 %v612, 0.0625
      %v635 = vmul.f32 %v614, 0.0625
      %v636 = vmul.f32 %v616, 0.0625
      %v637 = vmul.f32 %v618, 0.0625
      %v638 = vmul.f32 %v620, 0.0625
      %v639 = vmul.f32 %v622, 0.0625
      %v640 = vmul.f32 %v624, 0.0625
      %v641 = vmul.f32 %v531, %v531
      %v642 = vmul.f32 %v534, %v534
      %v643 = vmul.f32 %v539, %v539
      %v644 = vmul.f32 %v542, %v542
      %v645 = vmul.f32 %v547, %v547
      %v646 = vmul.f32 %v550, %v550
      %v647 = vmul.f32 %v555, %v555
      %v648 = vmul.f32 %v558, %v558
      %v649 = vmul.f32 %v563, %v563
      %v650 = vmul.f32 %v566, %v566
      %v651 = vmul.f32 %v571, %v571
      %v652 = vmul.f32 %v574, %v574
      %v653 = vmul.f32 %v579, %v579
      %v654 = vmul.f32 %v582, %v582
      %v655 = vmul.f32 %v587, %v587
      %v656 = vmul.f32 %v590, %v590
      %657 = vadd.xlane.f32.xlu0 %v641
      %v658 = vpop.xlane.xlu0 %657
      %659 = vadd.xlane.f32.xlu0 %v642
      %v660 = vpop.xlane.xlu0 %659
      %661 = vadd.xlane.f32.xlu0 %v643
      %v662 = vpop.xlane.xlu0 %661
      %663 = vadd.xlane.f32.xlu0 %v644
      %v664 = vpop.xlane.xlu0 %663
      %665 = vadd.xlane.f32.xlu0 %v645
      %v666 = vpop.xlane.xlu0 %665
      %667 = vadd.xlane.f32.xlu0 %v646
      %v668 = vpop.xlane.xlu0 %667
      %669 = vadd.xlane.f32.xlu0 %v647
      %v670 = vpop.xlane.xlu0 %669
      %671 = vadd.xlane.f32.xlu0 %v648
      %v672 = vpop.xlane.xlu0 %671
      %673 = vadd.xlane.f32.xlu0 %v649
      %v674 = vpop.xlane.xlu0 %673
      %675 = vadd.xlane.f32.xlu0 %v650
      %v676 = vpop.xlane.xlu0 %675
      %677 = vadd.xlane.f32.xlu0 %v651
      %v678 = vpop.xlane.xlu0 %677
      %679 = vadd.xlane.f32.xlu0 %v652
      %v680 = vpop.xlane.xlu0 %679
      %681 = vadd.xlane.f32.xlu0 %v653
      %v682 = vpop.xlane.xlu0 %681
      %683 = vadd.xlane.f32.xlu0 %v654
      %v684 = vpop.xlane.xlu0 %683
      %685 = vadd.xlane.f32.xlu0 %v655
      %v686 = vpop.xlane.xlu0 %685
      %687 = vadd.xlane.f32.xlu0 %v656
      %v688 = vpop.xlane.xlu0 %687
      %v689 = vmul.f32 %v658, 0.0625
      %v690 = vmul.f32 %v660, 0.0625
      %v691 = vmul.f32 %v662, 0.0625
      %v692 = vmul.f32 %v664, 0.0625
      %v693 = vmul.f32 %v666, 0.0625
      %v694 = vmul.f32 %v668, 0.0625
      %v695 = vmul.f32 %v670, 0.0625
      %v696 = vmul.f32 %v672, 0.0625
      %v697 = vmul.f32 %v674, 0.0625
      %v698 = vmul.f32 %v676, 0.0625
      %v699 = vmul.f32 %v678, 0.0625
      %v700 = vmul.f32 %v680, 0.0625
      %v701 = vmul.f32 %v682, 0.0625
      %v702 = vmul.f32 %v684, 0.0625
      %v703 = vmul.f32 %v686, 0.0625
      %v704 = vmul.f32 %v688, 0.0625
      %v705 = vmul.f32 %v625, %v625
      %v706 = vmul.f32 %v626, %v626
      %v707 = vmul.f32 %v627, %v627
      %v708 = vmul.f32 %v628, %v628
      %v709 = vmul.f32 %v629, %v629
      %v710 = vmul.f32 %v630, %v630
      %v711 = vmul.f32 %v631, %v631
      %v712 = vmul.f32 %v632, %v632
      %v713 = vmul.f32 %v633, %v633
      %v714 = vmul.f32 %v634, %v634
      %v715 = vmul.f32 %v635, %v635
      %v716 = vmul.f32 %v636, %v636
      %v717 = vmul.f32 %v637, %v637
      %v718 = vmul.f32 %v638, %v638
      %v719 = vmul.f32 %v639, %v639
      %v720 = vmul.f32 %v640, %v640
      %v721 = vsub.f32 %v689, %v705
      %v722 = vsub.f32 %v690, %v706
      %v723 = vsub.f32 %v691, %v707
      %v724 = vsub.f32 %v692, %v708
      %v725 = vsub.f32 %v693, %v709
      %v726 = vsub.f32 %v694, %v710
      %v727 = vsub.f32 %v695, %v711
      %v728 = vsub.f32 %v696, %v712
      %v729 = vsub.f32 %v697, %v713
      %v730 = vsub.f32 %v698, %v714
      %v731 = vsub.f32 %v699, %v715
      %v732 = vsub.f32 %v700, %v716
      %v733 = vsub.f32 %v701, %v717
      %v734 = vsub.f32 %v702, %v718
      %v735 = vsub.f32 %v703, %v719
      %v736 = vsub.f32 %v704, %v720
      %v737 = vmax.f32 %v721, 0.0
      %v738 = vmax.f32 %v722, 0.0
      %v739 = vmax.f32 %v723, 0.0
      %v740 = vmax.f32 %v724, 0.0
      %v741 = vmax.f32 %v725, 0.0
      %v742 = vmax.f32 %v726, 0.0
      %v743 = vmax.f32 %v727, 0.0
      %v744 = vmax.f32 %v728, 0.0
      %v745 = vmax.f32 %v729, 0.0
      %v746 = vmax.f32 %v730, 0.0
      %v747 = vmax.f32 %v731, 0.0
      %v748 = vmax.f32 %v732, 0.0
      %v749 = vmax.f32 %v733, 0.0
      %v750 = vmax.f32 %v734, 0.0
      %v751 = vmax.f32 %v735, 0.0
      %v752 = vmax.f32 %v736, 0.0
      %v753 = vsub.f32 %v531, %v625
      %v754 = vsub.f32 %v534, %v626
      %v755 = vsub.f32 %v539, %v627
      %v756 = vsub.f32 %v542, %v628
      %v757 = vsub.f32 %v547, %v629
      %v758 = vsub.f32 %v550, %v630
      %v759 = vsub.f32 %v555, %v631
      %v760 = vsub.f32 %v558, %v632
      %v761 = vsub.f32 %v563, %v633
      %v762 = vsub.f32 %v566, %v634
      %v763 = vsub.f32 %v571, %v635
      %v764 = vsub.f32 %v574, %v636
      %v765 = vsub.f32 %v579, %v637
      %v766 = vsub.f32 %v582, %v638
      %v767 = vsub.f32 %v587, %v639
      %v768 = vsub.f32 %v590, %v640
      %v769 = vadd.f32 %v737, 1e-05
      %v770 = vadd.f32 %v738, 1e-05
      %v771 = vadd.f32 %v739, 1e-05
      %v772 = vadd.f32 %v740, 1e-05
      %v773 = vadd.f32 %v741, 1e-05
      %v774 = vadd.f32 %v742, 1e-05
      %v775 = vadd.f32 %v743, 1e-05
      %v776 = vadd.f32 %v744, 1e-05
      %v777 = vadd.f32 %v745, 1e-05
      %v778 = vadd.f32 %v746, 1e-05
      %v779 = vadd.f32 %v747, 1e-05
      %v780 = vadd.f32 %v748, 1e-05
      %v781 = vadd.f32 %v749, 1e-05
      %v782 = vadd.f32 %v750, 1e-05
      %v783 = vadd.f32 %v751, 1e-05
      %v784 = vadd.f32 %v752, 1e-05
      %v785 = vrsqrt.pop %v769
      %v786 = vrsqrt.pop %v770
      %v787 = vrsqrt.pop %v771
      %v788 = vrsqrt.pop %v772
      %v789 = vrsqrt.pop %v773
      %v790 = vrsqrt.pop %v774
      %v791 = vrsqrt.pop %v775
      %v792 = vrsqrt.pop %v776
      %v793 = vrsqrt.pop %v777
      %v794 = vrsqrt.pop %v778
      %v795 = vrsqrt.pop %v779
      %v796 = vrsqrt.pop %v780
      %v797 = vrsqrt.pop %v781
      %v798 = vrsqrt.pop %v782
      %v799 = vrsqrt.pop %v783
      %v800 = vrsqrt.pop %v784
      %v801 = vmul.f32 %v753, %v785
      %v802 = vmul.f32 %v754, %v786
      %v803 = vmul.f32 %v755, %v787
      %v804 = vmul.f32 %v756, %v788
      %v805 = vmul.f32 %v757, %v789
      %v806 = vmul.f32 %v758, %v790
      %v807 = vmul.f32 %v759, %v791
      %v808 = vmul.f32 %v760, %v792
      %v809 = vmul.f32 %v761, %v793
      %v810 = vmul.f32 %v762, %v794
      %v811 = vmul.f32 %v763, %v795
      %v812 = vmul.f32 %v764, %v796
      %v813 = vmul.f32 %v765, %v797
      %v814 = vmul.f32 %v766, %v798
      %v815 = vmul.f32 %v767, %v799
      %v816 = vmul.f32 %v768, %v800
      %v817 = vld [vmem:[%s378] sm:$0x1]
      %v819 = vlaneseq
      %v820 = vshrl.u32 %v819, 7
      %v821 = vsub.s32 0, %v820
      %v822 = vrot.slane %v817, %v821
      %v824 = vmul.f32 %v801, %v822
      %v825 = vmul.f32 %v802, %v822
      %v826 = vmul.f32 %v803, %v822
      %v827 = vmul.f32 %v804, %v822
      %v828 = vmul.f32 %v805, %v822
      %v829 = vmul.f32 %v806, %v822
      %v830 = vmul.f32 %v807, %v822
      %v831 = vmul.f32 %v808, %v822
      %v832 = vmul.f32 %v809, %v822
      %v833 = vmul.f32 %v810, %v822
      %v834 = vmul.f32 %v811, %v822
      %v835 = vmul.f32 %v812, %v822
      %v836 = vmul.f32 %v813, %v822
      %v837 = vmul.f32 %v814, %v822
      %v838 = vmul.f32 %v815, %v822
      %v839 = vmul.f32 %v816, %v822
      %v840 = vld [vmem:[%s381] sm:$0x1]
      %v842 = vlaneseq
      %v843 = vshrl.u32 %v842, 7
      %v844 = vsub.s32 0, %v843
      %v845 = vrot.slane %v840, %v844
      %v847 = vadd.f32 %v824, %v845
      %v848 = vadd.f32 %v825, %v845
      %v849 = vadd.f32 %v826, %v845
      %v850 = vadd.f32 %v827, %v845
      %v851 = vadd.f32 %v828, %v845
      %v852 = vadd.f32 %v829, %v845
      %v853 = vadd.f32 %v830, %v845
      %v854 = vadd.f32 %v831, %v845
      %v855 = vadd.f32 %v832, %v845
      %v856 = vadd.f32 %v833, %v845
      %v857 = vadd.f32 %v834, %v845
      %v858 = vadd.f32 %v835, %v845
      %v859 = vadd.f32 %v836, %v845
      %v860 = vadd.f32 %v837, %v845
      %v861 = vadd.f32 %v838, %v845
      %v862 = vadd.f32 %v839, %v845
      %v863 = vmax.f32 %v847, 0.0
      %v864 = vmax.f32 %v848, 0.0
      %v865 = vmax.f32 %v849, 0.0
      %v866 = vmax.f32 %v850, 0.0
      %v867 = vmax.f32 %v851, 0.0
      %v868 = vmax.f32 %v852, 0.0
      %v869 = vmax.f32 %v853, 0.0
      %v870 = vmax.f32 %v854, 0.0
      %v871 = vmax.f32 %v855, 0.0
      %v872 = vmax.f32 %v856, 0.0
      %v873 = vmax.f32 %v857, 0.0
      %v874 = vmax.f32 %v858, 0.0
      %v875 = vmax.f32 %v859, 0.0
      %v876 = vmax.f32 %v860, 0.0
      %v877 = vmax.f32 %v861, 0.0
      %v878 = vmax.f32 %v862, 0.0
      %v879 = vpack.c.bf16 %v864, %v863
      %v880 = vpack.c.bf16 %v866, %v865
      %v881 = vpack.c.bf16 %v868, %v867
      %v882 = vpack.c.bf16 %v870, %v869
      %v883 = vpack.c.bf16 %v872, %v871
      %v884 = vpack.c.bf16 %v874, %v873
      %v885 = vpack.c.bf16 %v876, %v875
      %v886 = vpack.c.bf16 %v878, %v877
      %v887 = vld [vmem:[%s386] sm:$0xf]
      %v888 = vld [vmem:[%s386 + $0x4] sm:$0xf]
      %v889 = vld [vmem:[%s386 + $0x8] sm:$0xf]
      %v890 = vld [vmem:[%s386 + $0xc] sm:$0xf]
      %v891 = vld [vmem:[%s386 + $0x10] sm:$0xf]
      %v892 = vld [vmem:[%s386 + $0x14] sm:$0xf]
      %v893 = vld [vmem:[%s386 + $0x18] sm:$0xf]
      %v894 = vld [vmem:[%s386 + $0x1c] sm:$0xf]
      %v895 = vld [vmem:[%s386 + $0x20] sm:$0xf]
      %v896 = vld [vmem:[%s386 + $0x24] sm:$0xf]
      %v897 = vld [vmem:[%s386 + $0x28] sm:$0xf]
      %v898 = vld [vmem:[%s386 + $0x2c] sm:$0xf]
      %v899 = vld [vmem:[%s386 + $0x30] sm:$0xf]
      %v900 = vld [vmem:[%s386 + $0x34] sm:$0xf]
      %v901 = vld [vmem:[%s386 + $0x38] sm:$0xf]
      %v902 = vld [vmem:[%s386 + $0x3c] sm:$0xf]
      %v903 = vld [vmem:[%s389] sm:$0x1]
      %v905 = vlaneseq
      %v906 = vshrl.u32 %v905, 7
      %v907 = vsub.s32 0, %v906
      %v908 = vrot.slane %v903, %v907
      %v926 = vunpack.c.l.b16 %v887
      %v927 = vunpack.c.l.b16 %v888
      %v928 = vunpack.c.l.b16 %v889
      %v929 = vunpack.c.l.b16 %v890
      %v930 = vunpack.c.l.b16 %v891
      %v931 = vunpack.c.l.b16 %v892
      %v932 = vunpack.c.l.b16 %v893
      %v933 = vunpack.c.l.b16 %v894
      %v934 = vunpack.c.l.b16 %v895
      %v935 = vunpack.c.l.b16 %v896
      %v936 = vunpack.c.l.b16 %v897
      %v937 = vunpack.c.l.b16 %v898
      %v938 = vunpack.c.l.b16 %v899
      %v939 = vunpack.c.l.b16 %v900
      %v940 = vunpack.c.l.b16 %v901
      %v941 = vunpack.c.l.b16 %v902
      %v942 = vpack.c.b16 %v927, %v926
      %v943 = vpack.c.b16 %v929, %v928
      %v944 = vpack.c.b16 %v931, %v930
      %v945 = vpack.c.b16 %v933, %v932
      %v946 = vpack.c.b16 %v935, %v934
      %v947 = vpack.c.b16 %v937, %v936
      %v948 = vpack.c.b16 %v939, %v938
      %v949 = vpack.c.b16 %v941, %v940
      %958 = vmatprep.subr.bf16.mxu0 0
      %959 = vmatpush1.bf16.msra.mxu0 %v942
      %960 = vmatprep.subr.bf16.mxu0 0
      %961 = vmatpush1.bf16.msra.mxu0 %v943
      %962 = vmatprep.subr.bf16.mxu0 0
      %963 = vmatpush1.bf16.msra.mxu0 %v944
      %964 = vmatprep.subr.bf16.mxu0 0
      %965 = vmatpush1.bf16.msra.mxu0 %v945
      %966 = vmatprep.subr.bf16.mxu0 0
      %967 = vmatpush1.bf16.msra.mxu0 %v946
      %968 = vmatprep.subr.bf16.mxu0 0
      %969 = vmatpush1.bf16.msra.mxu0 %v947
      %970 = vmatprep.subr.bf16.mxu0 0
      %971 = vmatpush1.bf16.msra.mxu0 %v948
      %972 = vmatprep.subr.bf16.mxu0 0
      %973 = vmatpush1.bf16.msra.mxu0 %v949
      %974 = vmatprep.subr.bf16.mxu0 0
      %975 = vmatpush1.bf16.msra.mxu0 0
      %976 = vmatprep.subr.bf16.mxu0 0
      %977 = vmatpush1.bf16.msra.mxu0 0
      %978 = vmatprep.subr.bf16.mxu0 0
      %979 = vmatpush1.bf16.msra.mxu0 0
      %980 = vmatprep.subr.bf16.mxu0 0
      %981 = vmatpush1.bf16.msra.mxu0 0
      %982 = vmatprep.subr.bf16.mxu0 0
      %983 = vmatpush1.bf16.msra.mxu0 0
      %984 = vmatprep.subr.bf16.mxu0 0
      %985 = vmatpush1.bf16.msra.mxu0 0
      %986 = vmatprep.subr.bf16.mxu0 0
      %987 = vmatpush1.bf16.msra.mxu0 0
      %988 = vmatprep.subr.bf16.mxu0 0
      %989 = vmatpush1.bf16.msra.mxu0 0
      %990 = vmatprep.mubr.bf16.mxu0 0
      %991 = vmatmul.mubr.bf16.gmra.mrb[0].mxu0 %v879
      %v992 = vpop.f32.mrb[0].mxu0
      %v993 = vadd.f32 %v908, %v992
      %v994 = vpop.f32.mrb[0].mxu0
      %v995 = vpop.f32.mrb[0].mxu0
      %v996 = vadd.f32 %v908, %v995
      %v997 = vpop.f32.mrb[0].mxu0
      %998 = vmatprep.mubr.bf16.mxu0 0
      %999 = vmatmul.mubr.bf16.gmra.mrb[0].mxu0 %v880
      %v1000 = vpop.f32.mrb[0].mxu0
      %v1001 = vadd.f32 %v908, %v1000
      %v1002 = vpop.f32.mrb[0].mxu0
      %v1003 = vpop.f32.mrb[0].mxu0
      %v1004 = vadd.f32 %v908, %v1003
      %v1005 = vpop.f32.mrb[0].mxu0
      %1006 = vmatprep.mubr.bf16.mxu0 0
      %1007 = vmatmul.mubr.bf16.gmra.mrb[0].mxu0 %v881
      %v1008 = vpop.f32.mrb[0].mxu0
      %v1009 = vadd.f32 %v908, %v1008
      %v1010 = vpop.f32.mrb[0].mxu0
      %v1011 = vpop.f32.mrb[0].mxu0
      %v1012 = vadd.f32 %v908, %v1011
      %v1013 = vpop.f32.mrb[0].mxu0
      %1014 = vmatprep.mubr.bf16.mxu0 0
      %1015 = vmatmul.mubr.bf16.gmra.mrb[0].mxu0 %v882
      %v1016 = vpop.f32.mrb[0].mxu0
      %v1017 = vadd.f32 %v908, %v1016
      %v1018 = vpop.f32.mrb[0].mxu0
      %v1019 = vpop.f32.mrb[0].mxu0
      %v1020 = vadd.f32 %v908, %v1019
      %v1021 = vpop.f32.mrb[0].mxu0
      %1022 = vmatprep.mubr.bf16.mxu0 0
      %1023 = vmatmul.mubr.bf16.gmra.mrb[0].mxu0 %v883
      %v1024 = vpop.f32.mrb[0].mxu0
      %v1025 = vadd.f32 %v908, %v1024
      %v1026 = vpop.f32.mrb[0].mxu0
      %v1027 = vpop.f32.mrb[0].mxu0
      %v1028 = vadd.f32 %v908, %v1027
      %v1029 = vpop.f32.mrb[0].mxu0
      %1030 = vmatprep.mubr.bf16.mxu0 0
      %1031 = vmatmul.mubr.bf16.gmra.mrb[0].mxu0 %v884
      %v1032 = vpop.f32.mrb[0].mxu0
      %v1033 = vadd.f32 %v908, %v1032
      %v1034 = vpop.f32.mrb[0].mxu0
      %v1035 = vpop.f32.mrb[0].mxu0
      %v1036 = vadd.f32 %v908, %v1035
      %v1037 = vpop.f32.mrb[0].mxu0
      %1038 = vmatprep.mubr.bf16.mxu0 0
      %1039 = vmatmul.mubr.bf16.gmra.mrb[0].mxu0 %v885
      %v1040 = vpop.f32.mrb[0].mxu0
      %v1041 = vadd.f32 %v908, %v1040
      %v1042 = vpop.f32.mrb[0].mxu0
      %v1043 = vpop.f32.mrb[0].mxu0
      %v1044 = vadd.f32 %v908, %v1043
      %v1045 = vpop.f32.mrb[0].mxu0
      %1046 = vmatprep.mubr.bf16.mxu0 0
      %1047 = vmatmul.mubr.bf16.gmra.mrb[0].mxu0 %v886
      %v1048 = vpop.f32.mrb[0].mxu0
      %v1049 = vadd.f32 %v908, %v1048
      %v1050 = vpop.f32.mrb[0].mxu0
      %v1051 = vpop.f32.mrb[0].mxu0
      %v1052 = vadd.f32 %v908, %v1051
      %v1053 = vpop.f32.mrb[0].mxu0
      %1054 = vdwg.mxu0
      %1055 = vst [vmem:[%s398] sm:$0xff] %v993
      %1056 = vst [vmem:[%s398 + $0x8] sm:$0xff] %v996
      %1057 = vst [vmem:[%s398 + $0x10] sm:$0xff] %v1001
      %1058 = vst [vmem:[%s398 + $0x18] sm:$0xff] %v1004
      %1059 = vst [vmem:[%s398 + $0x20] sm:$0xff] %v1009
      %1060 = vst [vmem:[%s398 + $0x28] sm:$0xff] %v1012
      %1061 = vst [vmem:[%s398 + $0x30] sm:$0xff] %v1017
      %1062 = vst [vmem:[%s398 + $0x38] sm:$0xff] %v1020
      %1063 = vst [vmem:[%s398 + $0x40] sm:$0xff] %v1025
      %1064 = vst [vmem:[%s398 + $0x48] sm:$0xff] %v1028
      %1065 = vst [vmem:[%s398 + $0x50] sm:$0xff] %v1033
      %1066 = vst [vmem:[%s398 + $0x58] sm:$0xff] %v1036
      %1067 = vst [vmem:[%s398 + $0x60] sm:$0xff] %v1041
      %1068 = vst [vmem:[%s398 + $0x68] sm:$0xff] %v1044
      %1069 = vst [vmem:[%s398 + $0x70] sm:$0xff] %v1049
      %1070 = vst [vmem:[%s398 + $0x78] sm:$0xff] %v1052
      %s1071 = smul.u32 16, %s22
      %p1072 = scmp.lt.s32.totalorder %s23, 2
      %s1073 = scalar_select %p1072, %s23, 2
      %p1074 = scmp.lt.s32.totalorder %s1071, 15
      %s1075 = scalar_select %p1074, %s1071, 15
      %s1076 = smul.addr %s1073, 16
      %s1077 = sadd.s32 %s1075, %s1076
      %s1078 = smul.addr %s1077, 8
      %s1079 = scalar_lea.vmem %s7, %s1078
      // Predicated region
      $region49: #{_lambda_.6} parent=47 // pred_check
        %p1080 = pneg %p232
      $region50: #{_lambda_.6} parent=47 // pred_check_branch
        %1082 = sbr.rel (%p1080) target = $region52
      $region51: #{_lambda_.6} parent=47 // pred_region
        %s1083 = smul.u32 16, %s22
      $region52: #{_lambda_.6} parent=47 // pred_fallthru
        _
    $region48: #{_lambda_.6} parent=5 // pred_fallthru
      _
    %p1084 = scmp.le.s32.totalorder 2, %s13
    // Predicated region
    $region53: #{_lambda_.6} parent=5 // pred_check
      %p1085 = pneg %p1084
    $region54: #{_lambda_.6} parent=5 // pred_check_branch
      %1087 = sbr.rel (%p1085) target = $region56
    $region55: #{_lambda_.6} parent=5 // pred_region
      %s1088 = ssub.s32 %s13, 2
      // Predicated region
      $region57: #{_lambda_.6} parent=55 // pred_check
        %p1089 = pneg %p238
      $region58: #{_lambda_.6} parent=55 // pred_check_branch
        %1091 = sbr.rel (%p1089) target = $region60
      $region59: #{_lambda_.6} parent=55 // pred_region
        %s1092 = smul.u32 16, %s24
        %p1093 = scmp.lt.s32.totalorder %s25, 2
        %s1094 = scalar_select %p1093, %s25, 2
        %p1095 = scmp.lt.s32.totalorder %s1092, 15
        %s1096 = scalar_select %p1095, %s1092, 15
        %s1097 = smul.addr %s1094, 16
        %s1098 = sadd.s32 %s1096, %s1097
        %s1099 = smul.addr %s1098, 8
        %s1100 = scalar_lea.vmem %s7, %s1099
      $region60: #{_lambda_.6} parent=55 // pred_fallthru
        _
    $region56: #{_lambda_.6} parent=5 // pred_fallthru
      _
  $region6: #{_lambda_.6} parent=0 // loop_footer
    %s17 = sadd.s32 1, %s13
  $region7: #{_lambda_.6} parent=0 // loop_footer_branch
    %12 = sbr.rel target = $region3
  $region8: #{_lambda_.6} parent=0 // loop_exit
    _

// kernel: _lambda_.10
$region0: #{_lambda_.10}
  #allocation0 [shape = 'u32[]', space=smem, size = 0x4, offset = 0x4, fixed_abs, tag = 'smem constant byte address 0x4 - core index']
  #allocation1 [shape = 'u32[144,128]{1,0:T(1,128)}', space=vmem, size = 0x12000, scoped, tag = 'internal scratch']
  %s0 = inlined_call_operand.hbm [shape: f32[1,128,128], index: 0, kind: input, shape index: {}]
  %s1 = inlined_call_operand.vmem [shape: bf16[1,128,128], index: 1, kind: input, shape index: {}]
  %s2 = inlined_call_operand.vmem [shape: f32[1,1,128], index: 2, kind: input, shape index: {}]
  %s3 = inlined_call_operand.vmem [shape: f32[1,1,128], index: 3, kind: input, shape index: {}]
  %s4 = inlined_call_operand.vmem [shape: f32[1,1,128], index: 4, kind: input, shape index: {}]
  %s5 = inlined_call_operand.vmem [shape: bf16[1,128,128], index: 5, kind: input, shape index: {}]
  %s6 = inlined_call_operand.vmem [shape: f32[1,1,128], index: 6, kind: input, shape index: {}]
  %s7 = inlined_call_operand.vmem [shape: f32[1,128,128], index: 7, kind: output, shape index: {}]
  %s8 = sld [smem:[#allocation0]]
  $region42: #{_lambda_.10} parent=0
    _
  %s10 = ssub.s32 1, %s8
  %s11 = scalar_select 0, %s10, %s8
  $region1: #{_lambda_.10} parent=0
    #allocation2 [shape = 'u8[65536]{0}', space=vmem, size = 0x10000, scoped, tag = 'input window, operand 0, single buffered']
    #allocation3 [shape = 's32[1]{0}', space=sflag, size = 0x4, scoped, tag = 'scoped memory for _lambda_.10']
    %12 = vsyncpa [#allocation3], 0
    // Predicated region
    $region2: #{_lambda_.10} parent=1 // pred_check
      _
    $region3: #{_lambda_.10} parent=1 // pred_check_branch
      %14 = sbr.rel (0) target = $region5
    $region4: #{_lambda_.10} parent=1 // pred_region
      %s16 = ssub.s32 2048, 2048
      %17 = vsyncadd [#allocation3], %s16
      %s18 = sshll.u32 [#allocation2], 4
      %s19 = int_to_ptr.vmem [resolvable:$true] %s18
      %24 = dma.hbm_to_vmem [thread:$0]  %s0, 2048, %s19, [#allocation3], 128, 128, 8
    $region5: #{_lambda_.10} parent=1 // pred_fallthru
      _
    // Predicated region
    $region6: #{_lambda_.10} parent=1 // pred_check
      _
    $region7: #{_lambda_.10} parent=1 // pred_check_branch
      %26 = sbr.rel (0) target = $region9
    $region8: #{_lambda_.10} parent=1 // pred_region
      _
    $region9: #{_lambda_.10} parent=1 // pred_fallthru
      _
    // Predicated region
    $region10: #{_lambda_.10} parent=1 // pred_check
      _
    $region11: #{_lambda_.10} parent=1 // pred_check_branch
      %28 = sbr.rel (0) target = $region13
    $region12: #{_lambda_.10} parent=1 // pred_region
      _
    $region13: #{_lambda_.10} parent=1 // pred_fallthru
      _
    // Predicated region
    $region14: #{_lambda_.10} parent=1 // pred_check
      _
    $region15: #{_lambda_.10} parent=1 // pred_check_branch
      %30 = sbr.rel (0) target = $region17
    $region16: #{_lambda_.10} parent=1 // pred_region
      _
    $region17: #{_lambda_.10} parent=1 // pred_fallthru
      _
    // Predicated region
    $region18: #{_lambda_.10} parent=1 // pred_check
      _
    $region19: #{_lambda_.10} parent=1 // pred_check_branch
      %32 = sbr.rel (0) target = $region21
    $region20: #{_lambda_.10} parent=1 // pred_region
      _
    $region21: #{_lambda_.10} parent=1 // pred_fallthru
      _
    // Predicated region
    $region22: #{_lambda_.10} parent=1 // pred_check
      _
    $region23: #{_lambda_.10} parent=1 // pred_check_branch
      %34 = sbr.rel (0) target = $region25
    $region24: #{_lambda_.10} parent=1 // pred_region
      _
    $region25: #{_lambda_.10} parent=1 // pred_fallthru
      _
    // Predicated region
    $region26: #{_lambda_.10} parent=1 // pred_check
      _
    $region27: #{_lambda_.10} parent=1 // pred_check_branch
      %36 = sbr.rel (0) target = $region29
    $region28: #{_lambda_.10} parent=1 // pred_region
      _
    $region29: #{_lambda_.10} parent=1 // pred_fallthru
      _
    // Predicated region
    $region30: #{_lambda_.10} parent=1 // pred_check
      _
    $region31: #{_lambda_.10} parent=1 // pred_check_branch
      %38 = sbr.rel (0) target = $region33
    $region32: #{_lambda_.10} parent=1 // pred_region
      %39 = dma.done [#allocation3], 2048
    $region33: #{_lambda_.10} parent=1 // pred_fallthru
      _
    %v41 = vld [vmem:[#allocation2] sm:$0xff]
    %v42 = vld [vmem:[#allocation2 + $0x8] sm:$0xff]
    %v43 = vld [vmem:[#allocation2 + $0x10] sm:$0xff]
    %v44 = vld [vmem:[#allocation2 + $0x18] sm:$0xff]
    %v45 = vld [vmem:[#allocation2 + $0x20] sm:$0xff]
    %v46 = vld [vmem:[#allocation2 + $0x28] sm:$0xff]
    %v47 = vld [vmem:[#allocation2 + $0x30] sm:$0xff]
    %v48 = vld [vmem:[#allocation2 + $0x38] sm:$0xff]
    %v49 = vld [vmem:[#allocation2 + $0x40] sm:$0xff]
    %v50 = vld [vmem:[#allocation2 + $0x48] sm:$0xff]
    %v51 = vld [vmem:[#allocation2 + $0x50] sm:$0xff]
    %v52 = vld [vmem:[#allocation2 + $0x58] sm:$0xff]
    %v53 = vld [vmem:[#allocation2 + $0x60] sm:$0xff]
    %v54 = vld [vmem:[#allocation2 + $0x68] sm:$0xff]
    %v55 = vld [vmem:[#allocation2 + $0x70] sm:$0xff]
    %v56 = vld [vmem:[#allocation2 + $0x78] sm:$0xff]
    %v57 = vpack.c.bf16 %v42, %v41
    %v58 = vpack.c.bf16 %v44, %v43
    %v59 = vpack.c.bf16 %v46, %v45
    %v60 = vpack.c.bf16 %v48, %v47
    %v61 = vpack.c.bf16 %v50, %v49
    %v62 = vpack.c.bf16 %v52, %v51
    %v63 = vpack.c.bf16 %v54, %v53
    %v64 = vpack.c.bf16 %v56, %v55
    %v65 = vld [vmem:[%s1] sm:$0xf]
    %v66 = vld [vmem:[%s1 + $0x4] sm:$0xf]
    %v67 = vld [vmem:[%s1 + $0x8] sm:$0xf]
    %v68 = vld [vmem:[%s1 + $0xc] sm:$0xf]
    %v69 = vld [vmem:[%s1 + $0x10] sm:$0xf]
    %v70 = vld [vmem:[%s1 + $0x14] sm:$0xf]
    %v71 = vld [vmem:[%s1 + $0x18] sm:$0xf]
    %v72 = vld [vmem:[%s1 + $0x1c] sm:$0xf]
    %v73 = vld [vmem:[%s1 + $0x20] sm:$0xf]
    %v74 = vld [vmem:[%s1 + $0x24] sm:$0xf]
    %v75 = vld [vmem:[%s1 + $0x28] sm:$0xf]
    %v76 = vld [vmem:[%s1 + $0x2c] sm:$0xf]
    %v77 = vld [vmem:[%s1 + $0x30] sm:$0xf]
    %v78 = vld [vmem:[%s1 + $0x34] sm:$0xf]
    %v79 = vld [vmem:[%s1 + $0x38] sm:$0xf]
    %v80 = vld [vmem:[%s1 + $0x3c] sm:$0xf]
    %v81 = vld [vmem:[%s2] sm:$0x1]
    %v83 = vlaneseq
    %v84 = vshrl.u32 %v83, 7
    %v85 = vsub.s32 0, %v84
    %v86 = vrot.slane %v81, %v85
    %v104 = vunpack.c.l.b16 %v65
    %v105 = vunpack.c.l.b16 %v66
    %v106 = vunpack.c.l.b16 %v67
    %v107 = vunpack.c.l.b16 %v68
    %v108 = vunpack.c.l.b16 %v69
    %v109 = vunpack.c.l.b16 %v70
    %v110 = vunpack.c.l.b16 %v71
    %v111 = vunpack.c.l.b16 %v72
    %v112 = vunpack.c.l.b16 %v73
    %v113 = vunpack.c.l.b16 %v74
    %v114 = vunpack.c.l.b16 %v75
    %v115 = vunpack.c.l.b16 %v76
    %v116 = vunpack.c.l.b16 %v77
    %v117 = vunpack.c.l.b16 %v78
    %v118 = vunpack.c.l.b16 %v79
    %v119 = vunpack.c.l.b16 %v80
    %v120 = vpack.c.b16 %v105, %v104
    %v121 = vpack.c.b16 %v107, %v106
    %v122 = vpack.c.b16 %v109, %v108
    %v123 = vpack.c.b16 %v111, %v110
    %v124 = vpack.c.b16 %v113, %v112
    %v125 = vpack.c.b16 %v115, %v114
    %v126 = vpack.c.b16 %v117, %v116
    %v127 = vpack.c.b16 %v119, %v118
    %136 = vmatprep.subr.bf16.mxu0 0
    %137 = vmatpush1.bf16.msra.mxu0 %v120
    %138 = vmatprep.subr.bf16.mxu0 0
    %139 = vmatpush1.bf16.msra.mxu0 %v121
    %140 = vmatprep.subr.bf16.mxu0 0
    %141 = vmatpush1.bf16.msra.mxu0 %v122
    %142 = vmatprep.subr.bf16.mxu0 0
    %143 = vmatpush1.bf16.msra.mxu0 %v123
    %144 = vmatprep.subr.bf16.mxu0 0
    %145 = vmatpush1.bf16.msra.mxu0 %v124
    %146 = vmatprep.subr.bf16.mxu0 0
    %147 = vmatpush1.bf16.msra.mxu0 %v125
    %148 = vmatprep.subr.bf16.mxu0 0
    %149 = vmatpush1.bf16.msra.mxu0 %v126
    %150 = vmatprep.subr.bf16.mxu0 0
    %151 = vmatpush1.bf16.msra.mxu0 %v127
    %152 = vmatprep.subr.bf16.mxu0 0
    %153 = vmatpush1.bf16.msra.mxu0 0
    %154 = vmatprep.subr.bf16.mxu0 0
    %155 = vmatpush1.bf16.msra.mxu0 0
    %156 = vmatprep.subr.bf16.mxu0 0
    %157 = vmatpush1.bf16.msra.mxu0 0
    %158 = vmatprep.subr.bf16.mxu0 0
    %159 = vmatpush1.bf16.msra.mxu0 0
    %160 = vmatprep.subr.bf16.mxu0 0
    %161 = vmatpush1.bf16.msra.mxu0 0
    %162 = vmatprep.subr.bf16.mxu0 0
    %163 = vmatpush1.bf16.msra.mxu0 0
    %164 = vmatprep.subr.bf16.mxu0 0
    %165 = vmatpush1.bf16.msra.mxu0 0
    %166 = vmatprep.subr.bf16.mxu0 0
    %167 = vmatpush1.bf16.msra.mxu0 0
    %168 = vmatprep.mubr.bf16.mxu0 0
    %169 = vmatmul.mubr.bf16.gmra.mrb[0].mxu0 %v57
    %v170 = vpop.f32.mrb[0].mxu0
    %v171 = vadd.f32 %v86, %v170
    %v172 = vpop.f32.mrb[0].mxu0
    %v173 = vpop.f32.mrb[0].mxu0
    %v174 = vadd.f32 %v86, %v173
    %v175 = vpop.f32.mrb[0].mxu0
    %176 = vmatprep.mubr.bf16.mxu0 0
    %177 = vmatmul.mubr.bf16.gmra.mrb[0].mxu0 %v58
    %v178 = vpop.f32.mrb[0].mxu0
    %v179 = vadd.f32 %v86, %v178
    %v180 = vpop.f32.mrb[0].mxu0
    %v181 = vpop.f32.mrb[0].mxu0
    %v182 = vadd.f32 %v86, %v181
    %v183 = vpop.f32.mrb[0].mxu0
    %184 = vmatprep.mubr.bf16.mxu0 0
    %185 = vmatmul.mubr.bf16.gmra.mrb[0].mxu0 %v59
    %v186 = vpop.f32.mrb[0].mxu0
    %v187 = vadd.f32 %v86, %v186
    %v188 = vpop.f32.mrb[0].mxu0
    %v189 = vpop.f32.mrb[0].mxu0
    %v190 = vadd.f32 %v86, %v189
    %v191 = vpop.f32.mrb[0].mxu0
    %192 = vmatprep.mubr.bf16.mxu0 0
    %193 = vmatmul.mubr.bf16.gmra.mrb[0].mxu0 %v60
    %v194 = vpop.f32.mrb[0].mxu0
    %v195 = vadd.f32 %v86, %v194
    %v196 = vpop.f32.mrb[0].mxu0
    %v197 = vpop.f32.mrb[0].mxu0
    %v198 = vadd.f32 %v86, %v197
    %v199 = vpop.f32.mrb[0].mxu0
    %200 = vmatprep.mubr.bf16.mxu0 0
    %201 = vmatmul.mubr.bf16.gmra.mrb[0].mxu0 %v61
    %v202 = vpop.f32.mrb[0].mxu0
    %v203 = vadd.f32 %v86, %v202
    %v204 = vpop.f32.mrb[0].mxu0
    %v205 = vpop.f32.mrb[0].mxu0
    %v206 = vadd.f32 %v86, %v205
    %v207 = vpop.f32.mrb[0].mxu0
    %208 = vmatprep.mubr.bf16.mxu0 0
    %209 = vmatmul.mubr.bf16.gmra.mrb[0].mxu0 %v62
    %v210 = vpop.f32.mrb[0].mxu0
    %v211 = vadd.f32 %v86, %v210
    %v212 = vpop.f32.mrb[0].mxu0
    %v213 = vpop.f32.mrb[0].mxu0
    %v214 = vadd.f32 %v86, %v213
    %v215 = vpop.f32.mrb[0].mxu0
    %216 = vmatprep.mubr.bf16.mxu0 0
    %217 = vmatmul.mubr.bf16.gmra.mrb[0].mxu0 %v63
    %v218 = vpop.f32.mrb[0].mxu0
    %v219 = vadd.f32 %v86, %v218
    %v220 = vpop.f32.mrb[0].mxu0
    %v221 = vpop.f32.mrb[0].mxu0
    %v222 = vadd.f32 %v86, %v221
    %v223 = vpop.f32.mrb[0].mxu0
    %224 = vmatprep.mubr.bf16.mxu0 0
    %225 = vmatmul.mubr.bf16.gmra.mrb[0].mxu0 %v64
    %v226 = vpop.f32.mrb[0].mxu0
    %v227 = vadd.f32 %v86, %v226
    %v228 = vpop.f32.mrb[0].mxu0
    %v229 = vpop.f32.mrb[0].mxu0
    %v230 = vadd.f32 %v86, %v229
    %v231 = vpop.f32.mrb[0].mxu0
    %232 = vdwg.mxu0
    %233 = vadd.xlane.f32.xlu0 %v171
    %v234 = vpop.xlane.xlu0 %233
    %235 = vadd.xlane.f32.xlu0 %v174
    %v236 = vpop.xlane.xlu0 %235
    %237 = vadd.xlane.f32.xlu0 %v179
    %v238 = vpop.xlane.xlu0 %237
    %239 = vadd.xlane.f32.xlu0 %v182
    %v240 = vpop.xlane.xlu0 %239
    %241 = vadd.xlane.f32.xlu0 %v187
    %v242 = vpop.xlane.xlu0 %241
    %243 = vadd.xlane.f32.xlu0 %v190
    %v244 = vpop.xlane.xlu0 %243
    %245 = vadd.xlane.f32.xlu0 %v195
    %v246 = vpop.xlane.xlu0 %245
    %247 = vadd.xlane.f32.xlu0 %v198
    %v248 = vpop.xlane.xlu0 %247
    %249 = vadd.xlane.f32.xlu0 %v203
    %v250 = vpop.xlane.xlu0 %249
    %251 = vadd.xlane.f32.xlu0 %v206
    %v252 = vpop.xlane.xlu0 %251
    %253 = vadd.xlane.f32.xlu0 %v211
    %v254 = vpop.xlane.xlu0 %253
    %255 = vadd.xlane.f32.xlu0 %v214
    %v256 = vpop.xlane.xlu0 %255
    %257 = vadd.xlane.f32.xlu0 %v219
    %v258 = vpop.xlane.xlu0 %257
    %259 = vadd.xlane.f32.xlu0 %v222
    %v260 = vpop.xlane.xlu0 %259
    %261 = vadd.xlane.f32.xlu0 %v227
    %v262 = vpop.xlane.xlu0 %261
    %263 = vadd.xlane.f32.xlu0 %v230
    %v264 = vpop.xlane.xlu0 %263
    %v265 = vmul.f32 %v234, 0.0625
    %v266 = vmul.f32 %v236, 0.0625
    %v267 = vmul.f32 %v238, 0.0625
    %v268 = vmul.f32 %v240, 0.0625
    %v269 = vmul.f32 %v242, 0.0625
    %v270 = vmul.f32 %v244, 0.0625
    %v271 = vmul.f32 %v246, 0.0625
    %v272 = vmul.f32 %v248, 0.0625
    %v273 = vmul.f32 %v250, 0.0625
    %v274 = vmul.f32 %v252, 0.0625
    %v275 = vmul.f32 %v254, 0.0625
    %v276 = vmul.f32 %v256, 0.0625
    %v277 = vmul.f32 %v258, 0.0625
    %v278 = vmul.f32 %v260, 0.0625
    %v279 = vmul.f32 %v262, 0.0625
    %v280 = vmul.f32 %v264, 0.0625
    %v281 = vmul.f32 %v171, %v171
    %v282 = vmul.f32 %v174, %v174
    %v283 = vmul.f32 %v179, %v179
    %v284 = vmul.f32 %v182, %v182
    %v285 = vmul.f32 %v187, %v187
    %v286 = vmul.f32 %v190, %v190
    %v287 = vmul.f32 %v195, %v195
    %v288 = vmul.f32 %v198, %v198
    %v289 = vmul.f32 %v203, %v203
    %v290 = vmul.f32 %v206, %v206
    %v291 = vmul.f32 %v211, %v211
    %v292 = vmul.f32 %v214, %v214
    %v293 = vmul.f32 %v219, %v219
    %v294 = vmul.f32 %v222, %v222
    %v295 = vmul.f32 %v227, %v227
    %v296 = vmul.f32 %v230, %v230
    %297 = vadd.xlane.f32.xlu0 %v281
    %v298 = vpop.xlane.xlu0 %297
    %299 = vadd.xlane.f32.xlu0 %v282
    %v300 = vpop.xlane.xlu0 %299
    %301 = vadd.xlane.f32.xlu0 %v283
    %v302 = vpop.xlane.xlu0 %301
    %303 = vadd.xlane.f32.xlu0 %v284
    %v304 = vpop.xlane.xlu0 %303
    %305 = vadd.xlane.f32.xlu0 %v285
    %v306 = vpop.xlane.xlu0 %305
    %307 = vadd.xlane.f32.xlu0 %v286
    %v308 = vpop.xlane.xlu0 %307
    %309 = vadd.xlane.f32.xlu0 %v287
    %v310 = vpop.xlane.xlu0 %309
    %311 = vadd.xlane.f32.xlu0 %v288
    %v312 = vpop.xlane.xlu0 %311
    %313 = vadd.xlane.f32.xlu0 %v289
    %v314 = vpop.xlane.xlu0 %313
    %315 = vadd.xlane.f32.xlu0 %v290
    %v316 = vpop.xlane.xlu0 %315
    %317 = vadd.xlane.f32.xlu0 %v291
    %v318 = vpop.xlane.xlu0 %317
    %319 = vadd.xlane.f32.xlu0 %v292
    %v320 = vpop.xlane.xlu0 %319
    %321 = vadd.xlane.f32.xlu0 %v293
    %v322 = vpop.xlane.xlu0 %321
    %323 = vadd.xlane.f32.xlu0 %v294
    %v324 = vpop.xlane.xlu0 %323
    %325 = vadd.xlane.f32.xlu0 %v295
    %v326 = vpop.xlane.xlu0 %325
    %327 = vadd.xlane.f32.xlu0 %v296
    %v328 = vpop.xlane.xlu0 %327
    %v329 = vmul.f32 %v298, 0.0625
    %v330 = vmul.f32 %v300, 0.0625
    %v331 = vmul.f32 %v302, 0.0625
    %v332 = vmul.f32 %v304, 0.0625
    %v333 = vmul.f32 %v306, 0.0625
    %v334 = vmul.f32 %v308, 0.0625
    %v335 = vmul.f32 %v310, 0.0625
    %v336 = vmul.f32 %v312, 0.0625
    %v337 = vmul.f32 %v314, 0.0625
    %v338 = vmul.f32 %v316, 0.0625
    %v339 = vmul.f32 %v318, 0.0625
    %v340 = vmul.f32 %v320, 0.0625
    %v341 = vmul.f32 %v322, 0.0625
    %v342 = vmul.f32 %v324, 0.0625
    %v343 = vmul.f32 %v326, 0.0625
    %v344 = vmul.f32 %v328, 0.0625
    %v345 = vmul.f32 %v265, %v265
    %v346 = vmul.f32 %v266, %v266
    %v347 = vmul.f32 %v267, %v267
    %v348 = vmul.f32 %v268, %v268
    %v349 = vmul.f32 %v269, %v269
    %v350 = vmul.f32 %v270, %v270
    %v351 = vmul.f32 %v271, %v271
    %v352 = vmul.f32 %v272, %v272
    %v353 = vmul.f32 %v273, %v273
    %v354 = vmul.f32 %v274, %v274
    %v355 = vmul.f32 %v275, %v275
    %v356 = vmul.f32 %v276, %v276
    %v357 = vmul.f32 %v277, %v277
    %v358 = vmul.f32 %v278, %v278
    %v359 = vmul.f32 %v279, %v279
    %v360 = vmul.f32 %v280, %v280
    %v361 = vsub.f32 %v329, %v345
    %v362 = vsub.f32 %v330, %v346
    %v363 = vsub.f32 %v331, %v347
    %v364 = vsub.f32 %v332, %v348
    %v365 = vsub.f32 %v333, %v349
    %v366 = vsub.f32 %v334, %v350
    %v367 = vsub.f32 %v335, %v351
    %v368 = vsub.f32 %v336, %v352
    %v369 = vsub.f32 %v337, %v353
    %v370 = vsub.f32 %v338, %v354
    %v371 = vsub.f32 %v339, %v355
    %v372 = vsub.f32 %v340, %v356
    %v373 = vsub.f32 %v341, %v357
    %v374 = vsub.f32 %v342, %v358
    %v375 = vsub.f32 %v343, %v359
    %v376 = vsub.f32 %v344, %v360
    %v377 = vmax.f32 %v361, 0.0
    %v378 = vmax.f32 %v362, 0.0
    %v379 = vmax.f32 %v363, 0.0
    %v380 = vmax.f32 %v364, 0.0
    %v381 = vmax.f32 %v365, 0.0
    %v382 = vmax.f32 %v366, 0.0
    %v383 = vmax.f32 %v367, 0.0
    %v384 = vmax.f32 %v368, 0.0
    %v385 = vmax.f32 %v369, 0.0
    %v386 = vmax.f32 %v370, 0.0
    %v387 = vmax.f32 %v371, 0.0
    %v388 = vmax.f32 %v372, 0.0
    %v389 = vmax.f32 %v373, 0.0
    %v390 = vmax.f32 %v374, 0.0
    %v391 = vmax.f32 %v375, 0.0
    %v392 = vmax.f32 %v376, 0.0
    %v393 = vsub.f32 %v171, %v265
    %v394 = vsub.f32 %v174, %v266
    %v395 = vsub.f32 %v179, %v267
    %v396 = vsub.f32 %v182, %v268
    %v397 = vsub.f32 %v187, %v269
    %v398 = vsub.f32 %v190, %v270
    %v399 = vsub.f32 %v195, %v271
    %v400 = vsub.f32 %v198, %v272
    %v401 = vsub.f32 %v203, %v273
    %v402 = vsub.f32 %v206, %v274
    %v403 = vsub.f32 %v211, %v275
    %v404 = vsub.f32 %v214, %v276
    %v405 = vsub.f32 %v219, %v277
    %v406 = vsub.f32 %v222, %v278
    %v407 = vsub.f32 %v227, %v279
    %v408 = vsub.f32 %v230, %v280
    %v409 = vadd.f32 %v377, 1e-05
    %v410 = vadd.f32 %v378, 1e-05
    %v411 = vadd.f32 %v379, 1e-05
    %v412 = vadd.f32 %v380, 1e-05
    %v413 = vadd.f32 %v381, 1e-05
    %v414 = vadd.f32 %v382, 1e-05
    %v415 = vadd.f32 %v383, 1e-05
    %v416 = vadd.f32 %v384, 1e-05
    %v417 = vadd.f32 %v385, 1e-05
    %v418 = vadd.f32 %v386, 1e-05
    %v419 = vadd.f32 %v387, 1e-05
    %v420 = vadd.f32 %v388, 1e-05
    %v421 = vadd.f32 %v389, 1e-05
    %v422 = vadd.f32 %v390, 1e-05
    %v423 = vadd.f32 %v391, 1e-05
    %v424 = vadd.f32 %v392, 1e-05
    %v425 = vrsqrt.pop %v409
    %v426 = vrsqrt.pop %v410
    %v427 = vrsqrt.pop %v411
    %v428 = vrsqrt.pop %v412
    %v429 = vrsqrt.pop %v413
    %v430 = vrsqrt.pop %v414
    %v431 = vrsqrt.pop %v415
    %v432 = vrsqrt.pop %v416
    %v433 = vrsqrt.pop %v417
    %v434 = vrsqrt.pop %v418
    %v435 = vrsqrt.pop %v419
    %v436 = vrsqrt.pop %v420
    %v437 = vrsqrt.pop %v421
    %v438 = vrsqrt.pop %v422
    %v439 = vrsqrt.pop %v423
    %v440 = vrsqrt.pop %v424
    %v441 = vmul.f32 %v393, %v425
    %v442 = vmul.f32 %v394, %v426
    %v443 = vmul.f32 %v395, %v427
    %v444 = vmul.f32 %v396, %v428
    %v445 = vmul.f32 %v397, %v429
    %v446 = vmul.f32 %v398, %v430
    %v447 = vmul.f32 %v399, %v431
    %v448 = vmul.f32 %v400, %v432
    %v449 = vmul.f32 %v401, %v433
    %v450 = vmul.f32 %v402, %v434
    %v451 = vmul.f32 %v403, %v435
    %v452 = vmul.f32 %v404, %v436
    %v453 = vmul.f32 %v405, %v437
    %v454 = vmul.f32 %v406, %v438
    %v455 = vmul.f32 %v407, %v439
    %v456 = vmul.f32 %v408, %v440
    %v457 = vld [vmem:[%s3] sm:$0x1]
    %v459 = vlaneseq
    %v460 = vshrl.u32 %v459, 7
    %v461 = vsub.s32 0, %v460
    %v462 = vrot.slane %v457, %v461
    %v464 = vmul.f32 %v441, %v462
    %v465 = vmul.f32 %v442, %v462
    %v466 = vmul.f32 %v443, %v462
    %v467 = vmul.f32 %v444, %v462
    %v468 = vmul.f32 %v445, %v462
    %v469 = vmul.f32 %v446, %v462
    %v470 = vmul.f32 %v447, %v462
    %v471 = vmul.f32 %v448, %v462
    %v472 = vmul.f32 %v449, %v462
    %v473 = vmul.f32 %v450, %v462
    %v474 = vmul.f32 %v451, %v462
    %v475 = vmul.f32 %v452, %v462
    %v476 = vmul.f32 %v453, %v462
    %v477 = vmul.f32 %v454, %v462
    %v478 = vmul.f32 %v455, %v462
    %v479 = vmul.f32 %v456, %v462
    %v480 = vld [vmem:[%s4] sm:$0x1]
    %v482 = vlaneseq
    %v483 = vshrl.u32 %v482, 7
    %v484 = vsub.s32 0, %v483
    %v485 = vrot.slane %v480, %v484
    %v487 = vadd.f32 %v464, %v485
    %v488 = vadd.f32 %v465, %v485
    %v489 = vadd.f32 %v466, %v485
    %v490 = vadd.f32 %v467, %v485
    %v491 = vadd.f32 %v468, %v485
    %v492 = vadd.f32 %v469, %v485
    %v493 = vadd.f32 %v470, %v485
    %v494 = vadd.f32 %v471, %v485
    %v495 = vadd.f32 %v472, %v485
    %v496 = vadd.f32 %v473, %v485
    %v497 = vadd.f32 %v474, %v485
    %v498 = vadd.f32 %v475, %v485
    %v499 = vadd.f32 %v476, %v485
    %v500 = vadd.f32 %v477, %v485
    %v501 = vadd.f32 %v478, %v485
    %v502 = vadd.f32 %v479, %v485
    %v503 = vmax.f32 %v487, 0.0
    %v504 = vmax.f32 %v488, 0.0
    %v505 = vmax.f32 %v489, 0.0
    %v506 = vmax.f32 %v490, 0.0
    %v507 = vmax.f32 %v491, 0.0
    %v508 = vmax.f32 %v492, 0.0
    %v509 = vmax.f32 %v493, 0.0
    %v510 = vmax.f32 %v494, 0.0
    %v511 = vmax.f32 %v495, 0.0
    %v512 = vmax.f32 %v496, 0.0
    %v513 = vmax.f32 %v497, 0.0
    %v514 = vmax.f32 %v498, 0.0
    %v515 = vmax.f32 %v499, 0.0
    %v516 = vmax.f32 %v500, 0.0
    %v517 = vmax.f32 %v501, 0.0
    %v518 = vmax.f32 %v502, 0.0
    %v519 = vpack.c.bf16 %v504, %v503
    %v520 = vpack.c.bf16 %v506, %v505
    %v521 = vpack.c.bf16 %v508, %v507
    %v522 = vpack.c.bf16 %v510, %v509
    %v523 = vpack.c.bf16 %v512, %v511
    %v524 = vpack.c.bf16 %v514, %v513
    %v525 = vpack.c.bf16 %v516, %v515
    %v526 = vpack.c.bf16 %v518, %v517
    %v527 = vld [vmem:[%s5] sm:$0xf]
    %v528 = vld [vmem:[%s5 + $0x4] sm:$0xf]
    %v529 = vld [vmem:[%s5 + $0x8] sm:$0xf]
    %v530 = vld [vmem:[%s5 + $0xc] sm:$0xf]
    %v531 = vld [vmem:[%s5 + $0x10] sm:$0xf]
    %v532 = vld [vmem:[%s5 + $0x14] sm:$0xf]
    %v533 = vld [vmem:[%s5 + $0x18] sm:$0xf]
    %v534 = vld [vmem:[%s5 + $0x1c] sm:$0xf]
    %v535 = vld [vmem:[%s5 + $0x20] sm:$0xf]
    %v536 = vld [vmem:[%s5 + $0x24] sm:$0xf]
    %v537 = vld [vmem:[%s5 + $0x28] sm:$0xf]
    %v538 = vld [vmem:[%s5 + $0x2c] sm:$0xf]
    %v539 = vld [vmem:[%s5 + $0x30] sm:$0xf]
    %v540 = vld [vmem:[%s5 + $0x34] sm:$0xf]
    %v541 = vld [vmem:[%s5 + $0x38] sm:$0xf]
    %v542 = vld [vmem:[%s5 + $0x3c] sm:$0xf]
    %v543 = vld [vmem:[%s6] sm:$0x1]
    %v545 = vlaneseq
    %v546 = vshrl.u32 %v545, 7
    %v547 = vsub.s32 0, %v546
    %v548 = vrot.slane %v543, %v547
    %v566 = vunpack.c.l.b16 %v527
    %v567 = vunpack.c.l.b16 %v528
    %v568 = vunpack.c.l.b16 %v529
    %v569 = vunpack.c.l.b16 %v530
    %v570 = vunpack.c.l.b16 %v531
    %v571 = vunpack.c.l.b16 %v532
    %v572 = vunpack.c.l.b16 %v533
    %v573 = vunpack.c.l.b16 %v534
    %v574 = vunpack.c.l.b16 %v535
    %v575 = vunpack.c.l.b16 %v536
    %v576 = vunpack.c.l.b16 %v537
    %v577 = vunpack.c.l.b16 %v538
    %v578 = vunpack.c.l.b16 %v539
    %v579 = vunpack.c.l.b16 %v540
    %v580 = vunpack.c.l.b16 %v541
    %v581 = vunpack.c.l.b16 %v542
    %v582 = vpack.c.b16 %v567, %v566
    %v583 = vpack.c.b16 %v569, %v568
    %v584 = vpack.c.b16 %v571, %v570
    %v585 = vpack.c.b16 %v573, %v572
    %v586 = vpack.c.b16 %v575, %v574
    %v587 = vpack.c.b16 %v577, %v576
    %v588 = vpack.c.b16 %v579, %v578
    %v589 = vpack.c.b16 %v581, %v580
    %598 = vmatprep.subr.bf16.mxu0 0
    %599 = vmatpush1.bf16.msra.mxu0 %v582
    %600 = vmatprep.subr.bf16.mxu0 0
    %601 = vmatpush1.bf16.msra.mxu0 %v583
    %602 = vmatprep.subr.bf16.mxu0 0
    %603 = vmatpush1.bf16.msra.mxu0 %v584
    %604 = vmatprep.subr.bf16.mxu0 0
    %605 = vmatpush1.bf16.msra.mxu0 %v585
    %606 = vmatprep.subr.bf16.mxu0 0
    %607 = vmatpush1.bf16.msra.mxu0 %v586
    %608 = vmatprep.subr.bf16.mxu0 0
    %609 = vmatpush1.bf16.msra.mxu0 %v587
    %610 = vmatprep.subr.bf16.mxu0 0
    %611 = vmatpush1.bf16.msra.mxu0 %v588
    %612 = vmatprep.subr.bf16.mxu0 0
    %613 = vmatpush1.bf16.msra.mxu0 %v589
    %614 = vmatprep.subr.bf16.mxu0 0
    %615 = vmatpush1.bf16.msra.mxu0 0
    %616 = vmatprep.subr.bf16.mxu0 0
    %617 = vmatpush1.bf16.msra.mxu0 0
    %618 = vmatprep.subr.bf16.mxu0 0
    %619 = vmatpush1.bf16.msra.mxu0 0
    %620 = vmatprep.subr.bf16.mxu0 0
    %621 = vmatpush1.bf16.msra.mxu0 0
    %622 = vmatprep.subr.bf16.mxu0 0
    %623 = vmatpush1.bf16.msra.mxu0 0
    %624 = vmatprep.subr.bf16.mxu0 0
    %625 = vmatpush1.bf16.msra.mxu0 0
    %626 = vmatprep.subr.bf16.mxu0 0
    %627 = vmatpush1.bf16.msra.mxu0 0
    %628 = vmatprep.subr.bf16.mxu0 0
    %629 = vmatpush1.bf16.msra.mxu0 0
    %630 = vmatprep.mubr.bf16.mxu0 0
    %631 = vmatmul.mubr.bf16.gmra.mrb[0].mxu0 %v519
    %v632 = vpop.f32.mrb[0].mxu0
    %v633 = vadd.f32 %v548, %v632
    %v634 = vpop.f32.mrb[0].mxu0
    %v635 = vpop.f32.mrb[0].mxu0
    %v636 = vadd.f32 %v548, %v635
    %v637 = vpop.f32.mrb[0].mxu0
    %638 = vmatprep.mubr.bf16.mxu0 0
    %639 = vmatmul.mubr.bf16.gmra.mrb[0].mxu0 %v520
    %v640 = vpop.f32.mrb[0].mxu0
    %v641 = vadd.f32 %v548, %v640
    %v642 = vpop.f32.mrb[0].mxu0
    %v643 = vpop.f32.mrb[0].mxu0
    %v644 = vadd.f32 %v548, %v643
    %v645 = vpop.f32.mrb[0].mxu0
    %646 = vmatprep.mubr.bf16.mxu0 0
    %647 = vmatmul.mubr.bf16.gmra.mrb[0].mxu0 %v521
    %v648 = vpop.f32.mrb[0].mxu0
    %v649 = vadd.f32 %v548, %v648
    %v650 = vpop.f32.mrb[0].mxu0
    %v651 = vpop.f32.mrb[0].mxu0
    %v652 = vadd.f32 %v548, %v651
    %v653 = vpop.f32.mrb[0].mxu0
    %654 = vmatprep.mubr.bf16.mxu0 0
    %655 = vmatmul.mubr.bf16.gmra.mrb[0].mxu0 %v522
    %v656 = vpop.f32.mrb[0].mxu0
    %v657 = vadd.f32 %v548, %v656
    %v658 = vpop.f32.mrb[0].mxu0
    %v659 = vpop.f32.mrb[0].mxu0
    %v660 = vadd.f32 %v548, %v659
    %v661 = vpop.f32.mrb[0].mxu0
    %662 = vmatprep.mubr.bf16.mxu0 0
    %663 = vmatmul.mubr.bf16.gmra.mrb[0].mxu0 %v523
    %v664 = vpop.f32.mrb[0].mxu0
    %v665 = vadd.f32 %v548, %v664
    %v666 = vpop.f32.mrb[0].mxu0
    %v667 = vpop.f32.mrb[0].mxu0
    %v668 = vadd.f32 %v548, %v667
    %v669 = vpop.f32.mrb[0].mxu0
    %670 = vmatprep.mubr.bf16.mxu0 0
    %671 = vmatmul.mubr.bf16.gmra.mrb[0].mxu0 %v524
    %v672 = vpop.f32.mrb[0].mxu0
    %v673 = vadd.f32 %v548, %v672
    %v674 = vpop.f32.mrb[0].mxu0
    %v675 = vpop.f32.mrb[0].mxu0
    %v676 = vadd.f32 %v548, %v675
    %v677 = vpop.f32.mrb[0].mxu0
    %678 = vmatprep.mubr.bf16.mxu0 0
    %679 = vmatmul.mubr.bf16.gmra.mrb[0].mxu0 %v525
    %v680 = vpop.f32.mrb[0].mxu0
    %v681 = vadd.f32 %v548, %v680
    %v682 = vpop.f32.mrb[0].mxu0
    %v683 = vpop.f32.mrb[0].mxu0
    %v684 = vadd.f32 %v548, %v683
    %v685 = vpop.f32.mrb[0].mxu0
    %686 = vmatprep.mubr.bf16.mxu0 0
    %687 = vmatmul.mubr.bf16.gmra.mrb[0].mxu0 %v526
    %v688 = vpop.f32.mrb[0].mxu0
    %v689 = vadd.f32 %v548, %v688
    %v690 = vpop.f32.mrb[0].mxu0
    %v691 = vpop.f32.mrb[0].mxu0
    %v692 = vadd.f32 %v548, %v691
    %v693 = vpop.f32.mrb[0].mxu0
    %694 = vdwg.mxu0
    %v695 = vmax.f32 %v633, 0.0
    %v696 = vmax.f32 %v636, 0.0
    %v697 = vmax.f32 %v641, 0.0
    %v698 = vmax.f32 %v644, 0.0
    %v699 = vmax.f32 %v649, 0.0
    %v700 = vmax.f32 %v652, 0.0
    %v701 = vmax.f32 %v657, 0.0
    %v702 = vmax.f32 %v660, 0.0
    %v703 = vmax.f32 %v665, 0.0
    %v704 = vmax.f32 %v668, 0.0
    %v705 = vmax.f32 %v673, 0.0
    %v706 = vmax.f32 %v676, 0.0
    %v707 = vmax.f32 %v681, 0.0
    %v708 = vmax.f32 %v684, 0.0
    %v709 = vmax.f32 %v689, 0.0
    %v710 = vmax.f32 %v692, 0.0
    %v711 = vmul.f32 %v695, %v695
    %v712 = vmul.f32 %v696, %v696
    %v713 = vmul.f32 %v697, %v697
    %v714 = vmul.f32 %v698, %v698
    %v715 = vmul.f32 %v699, %v699
    %v716 = vmul.f32 %v700, %v700
    %v717 = vmul.f32 %v701, %v701
    %v718 = vmul.f32 %v702, %v702
    %v719 = vmul.f32 %v703, %v703
    %v720 = vmul.f32 %v704, %v704
    %v721 = vmul.f32 %v705, %v705
    %v722 = vmul.f32 %v706, %v706
    %v723 = vmul.f32 %v707, %v707
    %v724 = vmul.f32 %v708, %v708
    %v725 = vmul.f32 %v709, %v709
    %v726 = vmul.f32 %v710, %v710
    %727 = vadd.xlane.f32.xlu0 %v711
    %v728 = vpop.xlane.xlu0 %727
    %729 = vadd.xlane.f32.xlu0 %v712
    %v730 = vpop.xlane.xlu0 %729
    %731 = vadd.xlane.f32.xlu0 %v713
    %v732 = vpop.xlane.xlu0 %731
    %733 = vadd.xlane.f32.xlu0 %v714
    %v734 = vpop.xlane.xlu0 %733
    %735 = vadd.xlane.f32.xlu0 %v715
    %v736 = vpop.xlane.xlu0 %735
    %737 = vadd.xlane.f32.xlu0 %v716
    %v738 = vpop.xlane.xlu0 %737
    %739 = vadd.xlane.f32.xlu0 %v717
    %v740 = vpop.xlane.xlu0 %739
    %741 = vadd.xlane.f32.xlu0 %v718
    %v742 = vpop.xlane.xlu0 %741
    %743 = vadd.xlane.f32.xlu0 %v719
    %v744 = vpop.xlane.xlu0 %743
    %745 = vadd.xlane.f32.xlu0 %v720
    %v746 = vpop.xlane.xlu0 %745
    %747 = vadd.xlane.f32.xlu0 %v721
    %v748 = vpop.xlane.xlu0 %747
    %749 = vadd.xlane.f32.xlu0 %v722
    %v750 = vpop.xlane.xlu0 %749
    %751 = vadd.xlane.f32.xlu0 %v723
    %v752 = vpop.xlane.xlu0 %751
    %753 = vadd.xlane.f32.xlu0 %v724
    %v754 = vpop.xlane.xlu0 %753
    %755 = vadd.xlane.f32.xlu0 %v725
    %v756 = vpop.xlane.xlu0 %755
    %757 = vadd.xlane.f32.xlu0 %v726
    %v758 = vpop.xlane.xlu0 %757
    %v759 = vmax.f32 %v728, 1e-24
    %v760 = vmax.f32 %v730, 1e-24
    %v761 = vmax.f32 %v732, 1e-24
    %v762 = vmax.f32 %v734, 1e-24
    %v763 = vmax.f32 %v736, 1e-24
    %v764 = vmax.f32 %v738, 1e-24
    %v765 = vmax.f32 %v740, 1e-24
    %v766 = vmax.f32 %v742, 1e-24
    %v767 = vmax.f32 %v744, 1e-24
    %v768 = vmax.f32 %v746, 1e-24
    %v769 = vmax.f32 %v748, 1e-24
    %v770 = vmax.f32 %v750, 1e-24
    %v771 = vmax.f32 %v752, 1e-24
    %v772 = vmax.f32 %v754, 1e-24
    %v773 = vmax.f32 %v756, 1e-24
    %v774 = vmax.f32 %v758, 1e-24
    %v775 = vrsqrt.pop %v759
    %v776 = vrsqrt.pop %v760
    %v777 = vrsqrt.pop %v761
    %v778 = vrsqrt.pop %v762
    %v779 = vrsqrt.pop %v763
    %v780 = vrsqrt.pop %v764
    %v781 = vrsqrt.pop %v765
    %v782 = vrsqrt.pop %v766
    %v783 = vrsqrt.pop %v767
    %v784 = vrsqrt.pop %v768
    %v785 = vrsqrt.pop %v769
    %v786 = vrsqrt.pop %v770
    %v787 = vrsqrt.pop %v771
    %v788 = vrsqrt.pop %v772
    %v789 = vrsqrt.pop %v773
    %v790 = vrsqrt.pop %v774
    %v791 = vmul.f32 %v695, %v775
    %v792 = vmul.f32 %v696, %v776
    %v793 = vmul.f32 %v697, %v777
    %v794 = vmul.f32 %v698, %v778
    %v795 = vmul.f32 %v699, %v779
    %v796 = vmul.f32 %v700, %v780
    %v797 = vmul.f32 %v701, %v781
    %v798 = vmul.f32 %v702, %v782
    %v799 = vmul.f32 %v703, %v783
    %v800 = vmul.f32 %v704, %v784
    %v801 = vmul.f32 %v705, %v785
    %v802 = vmul.f32 %v706, %v786
    %v803 = vmul.f32 %v707, %v787
    %v804 = vmul.f32 %v708, %v788
    %v805 = vmul.f32 %v709, %v789
    %v806 = vmul.f32 %v710, %v790
    %807 = vst [vmem:[%s7] sm:$0xff] %v791
    %808 = vst [vmem:[%s7 + $0x8] sm:$0xff] %v792
    %809 = vst [vmem:[%s7 + $0x10] sm:$0xff] %v793
    %810 = vst [vmem:[%s7 + $0x18] sm:$0xff] %v794
    %811 = vst [vmem:[%s7 + $0x20] sm:$0xff] %v795
    %812 = vst [vmem:[%s7 + $0x28] sm:$0xff] %v796
    %813 = vst [vmem:[%s7 + $0x30] sm:$0xff] %v797
    %814 = vst [vmem:[%s7 + $0x38] sm:$0xff] %v798
    %815 = vst [vmem:[%s7 + $0x40] sm:$0xff] %v799
    %816 = vst [vmem:[%s7 + $0x48] sm:$0xff] %v800
    %817 = vst [vmem:[%s7 + $0x50] sm:$0xff] %v801
    %818 = vst [vmem:[%s7 + $0x58] sm:$0xff] %v802
    %819 = vst [vmem:[%s7 + $0x60] sm:$0xff] %v803
    %820 = vst [vmem:[%s7 + $0x68] sm:$0xff] %v804
    %821 = vst [vmem:[%s7 + $0x70] sm:$0xff] %v805
    %822 = vst [vmem:[%s7 + $0x78] sm:$0xff] %v806
    // Predicated region
    $region34: #{_lambda_.10} parent=1 // pred_check
      _
    $region35: #{_lambda_.10} parent=1 // pred_check_branch
      %824 = sbr.rel (0) target = $region37
    $region36: #{_lambda_.10} parent=1 // pred_region
      _
    $region37: #{_lambda_.10} parent=1 // pred_fallthru
      _
    // Predicated region
    $region38: #{_lambda_.10} parent=1 // pred_check
      _
    $region39: #{_lambda_.10} parent=1 // pred_check_branch
      %826 = sbr.rel (0) target = $region41
    $region40: #{_lambda_.10} parent=1 // pred_region
      _
    $region41: #{_lambda_.10} parent=1 // pred_fallthru
      _
    %827 = vsyncpa [#allocation3], 1

// kernel: _lambda_.11
$region0: #{_lambda_.11}
  #allocation0 [shape = 'u32[]', space=smem, size = 0x4, offset = 0x4, fixed_abs, tag = 'smem constant byte address 0x4 - core index']
  #allocation1 [shape = 'u32[144,128]{1,0:T(1,128)}', space=vmem, size = 0x12000, scoped, tag = 'internal scratch']
  #allocation2 [shape = 'bf16[128,128]{1,0:T(16,128)(2,1)}', space=vmem, size = 0x8000, scoped, tag = 'scratch operand']
  %s0 = inlined_call_operand.vmem [shape: f32[128,128], index: 0, kind: input, shape index: {}]
  %s1 = inlined_call_operand.vmem [shape: f32[128,128], index: 1, kind: input, shape index: {}]
  %s2 = inlined_call_operand.vmem [shape: f32[128,128], index: 2, kind: output, shape index: {}]
  %s3 = sld [smem:[#allocation0]]
  $region22: #{_lambda_.11} parent=0
    _
  %s5 = ssub.s32 1, %s3
  %s6 = scalar_select 0, %s5, %s3
  // Predicated region
  $region2: #{_lambda_.11} parent=0 // pred_check
    _
  $region3: #{_lambda_.11} parent=0 // pred_check_branch
    %8 = sbr.rel (0) target = $region5
  $region4: #{_lambda_.11} parent=0 // pred_region
    _
  $region5: #{_lambda_.11} parent=0 // pred_fallthru
    _
  // Predicated region
  $region6: #{_lambda_.11} parent=0 // pred_check
    _
  $region7: #{_lambda_.11} parent=0 // pred_check_branch
    %10 = sbr.rel (0) target = $region9
  $region8: #{_lambda_.11} parent=0 // pred_region
    _
  $region9: #{_lambda_.11} parent=0 // pred_fallthru
    _
  %p12 = scmp.eq.s32.totalorder 0, 0
  // Predicated region
  $region10: #{_lambda_.11} parent=0 // pred_check
    %p13 = pneg %p12
  $region11: #{_lambda_.11} parent=0 // pred_check_branch
    %15 = sbr.rel (%p13) target = $region13
  $region12: #{_lambda_.11} parent=0 // pred_region
    %v16 = vld [vmem:[%s0] sm:$0xff]
    %v17 = vld [vmem:[%s0 + $0x8] sm:$0xff]
    %v18 = vld [vmem:[%s0 + $0x10] sm:$0xff]
    %v19 = vld [vmem:[%s0 + $0x18] sm:$0xff]
    %v20 = vld [vmem:[%s0 + $0x20] sm:$0xff]
    %v21 = vld [vmem:[%s0 + $0x28] sm:$0xff]
    %v22 = vld [vmem:[%s0 + $0x30] sm:$0xff]
    %v23 = vld [vmem:[%s0 + $0x38] sm:$0xff]
    %v24 = vld [vmem:[%s0 + $0x40] sm:$0xff]
    %v25 = vld [vmem:[%s0 + $0x48] sm:$0xff]
    %v26 = vld [vmem:[%s0 + $0x50] sm:$0xff]
    %v27 = vld [vmem:[%s0 + $0x58] sm:$0xff]
    %v28 = vld [vmem:[%s0 + $0x60] sm:$0xff]
    %v29 = vld [vmem:[%s0 + $0x68] sm:$0xff]
    %v30 = vld [vmem:[%s0 + $0x70] sm:$0xff]
    %v31 = vld [vmem:[%s0 + $0x78] sm:$0xff]
    %v32 = vmul.f32 %v16, %v16
    %v33 = vmul.f32 %v17, %v17
    %v34 = vmul.f32 %v18, %v18
    %v35 = vmul.f32 %v19, %v19
    %v36 = vmul.f32 %v20, %v20
    %v37 = vmul.f32 %v21, %v21
    %v38 = vmul.f32 %v22, %v22
    %v39 = vmul.f32 %v23, %v23
    %v40 = vmul.f32 %v24, %v24
    %v41 = vmul.f32 %v25, %v25
    %v42 = vmul.f32 %v26, %v26
    %v43 = vmul.f32 %v27, %v27
    %v44 = vmul.f32 %v28, %v28
    %v45 = vmul.f32 %v29, %v29
    %v46 = vmul.f32 %v30, %v30
    %v47 = vmul.f32 %v31, %v31
    %48 = vadd.xlane.f32.xlu0 %v32
    %v49 = vpop.xlane.xlu0 %48
    %50 = vadd.xlane.f32.xlu0 %v33
    %v51 = vpop.xlane.xlu0 %50
    %52 = vadd.xlane.f32.xlu0 %v34
    %v53 = vpop.xlane.xlu0 %52
    %54 = vadd.xlane.f32.xlu0 %v35
    %v55 = vpop.xlane.xlu0 %54
    %56 = vadd.xlane.f32.xlu0 %v36
    %v57 = vpop.xlane.xlu0 %56
    %58 = vadd.xlane.f32.xlu0 %v37
    %v59 = vpop.xlane.xlu0 %58
    %60 = vadd.xlane.f32.xlu0 %v38
    %v61 = vpop.xlane.xlu0 %60
    %62 = vadd.xlane.f32.xlu0 %v39
    %v63 = vpop.xlane.xlu0 %62
    %64 = vadd.xlane.f32.xlu0 %v40
    %v65 = vpop.xlane.xlu0 %64
    %66 = vadd.xlane.f32.xlu0 %v41
    %v67 = vpop.xlane.xlu0 %66
    %68 = vadd.xlane.f32.xlu0 %v42
    %v69 = vpop.xlane.xlu0 %68
    %70 = vadd.xlane.f32.xlu0 %v43
    %v71 = vpop.xlane.xlu0 %70
    %72 = vadd.xlane.f32.xlu0 %v44
    %v73 = vpop.xlane.xlu0 %72
    %74 = vadd.xlane.f32.xlu0 %v45
    %v75 = vpop.xlane.xlu0 %74
    %76 = vadd.xlane.f32.xlu0 %v46
    %v77 = vpop.xlane.xlu0 %76
    %78 = vadd.xlane.f32.xlu0 %v47
    %v79 = vpop.xlane.xlu0 %78
    %v80 = vmax.f32 %v49, 1e-24
    %v81 = vmax.f32 %v51, 1e-24
    %v82 = vmax.f32 %v53, 1e-24
    %v83 = vmax.f32 %v55, 1e-24
    %v84 = vmax.f32 %v57, 1e-24
    %v85 = vmax.f32 %v59, 1e-24
    %v86 = vmax.f32 %v61, 1e-24
    %v87 = vmax.f32 %v63, 1e-24
    %v88 = vmax.f32 %v65, 1e-24
    %v89 = vmax.f32 %v67, 1e-24
    %v90 = vmax.f32 %v69, 1e-24
    %v91 = vmax.f32 %v71, 1e-24
    %v92 = vmax.f32 %v73, 1e-24
    %v93 = vmax.f32 %v75, 1e-24
    %v94 = vmax.f32 %v77, 1e-24
    %v95 = vmax.f32 %v79, 1e-24
    %v96 = vrsqrt.pop %v80
    %v97 = vrsqrt.pop %v81
    %v98 = vrsqrt.pop %v82
    %v99 = vrsqrt.pop %v83
    %v100 = vrsqrt.pop %v84
    %v101 = vrsqrt.pop %v85
    %v102 = vrsqrt.pop %v86
    %v103 = vrsqrt.pop %v87
    %v104 = vrsqrt.pop %v88
    %v105 = vrsqrt.pop %v89
    %v106 = vrsqrt.pop %v90
    %v107 = vrsqrt.pop %v91
    %v108 = vrsqrt.pop %v92
    %v109 = vrsqrt.pop %v93
    %v110 = vrsqrt.pop %v94
    %v111 = vrsqrt.pop %v95
    %v112 = vmul.f32 %v16, %v96
    %v113 = vmul.f32 %v17, %v97
    %v114 = vmul.f32 %v18, %v98
    %v115 = vmul.f32 %v19, %v99
    %v116 = vmul.f32 %v20, %v100
    %v117 = vmul.f32 %v21, %v101
    %v118 = vmul.f32 %v22, %v102
    %v119 = vmul.f32 %v23, %v103
    %v120 = vmul.f32 %v24, %v104
    %v121 = vmul.f32 %v25, %v105
    %v122 = vmul.f32 %v26, %v106
    %v123 = vmul.f32 %v27, %v107
    %v124 = vmul.f32 %v28, %v108
    %v125 = vmul.f32 %v29, %v109
    %v126 = vmul.f32 %v30, %v110
    %v127 = vmul.f32 %v31, %v111
    %v128 = vpack.c.bf16 %v113, %v112
    %v129 = vpack.c.bf16 %v115, %v114
    %v130 = vpack.c.bf16 %v117, %v116
    %v131 = vpack.c.bf16 %v119, %v118
    %v132 = vpack.c.bf16 %v121, %v120
    %v133 = vpack.c.bf16 %v123, %v122
    %v134 = vpack.c.bf16 %v125, %v124
    %v135 = vpack.c.bf16 %v127, %v126
    %136 = vst [vmem:[#allocation2] sm:$0xff] %v128
    %137 = vst [vmem:[#allocation2 + $0x8] sm:$0xff] %v129
    %138 = vst [vmem:[#allocation2 + $0x10] sm:$0xff] %v130
    %139 = vst [vmem:[#allocation2 + $0x18] sm:$0xff] %v131
    %140 = vst [vmem:[#allocation2 + $0x20] sm:$0xff] %v132
    %141 = vst [vmem:[#allocation2 + $0x28] sm:$0xff] %v133
    %142 = vst [vmem:[#allocation2 + $0x30] sm:$0xff] %v134
    %143 = vst [vmem:[#allocation2 + $0x38] sm:$0xff] %v135
  $region13: #{_lambda_.11} parent=0 // pred_fallthru
    _
  %v144 = vld [vmem:[#allocation2] sm:$0xff]
  %v145 = vld [vmem:[#allocation2 + $0x8] sm:$0xff]
  %v146 = vld [vmem:[#allocation2 + $0x10] sm:$0xff]
  %v147 = vld [vmem:[#allocation2 + $0x18] sm:$0xff]
  %v148 = vld [vmem:[#allocation2 + $0x20] sm:$0xff]
  %v149 = vld [vmem:[#allocation2 + $0x28] sm:$0xff]
  %v150 = vld [vmem:[#allocation2 + $0x30] sm:$0xff]
  %v151 = vld [vmem:[#allocation2 + $0x38] sm:$0xff]
  %v152 = vld [vmem:[%s1] sm:$0xff]
  %v153 = vld [vmem:[%s1 + $0x8] sm:$0xff]
  %v154 = vld [vmem:[%s1 + $0x10] sm:$0xff]
  %v155 = vld [vmem:[%s1 + $0x18] sm:$0xff]
  %v156 = vld [vmem:[%s1 + $0x20] sm:$0xff]
  %v157 = vld [vmem:[%s1 + $0x28] sm:$0xff]
  %v158 = vld [vmem:[%s1 + $0x30] sm:$0xff]
  %v159 = vld [vmem:[%s1 + $0x38] sm:$0xff]
  %v160 = vld [vmem:[%s1 + $0x40] sm:$0xff]
  %v161 = vld [vmem:[%s1 + $0x48] sm:$0xff]
  %v162 = vld [vmem:[%s1 + $0x50] sm:$0xff]
  %v163 = vld [vmem:[%s1 + $0x58] sm:$0xff]
  %v164 = vld [vmem:[%s1 + $0x60] sm:$0xff]
  %v165 = vld [vmem:[%s1 + $0x68] sm:$0xff]
  %v166 = vld [vmem:[%s1 + $0x70] sm:$0xff]
  %v167 = vld [vmem:[%s1 + $0x78] sm:$0xff]
  %v168 = vpack.c.bf16 %v153, %v152
  %v169 = vpack.c.bf16 %v155, %v154
  %v170 = vpack.c.bf16 %v157, %v156
  %v171 = vpack.c.bf16 %v159, %v158
  %v172 = vpack.c.bf16 %v161, %v160
  %v173 = vpack.c.bf16 %v163, %v162
  %v174 = vpack.c.bf16 %v165, %v164
  %v175 = vpack.c.bf16 %v167, %v166
  %176 = vmatprep.subr.bf16.mxu0 0
  %177 = vmatpush1.bf16.xpose.msra.mxu0 %v168
  %178 = vmatprep.subr.bf16.mxu0 0
  %179 = vmatpush1.bf16.xpose.msra.mxu0 %v169
  %180 = vmatprep.subr.bf16.mxu0 0
  %181 = vmatpush1.bf16.xpose.msra.mxu0 %v170
  %182 = vmatprep.subr.bf16.mxu0 0
  %183 = vmatpush1.bf16.xpose.msra.mxu0 %v171
  %184 = vmatprep.subr.bf16.mxu0 0
  %185 = vmatpush1.bf16.xpose.msra.mxu0 %v172
  %186 = vmatprep.subr.bf16.mxu0 0
  %187 = vmatpush1.bf16.xpose.msra.mxu0 %v173
  %188 = vmatprep.subr.bf16.mxu0 0
  %189 = vmatpush1.bf16.xpose.msra.mxu0 %v174
  %190 = vmatprep.subr.bf16.mxu0 0
  %191 = vmatpush1.bf16.xpose.msra.mxu0 %v175
  %192 = vmatprep.subr.bf16.mxu0 0
  %193 = vmatpush1.bf16.xpose.msra.mxu0 0
  %194 = vmatprep.subr.bf16.mxu0 0
  %195 = vmatpush1.bf16.xpose.msra.mxu0 0
  %196 = vmatprep.subr.bf16.mxu0 0
  %197 = vmatpush1.bf16.xpose.msra.mxu0 0
  %198 = vmatprep.subr.bf16.mxu0 0
  %199 = vmatpush1.bf16.xpose.msra.mxu0 0
  %200 = vmatprep.subr.bf16.mxu0 0
  %201 = vmatpush1.bf16.xpose.msra.mxu0 0
  %202 = vmatprep.subr.bf16.mxu0 0
  %203 = vmatpush1.bf16.xpose.msra.mxu0 0
  %204 = vmatprep.subr.bf16.mxu0 0
  %205 = vmatpush1.bf16.xpose.msra.mxu0 0
  %206 = vmatprep.subr.bf16.mxu0 0
  %207 = vmatpush1.bf16.xpose.msra.mxu0 0
  %208 = vmatprep.mubr.bf16.mxu0 0
  %209 = vmatmul.mubr.bf16.gmra.mrb[0].mxu0 %v144
  %v210 = vpop.f32.mrb[0].mxu0
  %v211 = vadd.f32 0.0, %v210
  %v212 = vpop.f32.mrb[0].mxu0
  %v213 = vpop.f32.mrb[0].mxu0
  %v214 = vadd.f32 0.0, %v213
  %v215 = vpop.f32.mrb[0].mxu0
  %216 = vmatprep.mubr.bf16.mxu0 0
  %217 = vmatmul.mubr.bf16.gmra.mrb[0].mxu0 %v145
  %v218 = vpop.f32.mrb[0].mxu0
  %v219 = vadd.f32 0.0, %v218
  %v220 = vpop.f32.mrb[0].mxu0
  %v221 = vpop.f32.mrb[0].mxu0
  %v222 = vadd.f32 0.0, %v221
  %v223 = vpop.f32.mrb[0].mxu0
  %224 = vmatprep.mubr.bf16.mxu0 0
  %225 = vmatmul.mubr.bf16.gmra.mrb[0].mxu0 %v146
  %v226 = vpop.f32.mrb[0].mxu0
  %v227 = vadd.f32 0.0, %v226
  %v228 = vpop.f32.mrb[0].mxu0
  %v229 = vpop.f32.mrb[0].mxu0
  %v230 = vadd.f32 0.0, %v229
  %v231 = vpop.f32.mrb[0].mxu0
  %232 = vmatprep.mubr.bf16.mxu0 0
  %233 = vmatmul.mubr.bf16.gmra.mrb[0].mxu0 %v147
  %v234 = vpop.f32.mrb[0].mxu0
  %v235 = vadd.f32 0.0, %v234
  %v236 = vpop.f32.mrb[0].mxu0
  %v237 = vpop.f32.mrb[0].mxu0
  %v238 = vadd.f32 0.0, %v237
  %v239 = vpop.f32.mrb[0].mxu0
  %240 = vmatprep.mubr.bf16.mxu0 0
  %241 = vmatmul.mubr.bf16.gmra.mrb[0].mxu0 %v148
  %v242 = vpop.f32.mrb[0].mxu0
  %v243 = vadd.f32 0.0, %v242
  %v244 = vpop.f32.mrb[0].mxu0
  %v245 = vpop.f32.mrb[0].mxu0
  %v246 = vadd.f32 0.0, %v245
  %v247 = vpop.f32.mrb[0].mxu0
  %248 = vmatprep.mubr.bf16.mxu0 0
  %249 = vmatmul.mubr.bf16.gmra.mrb[0].mxu0 %v149
  %v250 = vpop.f32.mrb[0].mxu0
  %v251 = vadd.f32 0.0, %v250
  %v252 = vpop.f32.mrb[0].mxu0
  %v253 = vpop.f32.mrb[0].mxu0
  %v254 = vadd.f32 0.0, %v253
  %v255 = vpop.f32.mrb[0].mxu0
  %256 = vmatprep.mubr.bf16.mxu0 0
  %257 = vmatmul.mubr.bf16.gmra.mrb[0].mxu0 %v150
  %v258 = vpop.f32.mrb[0].mxu0
  %v259 = vadd.f32 0.0, %v258
  %v260 = vpop.f32.mrb[0].mxu0
  %v261 = vpop.f32.mrb[0].mxu0
  %v262 = vadd.f32 0.0, %v261
  %v263 = vpop.f32.mrb[0].mxu0
  %264 = vmatprep.mubr.bf16.mxu0 0
  %265 = vmatmul.mubr.bf16.gmra.mrb[0].mxu0 %v151
  %v266 = vpop.f32.mrb[0].mxu0
  %v267 = vadd.f32 0.0, %v266
  %v268 = vpop.f32.mrb[0].mxu0
  %v269 = vpop.f32.mrb[0].mxu0
  %v270 = vadd.f32 0.0, %v269
  %v271 = vpop.f32.mrb[0].mxu0
  %272 = vdwg.mxu0
  %273 = vst [vmem:[%s2] sm:$0xff] %v211
  %274 = vst [vmem:[%s2 + $0x8] sm:$0xff] %v214
  %275 = vst [vmem:[%s2 + $0x10] sm:$0xff] %v219
  %276 = vst [vmem:[%s2 + $0x18] sm:$0xff] %v222
  %277 = vst [vmem:[%s2 + $0x20] sm:$0xff] %v227
  %278 = vst [vmem:[%s2 + $0x28] sm:$0xff] %v230
  %279 = vst [vmem:[%s2 + $0x30] sm:$0xff] %v235
  %280 = vst [vmem:[%s2 + $0x38] sm:$0xff] %v238
  %281 = vst [vmem:[%s2 + $0x40] sm:$0xff] %v243
  %282 = vst [vmem:[%s2 + $0x48] sm:$0xff] %v246
  %283 = vst [vmem:[%s2 + $0x50] sm:$0xff] %v251
  %284 = vst [vmem:[%s2 + $0x58] sm:$0xff] %v254
  %285 = vst [vmem:[%s2 + $0x60] sm:$0xff] %v259
  %286 = vst [vmem:[%s2 + $0x68] sm:$0xff] %v262
  %287 = vst [vmem:[%s2 + $0x70] sm:$0xff] %v267
  %288 = vst [vmem:[%s2 + $0x78] sm:$0xff] %v270
  // Predicated region
  $region14: #{_lambda_.11} parent=0 // pred_check
    _
  $region15: #{_lambda_.11} parent=0 // pred_check_branch
    %290 = sbr.rel (0) target = $region17
  $region16: #{_lambda_.11} parent=0 // pred_region
    _
  $region17: #{_lambda_.11} parent=0 // pred_fallthru
    _
  // Predicated region
  $region18: #{_lambda_.11} parent=0 // pred_check
    _
  $region19: #{_lambda_.11} parent=0 // pred_check_branch
    %292 = sbr.rel (0) target = $region21
  $region20: #{_lambda_.11} parent=0 // pred_region
    _
  $region21: #{_lambda_.11} parent=0 // pred_fallthru
    _

// kernel: _lambda_.8
$region0: #{_lambda_.8}
  #allocation0 [shape = 'u32[]', space=smem, size = 0x4, offset = 0x4, fixed_abs, tag = 'smem constant byte address 0x4 - core index']
  #allocation1 [shape = 'u32[144,128]{1,0:T(1,128)}', space=vmem, size = 0x12000, scoped, tag = 'internal scratch']
  %s0 = inlined_call_operand.vmem [shape: f32[2,128,128], index: 0, kind: input, shape index: {}]
  %s1 = inlined_call_operand.vmem [shape: bf16[2,128,128], index: 1, kind: input, shape index: {}]
  %s2 = inlined_call_operand.vmem [shape: f32[2,1,128], index: 2, kind: input, shape index: {}]
  %s3 = inlined_call_operand.vmem [shape: f32[2,1,128], index: 3, kind: input, shape index: {}]
  %s4 = inlined_call_operand.vmem [shape: f32[2,1,128], index: 4, kind: input, shape index: {}]
  %s5 = inlined_call_operand.vmem [shape: bf16[2,128,128], index: 5, kind: input, shape index: {}]
  %s6 = inlined_call_operand.vmem [shape: f32[2,1,128], index: 6, kind: input, shape index: {}]
  %s7 = inlined_call_operand.vmem [shape: f32[2,128,128], index: 7, kind: output, shape index: {}]
  %s8 = sld [smem:[#allocation0]]
  $region61: #{_lambda_.8} parent=0
    _
  %s10 = ssub.s32 1, %s8
  %s11 = scalar_select 0, %s10, %s8
  loop: start=0, step=1, limit=4
  $region2: #{_lambda_.8} parent=0 // loop_pre_header
    _
  $region3: #{_lambda_.8} parent=0 // loop_header
    %s13 = sphi 0, %s17
    %p14 = scmp.ge.s32.totalorder %s13, 4
    %s20 = sphi 0, %s32
    %s21 = sphi 0, %s28
    %s22 = sphi 0, %s20
    %s23 = sphi 0, %s21
    %s24 = sphi 0, %s22
    %s25 = sphi 0, %s23
    %s37 = sphi 0, %s39
    %s40 = sphi 0, %s37
    %s41 = sphi 0, %s40
    %s57 = sphi 0, %s41
    %s63 = sphi 0, %s65
    %s66 = sphi 0, %s63
    %s67 = sphi 0, %s66
    %s83 = sphi 0, %s67
    %s89 = sphi 0, %s91
    %s92 = sphi 0, %s89
    %s93 = sphi 0, %s92
    %s109 = sphi 0, %s93
    %s115 = sphi 0, %s117
    %s118 = sphi 0, %s115
    %s119 = sphi 0, %s118
    %s135 = sphi 0, %s119
    %s141 = sphi 0, %s143
    %s144 = sphi 0, %s141
    %s145 = sphi 0, %s144
    %s161 = sphi 0, %s145
    %s167 = sphi 0, %s169
    %s170 = sphi 0, %s167
    %s171 = sphi 0, %s170
    %s187 = sphi 0, %s171
    %s193 = sphi 0, %s195
    %s196 = sphi 0, %s193
    %s197 = sphi 0, %s196
    %s213 = sphi 0, %s197
    %s221 = sphi 0, %s223
    %s224 = sphi 0, %s221
    %s225 = sphi 0, %s224
    %s241 = sphi 0, %s225
  $region4: #{_lambda_.8} parent=0 // loop_header_branch
    %16 = sbr.rel (%p14) target = $region8
  $region5: #{_lambda_.8} parent=0 // loop_body
    %s18 = ssub.s32 %s13, 1
    %s19 = ssub.s32 %s13, 2
    %s26 = sadd.s32 1, %s21
    %p27 = scmp.ge.s32.totalorder %s26, 2
    %s28 = scalar_select %p27, 0, %s26
    %s29 = sadd.s32 1, %s20
    %s30 = scalar_select %p27, %s29, %s20
    %p31 = scmp.ge.s32.totalorder %s30, 1
    %s32 = scalar_select %p31, 0, %s30
    %s33 = ssub.s32 %s21, %s28
    %s34 = ssub.s32 %s20, %s32
    %s35 = sor.u32 %s33, %s34
    %p36 = scmp.eq.s32.totalorder %s35, 0
    %s38 = sadd.s32 %s37, 1
    %s39 = scalar_select %p36, %s37, %s38
    %p42 = pneg %p36
    %p43 = scmp.eq.s32.totalorder %s13, 1
    %p44 = por %p42, %p43
    %p45 = scmp.ne.s32.totalorder %s37, %s40
    %p46 = scmp.eq.s32.totalorder %s13, 0
    %p47 = por %p45, %p46
    %p48 = scmp.ne.s32.totalorder %s37, %s40
    %p49 = scmp.eq.s32.totalorder %s18, 1
    %p50 = por %p48, %p49
    %p51 = scmp.ne.s32.totalorder %s40, %s41
    %p52 = scmp.eq.s32.totalorder %s18, 0
    %p53 = por %p51, %p52
    %p54 = scmp.ne.s32.totalorder %s40, %s41
    %p55 = scmp.eq.s32.totalorder %s19, 1
    %p56 = por %p54, %p55
    %p58 = scmp.ne.s32.totalorder %s41, %s57
    %p59 = scmp.eq.s32.totalorder %s19, 0
    %p60 = por %p58, %p59
    %s61 = ssub.s32 %s21, %s28
    %p62 = scmp.eq.s32.totalorder %s61, 0
    %s64 = sadd.s32 %s63, 1
    %s65 = scalar_select %p62, %s63, %s64
    %p68 = pneg %p62
    %p69 = scmp.eq.s32.totalorder %s13, 1
    %p70 = por %p68, %p69
    %p71 = scmp.ne.s32.totalorder %s63, %s66
    %p72 = scmp.eq.s32.totalorder %s13, 0
    %p73 = por %p71, %p72
    %p74 = scmp.ne.s32.totalorder %s63, %s66
    %p75 = scmp.eq.s32.totalorder %s18, 1
    %p76 = por %p74, %p75
    %p77 = scmp.ne.s32.totalorder %s66, %s67
    %p78 = scmp.eq.s32.totalorder %s18, 0
    %p79 = por %p77, %p78
    %p80 = scmp.ne.s32.totalorder %s66, %s67
    %p81 = scmp.eq.s32.totalorder %s19, 1
    %p82 = por %p80, %p81
    %p84 = scmp.ne.s32.totalorder %s67, %s83
    %p85 = scmp.eq.s32.totalorder %s19, 0
    %p86 = por %p84, %p85
    %s87 = ssub.s32 %s21, %s28
    %p88 = scmp.eq.s32.totalorder %s87, 0
    %s90 = sadd.s32 %s89, 1
    %s91 = scalar_select %p88, %s89, %s90
    %p94 = pneg %p88
    %p95 = scmp.eq.s32.totalorder %s13, 1
    %p96 = por %p94, %p95
    %p97 = scmp.ne.s32.totalorder %s89, %s92
    %p98 = scmp.eq.s32.totalorder %s13, 0
    %p99 = por %p97, %p98
    %p100 = scmp.ne.s32.totalorder %s89, %s92
    %p101 = scmp.eq.s32.totalorder %s18, 1
    %p102 = por %p100, %p101
    %p103 = scmp.ne.s32.totalorder %s92, %s93
    %p104 = scmp.eq.s32.totalorder %s18, 0
    %p105 = por %p103, %p104
    %p106 = scmp.ne.s32.totalorder %s92, %s93
    %p107 = scmp.eq.s32.totalorder %s19, 1
    %p108 = por %p106, %p107
    %p110 = scmp.ne.s32.totalorder %s93, %s109
    %p111 = scmp.eq.s32.totalorder %s19, 0
    %p112 = por %p110, %p111
    %s113 = ssub.s32 %s21, %s28
    %p114 = scmp.eq.s32.totalorder %s113, 0
    %s116 = sadd.s32 %s115, 1
    %s117 = scalar_select %p114, %s115, %s116
    %p120 = pneg %p114
    %p121 = scmp.eq.s32.totalorder %s13, 1
    %p122 = por %p120, %p121
    %p123 = scmp.ne.s32.totalorder %s115, %s118
    %p124 = scmp.eq.s32.totalorder %s13, 0
    %p125 = por %p123, %p124
    %p126 = scmp.ne.s32.totalorder %s115, %s118
    %p127 = scmp.eq.s32.totalorder %s18, 1
    %p128 = por %p126, %p127
    %p129 = scmp.ne.s32.totalorder %s118, %s119
    %p130 = scmp.eq.s32.totalorder %s18, 0
    %p131 = por %p129, %p130
    %p132 = scmp.ne.s32.totalorder %s118, %s119
    %p133 = scmp.eq.s32.totalorder %s19, 1
    %p134 = por %p132, %p133
    %p136 = scmp.ne.s32.totalorder %s119, %s135
    %p137 = scmp.eq.s32.totalorder %s19, 0
    %p138 = por %p136, %p137
    %s139 = ssub.s32 %s21, %s28
    %p140 = scmp.eq.s32.totalorder %s139, 0
    %s142 = sadd.s32 %s141, 1
    %s143 = scalar_select %p140, %s141, %s142
    %p146 = pneg %p140
    %p147 = scmp.eq.s32.totalorder %s13, 1
    %p148 = por %p146, %p147
    %p149 = scmp.ne.s32.totalorder %s141, %s144
    %p150 = scmp.eq.s32.totalorder %s13, 0
    %p151 = por %p149, %p150
    %p152 = scmp.ne.s32.totalorder %s141, %s144
    %p153 = scmp.eq.s32.totalorder %s18, 1
    %p154 = por %p152, %p153
    %p155 = scmp.ne.s32.totalorder %s144, %s145
    %p156 = scmp.eq.s32.totalorder %s18, 0
    %p157 = por %p155, %p156
    %p158 = scmp.ne.s32.totalorder %s144, %s145
    %p159 = scmp.eq.s32.totalorder %s19, 1
    %p160 = por %p158, %p159
    %p162 = scmp.ne.s32.totalorder %s145, %s161
    %p163 = scmp.eq.s32.totalorder %s19, 0
    %p164 = por %p162, %p163
    %s165 = ssub.s32 %s21, %s28
    %p166 = scmp.eq.s32.totalorder %s165, 0
    %s168 = sadd.s32 %s167, 1
    %s169 = scalar_select %p166, %s167, %s168
    %p172 = pneg %p166
    %p173 = scmp.eq.s32.totalorder %s13, 1
    %p174 = por %p172, %p173
    %p175 = scmp.ne.s32.totalorder %s167, %s170
    %p176 = scmp.eq.s32.totalorder %s13, 0
    %p177 = por %p175, %p176
    %p178 = scmp.ne.s32.totalorder %s167, %s170
    %p179 = scmp.eq.s32.totalorder %s18, 1
    %p180 = por %p178, %p179
    %p181 = scmp.ne.s32.totalorder %s170, %s171
    %p182 = scmp.eq.s32.totalorder %s18, 0
    %p183 = por %p181, %p182
    %p184 = scmp.ne.s32.totalorder %s170, %s171
    %p185 = scmp.eq.s32.totalorder %s19, 1
    %p186 = por %p184, %p185
    %p188 = scmp.ne.s32.totalorder %s171, %s187
    %p189 = scmp.eq.s32.totalorder %s19, 0
    %p190 = por %p188, %p189
    %s191 = ssub.s32 %s21, %s28
    %p192 = scmp.eq.s32.totalorder %s191, 0
    %s194 = sadd.s32 %s193, 1
    %s195 = scalar_select %p192, %s193, %s194
    %p198 = pneg %p192
    %p199 = scmp.eq.s32.totalorder %s13, 1
    %p200 = por %p198, %p199
    %p201 = scmp.ne.s32.totalorder %s193, %s196
    %p202 = scmp.eq.s32.totalorder %s13, 0
    %p203 = por %p201, %p202
    %p204 = scmp.ne.s32.totalorder %s193, %s196
    %p205 = scmp.eq.s32.totalorder %s18, 1
    %p206 = por %p204, %p205
    %p207 = scmp.ne.s32.totalorder %s196, %s197
    %p208 = scmp.eq.s32.totalorder %s18, 0
    %p209 = por %p207, %p208
    %p210 = scmp.ne.s32.totalorder %s196, %s197
    %p211 = scmp.eq.s32.totalorder %s19, 1
    %p212 = por %p210, %p211
    %p214 = scmp.ne.s32.totalorder %s197, %s213
    %p215 = scmp.eq.s32.totalorder %s19, 0
    %p216 = por %p214, %p215
    %s217 = ssub.s32 %s21, %s28
    %s218 = ssub.s32 %s20, %s32
    %s219 = sor.u32 %s217, %s218
    %p220 = scmp.eq.s32.totalorder %s219, 0
    %s222 = sadd.s32 %s221, 1
    %s223 = scalar_select %p220, %s221, %s222
    %p226 = pneg %p220
    %p227 = scmp.eq.s32.totalorder %s13, 1
    %p228 = por %p226, %p227
    %p229 = scmp.ne.s32.totalorder %s221, %s224
    %p230 = scmp.eq.s32.totalorder %s13, 0
    %p231 = por %p229, %p230
    %p232 = scmp.ne.s32.totalorder %s221, %s224
    %p233 = scmp.eq.s32.totalorder %s18, 1
    %p234 = por %p232, %p233
    %p235 = scmp.ne.s32.totalorder %s224, %s225
    %p236 = scmp.eq.s32.totalorder %s18, 0
    %p237 = por %p235, %p236
    %p238 = scmp.ne.s32.totalorder %s224, %s225
    %p239 = scmp.eq.s32.totalorder %s19, 1
    %p240 = por %p238, %p239
    %p242 = scmp.ne.s32.totalorder %s225, %s241
    %p243 = scmp.eq.s32.totalorder %s19, 0
    %p244 = por %p242, %p243
    %p245 = scmp.le.s32.totalorder 1, %s13
    %p246 = scmp.lt.s32.totalorder %s13, 3
    %p247 = pnand %p245, %p246
    %p248 = pneg %p247
    // Predicated region
    $region9: #{_lambda_.8} parent=5 // pred_check
      _
    $region10: #{_lambda_.8} parent=5 // pred_check_branch
      %250 = sbr.rel (%p247) target = $region12
    $region11: #{_lambda_.8} parent=5 // pred_region
      %s251 = ssub.s32 %s13, 1
    $region12: #{_lambda_.8} parent=5 // pred_fallthru
      _
    %p252 = scmp.lt.s32.totalorder %s13, 2
    // Predicated region
    $region13: #{_lambda_.8} parent=5 // pred_check
      %p253 = pneg %p252
    $region14: #{_lambda_.8} parent=5 // pred_check_branch
      %255 = sbr.rel (%p253) target = $region16
    $region15: #{_lambda_.8} parent=5 // pred_region
      // Predicated region
      $region17: #{_lambda_.8} parent=15 // pred_check
        %p256 = pneg %p47
      $region18: #{_lambda_.8} parent=15 // pred_check_branch
        %258 = sbr.rel (%p256) target = $region20
      $region19: #{_lambda_.8} parent=15 // pred_region
        %s259 = smul.u32 16, %s20
        %p260 = scmp.lt.s32.totalorder %s21, 1
        %s261 = scalar_select %p260, %s21, 1
        %p262 = scmp.lt.s32.totalorder %s259, 15
        %s263 = scalar_select %p262, %s259, 15
        %s264 = smul.addr %s261, 16
        %s265 = sadd.s32 %s263, %s264
        %s266 = smul.addr %s265, 8
        %s267 = scalar_lea.vmem %s0, %s266
        %s268 = smul.u32 16, %s20
      $region20: #{_lambda_.8} parent=15 // pred_fallthru
        _
      // Predicated region
      $region21: #{_lambda_.8} parent=15 // pred_check
        %p269 = pneg %p73
      $region22: #{_lambda_.8} parent=15 // pred_check_branch
        %271 = sbr.rel (%p269) target = $region24
      $region23: #{_lambda_.8} parent=15 // pred_region
        %p272 = scmp.lt.s32.totalorder %s21, 1
        %s273 = scalar_select %p272, %s21, 1
        %s274 = smul.addr %s273, 16
        %s275 = smul.addr %s274, 4
        %s276 = scalar_lea.vmem %s1, %s275
      $region24: #{_lambda_.8} parent=15 // pred_fallthru
        _
      // Predicated region
      $region25: #{_lambda_.8} parent=15 // pred_check
        %p277 = pneg %p99
      $region26: #{_lambda_.8} parent=15 // pred_check_branch
        %279 = sbr.rel (%p277) target = $region28
      $region27: #{_lambda_.8} parent=15 // pred_region
        %p280 = scmp.lt.s32.totalorder %s21, 1
        %s281 = scalar_select %p280, %s21, 1
        %s282 = scalar_lea.vmem %s2, %s281
      $region28: #{_lambda_.8} parent=15 // pred_fallthru
        _
      // Predicated region
      $region29: #{_lambda_.8} parent=15 // pred_check
        %p283 = pneg %p125
      $region30: #{_lambda_.8} parent=15 // pred_check_branch
        %285 = sbr.rel (%p283) target = $region32
      $region31: #{_lambda_.8} parent=15 // pred_region
        %p286 = scmp.lt.s32.totalorder %s21, 1
        %s287 = scalar_select %p286, %s21, 1
        %s288 = scalar_lea.vmem %s3, %s287
      $region32: #{_lambda_.8} parent=15 // pred_fallthru
        _
      // Predicated region
      $region33: #{_lambda_.8} parent=15 // pred_check
        %p289 = pneg %p151
      $region34: #{_lambda_.8} parent=15 // pred_check_branch
        %291 = sbr.rel (%p289) target = $region36
      $region35: #{_lambda_.8} parent=15 // pred_region
        %p292 = scmp.lt.s32.totalorder %s21, 1
        %s293 = scalar_select %p292, %s21, 1
        %s294 = scalar_lea.vmem %s4, %s293
      $region36: #{_lambda_.8} parent=15 // pred_fallthru
        _
      // Predicated region
      $region37: #{_lambda_.8} parent=15 // pred_check
        %p295 = pneg %p177
      $region38: #{_lambda_.8} parent=15 // pred_check_branch
        %297 = sbr.rel (%p295) target = $region40
      $region39: #{_lambda_.8} parent=15 // pred_region
        %p298 = scmp.lt.s32.totalorder %s21, 1
        %s299 = scalar_select %p298, %s21, 1
        %s300 = smul.addr %s299, 16
        %s301 = smul.addr %s300, 4
        %s302 = scalar_lea.vmem %s5, %s301
      $region40: #{_lambda_.8} parent=15 // pred_fallthru
        _
      // Predicated region
      $region41: #{_lambda_.8} parent=15 // pred_check
        %p303 = pneg %p203
      $region42: #{_lambda_.8} parent=15 // pred_check_branch
        %305 = sbr.rel (%p303) target = $region44
      $region43: #{_lambda_.8} parent=15 // pred_region
        %p306 = scmp.lt.s32.totalorder %s21, 1
        %s307 = scalar_select %p306, %s21, 1
        %s308 = scalar_lea.vmem %s6, %s307
      $region44: #{_lambda_.8} parent=15 // pred_fallthru
        _
    $region16: #{_lambda_.8} parent=5 // pred_fallthru
      _
    %p309 = scmp.le.s32.totalorder 1, %s13
    %p310 = scmp.lt.s32.totalorder %s13, 3
    %p311 = pnand %p309, %p310
    %p312 = pneg %p311
    // Predicated region
    $region45: #{_lambda_.8} parent=5 // pred_check
      _
    $region46: #{_lambda_.8} parent=5 // pred_check_branch
      %314 = sbr.rel (%p311) target = $region48
    $region47: #{_lambda_.8} parent=5 // pred_region
      %s315 = ssub.s32 %s13, 1
      %s316 = smul.u32 16, %s22
      %p317 = scmp.lt.s32.totalorder %s23, 1
      %s318 = scalar_select %p317, %s23, 1
      %p319 = scmp.lt.s32.totalorder %s316, 15
      %s320 = scalar_select %p319, %s316, 15
      %s321 = smul.addr %s318, 16
      %s322 = sadd.s32 %s320, %s321
      %s323 = smul.addr %s322, 8
      %s324 = scalar_lea.vmem %s0, %s323
      %p325 = pneg %p53
      %p326 = pneg %p50
      %p327 = scmp.lt.s32.totalorder %s23, 1
      %s328 = scalar_select %p327, %s23, 1
      %s329 = smul.addr %s328, 16
      %s330 = smul.addr %s329, 4
      %s331 = scalar_lea.vmem %s1, %s330
      %p332 = pneg %p79
      %p333 = pneg %p76
      %p334 = scmp.lt.s32.totalorder %s23, 1
      %s335 = scalar_select %p334, %s23, 1
      %s336 = scalar_lea.vmem %s2, %s335
      %p337 = pneg %p105
      %p338 = pneg %p102
      %p339 = scmp.lt.s32.totalorder %s23, 1
      %s340 = scalar_select %p339, %s23, 1
      %s341 = scalar_lea.vmem %s3, %s340
      %p342 = pneg %p131
      %p343 = pneg %p128
      %p344 = scmp.lt.s32.totalorder %s23, 1
      %s345 = scalar_select %p344, %s23, 1
      %s346 = scalar_lea.vmem %s4, %s345
      %p347 = pneg %p157
      %p348 = pneg %p154
      %p349 = scmp.lt.s32.totalorder %s23, 1
      %s350 = scalar_select %p349, %s23, 1
      %s351 = smul.addr %s350, 16
      %s352 = smul.addr %s351, 4
      %s353 = scalar_lea.vmem %s5, %s352
      %p354 = pneg %p183
      %p355 = pneg %p180
      %p356 = scmp.lt.s32.totalorder %s23, 1
      %s357 = scalar_select %p356, %s23, 1
      %s358 = scalar_lea.vmem %s6, %s357
      %p359 = pneg %p209
      %p360 = pneg %p206
      %p361 = pneg %p237
      %p362 = pneg %p234
      %s363 = smul.u32 16, %s22
      %p364 = scmp.lt.s32.totalorder %s23, 1
      %s365 = scalar_select %p364, %s23, 1
      %p366 = scmp.lt.s32.totalorder %s363, 15
      %s367 = scalar_select %p366, %s363, 15
      %s368 = smul.addr %s365, 16
      %s369 = sadd.s32 %s367, %s368
      %s370 = smul.addr %s369, 8
      %s371 = scalar_lea.vmem %s7, %s370
      %s372 = smul.u32 16, %s22
      %p373 = scmp.lt.s32.totalorder %s23, 1
      %s374 = scalar_select %p373, %s23, 1
      %p375 = scmp.lt.s32.totalorder %s372, 15
      %s376 = scalar_select %p375, %s372, 15
      %s377 = smul.addr %s374, 16
      %s378 = sadd.s32 %s376, %s377
      %s379 = smul.addr %s378, 8
      %s380 = scalar_lea.vmem %s0, %s379
      %s381 = smul.u32 16, %s22
      %p382 = scmp.lt.s32.totalorder %s23, 1
      %s383 = scalar_select %p382, %s23, 1
      %s384 = smul.addr %s383, 16
      %s385 = smul.addr %s384, 4
      %s386 = scalar_lea.vmem %s1, %s385
      %p387 = scmp.lt.s32.totalorder %s23, 1
      %s388 = scalar_select %p387, %s23, 1
      %s389 = scalar_lea.vmem %s2, %s388
      %p390 = scmp.lt.s32.totalorder %s23, 1
      %s391 = scalar_select %p390, %s23, 1
      %s392 = scalar_lea.vmem %s3, %s391
      %p393 = scmp.lt.s32.totalorder %s23, 1
      %s394 = scalar_select %p393, %s23, 1
      %s395 = scalar_lea.vmem %s4, %s394
      %p396 = scmp.lt.s32.totalorder %s23, 1
      %s397 = scalar_select %p396, %s23, 1
      %s398 = smul.addr %s397, 16
      %s399 = smul.addr %s398, 4
      %s400 = scalar_lea.vmem %s5, %s399
      %p401 = scmp.lt.s32.totalorder %s23, 1
      %s402 = scalar_select %p401, %s23, 1
      %s403 = scalar_lea.vmem %s6, %s402
      %s404 = smul.u32 16, %s22
      %p405 = scmp.lt.s32.totalorder %s23, 1
      %s406 = scalar_select %p405, %s23, 1
      %p407 = scmp.lt.s32.totalorder %s404, 15
      %s408 = scalar_select %p407, %s404, 15
      %s409 = smul.addr %s406, 16
      %s410 = sadd.s32 %s408, %s409
      %s411 = smul.addr %s410, 8
      %s412 = scalar_lea.vmem %s7, %s411
      %s413 = smul.u32 16, %s22
      %v415 = vld [vmem:[%s380] sm:$0xff]
      %v416 = vld [vmem:[%s380 + $0x8] sm:$0xff]
      %v417 = vld [vmem:[%s380 + $0x10] sm:$0xff]
      %v418 = vld [vmem:[%s380 + $0x18] sm:$0xff]
      %v419 = vld [vmem:[%s380 + $0x20] sm:$0xff]
      %v420 = vld [vmem:[%s380 + $0x28] sm:$0xff]
      %v421 = vld [vmem:[%s380 + $0x30] sm:$0xff]
      %v422 = vld [vmem:[%s380 + $0x38] sm:$0xff]
      %v423 = vld [vmem:[%s380 + $0x40] sm:$0xff]
      %v424 = vld [vmem:[%s380 + $0x48] sm:$0xff]
      %v425 = vld [vmem:[%s380 + $0x50] sm:$0xff]
      %v426 = vld [vmem:[%s380 + $0x58] sm:$0xff]
      %v427 = vld [vmem:[%s380 + $0x60] sm:$0xff]
      %v428 = vld [vmem:[%s380 + $0x68] sm:$0xff]
      %v429 = vld [vmem:[%s380 + $0x70] sm:$0xff]
      %v430 = vld [vmem:[%s380 + $0x78] sm:$0xff]
      %v431 = vpack.c.bf16 %v416, %v415
      %v432 = vpack.c.bf16 %v418, %v417
      %v433 = vpack.c.bf16 %v420, %v419
      %v434 = vpack.c.bf16 %v422, %v421
      %v435 = vpack.c.bf16 %v424, %v423
      %v436 = vpack.c.bf16 %v426, %v425
      %v437 = vpack.c.bf16 %v428, %v427
      %v438 = vpack.c.bf16 %v430, %v429
      %v439 = vld [vmem:[%s386] sm:$0xf]
      %v440 = vld [vmem:[%s386 + $0x4] sm:$0xf]
      %v441 = vld [vmem:[%s386 + $0x8] sm:$0xf]
      %v442 = vld [vmem:[%s386 + $0xc] sm:$0xf]
      %v443 = vld [vmem:[%s386 + $0x10] sm:$0xf]
      %v444 = vld [vmem:[%s386 + $0x14] sm:$0xf]
      %v445 = vld [vmem:[%s386 + $0x18] sm:$0xf]
      %v446 = vld [vmem:[%s386 + $0x1c] sm:$0xf]
      %v447 = vld [vmem:[%s386 + $0x20] sm:$0xf]
      %v448 = vld [vmem:[%s386 + $0x24] sm:$0xf]
      %v449 = vld [vmem:[%s386 + $0x28] sm:$0xf]
      %v450 = vld [vmem:[%s386 + $0x2c] sm:$0xf]
      %v451 = vld [vmem:[%s386 + $0x30] sm:$0xf]
      %v452 = vld [vmem:[%s386 + $0x34] sm:$0xf]
      %v453 = vld [vmem:[%s386 + $0x38] sm:$0xf]
      %v454 = vld [vmem:[%s386 + $0x3c] sm:$0xf]
      %v455 = vld [vmem:[%s389] sm:$0x1]
      %v457 = vlaneseq
      %v458 = vshrl.u32 %v457, 7
      %v459 = vsub.s32 0, %v458
      %v460 = vrot.slane %v455, %v459
      %v478 = vunpack.c.l.b16 %v439
      %v479 = vunpack.c.l.b16 %v440
      %v480 = vunpack.c.l.b16 %v441
      %v481 = vunpack.c.l.b16 %v442
      %v482 = vunpack.c.l.b16 %v443
      %v483 = vunpack.c.l.b16 %v444
      %v484 = vunpack.c.l.b16 %v445
      %v485 = vunpack.c.l.b16 %v446
      %v486 = vunpack.c.l.b16 %v447
      %v487 = vunpack.c.l.b16 %v448
      %v488 = vunpack.c.l.b16 %v449
      %v489 = vunpack.c.l.b16 %v450
      %v490 = vunpack.c.l.b16 %v451
      %v491 = vunpack.c.l.b16 %v452
      %v492 = vunpack.c.l.b16 %v453
      %v493 = vunpack.c.l.b16 %v454
      %v494 = vpack.c.b16 %v479, %v478
      %v495 = vpack.c.b16 %v481, %v480
      %v496 = vpack.c.b16 %v483, %v482
      %v497 = vpack.c.b16 %v485, %v484
      %v498 = vpack.c.b16 %v487, %v486
      %v499 = vpack.c.b16 %v489, %v488
      %v500 = vpack.c.b16 %v491, %v490
      %v501 = vpack.c.b16 %v493, %v492
      %510 = vmatprep.subr.bf16.mxu0 0
      %511 = vmatpush1.bf16.msra.mxu0 %v494
      %512 = vmatprep.subr.bf16.mxu0 0
      %513 = vmatpush1.bf16.msra.mxu0 %v495
      %514 = vmatprep.subr.bf16.mxu0 0
      %515 = vmatpush1.bf16.msra.mxu0 %v496
      %516 = vmatprep.subr.bf16.mxu0 0
      %517 = vmatpush1.bf16.msra.mxu0 %v497
      %518 = vmatprep.subr.bf16.mxu0 0
      %519 = vmatpush1.bf16.msra.mxu0 %v498
      %520 = vmatprep.subr.bf16.mxu0 0
      %521 = vmatpush1.bf16.msra.mxu0 %v499
      %522 = vmatprep.subr.bf16.mxu0 0
      %523 = vmatpush1.bf16.msra.mxu0 %v500
      %524 = vmatprep.subr.bf16.mxu0 0
      %525 = vmatpush1.bf16.msra.mxu0 %v501
      %526 = vmatprep.subr.bf16.mxu0 0
      %527 = vmatpush1.bf16.msra.mxu0 0
      %528 = vmatprep.subr.bf16.mxu0 0
      %529 = vmatpush1.bf16.msra.mxu0 0
      %530 = vmatprep.subr.bf16.mxu0 0
      %531 = vmatpush1.bf16.msra.mxu0 0
      %532 = vmatprep.subr.bf16.mxu0 0
      %533 = vmatpush1.bf16.msra.mxu0 0
      %534 = vmatprep.subr.bf16.mxu0 0
      %535 = vmatpush1.bf16.msra.mxu0 0
      %536 = vmatprep.subr.bf16.mxu0 0
      %537 = vmatpush1.bf16.msra.mxu0 0
      %538 = vmatprep.subr.bf16.mxu0 0
      %539 = vmatpush1.bf16.msra.mxu0 0
      %540 = vmatprep.subr.bf16.mxu0 0
      %541 = vmatpush1.bf16.msra.mxu0 0
      %542 = vmatprep.mubr.bf16.mxu0 0
      %543 = vmatmul.mubr.bf16.gmra.mrb[0].mxu0 %v431
      %v544 = vpop.f32.mrb[0].mxu0
      %v545 = vadd.f32 %v460, %v544
      %v546 = vpop.f32.mrb[0].mxu0
      %v547 = vpop.f32.mrb[0].mxu0
      %v548 = vadd.f32 %v460, %v547
      %v549 = vpop.f32.mrb[0].mxu0
      %550 = vmatprep.mubr.bf16.mxu0 0
      %551 = vmatmul.mubr.bf16.gmra.mrb[0].mxu0 %v432
      %v552 = vpop.f32.mrb[0].mxu0
      %v553 = vadd.f32 %v460, %v552
      %v554 = vpop.f32.mrb[0].mxu0
      %v555 = vpop.f32.mrb[0].mxu0
      %v556 = vadd.f32 %v460, %v555
      %v557 = vpop.f32.mrb[0].mxu0
      %558 = vmatprep.mubr.bf16.mxu0 0
      %559 = vmatmul.mubr.bf16.gmra.mrb[0].mxu0 %v433
      %v560 = vpop.f32.mrb[0].mxu0
      %v561 = vadd.f32 %v460, %v560
      %v562 = vpop.f32.mrb[0].mxu0
      %v563 = vpop.f32.mrb[0].mxu0
      %v564 = vadd.f32 %v460, %v563
      %v565 = vpop.f32.mrb[0].mxu0
      %566 = vmatprep.mubr.bf16.mxu0 0
      %567 = vmatmul.mubr.bf16.gmra.mrb[0].mxu0 %v434
      %v568 = vpop.f32.mrb[0].mxu0
      %v569 = vadd.f32 %v460, %v568
      %v570 = vpop.f32.mrb[0].mxu0
      %v571 = vpop.f32.mrb[0].mxu0
      %v572 = vadd.f32 %v460, %v571
      %v573 = vpop.f32.mrb[0].mxu0
      %574 = vmatprep.mubr.bf16.mxu0 0
      %575 = vmatmul.mubr.bf16.gmra.mrb[0].mxu0 %v435
      %v576 = vpop.f32.mrb[0].mxu0
      %v577 = vadd.f32 %v460, %v576
      %v578 = vpop.f32.mrb[0].mxu0
      %v579 = vpop.f32.mrb[0].mxu0
      %v580 = vadd.f32 %v460, %v579
      %v581 = vpop.f32.mrb[0].mxu0
      %582 = vmatprep.mubr.bf16.mxu0 0
      %583 = vmatmul.mubr.bf16.gmra.mrb[0].mxu0 %v436
      %v584 = vpop.f32.mrb[0].mxu0
      %v585 = vadd.f32 %v460, %v584
      %v586 = vpop.f32.mrb[0].mxu0
      %v587 = vpop.f32.mrb[0].mxu0
      %v588 = vadd.f32 %v460, %v587
      %v589 = vpop.f32.mrb[0].mxu0
      %590 = vmatprep.mubr.bf16.mxu0 0
      %591 = vmatmul.mubr.bf16.gmra.mrb[0].mxu0 %v437
      %v592 = vpop.f32.mrb[0].mxu0
      %v593 = vadd.f32 %v460, %v592
      %v594 = vpop.f32.mrb[0].mxu0
      %v595 = vpop.f32.mrb[0].mxu0
      %v596 = vadd.f32 %v460, %v595
      %v597 = vpop.f32.mrb[0].mxu0
      %598 = vmatprep.mubr.bf16.mxu0 0
      %599 = vmatmul.mubr.bf16.gmra.mrb[0].mxu0 %v438
      %v600 = vpop.f32.mrb[0].mxu0
      %v601 = vadd.f32 %v460, %v600
      %v602 = vpop.f32.mrb[0].mxu0
      %v603 = vpop.f32.mrb[0].mxu0
      %v604 = vadd.f32 %v460, %v603
      %v605 = vpop.f32.mrb[0].mxu0
      %606 = vdwg.mxu0
      %607 = vadd.xlane.f32.xlu0 %v545
      %v608 = vpop.xlane.xlu0 %607
      %609 = vadd.xlane.f32.xlu0 %v548
      %v610 = vpop.xlane.xlu0 %609
      %611 = vadd.xlane.f32.xlu0 %v553
      %v612 = vpop.xlane.xlu0 %611
      %613 = vadd.xlane.f32.xlu0 %v556
      %v614 = vpop.xlane.xlu0 %613
      %615 = vadd.xlane.f32.xlu0 %v561
      %v616 = vpop.xlane.xlu0 %615
      %617 = vadd.xlane.f32.xlu0 %v564
      %v618 = vpop.xlane.xlu0 %617
      %619 = vadd.xlane.f32.xlu0 %v569
      %v620 = vpop.xlane.xlu0 %619
      %621 = vadd.xlane.f32.xlu0 %v572
      %v622 = vpop.xlane.xlu0 %621
      %623 = vadd.xlane.f32.xlu0 %v577
      %v624 = vpop.xlane.xlu0 %623
      %625 = vadd.xlane.f32.xlu0 %v580
      %v626 = vpop.xlane.xlu0 %625
      %627 = vadd.xlane.f32.xlu0 %v585
      %v628 = vpop.xlane.xlu0 %627
      %629 = vadd.xlane.f32.xlu0 %v588
      %v630 = vpop.xlane.xlu0 %629
      %631 = vadd.xlane.f32.xlu0 %v593
      %v632 = vpop.xlane.xlu0 %631
      %633 = vadd.xlane.f32.xlu0 %v596
      %v634 = vpop.xlane.xlu0 %633
      %635 = vadd.xlane.f32.xlu0 %v601
      %v636 = vpop.xlane.xlu0 %635
      %637 = vadd.xlane.f32.xlu0 %v604
      %v638 = vpop.xlane.xlu0 %637
      %v639 = vmul.f32 %v608, 0.0625
      %v640 = vmul.f32 %v610, 0.0625
      %v641 = vmul.f32 %v612, 0.0625
      %v642 = vmul.f32 %v614, 0.0625
      %v643 = vmul.f32 %v616, 0.0625
      %v644 = vmul.f32 %v618, 0.0625
      %v645 = vmul.f32 %v620, 0.0625
      %v646 = vmul.f32 %v622, 0.0625
      %v647 = vmul.f32 %v624, 0.0625
      %v648 = vmul.f32 %v626, 0.0625
      %v649 = vmul.f32 %v628, 0.0625
      %v650 = vmul.f32 %v630, 0.0625
      %v651 = vmul.f32 %v632, 0.0625
      %v652 = vmul.f32 %v634, 0.0625
      %v653 = vmul.f32 %v636, 0.0625
      %v654 = vmul.f32 %v638, 0.0625
      %v655 = vmul.f32 %v545, %v545
      %v656 = vmul.f32 %v548, %v548
      %v657 = vmul.f32 %v553, %v553
      %v658 = vmul.f32 %v556, %v556
      %v659 = vmul.f32 %v561, %v561
      %v660 = vmul.f32 %v564, %v564
      %v661 = vmul.f32 %v569, %v569
      %v662 = vmul.f32 %v572, %v572
      %v663 = vmul.f32 %v577, %v577
      %v664 = vmul.f32 %v580, %v580
      %v665 = vmul.f32 %v585, %v585
      %v666 = vmul.f32 %v588, %v588
      %v667 = vmul.f32 %v593, %v593
      %v668 = vmul.f32 %v596, %v596
      %v669 = vmul.f32 %v601, %v601
      %v670 = vmul.f32 %v604, %v604
      %671 = vadd.xlane.f32.xlu0 %v655
      %v672 = vpop.xlane.xlu0 %671
      %673 = vadd.xlane.f32.xlu0 %v656
      %v674 = vpop.xlane.xlu0 %673
      %675 = vadd.xlane.f32.xlu0 %v657
      %v676 = vpop.xlane.xlu0 %675
      %677 = vadd.xlane.f32.xlu0 %v658
      %v678 = vpop.xlane.xlu0 %677
      %679 = vadd.xlane.f32.xlu0 %v659
      %v680 = vpop.xlane.xlu0 %679
      %681 = vadd.xlane.f32.xlu0 %v660
      %v682 = vpop.xlane.xlu0 %681
      %683 = vadd.xlane.f32.xlu0 %v661
      %v684 = vpop.xlane.xlu0 %683
      %685 = vadd.xlane.f32.xlu0 %v662
      %v686 = vpop.xlane.xlu0 %685
      %687 = vadd.xlane.f32.xlu0 %v663
      %v688 = vpop.xlane.xlu0 %687
      %689 = vadd.xlane.f32.xlu0 %v664
      %v690 = vpop.xlane.xlu0 %689
      %691 = vadd.xlane.f32.xlu0 %v665
      %v692 = vpop.xlane.xlu0 %691
      %693 = vadd.xlane.f32.xlu0 %v666
      %v694 = vpop.xlane.xlu0 %693
      %695 = vadd.xlane.f32.xlu0 %v667
      %v696 = vpop.xlane.xlu0 %695
      %697 = vadd.xlane.f32.xlu0 %v668
      %v698 = vpop.xlane.xlu0 %697
      %699 = vadd.xlane.f32.xlu0 %v669
      %v700 = vpop.xlane.xlu0 %699
      %701 = vadd.xlane.f32.xlu0 %v670
      %v702 = vpop.xlane.xlu0 %701
      %v703 = vmul.f32 %v672, 0.0625
      %v704 = vmul.f32 %v674, 0.0625
      %v705 = vmul.f32 %v676, 0.0625
      %v706 = vmul.f32 %v678, 0.0625
      %v707 = vmul.f32 %v680, 0.0625
      %v708 = vmul.f32 %v682, 0.0625
      %v709 = vmul.f32 %v684, 0.0625
      %v710 = vmul.f32 %v686, 0.0625
      %v711 = vmul.f32 %v688, 0.0625
      %v712 = vmul.f32 %v690, 0.0625
      %v713 = vmul.f32 %v692, 0.0625
      %v714 = vmul.f32 %v694, 0.0625
      %v715 = vmul.f32 %v696, 0.0625
      %v716 = vmul.f32 %v698, 0.0625
      %v717 = vmul.f32 %v700, 0.0625
      %v718 = vmul.f32 %v702, 0.0625
      %v719 = vmul.f32 %v639, %v639
      %v720 = vmul.f32 %v640, %v640
      %v721 = vmul.f32 %v641, %v641
      %v722 = vmul.f32 %v642, %v642
      %v723 = vmul.f32 %v643, %v643
      %v724 = vmul.f32 %v644, %v644
      %v725 = vmul.f32 %v645, %v645
      %v726 = vmul.f32 %v646, %v646
      %v727 = vmul.f32 %v647, %v647
      %v728 = vmul.f32 %v648, %v648
      %v729 = vmul.f32 %v649, %v649
      %v730 = vmul.f32 %v650, %v650
      %v731 = vmul.f32 %v651, %v651
      %v732 = vmul.f32 %v652, %v652
      %v733 = vmul.f32 %v653, %v653
      %v734 = vmul.f32 %v654, %v654
      %v735 = vsub.f32 %v703, %v719
      %v736 = vsub.f32 %v704, %v720
      %v737 = vsub.f32 %v705, %v721
      %v738 = vsub.f32 %v706, %v722
      %v739 = vsub.f32 %v707, %v723
      %v740 = vsub.f32 %v708, %v724
      %v741 = vsub.f32 %v709, %v725
      %v742 = vsub.f32 %v710, %v726
      %v743 = vsub.f32 %v711, %v727
      %v744 = vsub.f32 %v712, %v728
      %v745 = vsub.f32 %v713, %v729
      %v746 = vsub.f32 %v714, %v730
      %v747 = vsub.f32 %v715, %v731
      %v748 = vsub.f32 %v716, %v732
      %v749 = vsub.f32 %v717, %v733
      %v750 = vsub.f32 %v718, %v734
      %v751 = vmax.f32 %v735, 0.0
      %v752 = vmax.f32 %v736, 0.0
      %v753 = vmax.f32 %v737, 0.0
      %v754 = vmax.f32 %v738, 0.0
      %v755 = vmax.f32 %v739, 0.0
      %v756 = vmax.f32 %v740, 0.0
      %v757 = vmax.f32 %v741, 0.0
      %v758 = vmax.f32 %v742, 0.0
      %v759 = vmax.f32 %v743, 0.0
      %v760 = vmax.f32 %v744, 0.0
      %v761 = vmax.f32 %v745, 0.0
      %v762 = vmax.f32 %v746, 0.0
      %v763 = vmax.f32 %v747, 0.0
      %v764 = vmax.f32 %v748, 0.0
      %v765 = vmax.f32 %v749, 0.0
      %v766 = vmax.f32 %v750, 0.0
      %v767 = vsub.f32 %v545, %v639
      %v768 = vsub.f32 %v548, %v640
      %v769 = vsub.f32 %v553, %v641
      %v770 = vsub.f32 %v556, %v642
      %v771 = vsub.f32 %v561, %v643
      %v772 = vsub.f32 %v564, %v644
      %v773 = vsub.f32 %v569, %v645
      %v774 = vsub.f32 %v572, %v646
      %v775 = vsub.f32 %v577, %v647
      %v776 = vsub.f32 %v580, %v648
      %v777 = vsub.f32 %v585, %v649
      %v778 = vsub.f32 %v588, %v650
      %v779 = vsub.f32 %v593, %v651
      %v780 = vsub.f32 %v596, %v652
      %v781 = vsub.f32 %v601, %v653
      %v782 = vsub.f32 %v604, %v654
      %v783 = vadd.f32 %v751, 1e-05
      %v784 = vadd.f32 %v752, 1e-05
      %v785 = vadd.f32 %v753, 1e-05
      %v786 = vadd.f32 %v754, 1e-05
      %v787 = vadd.f32 %v755, 1e-05
      %v788 = vadd.f32 %v756, 1e-05
      %v789 = vadd.f32 %v757, 1e-05
      %v790 = vadd.f32 %v758, 1e-05
      %v791 = vadd.f32 %v759, 1e-05
      %v792 = vadd.f32 %v760, 1e-05
      %v793 = vadd.f32 %v761, 1e-05
      %v794 = vadd.f32 %v762, 1e-05
      %v795 = vadd.f32 %v763, 1e-05
      %v796 = vadd.f32 %v764, 1e-05
      %v797 = vadd.f32 %v765, 1e-05
      %v798 = vadd.f32 %v766, 1e-05
      %v799 = vrsqrt.pop %v783
      %v800 = vrsqrt.pop %v784
      %v801 = vrsqrt.pop %v785
      %v802 = vrsqrt.pop %v786
      %v803 = vrsqrt.pop %v787
      %v804 = vrsqrt.pop %v788
      %v805 = vrsqrt.pop %v789
      %v806 = vrsqrt.pop %v790
      %v807 = vrsqrt.pop %v791
      %v808 = vrsqrt.pop %v792
      %v809 = vrsqrt.pop %v793
      %v810 = vrsqrt.pop %v794
      %v811 = vrsqrt.pop %v795
      %v812 = vrsqrt.pop %v796
      %v813 = vrsqrt.pop %v797
      %v814 = vrsqrt.pop %v798
      %v815 = vmul.f32 %v767, %v799
      %v816 = vmul.f32 %v768, %v800
      %v817 = vmul.f32 %v769, %v801
      %v818 = vmul.f32 %v770, %v802
      %v819 = vmul.f32 %v771, %v803
      %v820 = vmul.f32 %v772, %v804
      %v821 = vmul.f32 %v773, %v805
      %v822 = vmul.f32 %v774, %v806
      %v823 = vmul.f32 %v775, %v807
      %v824 = vmul.f32 %v776, %v808
      %v825 = vmul.f32 %v777, %v809
      %v826 = vmul.f32 %v778, %v810
      %v827 = vmul.f32 %v779, %v811
      %v828 = vmul.f32 %v780, %v812
      %v829 = vmul.f32 %v781, %v813
      %v830 = vmul.f32 %v782, %v814
      %v831 = vld [vmem:[%s392] sm:$0x1]
      %v833 = vlaneseq
      %v834 = vshrl.u32 %v833, 7
      %v835 = vsub.s32 0, %v834
      %v836 = vrot.slane %v831, %v835
      %v838 = vmul.f32 %v815, %v836
      %v839 = vmul.f32 %v816, %v836
      %v840 = vmul.f32 %v817, %v836
      %v841 = vmul.f32 %v818, %v836
      %v842 = vmul.f32 %v819, %v836
      %v843 = vmul.f32 %v820, %v836
      %v844 = vmul.f32 %v821, %v836
      %v845 = vmul.f32 %v822, %v836
      %v846 = vmul.f32 %v823, %v836
      %v847 = vmul.f32 %v824, %v836
      %v848 = vmul.f32 %v825, %v836
      %v849 = vmul.f32 %v826, %v836
      %v850 = vmul.f32 %v827, %v836
      %v851 = vmul.f32 %v828, %v836
      %v852 = vmul.f32 %v829, %v836
      %v853 = vmul.f32 %v830, %v836
      %v854 = vld [vmem:[%s395] sm:$0x1]
      %v856 = vlaneseq
      %v857 = vshrl.u32 %v856, 7
      %v858 = vsub.s32 0, %v857
      %v859 = vrot.slane %v854, %v858
      %v861 = vadd.f32 %v838, %v859
      %v862 = vadd.f32 %v839, %v859
      %v863 = vadd.f32 %v840, %v859
      %v864 = vadd.f32 %v841, %v859
      %v865 = vadd.f32 %v842, %v859
      %v866 = vadd.f32 %v843, %v859
      %v867 = vadd.f32 %v844, %v859
      %v868 = vadd.f32 %v845, %v859
      %v869 = vadd.f32 %v846, %v859
      %v870 = vadd.f32 %v847, %v859
      %v871 = vadd.f32 %v848, %v859
      %v872 = vadd.f32 %v849, %v859
      %v873 = vadd.f32 %v850, %v859
      %v874 = vadd.f32 %v851, %v859
      %v875 = vadd.f32 %v852, %v859
      %v876 = vadd.f32 %v853, %v859
      %v877 = vmax.f32 %v861, 0.0
      %v878 = vmax.f32 %v862, 0.0
      %v879 = vmax.f32 %v863, 0.0
      %v880 = vmax.f32 %v864, 0.0
      %v881 = vmax.f32 %v865, 0.0
      %v882 = vmax.f32 %v866, 0.0
      %v883 = vmax.f32 %v867, 0.0
      %v884 = vmax.f32 %v868, 0.0
      %v885 = vmax.f32 %v869, 0.0
      %v886 = vmax.f32 %v870, 0.0
      %v887 = vmax.f32 %v871, 0.0
      %v888 = vmax.f32 %v872, 0.0
      %v889 = vmax.f32 %v873, 0.0
      %v890 = vmax.f32 %v874, 0.0
      %v891 = vmax.f32 %v875, 0.0
      %v892 = vmax.f32 %v876, 0.0
      %v893 = vpack.c.bf16 %v878, %v877
      %v894 = vpack.c.bf16 %v880, %v879
      %v895 = vpack.c.bf16 %v882, %v881
      %v896 = vpack.c.bf16 %v884, %v883
      %v897 = vpack.c.bf16 %v886, %v885
      %v898 = vpack.c.bf16 %v888, %v887
      %v899 = vpack.c.bf16 %v890, %v889
      %v900 = vpack.c.bf16 %v892, %v891
      %v901 = vld [vmem:[%s400] sm:$0xf]
      %v902 = vld [vmem:[%s400 + $0x4] sm:$0xf]
      %v903 = vld [vmem:[%s400 + $0x8] sm:$0xf]
      %v904 = vld [vmem:[%s400 + $0xc] sm:$0xf]
      %v905 = vld [vmem:[%s400 + $0x10] sm:$0xf]
      %v906 = vld [vmem:[%s400 + $0x14] sm:$0xf]
      %v907 = vld [vmem:[%s400 + $0x18] sm:$0xf]
      %v908 = vld [vmem:[%s400 + $0x1c] sm:$0xf]
      %v909 = vld [vmem:[%s400 + $0x20] sm:$0xf]
      %v910 = vld [vmem:[%s400 + $0x24] sm:$0xf]
      %v911 = vld [vmem:[%s400 + $0x28] sm:$0xf]
      %v912 = vld [vmem:[%s400 + $0x2c] sm:$0xf]
      %v913 = vld [vmem:[%s400 + $0x30] sm:$0xf]
      %v914 = vld [vmem:[%s400 + $0x34] sm:$0xf]
      %v915 = vld [vmem:[%s400 + $0x38] sm:$0xf]
      %v916 = vld [vmem:[%s400 + $0x3c] sm:$0xf]
      %v917 = vld [vmem:[%s403] sm:$0x1]
      %v919 = vlaneseq
      %v920 = vshrl.u32 %v919, 7
      %v921 = vsub.s32 0, %v920
      %v922 = vrot.slane %v917, %v921
      %v940 = vunpack.c.l.b16 %v901
      %v941 = vunpack.c.l.b16 %v902
      %v942 = vunpack.c.l.b16 %v903
      %v943 = vunpack.c.l.b16 %v904
      %v944 = vunpack.c.l.b16 %v905
      %v945 = vunpack.c.l.b16 %v906
      %v946 = vunpack.c.l.b16 %v907
      %v947 = vunpack.c.l.b16 %v908
      %v948 = vunpack.c.l.b16 %v909
      %v949 = vunpack.c.l.b16 %v910
      %v950 = vunpack.c.l.b16 %v911
      %v951 = vunpack.c.l.b16 %v912
      %v952 = vunpack.c.l.b16 %v913
      %v953 = vunpack.c.l.b16 %v914
      %v954 = vunpack.c.l.b16 %v915
      %v955 = vunpack.c.l.b16 %v916
      %v956 = vpack.c.b16 %v941, %v940
      %v957 = vpack.c.b16 %v943, %v942
      %v958 = vpack.c.b16 %v945, %v944
      %v959 = vpack.c.b16 %v947, %v946
      %v960 = vpack.c.b16 %v949, %v948
      %v961 = vpack.c.b16 %v951, %v950
      %v962 = vpack.c.b16 %v953, %v952
      %v963 = vpack.c.b16 %v955, %v954
      %972 = vmatprep.subr.bf16.mxu0 0
      %973 = vmatpush1.bf16.msra.mxu0 %v956
      %974 = vmatprep.subr.bf16.mxu0 0
      %975 = vmatpush1.bf16.msra.mxu0 %v957
      %976 = vmatprep.subr.bf16.mxu0 0
      %977 = vmatpush1.bf16.msra.mxu0 %v958
      %978 = vmatprep.subr.bf16.mxu0 0
      %979 = vmatpush1.bf16.msra.mxu0 %v959
      %980 = vmatprep.subr.bf16.mxu0 0
      %981 = vmatpush1.bf16.msra.mxu0 %v960
      %982 = vmatprep.subr.bf16.mxu0 0
      %983 = vmatpush1.bf16.msra.mxu0 %v961
      %984 = vmatprep.subr.bf16.mxu0 0
      %985 = vmatpush1.bf16.msra.mxu0 %v962
      %986 = vmatprep.subr.bf16.mxu0 0
      %987 = vmatpush1.bf16.msra.mxu0 %v963
      %988 = vmatprep.subr.bf16.mxu0 0
      %989 = vmatpush1.bf16.msra.mxu0 0
      %990 = vmatprep.subr.bf16.mxu0 0
      %991 = vmatpush1.bf16.msra.mxu0 0
      %992 = vmatprep.subr.bf16.mxu0 0
      %993 = vmatpush1.bf16.msra.mxu0 0
      %994 = vmatprep.subr.bf16.mxu0 0
      %995 = vmatpush1.bf16.msra.mxu0 0
      %996 = vmatprep.subr.bf16.mxu0 0
      %997 = vmatpush1.bf16.msra.mxu0 0
      %998 = vmatprep.subr.bf16.mxu0 0
      %999 = vmatpush1.bf16.msra.mxu0 0
      %1000 = vmatprep.subr.bf16.mxu0 0
      %1001 = vmatpush1.bf16.msra.mxu0 0
      %1002 = vmatprep.subr.bf16.mxu0 0
      %1003 = vmatpush1.bf16.msra.mxu0 0
      %1004 = vmatprep.mubr.bf16.mxu0 0
      %1005 = vmatmul.mubr.bf16.gmra.mrb[0].mxu0 %v893
      %v1006 = vpop.f32.mrb[0].mxu0
      %v1007 = vadd.f32 %v922, %v1006
      %v1008 = vpop.f32.mrb[0].mxu0
      %v1009 = vpop.f32.mrb[0].mxu0
      %v1010 = vadd.f32 %v922, %v1009
      %v1011 = vpop.f32.mrb[0].mxu0
      %1012 = vmatprep.mubr.bf16.mxu0 0
      %1013 = vmatmul.mubr.bf16.gmra.mrb[0].mxu0 %v894
      %v1014 = vpop.f32.mrb[0].mxu0
      %v1015 = vadd.f32 %v922, %v1014
      %v1016 = vpop.f32.mrb[0].mxu0
      %v1017 = vpop.f32.mrb[0].mxu0
      %v1018 = vadd.f32 %v922, %v1017
      %v1019 = vpop.f32.mrb[0].mxu0
      %1020 = vmatprep.mubr.bf16.mxu0 0
      %1021 = vmatmul.mubr.bf16.gmra.mrb[0].mxu0 %v895
      %v1022 = vpop.f32.mrb[0].mxu0
      %v1023 = vadd.f32 %v922, %v1022
      %v1024 = vpop.f32.mrb[0].mxu0
      %v1025 = vpop.f32.mrb[0].mxu0
      %v1026 = vadd.f32 %v922, %v1025
      %v1027 = vpop.f32.mrb[0].mxu0
      %1028 = vmatprep.mubr.bf16.mxu0 0
      %1029 = vmatmul.mubr.bf16.gmra.mrb[0].mxu0 %v896
      %v1030 = vpop.f32.mrb[0].mxu0
      %v1031 = vadd.f32 %v922, %v1030
      %v1032 = vpop.f32.mrb[0].mxu0
      %v1033 = vpop.f32.mrb[0].mxu0
      %v1034 = vadd.f32 %v922, %v1033
      %v1035 = vpop.f32.mrb[0].mxu0
      %1036 = vmatprep.mubr.bf16.mxu0 0
      %1037 = vmatmul.mubr.bf16.gmra.mrb[0].mxu0 %v897
      %v1038 = vpop.f32.mrb[0].mxu0
      %v1039 = vadd.f32 %v922, %v1038
      %v1040 = vpop.f32.mrb[0].mxu0
      %v1041 = vpop.f32.mrb[0].mxu0
      %v1042 = vadd.f32 %v922, %v1041
      %v1043 = vpop.f32.mrb[0].mxu0
      %1044 = vmatprep.mubr.bf16.mxu0 0
      %1045 = vmatmul.mubr.bf16.gmra.mrb[0].mxu0 %v898
      %v1046 = vpop.f32.mrb[0].mxu0
      %v1047 = vadd.f32 %v922, %v1046
      %v1048 = vpop.f32.mrb[0].mxu0
      %v1049 = vpop.f32.mrb[0].mxu0
      %v1050 = vadd.f32 %v922, %v1049
      %v1051 = vpop.f32.mrb[0].mxu0
      %1052 = vmatprep.mubr.bf16.mxu0 0
      %1053 = vmatmul.mubr.bf16.gmra.mrb[0].mxu0 %v899
      %v1054 = vpop.f32.mrb[0].mxu0
      %v1055 = vadd.f32 %v922, %v1054
      %v1056 = vpop.f32.mrb[0].mxu0
      %v1057 = vpop.f32.mrb[0].mxu0
      %v1058 = vadd.f32 %v922, %v1057
      %v1059 = vpop.f32.mrb[0].mxu0
      %1060 = vmatprep.mubr.bf16.mxu0 0
      %1061 = vmatmul.mubr.bf16.gmra.mrb[0].mxu0 %v900
      %v1062 = vpop.f32.mrb[0].mxu0
      %v1063 = vadd.f32 %v922, %v1062
      %v1064 = vpop.f32.mrb[0].mxu0
      %v1065 = vpop.f32.mrb[0].mxu0
      %v1066 = vadd.f32 %v922, %v1065
      %v1067 = vpop.f32.mrb[0].mxu0
      %1068 = vdwg.mxu0
      %v1069 = vmax.f32 %v1007, 0.0
      %v1070 = vmax.f32 %v1010, 0.0
      %v1071 = vmax.f32 %v1015, 0.0
      %v1072 = vmax.f32 %v1018, 0.0
      %v1073 = vmax.f32 %v1023, 0.0
      %v1074 = vmax.f32 %v1026, 0.0
      %v1075 = vmax.f32 %v1031, 0.0
      %v1076 = vmax.f32 %v1034, 0.0
      %v1077 = vmax.f32 %v1039, 0.0
      %v1078 = vmax.f32 %v1042, 0.0
      %v1079 = vmax.f32 %v1047, 0.0
      %v1080 = vmax.f32 %v1050, 0.0
      %v1081 = vmax.f32 %v1055, 0.0
      %v1082 = vmax.f32 %v1058, 0.0
      %v1083 = vmax.f32 %v1063, 0.0
      %v1084 = vmax.f32 %v1066, 0.0
      %1085 = vst [vmem:[%s412] sm:$0xff] %v1069
      %1086 = vst [vmem:[%s412 + $0x8] sm:$0xff] %v1070
      %1087 = vst [vmem:[%s412 + $0x10] sm:$0xff] %v1071
      %1088 = vst [vmem:[%s412 + $0x18] sm:$0xff] %v1072
      %1089 = vst [vmem:[%s412 + $0x20] sm:$0xff] %v1073
      %1090 = vst [vmem:[%s412 + $0x28] sm:$0xff] %v1074
      %1091 = vst [vmem:[%s412 + $0x30] sm:$0xff] %v1075
      %1092 = vst [vmem:[%s412 + $0x38] sm:$0xff] %v1076
      %1093 = vst [vmem:[%s412 + $0x40] sm:$0xff] %v1077
      %1094 = vst [vmem:[%s412 + $0x48] sm:$0xff] %v1078
      %1095 = vst [vmem:[%s412 + $0x50] sm:$0xff] %v1079
      %1096 = vst [vmem:[%s412 + $0x58] sm:$0xff] %v1080
      %1097 = vst [vmem:[%s412 + $0x60] sm:$0xff] %v1081
      %1098 = vst [vmem:[%s412 + $0x68] sm:$0xff] %v1082
      %1099 = vst [vmem:[%s412 + $0x70] sm:$0xff] %v1083
      %1100 = vst [vmem:[%s412 + $0x78] sm:$0xff] %v1084
      %s1101 = smul.u32 16, %s22
      %p1102 = scmp.lt.s32.totalorder %s23, 1
      %s1103 = scalar_select %p1102, %s23, 1
      %p1104 = scmp.lt.s32.totalorder %s1101, 15
      %s1105 = scalar_select %p1104, %s1101, 15
      %s1106 = smul.addr %s1103, 16
      %s1107 = sadd.s32 %s1105, %s1106
      %s1108 = smul.addr %s1107, 8
      %s1109 = scalar_lea.vmem %s7, %s1108
      // Predicated region
      $region49: #{_lambda_.8} parent=47 // pred_check
        %p1110 = pneg %p234
      $region50: #{_lambda_.8} parent=47 // pred_check_branch
        %1112 = sbr.rel (%p1110) target = $region52
      $region51: #{_lambda_.8} parent=47 // pred_region
        %s1113 = smul.u32 16, %s22
      $region52: #{_lambda_.8} parent=47 // pred_fallthru
        _
    $region48: #{_lambda_.8} parent=5 // pred_fallthru
      _
    %p1114 = scmp.le.s32.totalorder 2, %s13
    // Predicated region
    $region53: #{_lambda_.8} parent=5 // pred_check
      %p1115 = pneg %p1114
    $region54: #{_lambda_.8} parent=5 // pred_check_branch
      %1117 = sbr.rel (%p1115) target = $region56
    $region55: #{_lambda_.8} parent=5 // pred_region
      %s1118 = ssub.s32 %s13, 2
      // Predicated region
      $region57: #{_lambda_.8} parent=55 // pred_check
        %p1119 = pneg %p240
      $region58: #{_lambda_.8} parent=55 // pred_check_branch
        %1121 = sbr.rel (%p1119) target = $region60
      $region59: #{_lambda_.8} parent=55 // pred_region
        %s1122 = smul.u32 16, %s24
        %p1123 = scmp.lt.s32.totalorder %s25, 1
        %s1124 = scalar_select %p1123, %s25, 1
        %p1125 = scmp.lt.s32.totalorder %s1122, 15
        %s1126 = scalar_select %p1125, %s1122, 15
        %s1127 = smul.addr %s1124, 16
        %s1128 = sadd.s32 %s1126, %s1127
        %s1129 = smul.addr %s1128, 8
        %s1130 = scalar_lea.vmem %s7, %s1129
      $region60: #{_lambda_.8} parent=55 // pred_fallthru
        _
    $region56: #{_lambda_.8} parent=5 // pred_fallthru
      _
  $region6: #{_lambda_.8} parent=0 // loop_footer
    %s17 = sadd.s32 1, %s13
  $region7: #{_lambda_.8} parent=0 // loop_footer_branch
    %12 = sbr.rel target = $region3
  $region8: #{_lambda_.8} parent=0 // loop_exit
    _

// kernel: _lambda_.7
$region0: #{_lambda_.7}
  #allocation0 [shape = 'u32[]', space=smem, size = 0x4, offset = 0x4, fixed_abs, tag = 'smem constant byte address 0x4 - core index']
  #allocation1 [shape = 'u32[144,128]{1,0:T(1,128)}', space=vmem, size = 0x12000, scoped, tag = 'internal scratch']
  #allocation2 [shape = 'f32[128,512]{1,0:T(8,128)}', space=vmem, size = 0x40000, scoped, tag = 'scratch operand']
  %s0 = inlined_call_operand.vmem [shape: f32[2,128,128], index: 0, kind: input, shape index: {}]
  %s1 = inlined_call_operand.vmem [shape: f32[2,128,512], index: 1, kind: input, shape index: {}]
  %s2 = inlined_call_operand.vmem [shape: bf16[2,128,512], index: 2, kind: input, shape index: {}]
  %s3 = inlined_call_operand.vmem [shape: f32[2,1,512], index: 3, kind: input, shape index: {}]
  %s4 = inlined_call_operand.vmem [shape: f32[2,1,1], index: 4, kind: input, shape index: {}]
  %s5 = inlined_call_operand.vmem [shape: f32[2,128,128], index: 5, kind: output, shape index: {}]
  %s6 = sld [smem:[#allocation0]]
  $region64: #{_lambda_.7} parent=0
    _
  %s8 = ssub.s32 1, %s6
  %s9 = scalar_select 0, %s8, %s6
  loop: start=0, step=1, limit=4
  $region2: #{_lambda_.7} parent=0 // loop_pre_header
    _
  $region3: #{_lambda_.7} parent=0 // loop_header
    %s11 = sphi 0, %s15
    %p12 = scmp.ge.s32.totalorder %s11, 4
    %s18 = sphi 0, %s37
    %s19 = sphi 0, %s33
    %s20 = sphi 0, %s29
    %s21 = sphi 0, %s18
    %s22 = sphi 0, %s19
    %s23 = sphi 0, %s20
    %s24 = sphi 0, %s21
    %s25 = sphi 0, %s22
    %s26 = sphi 0, %s23
    %s42 = sphi 0, %s44
    %s45 = sphi 0, %s42
    %s46 = sphi 0, %s45
    %s62 = sphi 0, %s46
    %s70 = sphi 0, %s72
    %s73 = sphi 0, %s70
    %s74 = sphi 0, %s73
    %s90 = sphi 0, %s74
    %s96 = sphi 0, %s98
    %s99 = sphi 0, %s96
    %s100 = sphi 0, %s99
    %s116 = sphi 0, %s100
    %s122 = sphi 0, %s124
    %s125 = sphi 0, %s122
    %s126 = sphi 0, %s125
    %s142 = sphi 0, %s126
    %s148 = sphi 0, %s150
    %s151 = sphi 0, %s148
    %s152 = sphi 0, %s151
    %s168 = sphi 0, %s152
    %s178 = sphi 0, %s180
    %s181 = sphi 0, %s178
    %s182 = sphi 0, %s181
    %s198 = sphi 0, %s182
  $region4: #{_lambda_.7} parent=0 // loop_header_branch
    %14 = sbr.rel (%p12) target = $region8
  $region5: #{_lambda_.7} parent=0 // loop_body
    %s16 = ssub.s32 %s11, 1
    %s17 = ssub.s32 %s11, 2
    %s27 = sadd.s32 1, %s20
    %p28 = scmp.ge.s32.totalorder %s27, 1
    %s29 = scalar_select %p28, 0, %s27
    %s30 = sadd.s32 1, %s19
    %s31 = scalar_select %p28, %s30, %s19
    %p32 = scmp.ge.s32.totalorder %s31, 1
    %s33 = scalar_select %p32, 0, %s31
    %s34 = sadd.s32 1, %s18
    %s35 = scalar_select %p32, %s34, %s18
    %p36 = scmp.ge.s32.totalorder %s35, 2
    %s37 = scalar_select %p36, 0, %s35
    %s38 = ssub.s32 %s18, %s37
    %s39 = ssub.s32 %s19, %s33
    %s40 = sor.u32 %s38, %s39
    %p41 = scmp.eq.s32.totalorder %s40, 0
    %s43 = sadd.s32 %s42, 1
    %s44 = scalar_select %p41, %s42, %s43
    %p47 = pneg %p41
    %p48 = scmp.eq.s32.totalorder %s11, 1
    %p49 = por %p47, %p48
    %p50 = scmp.ne.s32.totalorder %s42, %s45
    %p51 = scmp.eq.s32.totalorder %s11, 0
    %p52 = por %p50, %p51
    %p53 = scmp.ne.s32.totalorder %s42, %s45
    %p54 = scmp.eq.s32.totalorder %s16, 1
    %p55 = por %p53, %p54
    %p56 = scmp.ne.s32.totalorder %s45, %s46
    %p57 = scmp.eq.s32.totalorder %s16, 0
    %p58 = por %p56, %p57
    %p59 = scmp.ne.s32.totalorder %s45, %s46
    %p60 = scmp.eq.s32.totalorder %s17, 1
    %p61 = por %p59, %p60
    %p63 = scmp.ne.s32.totalorder %s46, %s62
    %p64 = scmp.eq.s32.totalorder %s17, 0
    %p65 = por %p63, %p64
    %s66 = ssub.s32 %s18, %s37
    %s67 = ssub.s32 %s20, %s29
    %s68 = sor.u32 %s66, %s67
    %p69 = scmp.eq.s32.totalorder %s68, 0
    %s71 = sadd.s32 %s70, 1
    %s72 = scalar_select %p69, %s70, %s71
    %p75 = pneg %p69
    %p76 = scmp.eq.s32.totalorder %s11, 1
    %p77 = por %p75, %p76
    %p78 = scmp.ne.s32.totalorder %s70, %s73
    %p79 = scmp.eq.s32.totalorder %s11, 0
    %p80 = por %p78, %p79
    %p81 = scmp.ne.s32.totalorder %s70, %s73
    %p82 = scmp.eq.s32.totalorder %s16, 1
    %p83 = por %p81, %p82
    %p84 = scmp.ne.s32.totalorder %s73, %s74
    %p85 = scmp.eq.s32.totalorder %s16, 0
    %p86 = por %p84, %p85
    %p87 = scmp.ne.s32.totalorder %s73, %s74
    %p88 = scmp.eq.s32.totalorder %s17, 1
    %p89 = por %p87, %p88
    %p91 = scmp.ne.s32.totalorder %s74, %s90
    %p92 = scmp.eq.s32.totalorder %s17, 0
    %p93 = por %p91, %p92
    %s94 = ssub.s32 %s18, %s37
    %p95 = scmp.eq.s32.totalorder %s94, 0
    %s97 = sadd.s32 %s96, 1
    %s98 = scalar_select %p95, %s96, %s97
    %p101 = pneg %p95
    %p102 = scmp.eq.s32.totalorder %s11, 1
    %p103 = por %p101, %p102
    %p104 = scmp.ne.s32.totalorder %s96, %s99
    %p105 = scmp.eq.s32.totalorder %s11, 0
    %p106 = por %p104, %p105
    %p107 = scmp.ne.s32.totalorder %s96, %s99
    %p108 = scmp.eq.s32.totalorder %s16, 1
    %p109 = por %p107, %p108
    %p110 = scmp.ne.s32.totalorder %s99, %s100
    %p111 = scmp.eq.s32.totalorder %s16, 0
    %p112 = por %p110, %p111
    %p113 = scmp.ne.s32.totalorder %s99, %s100
    %p114 = scmp.eq.s32.totalorder %s17, 1
    %p115 = por %p113, %p114
    %p117 = scmp.ne.s32.totalorder %s100, %s116
    %p118 = scmp.eq.s32.totalorder %s17, 0
    %p119 = por %p117, %p118
    %s120 = ssub.s32 %s18, %s37
    %p121 = scmp.eq.s32.totalorder %s120, 0
    %s123 = sadd.s32 %s122, 1
    %s124 = scalar_select %p121, %s122, %s123
    %p127 = pneg %p121
    %p128 = scmp.eq.s32.totalorder %s11, 1
    %p129 = por %p127, %p128
    %p130 = scmp.ne.s32.totalorder %s122, %s125
    %p131 = scmp.eq.s32.totalorder %s11, 0
    %p132 = por %p130, %p131
    %p133 = scmp.ne.s32.totalorder %s122, %s125
    %p134 = scmp.eq.s32.totalorder %s16, 1
    %p135 = por %p133, %p134
    %p136 = scmp.ne.s32.totalorder %s125, %s126
    %p137 = scmp.eq.s32.totalorder %s16, 0
    %p138 = por %p136, %p137
    %p139 = scmp.ne.s32.totalorder %s125, %s126
    %p140 = scmp.eq.s32.totalorder %s17, 1
    %p141 = por %p139, %p140
    %p143 = scmp.ne.s32.totalorder %s126, %s142
    %p144 = scmp.eq.s32.totalorder %s17, 0
    %p145 = por %p143, %p144
    %s146 = ssub.s32 %s18, %s37
    %p147 = scmp.eq.s32.totalorder %s146, 0
    %s149 = sadd.s32 %s148, 1
    %s150 = scalar_select %p147, %s148, %s149
    %p153 = pneg %p147
    %p154 = scmp.eq.s32.totalorder %s11, 1
    %p155 = por %p153, %p154
    %p156 = scmp.ne.s32.totalorder %s148, %s151
    %p157 = scmp.eq.s32.totalorder %s11, 0
    %p158 = por %p156, %p157
    %p159 = scmp.ne.s32.totalorder %s148, %s151
    %p160 = scmp.eq.s32.totalorder %s16, 1
    %p161 = por %p159, %p160
    %p162 = scmp.ne.s32.totalorder %s151, %s152
    %p163 = scmp.eq.s32.totalorder %s16, 0
    %p164 = por %p162, %p163
    %p165 = scmp.ne.s32.totalorder %s151, %s152
    %p166 = scmp.eq.s32.totalorder %s17, 1
    %p167 = por %p165, %p166
    %p169 = scmp.ne.s32.totalorder %s152, %s168
    %p170 = scmp.eq.s32.totalorder %s17, 0
    %p171 = por %p169, %p170
    %s172 = ssub.s32 %s18, %s37
    %s173 = ssub.s32 %s19, %s33
    %s174 = sor.u32 %s172, %s173
    %s175 = ssub.s32 %s20, %s29
    %s176 = sor.u32 %s174, %s175
    %p177 = scmp.eq.s32.totalorder %s176, 0
    %s179 = sadd.s32 %s178, 1
    %s180 = scalar_select %p177, %s178, %s179
    %p183 = pneg %p177
    %p184 = scmp.eq.s32.totalorder %s11, 1
    %p185 = por %p183, %p184
    %p186 = scmp.ne.s32.totalorder %s178, %s181
    %p187 = scmp.eq.s32.totalorder %s11, 0
    %p188 = por %p186, %p187
    %p189 = scmp.ne.s32.totalorder %s178, %s181
    %p190 = scmp.eq.s32.totalorder %s16, 1
    %p191 = por %p189, %p190
    %p192 = scmp.ne.s32.totalorder %s181, %s182
    %p193 = scmp.eq.s32.totalorder %s16, 0
    %p194 = por %p192, %p193
    %p195 = scmp.ne.s32.totalorder %s181, %s182
    %p196 = scmp.eq.s32.totalorder %s17, 1
    %p197 = por %p195, %p196
    %p199 = scmp.ne.s32.totalorder %s182, %s198
    %p200 = scmp.eq.s32.totalorder %s17, 0
    %p201 = por %p199, %p200
    %p202 = scmp.le.s32.totalorder 1, %s11
    %p203 = scmp.lt.s32.totalorder %s11, 3
    %p204 = pnand %p202, %p203
    %p205 = pneg %p204
    // Predicated region
    $region9: #{_lambda_.7} parent=5 // pred_check
      _
    $region10: #{_lambda_.7} parent=5 // pred_check_branch
      %207 = sbr.rel (%p204) target = $region12
    $region11: #{_lambda_.7} parent=5 // pred_region
      %s208 = ssub.s32 %s11, 1
    $region12: #{_lambda_.7} parent=5 // pred_fallthru
      _
    %p209 = scmp.lt.s32.totalorder %s11, 2
    // Predicated region
    $region13: #{_lambda_.7} parent=5 // pred_check
      %p210 = pneg %p209
    $region14: #{_lambda_.7} parent=5 // pred_check_branch
      %212 = sbr.rel (%p210) target = $region16
    $region15: #{_lambda_.7} parent=5 // pred_region
      // Predicated region
      $region17: #{_lambda_.7} parent=15 // pred_check
        %p213 = pneg %p52
      $region18: #{_lambda_.7} parent=15 // pred_check_branch
        %215 = sbr.rel (%p213) target = $region20
      $region19: #{_lambda_.7} parent=15 // pred_region
        %s216 = smul.u32 16, %s19
        %p217 = scmp.lt.s32.totalorder %s18, 1
        %s218 = scalar_select %p217, %s18, 1
        %p219 = scmp.lt.s32.totalorder %s216, 15
        %s220 = scalar_select %p219, %s216, 15
        %s221 = smul.addr %s218, 16
        %s222 = sadd.s32 %s220, %s221
        %s223 = smul.addr %s222, 8
        %s224 = scalar_lea.vmem %s0, %s223
        %s225 = smul.u32 16, %s19
      $region20: #{_lambda_.7} parent=15 // pred_fallthru
        _
      // Predicated region
      $region21: #{_lambda_.7} parent=15 // pred_check
        %p226 = pneg %p80
      $region22: #{_lambda_.7} parent=15 // pred_check_branch
        %228 = sbr.rel (%p226) target = $region24
      $region23: #{_lambda_.7} parent=15 // pred_region
        %s229 = smul.u32 16, %s20
        %p230 = scmp.lt.s32.totalorder %s18, 1
        %s231 = scalar_select %p230, %s18, 1
        %p232 = scmp.lt.s32.totalorder %s229, 15
        %s233 = scalar_select %p232, %s229, 15
        %s234 = smul.addr %s233, 4
        %s235 = smul.addr %s231, 64
        %s236 = sadd.s32 %s234, %s235
        %s237 = smul.addr %s236, 8
        %s238 = scalar_lea.vmem %s1, %s237
        %s239 = smul.u32 16, %s20
      $region24: #{_lambda_.7} parent=15 // pred_fallthru
        _
      // Predicated region
      $region25: #{_lambda_.7} parent=15 // pred_check
        %p240 = pneg %p106
      $region26: #{_lambda_.7} parent=15 // pred_check_branch
        %242 = sbr.rel (%p240) target = $region28
      $region27: #{_lambda_.7} parent=15 // pred_region
        %p243 = scmp.lt.s32.totalorder %s18, 1
        %s244 = scalar_select %p243, %s18, 1
        %s245 = smul.addr %s244, 64
        %s246 = smul.addr %s245, 4
        %s247 = scalar_lea.vmem %s2, %s246
      $region28: #{_lambda_.7} parent=15 // pred_fallthru
        _
      // Predicated region
      $region29: #{_lambda_.7} parent=15 // pred_check
        %p248 = pneg %p132
      $region30: #{_lambda_.7} parent=15 // pred_check_branch
        %250 = sbr.rel (%p248) target = $region32
      $region31: #{_lambda_.7} parent=15 // pred_region
        %p251 = scmp.lt.s32.totalorder %s18, 1
        %s252 = scalar_select %p251, %s18, 1
        %s253 = smul.addr %s252, 4
        %s254 = scalar_lea.vmem %s3, %s253
      $region32: #{_lambda_.7} parent=15 // pred_fallthru
        _
      // Predicated region
      $region33: #{_lambda_.7} parent=15 // pred_check
        %p255 = pneg %p158
      $region34: #{_lambda_.7} parent=15 // pred_check_branch
        %257 = sbr.rel (%p255) target = $region36
      $region35: #{_lambda_.7} parent=15 // pred_region
        %p258 = scmp.lt.s32.totalorder %s18, 1
        %s259 = scalar_select %p258, %s18, 1
        %s260 = scalar_lea.vmem %s4, %s259
      $region36: #{_lambda_.7} parent=15 // pred_fallthru
        _
    $region16: #{_lambda_.7} parent=5 // pred_fallthru
      _
    %p261 = scmp.le.s32.totalorder 1, %s11
    %p262 = scmp.lt.s32.totalorder %s11, 3
    %p263 = pnand %p261, %p262
    %p264 = pneg %p263
    // Predicated region
    $region37: #{_lambda_.7} parent=5 // pred_check
      _
    $region38: #{_lambda_.7} parent=5 // pred_check_branch
      %266 = sbr.rel (%p263) target = $region40
    $region39: #{_lambda_.7} parent=5 // pred_region
      %s267 = ssub.s32 %s11, 1
      %s268 = smul.u32 16, %s22
      %p269 = scmp.lt.s32.totalorder %s21, 1
      %s270 = scalar_select %p269, %s21, 1
      %p271 = scmp.lt.s32.totalorder %s268, 15
      %s272 = scalar_select %p271, %s268, 15
      %s273 = smul.addr %s270, 16
      %s274 = sadd.s32 %s272, %s273
      %s275 = smul.addr %s274, 8
      %s276 = scalar_lea.vmem %s0, %s275
      %p277 = pneg %p58
      %p278 = pneg %p55
      %s279 = smul.u32 16, %s23
      %p280 = scmp.lt.s32.totalorder %s21, 1
      %s281 = scalar_select %p280, %s21, 1
      %p282 = scmp.lt.s32.totalorder %s279, 15
      %s283 = scalar_select %p282, %s279, 15
      %s284 = smul.addr %s283, 4
      %s285 = smul.addr %s281, 64
      %s286 = sadd.s32 %s284, %s285
      %s287 = smul.addr %s286, 8
      %s288 = scalar_lea.vmem %s1, %s287
      %p289 = pneg %p86
      %p290 = pneg %p83
      %p291 = scmp.lt.s32.totalorder %s21, 1
      %s292 = scalar_select %p291, %s21, 1
      %s293 = smul.addr %s292, 64
      %s294 = smul.addr %s293, 4
      %s295 = scalar_lea.vmem %s2, %s294
      %p296 = pneg %p112
      %p297 = pneg %p109
      %p298 = scmp.lt.s32.totalorder %s21, 1
      %s299 = scalar_select %p298, %s21, 1
      %s300 = smul.addr %s299, 4
      %s301 = scalar_lea.vmem %s3, %s300
      %p302 = pneg %p138
      %p303 = pneg %p135
      %p304 = scmp.lt.s32.totalorder %s21, 1
      %s305 = scalar_select %p304, %s21, 1
      %s306 = scalar_lea.vmem %s4, %s305
      %p307 = pneg %p164
      %p308 = pneg %p161
      %p309 = pneg %p194
      %p310 = pneg %p191
      %s311 = smul.u32 16, %s22
      %p312 = scmp.lt.s32.totalorder %s21, 1
      %s313 = scalar_select %p312, %s21, 1
      %p314 = scmp.lt.s32.totalorder %s311, 15
      %s315 = scalar_select %p314, %s311, 15
      %p316 = scmp.lt.s32.totalorder %s23, 0
      %s317 = scalar_select %p316, %s23, 0
      %s318 = sadd.s32 %s317, %s315
      %s319 = smul.addr %s313, 16
      %s320 = sadd.s32 %s318, %s319
      %s321 = smul.addr %s320, 8
      %s322 = scalar_lea.vmem %s5, %s321
      %s323 = smul.u32 16, %s22
      %p324 = scmp.lt.s32.totalorder %s21, 1
      %s325 = scalar_select %p324, %s21, 1
      %p326 = scmp.lt.s32.totalorder %s323, 15
      %s327 = scalar_select %p326, %s323, 15
      %s328 = smul.addr %s325, 16
      %s329 = sadd.s32 %s327, %s328
      %s330 = smul.addr %s329, 8
      %s331 = scalar_lea.vmem %s0, %s330
      %s332 = smul.u32 16, %s22
      %s333 = smul.u32 16, %s23
      %p334 = scmp.lt.s32.totalorder %s21, 1
      %s335 = scalar_select %p334, %s21, 1
      %p336 = scmp.lt.s32.totalorder %s333, 15
      %s337 = scalar_select %p336, %s333, 15
      %s338 = smul.addr %s337, 4
      %s339 = smul.addr %s335, 64
      %s340 = sadd.s32 %s338, %s339
      %s341 = smul.addr %s340, 8
      %s342 = scalar_lea.vmem %s1, %s341
      %s343 = smul.u32 16, %s23
      %p344 = scmp.lt.s32.totalorder %s21, 1
      %s345 = scalar_select %p344, %s21, 1
      %s346 = smul.addr %s345, 64
      %s347 = smul.addr %s346, 4
      %s348 = scalar_lea.vmem %s2, %s347
      %p349 = scmp.lt.s32.totalorder %s21, 1
      %s350 = scalar_select %p349, %s21, 1
      %s351 = smul.addr %s350, 4
      %s352 = scalar_lea.vmem %s3, %s351
      %p353 = scmp.lt.s32.totalorder %s21, 1
      %s354 = scalar_select %p353, %s21, 1
      %s355 = scalar_lea.vmem %s4, %s354
      %s356 = smul.u32 16, %s22
      %p357 = scmp.lt.s32.totalorder %s21, 1
      %s358 = scalar_select %p357, %s21, 1
      %p359 = scmp.lt.s32.totalorder %s356, 15
      %s360 = scalar_select %p359, %s356, 15
      %p361 = scmp.lt.s32.totalorder %s23, 0
      %s362 = scalar_select %p361, %s23, 0
      %s363 = sadd.s32 %s362, %s360
      %s364 = smul.addr %s358, 16
      %s365 = sadd.s32 %s363, %s364
      %s366 = smul.addr %s365, 8
      %s367 = scalar_lea.vmem %s5, %s366
      %s368 = smul.u32 16, %s22
      %p370 = scmp.eq.s32.totalorder %s23, 0
      // Predicated region
      $region41: #{_lambda_.7} parent=39 // pred_check
        %p371 = pneg %p370
      $region42: #{_lambda_.7} parent=39 // pred_check_branch
        %373 = sbr.rel (%p371) target = $region44
      $region43: #{_lambda_.7} parent=39 // pred_region
        %v374 = vld [vmem:[%s331] sm:$0xff]
        %v375 = vld [vmem:[%s331 + $0x8] sm:$0xff]
        %v376 = vld [vmem:[%s331 + $0x10] sm:$0xff]
        %v377 = vld [vmem:[%s331 + $0x18] sm:$0xff]
        %v378 = vld [vmem:[%s331 + $0x20] sm:$0xff]
        %v379 = vld [vmem:[%s331 + $0x28] sm:$0xff]
        %v380 = vld [vmem:[%s331 + $0x30] sm:$0xff]
        %v381 = vld [vmem:[%s331 + $0x38] sm:$0xff]
        %v382 = vld [vmem:[%s331 + $0x40] sm:$0xff]
        %v383 = vld [vmem:[%s331 + $0x48] sm:$0xff]
        %v384 = vld [vmem:[%s331 + $0x50] sm:$0xff]
        %v385 = vld [vmem:[%s331 + $0x58] sm:$0xff]
        %v386 = vld [vmem:[%s331 + $0x60] sm:$0xff]
        %v387 = vld [vmem:[%s331 + $0x68] sm:$0xff]
        %v388 = vld [vmem:[%s331 + $0x70] sm:$0xff]
        %v389 = vld [vmem:[%s331 + $0x78] sm:$0xff]
        %v390 = vpack.c.bf16 %v375, %v374
        %v391 = vpack.c.bf16 %v377, %v376
        %v392 = vpack.c.bf16 %v379, %v378
        %v393 = vpack.c.bf16 %v381, %v380
        %v394 = vpack.c.bf16 %v383, %v382
        %v395 = vpack.c.bf16 %v385, %v384
        %v396 = vpack.c.bf16 %v387, %v386
        %v397 = vpack.c.bf16 %v389, %v388
        %v398 = vld [vmem:[%s348] sm:$0xff]
        %v399 = vld [vmem:[%s348 + $0x8] sm:$0xff]
        %v400 = vld [vmem:[%s348 + $0x10] sm:$0xff]
        %v401 = vld [vmem:[%s348 + $0x18] sm:$0xff]
        %v402 = vld [vmem:[%s348 + $0x20] sm:$0xff]
        %v403 = vld [vmem:[%s348 + $0x28] sm:$0xff]
        %v404 = vld [vmem:[%s348 + $0x30] sm:$0xff]
        %v405 = vld [vmem:[%s348 + $0x38] sm:$0xff]
        %v406 = vld [vmem:[%s348 + $0x40] sm:$0xff]
        %v407 = vld [vmem:[%s348 + $0x48] sm:$0xff]
        %v408 = vld [vmem:[%s348 + $0x50] sm:$0xff]
        %v409 = vld [vmem:[%s348 + $0x58] sm:$0xff]
        %v410 = vld [vmem:[%s348 + $0x60] sm:$0xff]
        %v411 = vld [vmem:[%s348 + $0x68] sm:$0xff]
        %v412 = vld [vmem:[%s348 + $0x70] sm:$0xff]
        %v413 = vld [vmem:[%s348 + $0x78] sm:$0xff]
        %v414 = vld [vmem:[%s348 + $0x80] sm:$0xff]
        %v415 = vld [vmem:[%s348 + $0x88] sm:$0xff]
        %v416 = vld [vmem:[%s348 + $0x90] sm:$0xff]
        %v417 = vld [vmem:[%s348 + $0x98] sm:$0xff]
        %v418 = vld [vmem:[%s348 + $0xa0] sm:$0xff]
        %v419 = vld [vmem:[%s348 + $0xa8] sm:$0xff]
        %v420 = vld [vmem:[%s348 + $0xb0] sm:$0xff]
        %v421 = vld [vmem:[%s348 + $0xb8] sm:$0xff]
        %v422 = vld [vmem:[%s348 + $0xc0] sm:$0xff]
        %v423 = vld [vmem:[%s348 + $0xc8] sm:$0xff]
        %v424 = vld [vmem:[%s348 + $0xd0] sm:$0xff]
        %v425 = vld [vmem:[%s348 + $0xd8] sm:$0xff]
        %v426 = vld [vmem:[%s348 + $0xe0] sm:$0xff]
        %v427 = vld [vmem:[%s348 + $0xe8] sm:$0xff]
        %v428 = vld [vmem:[%s348 + $0xf0] sm:$0xff]
        %v429 = vld [vmem:[%s348 + $0xf8] sm:$0xff]
        %v462 = vunpack.c.l.b16 %v398
        %v463 = vunpack.c.h.b16 %v398
        %v464 = vunpack.c.l.b16 %v399
        %v465 = vunpack.c.h.b16 %v399
        %v466 = vunpack.c.l.b16 %v400
        %v467 = vunpack.c.h.b16 %v400
        %v468 = vunpack.c.l.b16 %v401
        %v469 = vunpack.c.h.b16 %v401
        %v470 = vunpack.c.l.b16 %v402
        %v471 = vunpack.c.h.b16 %v402
        %v472 = vunpack.c.l.b16 %v403
        %v473 = vunpack.c.h.b16 %v403
        %v474 = vunpack.c.l.b16 %v404
        %v475 = vunpack.c.h.b16 %v404
        %v476 = vunpack.c.l.b16 %v405
        %v477 = vunpack.c.h.b16 %v405
        %v478 = vunpack.c.l.b16 %v406
        %v479 = vunpack.c.h.b16 %v406
        %v480 = vunpack.c.l.b16 %v407
        %v481 = vunpack.c.h.b16 %v407
        %v482 = vunpack.c.l.b16 %v408
        %v483 = vunpack.c.h.b16 %v408
        %v484 = vunpack.c.l.b16 %v409
        %v485 = vunpack.c.h.b16 %v409
        %v486 = vunpack.c.l.b16 %v410
        %v487 = vunpack.c.h.b16 %v410
        %v488 = vunpack.c.l.b16 %v411
        %v489 = vunpack.c.h.b16 %v411
        %v490 = vunpack.c.l.b16 %v412
        %v491 = vunpack.c.h.b16 %v412
        %v492 = vunpack.c.l.b16 %v413
        %v493 = vunpack.c.h.b16 %v413
        %v494 = vunpack.c.l.b16 %v414
        %v495 = vunpack.c.h.b16 %v414
        %v496 = vunpack.c.l.b16 %v415
        %v497 = vunpack.c.h.b16 %v415
        %v498 = vunpack.c.l.b16 %v416
        %v499 = vunpack.c.h.b16 %v416
        %v500 = vunpack.c.l.b16 %v417
        %v501 = vunpack.c.h.b16 %v417
        %v502 = vunpack.c.l.b16 %v418
        %v503 = vunpack.c.h.b16 %v418
        %v504 = vunpack.c.l.b16 %v419
        %v505 = vunpack.c.h.b16 %v419
        %v506 = vunpack.c.l.b16 %v420
        %v507 = vunpack.c.h.b16 %v420
        %v508 = vunpack.c.l.b16 %v421
        %v509 = vunpack.c.h.b16 %v421
        %v510 = vunpack.c.l.b16 %v422
        %v511 = vunpack.c.h.b16 %v422
        %v512 = vunpack.c.l.b16 %v423
        %v513 = vunpack.c.h.b16 %v423
        %v514 = vunpack.c.l.b16 %v424
        %v515 = vunpack.c.h.b16 %v424
        %v516 = vunpack.c.l.b16 %v425
        %v517 = vunpack.c.h.b16 %v425
        %v518 = vunpack.c.l.b16 %v426
        %v519 = vunpack.c.h.b16 %v426
        %v520 = vunpack.c.l.b16 %v427
        %v521 = vunpack.c.h.b16 %v427
        %v522 = vunpack.c.l.b16 %v428
        %v523 = vunpack.c.h.b16 %v428
        %v524 = vunpack.c.l.b16 %v429
        %v525 = vunpack.c.h.b16 %v429
        %v526 = vpack.c.b16 %v466, %v462
        %v527 = vpack.c.b16 %v467, %v463
        %v528 = vpack.c.b16 %v468, %v464
        %v529 = vpack.c.b16 %v469, %v465
        %v530 = vpack.c.b16 %v474, %v470
        %v531 = vpack.c.b16 %v475, %v471
        %v532 = vpack.c.b16 %v476, %v472
        %v533 = vpack.c.b16 %v477, %v473
        %v534 = vpack.c.b16 %v482, %v478
        %v535 = vpack.c.b16 %v483, %v479
        %v536 = vpack.c.b16 %v484, %v480
        %v537 = vpack.c.b16 %v485, %v481
        %v538 = vpack.c.b16 %v490, %v486
        %v539 = vpack.c.b16 %v491, %v487
        %v540 = vpack.c.b16 %v492, %v488
        %v541 = vpack.c.b16 %v493, %v489
        %v542 = vpack.c.b16 %v498, %v494
        %v543 = vpack.c.b16 %v499, %v495
        %v544 = vpack.c.b16 %v500, %v496
        %v545 = vpack.c.b16 %v501, %v497
        %v546 = vpack.c.b16 %v506, %v502
        %v547 = vpack.c.b16 %v507, %v503
        %v548 = vpack.c.b16 %v508, %v504
        %v549 = vpack.c.b16 %v509, %v505
        %v550 = vpack.c.b16 %v514, %v510
        %v551 = vpack.c.b16 %v515, %v511
        %v552 = vpack.c.b16 %v516, %v512
        %v553 = vpack.c.b16 %v517, %v513
        %v554 = vpack.c.b16 %v522, %v518
        %v555 = vpack.c.b16 %v523, %v519
        %v556 = vpack.c.b16 %v524, %v520
        %v557 = vpack.c.b16 %v525, %v521
        %590 = vmatprep.subr.bf16.mxu0 %v527
        %591 = vmatpush1.bf16.msra.mxu0 %v526
        %592 = vmatprep.subr.bf16.mxu0 %v531
        %593 = vmatpush1.bf16.msra.mxu0 %v530
        %594 = vmatprep.subr.bf16.mxu0 %v535
        %595 = vmatpush1.bf16.msra.mxu0 %v534
        %596 = vmatprep.subr.bf16.mxu0 %v539
        %597 = vmatpush1.bf16.msra.mxu0 %v538
        %598 = vmatprep.subr.bf16.mxu0 %v543
        %599 = vmatpush1.bf16.msra.mxu0 %v542
        %600 = vmatprep.subr.bf16.mxu0 %v547
        %601 = vmatpush1.bf16.msra.mxu0 %v546
        %602 = vmatprep.subr.bf16.mxu0 %v551
        %603 = vmatpush1.bf16.msra.mxu0 %v550
        %604 = vmatprep.subr.bf16.mxu0 %v555
        %605 = vmatpush1.bf16.msra.mxu0 %v554
        %606 = vmatprep.subr.bf16.mxu0 0
        %607 = vmatpush1.bf16.msra.mxu0 0
        %608 = vmatprep.subr.bf16.mxu0 0
        %609 = vmatpush1.bf16.msra.mxu0 0
        %610 = vmatprep.subr.bf16.mxu0 0
        %611 = vmatpush1.bf16.msra.mxu0 0
        %612 = vmatprep.subr.bf16.mxu0 0
        %613 = vmatpush1.bf16.msra.mxu0 0
        %614 = vmatprep.subr.bf16.mxu0 0
        %615 = vmatpush1.bf16.msra.mxu0 0
        %616 = vmatprep.subr.bf16.mxu0 0
        %617 = vmatpush1.bf16.msra.mxu0 0
        %618 = vmatprep.subr.bf16.mxu0 0
        %619 = vmatpush1.bf16.msra.mxu0 0
        %620 = vmatprep.subr.bf16.mxu0 0
        %621 = vmatpush1.bf16.msra.mxu0 0
        %622 = vmatprep.mubr.bf16.mxu0 0
        %623 = vmatmul.mubr.bf16.gmra.mrb[0].mxu0 %v390
        %v624 = vpop.f32.mrb[0].mxu0
        %v625 = vadd.f32 0.0, %v624
        %v626 = vpop.f32.mrb[0].mxu0
        %v627 = vadd.f32 0.0, %v626
        %v628 = vpop.f32.mrb[0].mxu0
        %v629 = vadd.f32 0.0, %v628
        %v630 = vpop.f32.mrb[0].mxu0
        %v631 = vadd.f32 0.0, %v630
        %632 = vmatprep.mubr.bf16.mxu0 0
        %633 = vmatmul.mubr.bf16.gmra.mrb[0].mxu0 %v391
        %v634 = vpop.f32.mrb[0].mxu0
        %v635 = vadd.f32 0.0, %v634
        %v636 = vpop.f32.mrb[0].mxu0
        %v637 = vadd.f32 0.0, %v636
        %v638 = vpop.f32.mrb[0].mxu0
        %v639 = vadd.f32 0.0, %v638
        %v640 = vpop.f32.mrb[0].mxu0
        %v641 = vadd.f32 0.0, %v640
        %642 = vmatprep.mubr.bf16.mxu0 0
        %643 = vmatmul.mubr.bf16.gmra.mrb[0].mxu0 %v392
        %v644 = vpop.f32.mrb[0].mxu0
        %v645 = vadd.f32 0.0, %v644
        %v646 = vpop.f32.mrb[0].mxu0
        %v647 = vadd.f32 0.0, %v646
        %v648 = vpop.f32.mrb[0].mxu0
        %v649 = vadd.f32 0.0, %v648
        %v650 = vpop.f32.mrb[0].mxu0
        %v651 = vadd.f32 0.0, %v650
        %652 = vmatprep.mubr.bf16.mxu0 0
        %653 = vmatmul.mubr.bf16.gmra.mrb[0].mxu0 %v393
        %v654 = vpop.f32.mrb[0].mxu0
        %v655 = vadd.f32 0.0, %v654
        %v656 = vpop.f32.mrb[0].mxu0
        %v657 = vadd.f32 0.0, %v656
        %v658 = vpop.f32.mrb[0].mxu0
        %v659 = vadd.f32 0.0, %v658
        %v660 = vpop.f32.mrb[0].mxu0
        %v661 = vadd.f32 0.0, %v660
        %662 = vmatprep.mubr.bf16.mxu0 0
        %663 = vmatmul.mubr.bf16.gmra.mrb[0].mxu0 %v394
        %v664 = vpop.f32.mrb[0].mxu0
        %v665 = vadd.f32 0.0, %v664
        %v666 = vpop.f32.mrb[0].mxu0
        %v667 = vadd.f32 0.0, %v666
        %v668 = vpop.f32.mrb[0].mxu0
        %v669 = vadd.f32 0.0, %v668
        %v670 = vpop.f32.mrb[0].mxu0
        %v671 = vadd.f32 0.0, %v670
        %672 = vmatprep.mubr.bf16.mxu0 0
        %673 = vmatmul.mubr.bf16.gmra.mrb[0].mxu0 %v395
        %v674 = vpop.f32.mrb[0].mxu0
        %v675 = vadd.f32 0.0, %v674
        %v676 = vpop.f32.mrb[0].mxu0
        %v677 = vadd.f32 0.0, %v676
        %v678 = vpop.f32.mrb[0].mxu0
        %v679 = vadd.f32 0.0, %v678
        %v680 = vpop.f32.mrb[0].mxu0
        %v681 = vadd.f32 0.0, %v680
        %682 = vmatprep.mubr.bf16.mxu0 0
        %683 = vmatmul.mubr.bf16.gmra.mrb[0].mxu0 %v396
        %v684 = vpop.f32.mrb[0].mxu0
        %v685 = vadd.f32 0.0, %v684
        %v686 = vpop.f32.mrb[0].mxu0
        %v687 = vadd.f32 0.0, %v686
        %v688 = vpop.f32.mrb[0].mxu0
        %v689 = vadd.f32 0.0, %v688
        %v690 = vpop.f32.mrb[0].mxu0
        %v691 = vadd.f32 0.0, %v690
        %692 = vmatprep.mubr.bf16.mxu0 0
        %693 = vmatmul.mubr.bf16.gmra.mrb[0].mxu0 %v397
        %v694 = vpop.f32.mrb[0].mxu0
        %v695 = vadd.f32 0.0, %v694
        %v696 = vpop.f32.mrb[0].mxu0
        %v697 = vadd.f32 0.0, %v696
        %v698 = vpop.f32.mrb[0].mxu0
        %v699 = vadd.f32 0.0, %v698
        %v700 = vpop.f32.mrb[0].mxu0
        %v701 = vadd.f32 0.0, %v700
        %702 = vdwg.mxu0
        %703 = vmatprep.subr.bf16.mxu0 %v529
        %704 = vmatpush1.bf16.msra.mxu0 %v528
        %705 = vmatprep.subr.bf16.mxu0 %v533
        %706 = vmatpush1.bf16.msra.mxu0 %v532
        %707 = vmatprep.subr.bf16.mxu0 %v537
        %708 = vmatpush1.bf16.msra.mxu0 %v536
        %709 = vmatprep.subr.bf16.mxu0 %v541
        %710 = vmatpush1.bf16.msra.mxu0 %v540
        %711 = vmatprep.subr.bf16.mxu0 %v545
        %712 = vmatpush1.bf16.msra.mxu0 %v544
        %713 = vmatprep.subr.bf16.mxu0 %v549
        %714 = vmatpush1.bf16.msra.mxu0 %v548
        %715 = vmatprep.subr.bf16.mxu0 %v553
        %716 = vmatpush1.bf16.msra.mxu0 %v552
        %717 = vmatprep.subr.bf16.mxu0 %v557
        %718 = vmatpush1.bf16.msra.mxu0 %v556
        %719 = vmatprep.subr.bf16.mxu0 0
        %720 = vmatpush1.bf16.msra.mxu0 0
        %721 = vmatprep.subr.bf16.mxu0 0
        %722 = vmatpush1.bf16.msra.mxu0 0
        %723 = vmatprep.subr.bf16.mxu0 0
        %724 = vmatpush1.bf16.msra.mxu0 0
        %725 = vmatprep.subr.bf16.mxu0 0
        %726 = vmatpush1.bf16.msra.mxu0 0
        %727 = vmatprep.subr.bf16.mxu0 0
        %728 = vmatpush1.bf16.msra.mxu0 0
        %729 = vmatprep.subr.bf16.mxu0 0
        %730 = vmatpush1.bf16.msra.mxu0 0
        %731 = vmatprep.subr.bf16.mxu0 0
        %732 = vmatpush1.bf16.msra.mxu0 0
        %733 = vmatprep.subr.bf16.mxu0 0
        %734 = vmatpush1.bf16.msra.mxu0 0
        %735 = vmatprep.mubr.bf16.mxu0 0
        %736 = vmatmul.mubr.bf16.gmra.mrb[0].mxu0 %v390
        %v737 = vpop.f32.mrb[0].mxu0
        %v738 = vadd.f32 0.0, %v737
        %v739 = vpop.f32.mrb[0].mxu0
        %v740 = vadd.f32 0.0, %v739
        %v741 = vpop.f32.mrb[0].mxu0
        %v742 = vadd.f32 0.0, %v741
        %v743 = vpop.f32.mrb[0].mxu0
        %v744 = vadd.f32 0.0, %v743
        %745 = vmatprep.mubr.bf16.mxu0 0
        %746 = vmatmul.mubr.bf16.gmra.mrb[0].mxu0 %v391
        %v747 = vpop.f32.mrb[0].mxu0
        %v748 = vadd.f32 0.0, %v747
        %v749 = vpop.f32.mrb[0].mxu0
        %v750 = vadd.f32 0.0, %v749
        %v751 = vpop.f32.mrb[0].mxu0
        %v752 = vadd.f32 0.0, %v751
        %v753 = vpop.f32.mrb[0].mxu0
        %v754 = vadd.f32 0.0, %v753
        %755 = vmatprep.mubr.bf16.mxu0 0
        %756 = vmatmul.mubr.bf16.gmra.mrb[0].mxu0 %v392
        %v757 = vpop.f32.mrb[0].mxu0
        %v758 = vadd.f32 0.0, %v757
        %v759 = vpop.f32.mrb[0].mxu0
        %v760 = vadd.f32 0.0, %v759
        %v761 = vpop.f32.mrb[0].mxu0
        %v762 = vadd.f32 0.0, %v761
        %v763 = vpop.f32.mrb[0].mxu0
        %v764 = vadd.f32 0.0, %v763
        %765 = vmatprep.mubr.bf16.mxu0 0
        %766 = vmatmul.mubr.bf16.gmra.mrb[0].mxu0 %v393
        %v767 = vpop.f32.mrb[0].mxu0
        %v768 = vadd.f32 0.0, %v767
        %v769 = vpop.f32.mrb[0].mxu0
        %v770 = vadd.f32 0.0, %v769
        %v771 = vpop.f32.mrb[0].mxu0
        %v772 = vadd.f32 0.0, %v771
        %v773 = vpop.f32.mrb[0].mxu0
        %v774 = vadd.f32 0.0, %v773
        %775 = vmatprep.mubr.bf16.mxu0 0
        %776 = vmatmul.mubr.bf16.gmra.mrb[0].mxu0 %v394
        %v777 = vpop.f32.mrb[0].mxu0
        %v778 = vadd.f32 0.0, %v777
        %v779 = vpop.f32.mrb[0].mxu0
        %v780 = vadd.f32 0.0, %v779
        %v781 = vpop.f32.mrb[0].mxu0
        %v782 = vadd.f32 0.0, %v781
        %v783 = vpop.f32.mrb[0].mxu0
        %v784 = vadd.f32 0.0, %v783
        %785 = vmatprep.mubr.bf16.mxu0 0
        %786 = vmatmul.mubr.bf16.gmra.mrb[0].mxu0 %v395
        %v787 = vpop.f32.mrb[0].mxu0
        %v788 = vadd.f32 0.0, %v787
        %v789 = vpop.f32.mrb[0].mxu0
        %v790 = vadd.f32 0.0, %v789
        %v791 = vpop.f32.mrb[0].mxu0
        %v792 = vadd.f32 0.0, %v791
        %v793 = vpop.f32.mrb[0].mxu0
        %v794 = vadd.f32 0.0, %v793
        %795 = vmatprep.mubr.bf16.mxu0 0
        %796 = vmatmul.mubr.bf16.gmra.mrb[0].mxu0 %v396
        %v797 = vpop.f32.mrb[0].mxu0
        %v798 = vadd.f32 0.0, %v797
        %v799 = vpop.f32.mrb[0].mxu0
        %v800 = vadd.f32 0.0, %v799
        %v801 = vpop.f32.mrb[0].mxu0
        %v802 = vadd.f32 0.0, %v801
        %v803 = vpop.f32.mrb[0].mxu0
        %v804 = vadd.f32 0.0, %v803
        %805 = vmatprep.mubr.bf16.mxu0 0
        %806 = vmatmul.mubr.bf16.gmra.mrb[0].mxu0 %v397
        %v807 = vpop.f32.mrb[0].mxu0
        %v808 = vadd.f32 0.0, %v807
        %v809 = vpop.f32.mrb[0].mxu0
        %v810 = vadd.f32 0.0, %v809
        %v811 = vpop.f32.mrb[0].mxu0
        %v812 = vadd.f32 0.0, %v811
        %v813 = vpop.f32.mrb[0].mxu0
        %v814 = vadd.f32 0.0, %v813
        %815 = vdwg.mxu0
        %816 = vst [vmem:[#allocation2] sm:$0xff] %v625
        %817 = vst [vmem:[#allocation2 + $0x8] sm:$0xff] %v627
        %818 = vst [vmem:[#allocation2 + $0x10] sm:$0xff] %v738
        %819 = vst [vmem:[#allocation2 + $0x18] sm:$0xff] %v740
        %820 = vst [vmem:[#allocation2 + $0x20] sm:$0xff] %v629
        %821 = vst [vmem:[#allocation2 + $0x28] sm:$0xff] %v631
        %822 = vst [vmem:[#allocation2 + $0x30] sm:$0xff] %v742
        %823 = vst [vmem:[#allocation2 + $0x38] sm:$0xff] %v744
        %824 = vst [vmem:[#allocation2 + $0x40] sm:$0xff] %v635
        %825 = vst [vmem:[#allocation2 + $0x48] sm:$0xff] %v637
        %826 = vst [vmem:[#allocation2 + $0x50] sm:$0xff] %v748
        %827 = vst [vmem:[#allocation2 + $0x58] sm:$0xff] %v750
        %828 = vst [vmem:[#allocation2 + $0x60] sm:$0xff] %v639
        %829 = vst [vmem:[#allocation2 + $0x68] sm:$0xff] %v641
        %830 = vst [vmem:[#allocation2 + $0x70] sm:$0xff] %v752
        %831 = vst [vmem:[#allocation2 + $0x78] sm:$0xff] %v754
        %832 = vst [vmem:[#allocation2 + $0x80] sm:$0xff] %v645
        %833 = vst [vmem:[#allocation2 + $0x88] sm:$0xff] %v647
        %834 = vst [vmem:[#allocation2 + $0x90] sm:$0xff] %v758
        %835 = vst [vmem:[#allocation2 + $0x98] sm:$0xff] %v760
        %836 = vst [vmem:[#allocation2 + $0xa0] sm:$0xff] %v649
        %837 = vst [vmem:[#allocation2 + $0xa8] sm:$0xff] %v651
        %838 = vst [vmem:[#allocation2 + $0xb0] sm:$0xff] %v762
        %839 = vst [vmem:[#allocation2 + $0xb8] sm:$0xff] %v764
        %840 = vst [vmem:[#allocation2 + $0xc0] sm:$0xff] %v655
        %841 = vst [vmem:[#allocation2 + $0xc8] sm:$0xff] %v657
        %842 = vst [vmem:[#allocation2 + $0xd0] sm:$0xff] %v768
        %843 = vst [vmem:[#allocation2 + $0xd8] sm:$0xff] %v770
        %844 = vst [vmem:[#allocation2 + $0xe0] sm:$0xff] %v659
        %845 = vst [vmem:[#allocation2 + $0xe8] sm:$0xff] %v661
        %846 = vst [vmem:[#allocation2 + $0xf0] sm:$0xff] %v772
        %847 = vst [vmem:[#allocation2 + $0xf8] sm:$0xff] %v774
        %848 = vst [vmem:[#allocation2 + $0x100] sm:$0xff] %v665
        %849 = vst [vmem:[#allocation2 + $0x108] sm:$0xff] %v667
        %850 = vst [vmem:[#allocation2 + $0x110] sm:$0xff] %v778
        %851 = vst [vmem:[#allocation2 + $0x118] sm:$0xff] %v780
        %852 = vst [vmem:[#allocation2 + $0x120] sm:$0xff] %v669
        %853 = vst [vmem:[#allocation2 + $0x128] sm:$0xff] %v671
        %854 = vst [vmem:[#allocation2 + $0x130] sm:$0xff] %v782
        %855 = vst [vmem:[#allocation2 + $0x138] sm:$0xff] %v784
        %856 = vst [vmem:[#allocation2 + $0x140] sm:$0xff] %v675
        %857 = vst [vmem:[#allocation2 + $0x148] sm:$0xff] %v677
        %858 = vst [vmem:[#allocation2 + $0x150] sm:$0xff] %v788
        %859 = vst [vmem:[#allocation2 + $0x158] sm:$0xff] %v790
        %860 = vst [vmem:[#allocation2 + $0x160] sm:$0xff] %v679
        %861 = vst [vmem:[#allocation2 + $0x168] sm:$0xff] %v681
        %862 = vst [vmem:[#allocation2 + $0x170] sm:$0xff] %v792
        %863 = vst [vmem:[#allocation2 + $0x178] sm:$0xff] %v794
        %864 = vst [vmem:[#allocation2 + $0x180] sm:$0xff] %v685
        %865 = vst [vmem:[#allocation2 + $0x188] sm:$0xff] %v687
        %866 = vst [vmem:[#allocation2 + $0x190] sm:$0xff] %v798
        %867 = vst [vmem:[#allocation2 + $0x198] sm:$0xff] %v800
        %868 = vst [vmem:[#allocation2 + $0x1a0] sm:$0xff] %v689
        %869 = vst [vmem:[#allocation2 + $0x1a8] sm:$0xff] %v691
        %870 = vst [vmem:[#allocation2 + $0x1b0] sm:$0xff] %v802
        %871 = vst [vmem:[#allocation2 + $0x1b8] sm:$0xff] %v804
        %872 = vst [vmem:[#allocation2 + $0x1c0] sm:$0xff] %v695
        %873 = vst [vmem:[#allocation2 + $0x1c8] sm:$0xff] %v697
        %874 = vst [vmem:[#allocation2 + $0x1d0] sm:$0xff] %v808
        %875 = vst [vmem:[#allocation2 + $0x1d8] sm:$0xff] %v810
        %876 = vst [vmem:[#allocation2 + $0x1e0] sm:$0xff] %v699
        %877 = vst [vmem:[#allocation2 + $0x1e8] sm:$0xff] %v701
        %878 = vst [vmem:[#allocation2 + $0x1f0] sm:$0xff] %v812
        %879 = vst [vmem:[#allocation2 + $0x1f8] sm:$0xff] %v814
      $region44: #{_lambda_.7} parent=39 // pred_fallthru
        _
      %v880 = vld [vmem:[%s352] sm:$0xf]
      %v881 = vld [vmem:[%s355] sm:$0x1]
      loop: start=0, step=1, limit=16
      $region45: #{_lambda_.7} parent=39 // loop_pre_header
        _
      $region46: #{_lambda_.7} parent=39 // loop_header
        %s883 = sphi 0, %s887
        %p884 = scmp.ge.s32.totalorder %s883, 16
      $region47: #{_lambda_.7} parent=39 // loop_header_branch
        %886 = sbr.rel (%p884) target = $region51
      $region48: #{_lambda_.7} parent=39 // loop_body
        %s888 = smul.u32 %s883, 8
        %s889 = sshra.s32 %s888, 3
        %s890 = sand.u32 %s888, 7
        %s891 = smul.u32 %s889, 4
        %s892 = smul.addr %s891, 8
        %s893 = scalar_lea.vmem [#allocation2], %s892
        %v894 = vld [vmem:[%s893] sm:$0xff]
        %v895 = vld [vmem:[%s893 + $0x8] sm:$0xff]
        %v896 = vld [vmem:[%s893 + $0x10] sm:$0xff]
        %v897 = vld [vmem:[%s893 + $0x18] sm:$0xff]
        %v902 = vcombine.low %v894, %v895
        %v903 = vcombine.high %v894, %v895
        %v904 = vcombine.low %v896, %v897
        %v905 = vcombine.high %v896, %v897
        %v907 = vunpack.c.l.s4 1966171168
        %v908 = vunpack.c.0.s8 %v907
        %v909 = vlaneseq
        %v910 = vshrl.u32 %v909, 7
        %v911 = vsub.s32 %v908, %v910
        %v912 = vrot.slane %v902, %v911
        %v914 = vunpack.c.l.s4 1966171168
        %v915 = vunpack.c.0.s8 %v914
        %v916 = vlaneseq
        %v917 = vshrl.u32 %v916, 7
        %v918 = vsub.s32 %v915, %v917
        %v919 = vrot.slane %v903, %v918
        %v921 = vunpack.c.l.s4 1966171168
        %v922 = vunpack.c.0.s8 %v921
        %v923 = vlaneseq
        %v924 = vshrl.u32 %v923, 7
        %v925 = vsub.s32 %v922, %v924
        %v926 = vrot.slane %v904, %v925
        %v928 = vunpack.c.l.s4 1966171168
        %v929 = vunpack.c.0.s8 %v928
        %v930 = vlaneseq
        %v931 = vshrl.u32 %v930, 7
        %v932 = vsub.s32 %v929, %v931
        %v933 = vrot.slane %v905, %v932
        %v934 = vcombine.low %v912, %v926
        %v935 = vcombine.high %v912, %v926
        %v936 = vcombine.low %v919, %v933
        %v937 = vcombine.high %v919, %v933
        %v939 = vunpack.c.l.s4 1966171168
        %v940 = vunpack.c.0.s8 %v939
        %v941 = vlaneseq
        %v942 = vshrl.u32 %v941, 7
        %v943 = vsub.s32 %v940, %v942
        %v944 = vrot.slane %v934, %v943
        %v946 = vunpack.c.l.s4 1966171168
        %v947 = vunpack.c.0.s8 %v946
        %v948 = vlaneseq
        %v949 = vshrl.u32 %v948, 7
        %v950 = vsub.s32 %v947, %v949
        %v951 = vrot.slane %v936, %v950
        %v953 = vunpack.c.l.s4 1966171168
        %v954 = vunpack.c.0.s8 %v953
        %v955 = vlaneseq
        %v956 = vshrl.u32 %v955, 7
        %v957 = vsub.s32 %v954, %v956
        %v958 = vrot.slane %v935, %v957
        %v960 = vunpack.c.l.s4 1966171168
        %v961 = vunpack.c.0.s8 %v960
        %v962 = vlaneseq
        %v963 = vshrl.u32 %v962, 7
        %v964 = vsub.s32 %v961, %v963
        %v965 = vrot.slane %v937, %v964
        %v966 = vcombine.high %v944, %v944
        %v967 = vcombine.high %v951, %v951
        %v968 = vcombine.high %v958, %v958
        %v969 = vcombine.high %v965, %v965
        %v970 = vld [vmem:[%s342] sm:$0xff]
        %v971 = vld [vmem:[%s342 + $0x8] sm:$0xff]
        %v972 = vld [vmem:[%s342 + $0x10] sm:$0xff]
        %v973 = vld [vmem:[%s342 + $0x18] sm:$0xff]
        %v974 = vlaneseq
        %v975 = vshrl.u32 %v974, 7
        %v976 = vsub.s32 0, %v975
        %v977 = vrot.slane %v944, %v976
        %v978 = vlaneseq
        %v979 = vshrl.u32 %v978, 7
        %v980 = vsub.s32 1, %v979
        %v981 = vrot.slane %v944, %v980
        %v982 = vlaneseq
        %v983 = vshrl.u32 %v982, 7
        %v984 = vsub.s32 2, %v983
        %v985 = vrot.slane %v944, %v984
        %v986 = vlaneseq
        %v987 = vshrl.u32 %v986, 7
        %v988 = vsub.s32 3, %v987
        %v989 = vrot.slane %v944, %v988
        %v990 = vlaneseq
        %v991 = vshrl.u32 %v990, 7
        %v992 = vsub.s32 0, %v991
        %v993 = vrot.slane %v958, %v992
        %v994 = vlaneseq
        %v995 = vshrl.u32 %v994, 7
        %v996 = vsub.s32 1, %v995
        %v997 = vrot.slane %v958, %v996
        %v998 = vlaneseq
        %v999 = vshrl.u32 %v998, 7
        %v1000 = vsub.s32 2, %v999
        %v1001 = vrot.slane %v958, %v1000
        %v1002 = vlaneseq
        %v1003 = vshrl.u32 %v1002, 7
        %v1004 = vsub.s32 3, %v1003
        %v1005 = vrot.slane %v958, %v1004
        %v1006 = vlaneseq
        %v1007 = vshrl.u32 %v1006, 7
        %v1008 = vsub.s32 0, %v1007
        %v1009 = vrot.slane %v966, %v1008
        %v1010 = vlaneseq
        %v1011 = vshrl.u32 %v1010, 7
        %v1012 = vsub.s32 1, %v1011
        %v1013 = vrot.slane %v966, %v1012
        %v1014 = vlaneseq
        %v1015 = vshrl.u32 %v1014, 7
        %v1016 = vsub.s32 2, %v1015
        %v1017 = vrot.slane %v966, %v1016
        %v1018 = vlaneseq
        %v1019 = vshrl.u32 %v1018, 7
        %v1020 = vsub.s32 3, %v1019
        %v1021 = vrot.slane %v966, %v1020
        %v1022 = vlaneseq
        %v1023 = vshrl.u32 %v1022, 7
        %v1024 = vsub.s32 0, %v1023
        %v1025 = vrot.slane %v968, %v1024
        %v1026 = vlaneseq
        %v1027 = vshrl.u32 %v1026, 7
        %v1028 = vsub.s32 1, %v1027
        %v1029 = vrot.slane %v968, %v1028
        %v1030 = vlaneseq
        %v1031 = vshrl.u32 %v1030, 7
        %v1032 = vsub.s32 2, %v1031
        %v1033 = vrot.slane %v968, %v1032
        %v1034 = vlaneseq
        %v1035 = vshrl.u32 %v1034, 7
        %v1036 = vsub.s32 3, %v1035
        %v1037 = vrot.slane %v968, %v1036
        %v1038 = vlaneseq
        %v1039 = vshrl.u32 %v1038, 7
        %v1040 = vsub.s32 0, %v1039
        %v1041 = vrot.slane %v951, %v1040
        %v1042 = vlaneseq
        %v1043 = vshrl.u32 %v1042, 7
        %v1044 = vsub.s32 1, %v1043
        %v1045 = vrot.slane %v951, %v1044
        %v1046 = vlaneseq
        %v1047 = vshrl.u32 %v1046, 7
        %v1048 = vsub.s32 2, %v1047
        %v1049 = vrot.slane %v951, %v1048
        %v1050 = vlaneseq
        %v1051 = vshrl.u32 %v1050, 7
        %v1052 = vsub.s32 3, %v1051
        %v1053 = vrot.slane %v951, %v1052
        %v1054 = vlaneseq
        %v1055 = vshrl.u32 %v1054, 7
        %v1056 = vsub.s32 0, %v1055
        %v1057 = vrot.slane %v965, %v1056
        %v1058 = vlaneseq
        %v1059 = vshrl.u32 %v1058, 7
        %v1060 = vsub.s32 1, %v1059
        %v1061 = vrot.slane %v965, %v1060
        %v1062 = vlaneseq
        %v1063 = vshrl.u32 %v1062, 7
        %v1064 = vsub.s32 2, %v1063
        %v1065 = vrot.slane %v965, %v1064
        %v1066 = vlaneseq
        %v1067 = vshrl.u32 %v1066, 7
        %v1068 = vsub.s32 3, %v1067
        %v1069 = vrot.slane %v965, %v1068
        %v1070 = vlaneseq
        %v1071 = vshrl.u32 %v1070, 7
        %v1072 = vsub.s32 0, %v1071
        %v1073 = vrot.slane %v967, %v1072
        %v1074 = vlaneseq
        %v1075 = vshrl.u32 %v1074, 7
        %v1076 = vsub.s32 1, %v1075
        %v1077 = vrot.slane %v967, %v1076
        %v1078 = vlaneseq
        %v1079 = vshrl.u32 %v1078, 7
        %v1080 = vsub.s32 2, %v1079
        %v1081 = vrot.slane %v967, %v1080
        %v1082 = vlaneseq
        %v1083 = vshrl.u32 %v1082, 7
        %v1084 = vsub.s32 3, %v1083
        %v1085 = vrot.slane %v967, %v1084
        %v1086 = vlaneseq
        %v1087 = vshrl.u32 %v1086, 7
        %v1088 = vsub.s32 0, %v1087
        %v1089 = vrot.slane %v969, %v1088
        %v1090 = vlaneseq
        %v1091 = vshrl.u32 %v1090, 7
        %v1092 = vsub.s32 1, %v1091
        %v1093 = vrot.slane %v969, %v1092
        %v1094 = vlaneseq
        %v1095 = vshrl.u32 %v1094, 7
        %v1096 = vsub.s32 2, %v1095
        %v1097 = vrot.slane %v969, %v1096
        %v1098 = vlaneseq
        %v1099 = vshrl.u32 %v1098, 7
        %v1100 = vsub.s32 3, %v1099
        %v1101 = vrot.slane %v969, %v1100
        %v1134 = vadd.f32 %v977, %v970
        %v1135 = vadd.f32 %v981, %v971
        %v1136 = vadd.f32 %v985, %v972
        %v1137 = vadd.f32 %v989, %v973
        %v1138 = vadd.f32 %v993, %v970
        %v1139 = vadd.f32 %v997, %v971
        %v1140 = vadd.f32 %v1001, %v972
        %v1141 = vadd.f32 %v1005, %v973
        %v1142 = vadd.f32 %v1009, %v970
        %v1143 = vadd.f32 %v1013, %v971
        %v1144 = vadd.f32 %v1017, %v972
        %v1145 = vadd.f32 %v1021, %v973
        %v1146 = vadd.f32 %v1025, %v970
        %v1147 = vadd.f32 %v1029, %v971
        %v1148 = vadd.f32 %v1033, %v972
        %v1149 = vadd.f32 %v1037, %v973
        %v1150 = vadd.f32 %v1041, %v970
        %v1151 = vadd.f32 %v1045, %v971
        %v1152 = vadd.f32 %v1049, %v972
        %v1153 = vadd.f32 %v1053, %v973
        %v1154 = vadd.f32 %v1057, %v970
        %v1155 = vadd.f32 %v1061, %v971
        %v1156 = vadd.f32 %v1065, %v972
        %v1157 = vadd.f32 %v1069, %v973
        %v1158 = vadd.f32 %v1073, %v970
        %v1159 = vadd.f32 %v1077, %v971
        %v1160 = vadd.f32 %v1081, %v972
        %v1161 = vadd.f32 %v1085, %v973
        %v1162 = vadd.f32 %v1089, %v970
        %v1163 = vadd.f32 %v1093, %v971
        %v1164 = vadd.f32 %v1097, %v972
        %v1165 = vadd.f32 %v1101, %v973
        %v1166 = vmax.f32 %v1134, 0.0
        %v1167 = vmax.f32 %v1135, 0.0
        %v1168 = vmax.f32 %v1136, 0.0
        %v1169 = vmax.f32 %v1137, 0.0
        %v1170 = vmax.f32 %v1138, 0.0
        %v1171 = vmax.f32 %v1139, 0.0
        %v1172 = vmax.f32 %v1140, 0.0
        %v1173 = vmax.f32 %v1141, 0.0
        %v1174 = vmax.f32 %v1142, 0.0
        %v1175 = vmax.f32 %v1143, 0.0
        %v1176 = vmax.f32 %v1144, 0.0
        %v1177 = vmax.f32 %v1145, 0.0
        %v1178 = vmax.f32 %v1146, 0.0
        %v1179 = vmax.f32 %v1147, 0.0
        %v1180 = vmax.f32 %v1148, 0.0
        %v1181 = vmax.f32 %v1149, 0.0
        %v1182 = vmax.f32 %v1150, 0.0
        %v1183 = vmax.f32 %v1151, 0.0
        %v1184 = vmax.f32 %v1152, 0.0
        %v1185 = vmax.f32 %v1153, 0.0
        %v1186 = vmax.f32 %v1154, 0.0
        %v1187 = vmax.f32 %v1155, 0.0
        %v1188 = vmax.f32 %v1156, 0.0
        %v1189 = vmax.f32 %v1157, 0.0
        %v1190 = vmax.f32 %v1158, 0.0
        %v1191 = vmax.f32 %v1159, 0.0
        %v1192 = vmax.f32 %v1160, 0.0
        %v1193 = vmax.f32 %v1161, 0.0
        %v1194 = vmax.f32 %v1162, 0.0
        %v1195 = vmax.f32 %v1163, 0.0
        %v1196 = vmax.f32 %v1164, 0.0
        %v1197 = vmax.f32 %v1165, 0.0
        %v1199 = vlaneseq
        %v1200 = vshrl.u32 %v1199, 7
        %v1201 = vsub.s32 0, %v1200
        %v1202 = vrot.slane %v880, %v1201
        %v1203 = vlaneseq
        %v1204 = vshrl.u32 %v1203, 7
        %v1205 = vsub.s32 1, %v1204
        %v1206 = vrot.slane %v880, %v1205
        %v1207 = vlaneseq
        %v1208 = vshrl.u32 %v1207, 7
        %v1209 = vsub.s32 2, %v1208
        %v1210 = vrot.slane %v880, %v1209
        %v1211 = vlaneseq
        %v1212 = vshrl.u32 %v1211, 7
        %v1213 = vsub.s32 3, %v1212
        %v1214 = vrot.slane %v880, %v1213
        %v1219 = vmul.f32 %v1166, %v1202
        %v1220 = vmul.f32 %v1167, %v1206
        %v1221 = vmul.f32 %v1168, %v1210
        %v1222 = vmul.f32 %v1169, %v1214
        %v1223 = vmul.f32 %v1170, %v1202
        %v1224 = vmul.f32 %v1171, %v1206
        %v1225 = vmul.f32 %v1172, %v1210
        %v1226 = vmul.f32 %v1173, %v1214
        %v1227 = vmul.f32 %v1174, %v1202
        %v1228 = vmul.f32 %v1175, %v1206
        %v1229 = vmul.f32 %v1176, %v1210
        %v1230 = vmul.f32 %v1177, %v1214
        %v1231 = vmul.f32 %v1178, %v1202
        %v1232 = vmul.f32 %v1179, %v1206
        %v1233 = vmul.f32 %v1180, %v1210
        %v1234 = vmul.f32 %v1181, %v1214
        %v1235 = vmul.f32 %v1182, %v1202
        %v1236 = vmul.f32 %v1183, %v1206
        %v1237 = vmul.f32 %v1184, %v1210
        %v1238 = vmul.f32 %v1185, %v1214
        %v1239 = vmul.f32 %v1186, %v1202
        %v1240 = vmul.f32 %v1187, %v1206
        %v1241 = vmul.f32 %v1188, %v1210
        %v1242 = vmul.f32 %v1189, %v1214
        %v1243 = vmul.f32 %v1190, %v1202
        %v1244 = vmul.f32 %v1191, %v1206
        %v1245 = vmul.f32 %v1192, %v1210
        %v1246 = vmul.f32 %v1193, %v1214
        %v1247 = vmul.f32 %v1194, %v1202
        %v1248 = vmul.f32 %v1195, %v1206
        %v1249 = vmul.f32 %v1196, %v1210
        %v1250 = vmul.f32 %v1197, %v1214
        %v1251 = vadd.f32 %v1219, %v1220
        %v1252 = vadd.f32 %v1251, %v1221
        %v1253 = vadd.f32 %v1252, %v1222
        %1254 = vadd.xlane.f32.xlu0 %v1253
        %v1255 = vpop.xlane.xlu0 %1254
        %v1256 = vadd.f32 %v1223, %v1224
        %v1257 = vadd.f32 %v1256, %v1225
        %v1258 = vadd.f32 %v1257, %v1226
        %1259 = vadd.xlane.f32.xlu0 %v1258
        %v1260 = vpop.xlane.xlu0 %1259
        %v1261 = vadd.f32 %v1227, %v1228
        %v1262 = vadd.f32 %v1261, %v1229
        %v1263 = vadd.f32 %v1262, %v1230
        %1264 = vadd.xlane.f32.xlu0 %v1263
        %v1265 = vpop.xlane.xlu0 %1264
        %v1266 = vadd.f32 %v1231, %v1232
        %v1267 = vadd.f32 %v1266, %v1233
        %v1268 = vadd.f32 %v1267, %v1234
        %1269 = vadd.xlane.f32.xlu0 %v1268
        %v1270 = vpop.xlane.xlu0 %1269
        %v1271 = vadd.f32 %v1235, %v1236
        %v1272 = vadd.f32 %v1271, %v1237
        %v1273 = vadd.f32 %v1272, %v1238
        %1274 = vadd.xlane.f32.xlu0 %v1273
        %v1275 = vpop.xlane.xlu0 %1274
        %v1276 = vadd.f32 %v1239, %v1240
        %v1277 = vadd.f32 %v1276, %v1241
        %v1278 = vadd.f32 %v1277, %v1242
        %1279 = vadd.xlane.f32.xlu0 %v1278
        %v1280 = vpop.xlane.xlu0 %1279
        %v1281 = vadd.f32 %v1243, %v1244
        %v1282 = vadd.f32 %v1281, %v1245
        %v1283 = vadd.f32 %v1282, %v1246
        %1284 = vadd.xlane.f32.xlu0 %v1283
        %v1285 = vpop.xlane.xlu0 %1284
        %v1286 = vadd.f32 %v1247, %v1248
        %v1287 = vadd.f32 %v1286, %v1249
        %v1288 = vadd.f32 %v1287, %v1250
        %1289 = vadd.xlane.f32.xlu0 %v1288
        %v1290 = vpop.xlane.xlu0 %1289
        %v1291 = vld [vmem:[%s342 + $0x20] sm:$0xff]
        %v1292 = vld [vmem:[%s342 + $0x28] sm:$0xff]
        %v1293 = vld [vmem:[%s342 + $0x30] sm:$0xff]
        %v1294 = vld [vmem:[%s342 + $0x38] sm:$0xff]
        %v1295 = vadd.f32 %v977, %v1291
        %v1296 = vadd.f32 %v981, %v1292
        %v1297 = vadd.f32 %v985, %v1293
        %v1298 = vadd.f32 %v989, %v1294
        %v1299 = vadd.f32 %v993, %v1291
        %v1300 = vadd.f32 %v997, %v1292
        %v1301 = vadd.f32 %v1001, %v1293
        %v1302 = vadd.f32 %v1005, %v1294
        %v1303 = vadd.f32 %v1009, %v1291
        %v1304 = vadd.f32 %v1013, %v1292
        %v1305 = vadd.f32 %v1017, %v1293
        %v1306 = vadd.f32 %v1021, %v1294
        %v1307 = vadd.f32 %v1025, %v1291
        %v1308 = vadd.f32 %v1029, %v1292
        %v1309 = vadd.f32 %v1033, %v1293
        %v1310 = vadd.f32 %v1037, %v1294
        %v1311 = vadd.f32 %v1041, %v1291
        %v1312 = vadd.f32 %v1045, %v1292
        %v1313 = vadd.f32 %v1049, %v1293
        %v1314 = vadd.f32 %v1053, %v1294
        %v1315 = vadd.f32 %v1057, %v1291
        %v1316 = vadd.f32 %v1061, %v1292
        %v1317 = vadd.f32 %v1065, %v1293
        %v1318 = vadd.f32 %v1069, %v1294
        %v1319 = vadd.f32 %v1073, %v1291
        %v1320 = vadd.f32 %v1077, %v1292
        %v1321 = vadd.f32 %v1081, %v1293
        %v1322 = vadd.f32 %v1085, %v1294
        %v1323 = vadd.f32 %v1089, %v1291
        %v1324 = vadd.f32 %v1093, %v1292
        %v1325 = vadd.f32 %v1097, %v1293
        %v1326 = vadd.f32 %v1101, %v1294
        %v1327 = vmax.f32 %v1295, 0.0
        %v1328 = vmax.f32 %v1296, 0.0
        %v1329 = vmax.f32 %v1297, 0.0
        %v1330 = vmax.f32 %v1298, 0.0
        %v1331 = vmax.f32 %v1299, 0.0
        %v1332 = vmax.f32 %v1300, 0.0
        %v1333 = vmax.f32 %v1301, 0.0
        %v1334 = vmax.f32 %v1302, 0.0
        %v1335 = vmax.f32 %v1303, 0.0
        %v1336 = vmax.f32 %v1304, 0.0
        %v1337 = vmax.f32 %v1305, 0.0
        %v1338 = vmax.f32 %v1306, 0.0
        %v1339 = vmax.f32 %v1307, 0.0
        %v1340 = vmax.f32 %v1308, 0.0
        %v1341 = vmax.f32 %v1309, 0.0
        %v1342 = vmax.f32 %v1310, 0.0
        %v1343 = vmax.f32 %v1311, 0.0
        %v1344 = vmax.f32 %v1312, 0.0
        %v1345 = vmax.f32 %v1313, 0.0
        %v1346 = vmax.f32 %v1314, 0.0
        %v1347 = vmax.f32 %v1315, 0.0
        %v1348 = vmax.f32 %v1316, 0.0
        %v1349 = vmax.f32 %v1317, 0.0
        %v1350 = vmax.f32 %v1318, 0.0
        %v1351 = vmax.f32 %v1319, 0.0
        %v1352 = vmax.f32 %v1320, 0.0
        %v1353 = vmax.f32 %v1321, 0.0
        %v1354 = vmax.f32 %v1322, 0.0
        %v1355 = vmax.f32 %v1323, 0.0
        %v1356 = vmax.f32 %v1324, 0.0
        %v1357 = vmax.f32 %v1325, 0.0
        %v1358 = vmax.f32 %v1326, 0.0
        %v1359 = vmul.f32 %v1327, %v1202
        %v1360 = vmul.f32 %v1328, %v1206
        %v1361 = vmul.f32 %v1329, %v1210
        %v1362 = vmul.f32 %v1330, %v1214
        %v1363 = vmul.f32 %v1331, %v1202
        %v1364 = vmul.f32 %v1332, %v1206
        %v1365 = vmul.f32 %v1333, %v1210
        %v1366 = vmul.f32 %v1334, %v1214
        %v1367 = vmul.f32 %v1335, %v1202
        %v1368 = vmul.f32 %v1336, %v1206
        %v1369 = vmul.f32 %v1337, %v1210
        %v1370 = vmul.f32 %v1338, %v1214
        %v1371 = vmul.f32 %v1339, %v1202
        %v1372 = vmul.f32 %v1340, %v1206
        %v1373 = vmul.f32 %v1341, %v1210
        %v1374 = vmul.f32 %v1342, %v1214
        %v1375 = vmul.f32 %v1343, %v1202
        %v1376 = vmul.f32 %v1344, %v1206
        %v1377 = vmul.f32 %v1345, %v1210
        %v1378 = vmul.f32 %v1346, %v1214
        %v1379 = vmul.f32 %v1347, %v1202
        %v1380 = vmul.f32 %v1348, %v1206
        %v1381 = vmul.f32 %v1349, %v1210
        %v1382 = vmul.f32 %v1350, %v1214
        %v1383 = vmul.f32 %v1351, %v1202
        %v1384 = vmul.f32 %v1352, %v1206
        %v1385 = vmul.f32 %v1353, %v1210
        %v1386 = vmul.f32 %v1354, %v1214
        %v1387 = vmul.f32 %v1355, %v1202
        %v1388 = vmul.f32 %v1356, %v1206
        %v1389 = vmul.f32 %v1357, %v1210
        %v1390 = vmul.f32 %v1358, %v1214
        %v1391 = vadd.f32 %v1359, %v1360
        %v1392 = vadd.f32 %v1391, %v1361
        %v1393 = vadd.f32 %v1392, %v1362
        %1394 = vadd.xlane.f32.xlu0 %v1393
        %v1395 = vpop.xlane.xlu0 %1394
        %v1396 = vadd.f32 %v1363, %v1364
        %v1397 = vadd.f32 %v1396, %v1365
        %v1398 = vadd.f32 %v1397, %v1366
        %1399 = vadd.xlane.f32.xlu0 %v1398
        %v1400 = vpop.xlane.xlu0 %1399
        %v1401 = vadd.f32 %v1367, %v1368
        %v1402 = vadd.f32 %v1401, %v1369
        %v1403 = vadd.f32 %v1402, %v1370
        %1404 = vadd.xlane.f32.xlu0 %v1403
        %v1405 = vpop.xlane.xlu0 %1404
        %v1406 = vadd.f32 %v1371, %v1372
        %v1407 = vadd.f32 %v1406, %v1373
        %v1408 = vadd.f32 %v1407, %v1374
        %1409 = vadd.xlane.f32.xlu0 %v1408
        %v1410 = vpop.xlane.xlu0 %1409
        %v1411 = vadd.f32 %v1375, %v1376
        %v1412 = vadd.f32 %v1411, %v1377
        %v1413 = vadd.f32 %v1412, %v1378
        %1414 = vadd.xlane.f32.xlu0 %v1413
        %v1415 = vpop.xlane.xlu0 %1414
        %v1416 = vadd.f32 %v1379, %v1380
        %v1417 = vadd.f32 %v1416, %v1381
        %v1418 = vadd.f32 %v1417, %v1382
        %1419 = vadd.xlane.f32.xlu0 %v1418
        %v1420 = vpop.xlane.xlu0 %1419
        %v1421 = vadd.f32 %v1383, %v1384
        %v1422 = vadd.f32 %v1421, %v1385
        %v1423 = vadd.f32 %v1422, %v1386
        %1424 = vadd.xlane.f32.xlu0 %v1423
        %v1425 = vpop.xlane.xlu0 %1424
        %v1426 = vadd.f32 %v1387, %v1388
        %v1427 = vadd.f32 %v1426, %v1389
        %v1428 = vadd.f32 %v1427, %v1390
        %1429 = vadd.xlane.f32.xlu0 %v1428
        %v1430 = vpop.xlane.xlu0 %1429
        %v1431 = vld [vmem:[%s342 + $0x40] sm:$0xff]
        %v1432 = vld [vmem:[%s342 + $0x48] sm:$0xff]
        %v1433 = vld [vmem:[%s342 + $0x50] sm:$0xff]
        %v1434 = vld [vmem:[%s342 + $0x58] sm:$0xff]
        %v1435 = vadd.f32 %v977, %v1431
        %v1436 = vadd.f32 %v981, %v1432
        %v1437 = vadd.f32 %v985, %v1433
        %v1438 = vadd.f32 %v989, %v1434
        %v1439 = vadd.f32 %v993, %v1431
        %v1440 = vadd.f32 %v997, %v1432
        %v1441 = vadd.f32 %v1001, %v1433
        %v1442 = vadd.f32 %v1005, %v1434
        %v1443 = vadd.f32 %v1009, %v1431
        %v1444 = vadd.f32 %v1013, %v1432
        %v1445 = vadd.f32 %v1017, %v1433
        %v1446 = vadd.f32 %v1021, %v1434
        %v1447 = vadd.f32 %v1025, %v1431
        %v1448 = vadd.f32 %v1029, %v1432
        %v1449 = vadd.f32 %v1033, %v1433
        %v1450 = vadd.f32 %v1037, %v1434
        %v1451 = vadd.f32 %v1041, %v1431
        %v1452 = vadd.f32 %v1045, %v1432
        %v1453 = vadd.f32 %v1049, %v1433
        %v1454 = vadd.f32 %v1053, %v1434
        %v1455 = vadd.f32 %v1057, %v1431
        %v1456 = vadd.f32 %v1061, %v1432
        %v1457 = vadd.f32 %v1065, %v1433
        %v1458 = vadd.f32 %v1069, %v1434
        %v1459 = vadd.f32 %v1073, %v1431
        %v1460 = vadd.f32 %v1077, %v1432
        %v1461 = vadd.f32 %v1081, %v1433
        %v1462 = vadd.f32 %v1085, %v1434
        %v1463 = vadd.f32 %v1089, %v1431
        %v1464 = vadd.f32 %v1093, %v1432
        %v1465 = vadd.f32 %v1097, %v1433
        %v1466 = vadd.f32 %v1101, %v1434
        %v1467 = vmax.f32 %v1435, 0.0
        %v1468 = vmax.f32 %v1436, 0.0
        %v1469 = vmax.f32 %v1437, 0.0
        %v1470 = vmax.f32 %v1438, 0.0
        %v1471 = vmax.f32 %v1439, 0.0
        %v1472 = vmax.f32 %v1440, 0.0
        %v1473 = vmax.f32 %v1441, 0.0
        %v1474 = vmax.f32 %v1442, 0.0
        %v1475 = vmax.f32 %v1443, 0.0
        %v1476 = vmax.f32 %v1444, 0.0
        %v1477 = vmax.f32 %v1445, 0.0
        %v1478 = vmax.f32 %v1446, 0.0
        %v1479 = vmax.f32 %v1447, 0.0
        %v1480 = vmax.f32 %v1448, 0.0
        %v1481 = vmax.f32 %v1449, 0.0
        %v1482 = vmax.f32 %v1450, 0.0
        %v1483 = vmax.f32 %v1451, 0.0
        %v1484 = vmax.f32 %v1452, 0.0
        %v1485 = vmax.f32 %v1453, 0.0
        %v1486 = vmax.f32 %v1454, 0.0
        %v1487 = vmax.f32 %v1455, 0.0
        %v1488 = vmax.f32 %v1456, 0.0
        %v1489 = vmax.f32 %v1457, 0.0
        %v1490 = vmax.f32 %v1458, 0.0
        %v1491 = vmax.f32 %v1459, 0.0
        %v1492 = vmax.f32 %v1460, 0.0
        %v1493 = vmax.f32 %v1461, 0.0
        %v1494 = vmax.f32 %v1462, 0.0
        %v1495 = vmax.f32 %v1463, 0.0
        %v1496 = vmax.f32 %v1464, 0.0
        %v1497 = vmax.f32 %v1465, 0.0
        %v1498 = vmax.f32 %v1466, 0.0
        %v1499 = vmul.f32 %v1467, %v1202
        %v1500 = vmul.f32 %v1468, %v1206
        %v1501 = vmul.f32 %v1469, %v1210
        %v1502 = vmul.f32 %v1470, %v1214
        %v1503 = vmul.f32 %v1471, %v1202
        %v1504 = vmul.f32 %v1472, %v1206
        %v1505 = vmul.f32 %v1473, %v1210
        %v1506 = vmul.f32 %v1474, %v1214
        %v1507 = vmul.f32 %v1475, %v1202
        %v1508 = vmul.f32 %v1476, %v1206
        %v1509 = vmul.f32 %v1477, %v1210
        %v1510 = vmul.f32 %v1478, %v1214
        %v1511 = vmul.f32 %v1479, %v1202
        %v1512 = vmul.f32 %v1480, %v1206
        %v1513 = vmul.f32 %v1481, %v1210
        %v1514 = vmul.f32 %v1482, %v1214
        %v1515 = vmul.f32 %v1483, %v1202
        %v1516 = vmul.f32 %v1484, %v1206
        %v1517 = vmul.f32 %v1485, %v1210
        %v1518 = vmul.f32 %v1486, %v1214
        %v1519 = vmul.f32 %v1487, %v1202
        %v1520 = vmul.f32 %v1488, %v1206
        %v1521 = vmul.f32 %v1489, %v1210
        %v1522 = vmul.f32 %v1490, %v1214
        %v1523 = vmul.f32 %v1491, %v1202
        %v1524 = vmul.f32 %v1492, %v1206
        %v1525 = vmul.f32 %v1493, %v1210
        %v1526 = vmul.f32 %v1494, %v1214
        %v1527 = vmul.f32 %v1495, %v1202
        %v1528 = vmul.f32 %v1496, %v1206
        %v1529 = vmul.f32 %v1497, %v1210
        %v1530 = vmul.f32 %v1498, %v1214
        %v1531 = vadd.f32 %v1499, %v1500
        %v1532 = vadd.f32 %v1531, %v1501
        %v1533 = vadd.f32 %v1532, %v1502
        %1534 = vadd.xlane.f32.xlu0 %v1533
        %v1535 = vpop.xlane.xlu0 %1534
        %v1536 = vadd.f32 %v1503, %v1504
        %v1537 = vadd.f32 %v1536, %v1505
        %v1538 = vadd.f32 %v1537, %v1506
        %1539 = vadd.xlane.f32.xlu0 %v1538
        %v1540 = vpop.xlane.xlu0 %1539
        %v1541 = vadd.f32 %v1507, %v1508
        %v1542 = vadd.f32 %v1541, %v1509
        %v1543 = vadd.f32 %v1542, %v1510
        %1544 = vadd.xlane.f32.xlu0 %v1543
        %v1545 = vpop.xlane.xlu0 %1544
        %v1546 = vadd.f32 %v1511, %v1512
        %v1547 = vadd.f32 %v1546, %v1513
        %v1548 = vadd.f32 %v1547, %v1514
        %1549 = vadd.xlane.f32.xlu0 %v1548
        %v1550 = vpop.xlane.xlu0 %1549
        %v1551 = vadd.f32 %v1515, %v1516
        %v1552 = vadd.f32 %v1551, %v1517
        %v1553 = vadd.f32 %v1552, %v1518
        %1554 = vadd.xlane.f32.xlu0 %v1553
        %v1555 = vpop.xlane.xlu0 %1554
        %v1556 = vadd.f32 %v1519, %v1520
        %v1557 = vadd.f32 %v1556, %v1521
        %v1558 = vadd.f32 %v1557, %v1522
        %1559 = vadd.xlane.f32.xlu0 %v1558
        %v1560 = vpop.xlane.xlu0 %1559
        %v1561 = vadd.f32 %v1523, %v1524
        %v1562 = vadd.f32 %v1561, %v1525
        %v1563 = vadd.f32 %v1562, %v1526
        %1564 = vadd.xlane.f32.xlu0 %v1563
        %v1565 = vpop.xlane.xlu0 %1564
        %v1566 = vadd.f32 %v1527, %v1528
        %v1567 = vadd.f32 %v1566, %v1529
        %v1568 = vadd.f32 %v1567, %v1530
        %1569 = vadd.xlane.f32.xlu0 %v1568
        %v1570 = vpop.xlane.xlu0 %1569
        %v1571 = vld [vmem:[%s342 + $0x60] sm:$0xff]
        %v1572 = vld [vmem:[%s342 + $0x68] sm:$0xff]
        %v1573 = vld [vmem:[%s342 + $0x70] sm:$0xff]
        %v1574 = vld [vmem:[%s342 + $0x78] sm:$0xff]
        %v1575 = vadd.f32 %v977, %v1571
        %v1576 = vadd.f32 %v981, %v1572
        %v1577 = vadd.f32 %v985, %v1573
        %v1578 = vadd.f32 %v989, %v1574
        %v1579 = vadd.f32 %v993, %v1571
        %v1580 = vadd.f32 %v997, %v1572
        %v1581 = vadd.f32 %v1001, %v1573
        %v1582 = vadd.f32 %v1005, %v1574
        %v1583 = vadd.f32 %v1009, %v1571
        %v1584 = vadd.f32 %v1013, %v1572
        %v1585 = vadd.f32 %v1017, %v1573
        %v1586 = vadd.f32 %v1021, %v1574
        %v1587 = vadd.f32 %v1025, %v1571
        %v1588 = vadd.f32 %v1029, %v1572
        %v1589 = vadd.f32 %v1033, %v1573
        %v1590 = vadd.f32 %v1037, %v1574
        %v1591 = vadd.f32 %v1041, %v1571
        %v1592 = vadd.f32 %v1045, %v1572
        %v1593 = vadd.f32 %v1049, %v1573
        %v1594 = vadd.f32 %v1053, %v1574
        %v1595 = vadd.f32 %v1057, %v1571
        %v1596 = vadd.f32 %v1061, %v1572
        %v1597 = vadd.f32 %v1065, %v1573
        %v1598 = vadd.f32 %v1069, %v1574
        %v1599 = vadd.f32 %v1073, %v1571
        %v1600 = vadd.f32 %v1077, %v1572
        %v1601 = vadd.f32 %v1081, %v1573
        %v1602 = vadd.f32 %v1085, %v1574
        %v1603 = vadd.f32 %v1089, %v1571
        %v1604 = vadd.f32 %v1093, %v1572
        %v1605 = vadd.f32 %v1097, %v1573
        %v1606 = vadd.f32 %v1101, %v1574
        %v1607 = vmax.f32 %v1575, 0.0
        %v1608 = vmax.f32 %v1576, 0.0
        %v1609 = vmax.f32 %v1577, 0.0
        %v1610 = vmax.f32 %v1578, 0.0
        %v1611 = vmax.f32 %v1579, 0.0
        %v1612 = vmax.f32 %v1580, 0.0
        %v1613 = vmax.f32 %v1581, 0.0
        %v1614 = vmax.f32 %v1582, 0.0
        %v1615 = vmax.f32 %v1583, 0.0
        %v1616 = vmax.f32 %v1584, 0.0
        %v1617 = vmax.f32 %v1585, 0.0
        %v1618 = vmax.f32 %v1586, 0.0
        %v1619 = vmax.f32 %v1587, 0.0
        %v1620 = vmax.f32 %v1588, 0.0
        %v1621 = vmax.f32 %v1589, 0.0
        %v1622 = vmax.f32 %v1590, 0.0
        %v1623 = vmax.f32 %v1591, 0.0
        %v1624 = vmax.f32 %v1592, 0.0
        %v1625 = vmax.f32 %v1593, 0.0
        %v1626 = vmax.f32 %v1594, 0.0
        %v1627 = vmax.f32 %v1595, 0.0
        %v1628 = vmax.f32 %v1596, 0.0
        %v1629 = vmax.f32 %v1597, 0.0
        %v1630 = vmax.f32 %v1598, 0.0
        %v1631 = vmax.f32 %v1599, 0.0
        %v1632 = vmax.f32 %v1600, 0.0
        %v1633 = vmax.f32 %v1601, 0.0
        %v1634 = vmax.f32 %v1602, 0.0
        %v1635 = vmax.f32 %v1603, 0.0
        %v1636 = vmax.f32 %v1604, 0.0
        %v1637 = vmax.f32 %v1605, 0.0
        %v1638 = vmax.f32 %v1606, 0.0
        %v1639 = vmul.f32 %v1607, %v1202
        %v1640 = vmul.f32 %v1608, %v1206
        %v1641 = vmul.f32 %v1609, %v1210
        %v1642 = vmul.f32 %v1610, %v1214
        %v1643 = vmul.f32 %v1611, %v1202
        %v1644 = vmul.f32 %v1612, %v1206
        %v1645 = vmul.f32 %v1613, %v1210
        %v1646 = vmul.f32 %v1614, %v1214
        %v1647 = vmul.f32 %v1615, %v1202
        %v1648 = vmul.f32 %v1616, %v1206
        %v1649 = vmul.f32 %v1617, %v1210
        %v1650 = vmul.f32 %v1618, %v1214
        %v1651 = vmul.f32 %v1619, %v1202
        %v1652 = vmul.f32 %v1620, %v1206
        %v1653 = vmul.f32 %v1621, %v1210
        %v1654 = vmul.f32 %v1622, %v1214
        %v1655 = vmul.f32 %v1623, %v1202
        %v1656 = vmul.f32 %v1624, %v1206
        %v1657 = vmul.f32 %v1625, %v1210
        %v1658 = vmul.f32 %v1626, %v1214
        %v1659 = vmul.f32 %v1627, %v1202
        %v1660 = vmul.f32 %v1628, %v1206
        %v1661 = vmul.f32 %v1629, %v1210
        %v1662 = vmul.f32 %v1630, %v1214
        %v1663 = vmul.f32 %v1631, %v1202
        %v1664 = vmul.f32 %v1632, %v1206
        %v1665 = vmul.f32 %v1633, %v1210
        %v1666 = vmul.f32 %v1634, %v1214
        %v1667 = vmul.f32 %v1635, %v1202
        %v1668 = vmul.f32 %v1636, %v1206
        %v1669 = vmul.f32 %v1637, %v1210
        %v1670 = vmul.f32 %v1638, %v1214
        %v1671 = vadd.f32 %v1639, %v1640
        %v1672 = vadd.f32 %v1671, %v1641
        %v1673 = vadd.f32 %v1672, %v1642
        %1674 = vadd.xlane.f32.xlu0 %v1673
        %v1675 = vpop.xlane.xlu0 %1674
        %v1676 = vadd.f32 %v1643, %v1644
        %v1677 = vadd.f32 %v1676, %v1645
        %v1678 = vadd.f32 %v1677, %v1646
        %1679 = vadd.xlane.f32.xlu0 %v1678
        %v1680 = vpop.xlane.xlu0 %1679
        %v1681 = vadd.f32 %v1647, %v1648
        %v1682 = vadd.f32 %v1681, %v1649
        %v1683 = vadd.f32 %v1682, %v1650
        %1684 = vadd.xlane.f32.xlu0 %v1683
        %v1685 = vpop.xlane.xlu0 %1684
        %v1686 = vadd.f32 %v1651, %v1652
        %v1687 = vadd.f32 %v1686, %v1653
        %v1688 = vadd.f32 %v1687, %v1654
        %1689 = vadd.xlane.f32.xlu0 %v1688
        %v1690 = vpop.xlane.xlu0 %1689
        %v1691 = vadd.f32 %v1655, %v1656
        %v1692 = vadd.f32 %v1691, %v1657
        %v1693 = vadd.f32 %v1692, %v1658
        %1694 = vadd.xlane.f32.xlu0 %v1693
        %v1695 = vpop.xlane.xlu0 %1694
        %v1696 = vadd.f32 %v1659, %v1660
        %v1697 = vadd.f32 %v1696, %v1661
        %v1698 = vadd.f32 %v1697, %v1662
        %1699 = vadd.xlane.f32.xlu0 %v1698
        %v1700 = vpop.xlane.xlu0 %1699
        %v1701 = vadd.f32 %v1663, %v1664
        %v1702 = vadd.f32 %v1701, %v1665
        %v1703 = vadd.f32 %v1702, %v1666
        %1704 = vadd.xlane.f32.xlu0 %v1703
        %v1705 = vpop.xlane.xlu0 %1704
        %v1706 = vadd.f32 %v1667, %v1668
        %v1707 = vadd.f32 %v1706, %v1669
        %v1708 = vadd.f32 %v1707, %v1670
        %1709 = vadd.xlane.f32.xlu0 %v1708
        %v1710 = vpop.xlane.xlu0 %1709
        %v1711 = vld [vmem:[%s342 + $0x80] sm:$0xff]
        %v1712 = vld [vmem:[%s342 + $0x88] sm:$0xff]
        %v1713 = vld [vmem:[%s342 + $0x90] sm:$0xff]
        %v1714 = vld [vmem:[%s342 + $0x98] sm:$0xff]
        %v1715 = vadd.f32 %v977, %v1711
        %v1716 = vadd.f32 %v981, %v1712
        %v1717 = vadd.f32 %v985, %v1713
        %v1718 = vadd.f32 %v989, %v1714
        %v1719 = vadd.f32 %v993, %v1711
        %v1720 = vadd.f32 %v997, %v1712
        %v1721 = vadd.f32 %v1001, %v1713
        %v1722 = vadd.f32 %v1005, %v1714
        %v1723 = vadd.f32 %v1009, %v1711
        %v1724 = vadd.f32 %v1013, %v1712
        %v1725 = vadd.f32 %v1017, %v1713
        %v1726 = vadd.f32 %v1021, %v1714
        %v1727 = vadd.f32 %v1025, %v1711
        %v1728 = vadd.f32 %v1029, %v1712
        %v1729 = vadd.f32 %v1033, %v1713
        %v1730 = vadd.f32 %v1037, %v1714
        %v1731 = vadd.f32 %v1041, %v1711
        %v1732 = vadd.f32 %v1045, %v1712
        %v1733 = vadd.f32 %v1049, %v1713
        %v1734 = vadd.f32 %v1053, %v1714
        %v1735 = vadd.f32 %v1057, %v1711
        %v1736 = vadd.f32 %v1061, %v1712
        %v1737 = vadd.f32 %v1065, %v1713
        %v1738 = vadd.f32 %v1069, %v1714
        %v1739 = vadd.f32 %v1073, %v1711
        %v1740 = vadd.f32 %v1077, %v1712
        %v1741 = vadd.f32 %v1081, %v1713
        %v1742 = vadd.f32 %v1085, %v1714
        %v1743 = vadd.f32 %v1089, %v1711
        %v1744 = vadd.f32 %v1093, %v1712
        %v1745 = vadd.f32 %v1097, %v1713
        %v1746 = vadd.f32 %v1101, %v1714
        %v1747 = vmax.f32 %v1715, 0.0
        %v1748 = vmax.f32 %v1716, 0.0
        %v1749 = vmax.f32 %v1717, 0.0
        %v1750 = vmax.f32 %v1718, 0.0
        %v1751 = vmax.f32 %v1719, 0.0
        %v1752 = vmax.f32 %v1720, 0.0
        %v1753 = vmax.f32 %v1721, 0.0
        %v1754 = vmax.f32 %v1722, 0.0
        %v1755 = vmax.f32 %v1723, 0.0
        %v1756 = vmax.f32 %v1724, 0.0
        %v1757 = vmax.f32 %v1725, 0.0
        %v1758 = vmax.f32 %v1726, 0.0
        %v1759 = vmax.f32 %v1727, 0.0
        %v1760 = vmax.f32 %v1728, 0.0
        %v1761 = vmax.f32 %v1729, 0.0
        %v1762 = vmax.f32 %v1730, 0.0
        %v1763 = vmax.f32 %v1731, 0.0
        %v1764 = vmax.f32 %v1732, 0.0
        %v1765 = vmax.f32 %v1733, 0.0
        %v1766 = vmax.f32 %v1734, 0.0
        %v1767 = vmax.f32 %v1735, 0.0
        %v1768 = vmax.f32 %v1736, 0.0
        %v1769 = vmax.f32 %v1737, 0.0
        %v1770 = vmax.f32 %v1738, 0.0
        %v1771 = vmax.f32 %v1739, 0.0
        %v1772 = vmax.f32 %v1740, 0.0
        %v1773 = vmax.f32 %v1741, 0.0
        %v1774 = vmax.f32 %v1742, 0.0
        %v1775 = vmax.f32 %v1743, 0.0
        %v1776 = vmax.f32 %v1744, 0.0
        %v1777 = vmax.f32 %v1745, 0.0
        %v1778 = vmax.f32 %v1746, 0.0
        %v1779 = vmul.f32 %v1747, %v1202
        %v1780 = vmul.f32 %v1748, %v1206
        %v1781 = vmul.f32 %v1749, %v1210
        %v1782 = vmul.f32 %v1750, %v1214
        %v1783 = vmul.f32 %v1751, %v1202
        %v1784 = vmul.f32 %v1752, %v1206
        %v1785 = vmul.f32 %v1753, %v1210
        %v1786 = vmul.f32 %v1754, %v1214
        %v1787 = vmul.f32 %v1755, %v1202
        %v1788 = vmul.f32 %v1756, %v1206
        %v1789 = vmul.f32 %v1757, %v1210
        %v1790 = vmul.f32 %v1758, %v1214
        %v1791 = vmul.f32 %v1759, %v1202
        %v1792 = vmul.f32 %v1760, %v1206
        %v1793 = vmul.f32 %v1761, %v1210
        %v1794 = vmul.f32 %v1762, %v1214
        %v1795 = vmul.f32 %v1763, %v1202
        %v1796 = vmul.f32 %v1764, %v1206
        %v1797 = vmul.f32 %v1765, %v1210
        %v1798 = vmul.f32 %v1766, %v1214
        %v1799 = vmul.f32 %v1767, %v1202
        %v1800 = vmul.f32 %v1768, %v1206
        %v1801 = vmul.f32 %v1769, %v1210
        %v1802 = vmul.f32 %v1770, %v1214
        %v1803 = vmul.f32 %v1771, %v1202
        %v1804 = vmul.f32 %v1772, %v1206
        %v1805 = vmul.f32 %v1773, %v1210
        %v1806 = vmul.f32 %v1774, %v1214
        %v1807 = vmul.f32 %v1775, %v1202
        %v1808 = vmul.f32 %v1776, %v1206
        %v1809 = vmul.f32 %v1777, %v1210
        %v1810 = vmul.f32 %v1778, %v1214
        %v1811 = vadd.f32 %v1779, %v1780
        %v1812 = vadd.f32 %v1811, %v1781
        %v1813 = vadd.f32 %v1812, %v1782
        %1814 = vadd.xlane.f32.xlu0 %v1813
        %v1815 = vpop.xlane.xlu0 %1814
        %v1816 = vadd.f32 %v1783, %v1784
        %v1817 = vadd.f32 %v1816, %v1785
        %v1818 = vadd.f32 %v1817, %v1786
        %1819 = vadd.xlane.f32.xlu0 %v1818
        %v1820 = vpop.xlane.xlu0 %1819
        %v1821 = vadd.f32 %v1787, %v1788
        %v1822 = vadd.f32 %v1821, %v1789
        %v1823 = vadd.f32 %v1822, %v1790
        %1824 = vadd.xlane.f32.xlu0 %v1823
        %v1825 = vpop.xlane.xlu0 %1824
        %v1826 = vadd.f32 %v1791, %v1792
        %v1827 = vadd.f32 %v1826, %v1793
        %v1828 = vadd.f32 %v1827, %v1794
        %1829 = vadd.xlane.f32.xlu0 %v1828
        %v1830 = vpop.xlane.xlu0 %1829
        %v1831 = vadd.f32 %v1795, %v1796
        %v1832 = vadd.f32 %v1831, %v1797
        %v1833 = vadd.f32 %v1832, %v1798
        %1834 = vadd.xlane.f32.xlu0 %v1833
        %v1835 = vpop.xlane.xlu0 %1834
        %v1836 = vadd.f32 %v1799, %v1800
        %v1837 = vadd.f32 %v1836, %v1801
        %v1838 = vadd.f32 %v1837, %v1802
        %1839 = vadd.xlane.f32.xlu0 %v1838
        %v1840 = vpop.xlane.xlu0 %1839
        %v1841 = vadd.f32 %v1803, %v1804
        %v1842 = vadd.f32 %v1841, %v1805
        %v1843 = vadd.f32 %v1842, %v1806
        %1844 = vadd.xlane.f32.xlu0 %v1843
        %v1845 = vpop.xlane.xlu0 %1844
        %v1846 = vadd.f32 %v1807, %v1808
        %v1847 = vadd.f32 %v1846, %v1809
        %v1848 = vadd.f32 %v1847, %v1810
        %1849 = vadd.xlane.f32.xlu0 %v1848
        %v1850 = vpop.xlane.xlu0 %1849
        %v1851 = vld [vmem:[%s342 + $0xa0] sm:$0xff]
        %v1852 = vld [vmem:[%s342 + $0xa8] sm:$0xff]
        %v1853 = vld [vmem:[%s342 + $0xb0] sm:$0xff]
        %v1854 = vld [vmem:[%s342 + $0xb8] sm:$0xff]
        %v1855 = vadd.f32 %v977, %v1851
        %v1856 = vadd.f32 %v981, %v1852
        %v1857 = vadd.f32 %v985, %v1853
        %v1858 = vadd.f32 %v989, %v1854
        %v1859 = vadd.f32 %v993, %v1851
        %v1860 = vadd.f32 %v997, %v1852
        %v1861 = vadd.f32 %v1001, %v1853
        %v1862 = vadd.f32 %v1005, %v1854
        %v1863 = vadd.f32 %v1009, %v1851
        %v1864 = vadd.f32 %v1013, %v1852
        %v1865 = vadd.f32 %v1017, %v1853
        %v1866 = vadd.f32 %v1021, %v1854
        %v1867 = vadd.f32 %v1025, %v1851
        %v1868 = vadd.f32 %v1029, %v1852
        %v1869 = vadd.f32 %v1033, %v1853
        %v1870 = vadd.f32 %v1037, %v1854
        %v1871 = vadd.f32 %v1041, %v1851
        %v1872 = vadd.f32 %v1045, %v1852
        %v1873 = vadd.f32 %v1049, %v1853
        %v1874 = vadd.f32 %v1053, %v1854
        %v1875 = vadd.f32 %v1057, %v1851
        %v1876 = vadd.f32 %v1061, %v1852
        %v1877 = vadd.f32 %v1065, %v1853
        %v1878 = vadd.f32 %v1069, %v1854
        %v1879 = vadd.f32 %v1073, %v1851
        %v1880 = vadd.f32 %v1077, %v1852
        %v1881 = vadd.f32 %v1081, %v1853
        %v1882 = vadd.f32 %v1085, %v1854
        %v1883 = vadd.f32 %v1089, %v1851
        %v1884 = vadd.f32 %v1093, %v1852
        %v1885 = vadd.f32 %v1097, %v1853
        %v1886 = vadd.f32 %v1101, %v1854
        %v1887 = vmax.f32 %v1855, 0.0
        %v1888 = vmax.f32 %v1856, 0.0
        %v1889 = vmax.f32 %v1857, 0.0
        %v1890 = vmax.f32 %v1858, 0.0
        %v1891 = vmax.f32 %v1859, 0.0
        %v1892 = vmax.f32 %v1860, 0.0
        %v1893 = vmax.f32 %v1861, 0.0
        %v1894 = vmax.f32 %v1862, 0.0
        %v1895 = vmax.f32 %v1863, 0.0
        %v1896 = vmax.f32 %v1864, 0.0
        %v1897 = vmax.f32 %v1865, 0.0
        %v1898 = vmax.f32 %v1866, 0.0
        %v1899 = vmax.f32 %v1867, 0.0
        %v1900 = vmax.f32 %v1868, 0.0
        %v1901 = vmax.f32 %v1869, 0.0
        %v1902 = vmax.f32 %v1870, 0.0
        %v1903 = vmax.f32 %v1871, 0.0
        %v1904 = vmax.f32 %v1872, 0.0
        %v1905 = vmax.f32 %v1873, 0.0
        %v1906 = vmax.f32 %v1874, 0.0
        %v1907 = vmax.f32 %v1875, 0.0
        %v1908 = vmax.f32 %v1876, 0.0
        %v1909 = vmax.f32 %v1877, 0.0
        %v1910 = vmax.f32 %v1878, 0.0
        %v1911 = vmax.f32 %v1879, 0.0
        %v1912 = vmax.f32 %v1880, 0.0
        %v1913 = vmax.f32 %v1881, 0.0
        %v1914 = vmax.f32 %v1882, 0.0
        %v1915 = vmax.f32 %v1883, 0.0
        %v1916 = vmax.f32 %v1884, 0.0
        %v1917 = vmax.f32 %v1885, 0.0
        %v1918 = vmax.f32 %v1886, 0.0
        %v1919 = vmul.f32 %v1887, %v1202
        %v1920 = vmul.f32 %v1888, %v1206
        %v1921 = vmul.f32 %v1889, %v1210
        %v1922 = vmul.f32 %v1890, %v1214
        %v1923 = vmul.f32 %v1891, %v1202
        %v1924 = vmul.f32 %v1892, %v1206
        %v1925 = vmul.f32 %v1893, %v1210
        %v1926 = vmul.f32 %v1894, %v1214
        %v1927 = vmul.f32 %v1895, %v1202
        %v1928 = vmul.f32 %v1896, %v1206
        %v1929 = vmul.f32 %v1897, %v1210
        %v1930 = vmul.f32 %v1898, %v1214
        %v1931 = vmul.f32 %v1899, %v1202
        %v1932 = vmul.f32 %v1900, %v1206
        %v1933 = vmul.f32 %v1901, %v1210
        %v1934 = vmul.f32 %v1902, %v1214
        %v1935 = vmul.f32 %v1903, %v1202
        %v1936 = vmul.f32 %v1904, %v1206
        %v1937 = vmul.f32 %v1905, %v1210
        %v1938 = vmul.f32 %v1906, %v1214
        %v1939 = vmul.f32 %v1907, %v1202
        %v1940 = vmul.f32 %v1908, %v1206
        %v1941 = vmul.f32 %v1909, %v1210
        %v1942 = vmul.f32 %v1910, %v1214
        %v1943 = vmul.f32 %v1911, %v1202
        %v1944 = vmul.f32 %v1912, %v1206
        %v1945 = vmul.f32 %v1913, %v1210
        %v1946 = vmul.f32 %v1914, %v1214
        %v1947 = vmul.f32 %v1915, %v1202
        %v1948 = vmul.f32 %v1916, %v1206
        %v1949 = vmul.f32 %v1917, %v1210
        %v1950 = vmul.f32 %v1918, %v1214
        %v1951 = vadd.f32 %v1919, %v1920
        %v1952 = vadd.f32 %v1951, %v1921
        %v1953 = vadd.f32 %v1952, %v1922
        %1954 = vadd.xlane.f32.xlu0 %v1953
        %v1955 = vpop.xlane.xlu0 %1954
        %v1956 = vadd.f32 %v1923, %v1924
        %v1957 = vadd.f32 %v1956, %v1925
        %v1958 = vadd.f32 %v1957, %v1926
        %1959 = vadd.xlane.f32.xlu0 %v1958
        %v1960 = vpop.xlane.xlu0 %1959
        %v1961 = vadd.f32 %v1927, %v1928
        %v1962 = vadd.f32 %v1961, %v1929
        %v1963 = vadd.f32 %v1962, %v1930
        %1964 = vadd.xlane.f32.xlu0 %v1963
        %v1965 = vpop.xlane.xlu0 %1964
        %v1966 = vadd.f32 %v1931, %v1932
        %v1967 = vadd.f32 %v1966, %v1933
        %v1968 = vadd.f32 %v1967, %v1934
        %1969 = vadd.xlane.f32.xlu0 %v1968
        %v1970 = vpop.xlane.xlu0 %1969
        %v1971 = vadd.f32 %v1935, %v1936
        %v1972 = vadd.f32 %v1971, %v1937
        %v1973 = vadd.f32 %v1972, %v1938
        %1974 = vadd.xlane.f32.xlu0 %v1973
        %v1975 = vpop.xlane.xlu0 %1974
        %v1976 = vadd.f32 %v1939, %v1940
        %v1977 = vadd.f32 %v1976, %v1941
        %v1978 = vadd.f32 %v1977, %v1942
        %1979 = vadd.xlane.f32.xlu0 %v1978
        %v1980 = vpop.xlane.xlu0 %1979
        %v1981 = vadd.f32 %v1943, %v1944
        %v1982 = vadd.f32 %v1981, %v1945
        %v1983 = vadd.f32 %v1982, %v1946
        %1984 = vadd.xlane.f32.xlu0 %v1983
        %v1985 = vpop.xlane.xlu0 %1984
        %v1986 = vadd.f32 %v1947, %v1948
        %v1987 = vadd.f32 %v1986, %v1949
        %v1988 = vadd.f32 %v1987, %v1950
        %1989 = vadd.xlane.f32.xlu0 %v1988
        %v1990 = vpop.xlane.xlu0 %1989
        %v1991 = vld [vmem:[%s342 + $0xc0] sm:$0xff]
        %v1992 = vld [vmem:[%s342 + $0xc8] sm:$0xff]
        %v1993 = vld [vmem:[%s342 + $0xd0] sm:$0xff]
        %v1994 = vld [vmem:[%s342 + $0xd8] sm:$0xff]
        %v1995 = vadd.f32 %v977, %v1991
        %v1996 = vadd.f32 %v981, %v1992
        %v1997 = vadd.f32 %v985, %v1993
        %v1998 = vadd.f32 %v989, %v1994
        %v1999 = vadd.f32 %v993, %v1991
        %v2000 = vadd.f32 %v997, %v1992
        %v2001 = vadd.f32 %v1001, %v1993
        %v2002 = vadd.f32 %v1005, %v1994
        %v2003 = vadd.f32 %v1009, %v1991
        %v2004 = vadd.f32 %v1013, %v1992
        %v2005 = vadd.f32 %v1017, %v1993
        %v2006 = vadd.f32 %v1021, %v1994
        %v2007 = vadd.f32 %v1025, %v1991
        %v2008 = vadd.f32 %v1029, %v1992
        %v2009 = vadd.f32 %v1033, %v1993
        %v2010 = vadd.f32 %v1037, %v1994
        %v2011 = vadd.f32 %v1041, %v1991
        %v2012 = vadd.f32 %v1045, %v1992
        %v2013 = vadd.f32 %v1049, %v1993
        %v2014 = vadd.f32 %v1053, %v1994
        %v2015 = vadd.f32 %v1057, %v1991
        %v2016 = vadd.f32 %v1061, %v1992
        %v2017 = vadd.f32 %v1065, %v1993
        %v2018 = vadd.f32 %v1069, %v1994
        %v2019 = vadd.f32 %v1073, %v1991
        %v2020 = vadd.f32 %v1077, %v1992
        %v2021 = vadd.f32 %v1081, %v1993
        %v2022 = vadd.f32 %v1085, %v1994
        %v2023 = vadd.f32 %v1089, %v1991
        %v2024 = vadd.f32 %v1093, %v1992
        %v2025 = vadd.f32 %v1097, %v1993
        %v2026 = vadd.f32 %v1101, %v1994
        %v2027 = vmax.f32 %v1995, 0.0
        %v2028 = vmax.f32 %v1996, 0.0
        %v2029 = vmax.f32 %v1997, 0.0
        %v2030 = vmax.f32 %v1998, 0.0
        %v2031 = vmax.f32 %v1999, 0.0
        %v2032 = vmax.f32 %v2000, 0.0
        %v2033 = vmax.f32 %v2001, 0.0
        %v2034 = vmax.f32 %v2002, 0.0
        %v2035 = vmax.f32 %v2003, 0.0
        %v2036 = vmax.f32 %v2004, 0.0
        %v2037 = vmax.f32 %v2005, 0.0
        %v2038 = vmax.f32 %v2006, 0.0
        %v2039 = vmax.f32 %v2007, 0.0
        %v2040 = vmax.f32 %v2008, 0.0
        %v2041 = vmax.f32 %v2009, 0.0
        %v2042 = vmax.f32 %v2010, 0.0
        %v2043 = vmax.f32 %v2011, 0.0
        %v2044 = vmax.f32 %v2012, 0.0
        %v2045 = vmax.f32 %v2013, 0.0
        %v2046 = vmax.f32 %v2014, 0.0
        %v2047 = vmax.f32 %v2015, 0.0
        %v2048 = vmax.f32 %v2016, 0.0
        %v2049 = vmax.f32 %v2017, 0.0
        %v2050 = vmax.f32 %v2018, 0.0
        %v2051 = vmax.f32 %v2019, 0.0
        %v2052 = vmax.f32 %v2020, 0.0
        %v2053 = vmax.f32 %v2021, 0.0
        %v2054 = vmax.f32 %v2022, 0.0
        %v2055 = vmax.f32 %v2023, 0.0
        %v2056 = vmax.f32 %v2024, 0.0
        %v2057 = vmax.f32 %v2025, 0.0
        %v2058 = vmax.f32 %v2026, 0.0
        %v2059 = vmul.f32 %v2027, %v1202
        %v2060 = vmul.f32 %v2028, %v1206
        %v2061 = vmul.f32 %v2029, %v1210
        %v2062 = vmul.f32 %v2030, %v1214
        %v2063 = vmul.f32 %v2031, %v1202
        %v2064 = vmul.f32 %v2032, %v1206
        %v2065 = vmul.f32 %v2033, %v1210
        %v2066 = vmul.f32 %v2034, %v1214
        %v2067 = vmul.f32 %v2035, %v1202
        %v2068 = vmul.f32 %v2036, %v1206
        %v2069 = vmul.f32 %v2037, %v1210
        %v2070 = vmul.f32 %v2038, %v1214
        %v2071 = vmul.f32 %v2039, %v1202
        %v2072 = vmul.f32 %v2040, %v1206
        %v2073 = vmul.f32 %v2041, %v1210
        %v2074 = vmul.f32 %v2042, %v1214
        %v2075 = vmul.f32 %v2043, %v1202
        %v2076 = vmul.f32 %v2044, %v1206
        %v2077 = vmul.f32 %v2045, %v1210
        %v2078 = vmul.f32 %v2046, %v1214
        %v2079 = vmul.f32 %v2047, %v1202
        %v2080 = vmul.f32 %v2048, %v1206
        %v2081 = vmul.f32 %v2049, %v1210
        %v2082 = vmul.f32 %v2050, %v1214
        %v2083 = vmul.f32 %v2051, %v1202
        %v2084 = vmul.f32 %v2052, %v1206
        %v2085 = vmul.f32 %v2053, %v1210
        %v2086 = vmul.f32 %v2054, %v1214
        %v2087 = vmul.f32 %v2055, %v1202
        %v2088 = vmul.f32 %v2056, %v1206
        %v2089 = vmul.f32 %v2057, %v1210
        %v2090 = vmul.f32 %v2058, %v1214
        %v2091 = vadd.f32 %v2059, %v2060
        %v2092 = vadd.f32 %v2091, %v2061
        %v2093 = vadd.f32 %v2092, %v2062
        %2094 = vadd.xlane.f32.xlu0 %v2093
        %v2095 = vpop.xlane.xlu0 %2094
        %v2096 = vadd.f32 %v2063, %v2064
        %v2097 = vadd.f32 %v2096, %v2065
        %v2098 = vadd.f32 %v2097, %v2066
        %2099 = vadd.xlane.f32.xlu0 %v2098
        %v2100 = vpop.xlane.xlu0 %2099
        %v2101 = vadd.f32 %v2067, %v2068
        %v2102 = vadd.f32 %v2101, %v2069
        %v2103 = vadd.f32 %v2102, %v2070
        %2104 = vadd.xlane.f32.xlu0 %v2103
        %v2105 = vpop.xlane.xlu0 %2104
        %v2106 = vadd.f32 %v2071, %v2072
        %v2107 = vadd.f32 %v2106, %v2073
        %v2108 = vadd.f32 %v2107, %v2074
        %2109 = vadd.xlane.f32.xlu0 %v2108
        %v2110 = vpop.xlane.xlu0 %2109
        %v2111 = vadd.f32 %v2075, %v2076
        %v2112 = vadd.f32 %v2111, %v2077
        %v2113 = vadd.f32 %v2112, %v2078
        %2114 = vadd.xlane.f32.xlu0 %v2113
        %v2115 = vpop.xlane.xlu0 %2114
        %v2116 = vadd.f32 %v2079, %v2080
        %v2117 = vadd.f32 %v2116, %v2081
        %v2118 = vadd.f32 %v2117, %v2082
        %2119 = vadd.xlane.f32.xlu0 %v2118
        %v2120 = vpop.xlane.xlu0 %2119
        %v2121 = vadd.f32 %v2083, %v2084
        %v2122 = vadd.f32 %v2121, %v2085
        %v2123 = vadd.f32 %v2122, %v2086
        %2124 = vadd.xlane.f32.xlu0 %v2123
        %v2125 = vpop.xlane.xlu0 %2124
        %v2126 = vadd.f32 %v2087, %v2088
        %v2127 = vadd.f32 %v2126, %v2089
        %v2128 = vadd.f32 %v2127, %v2090
        %2129 = vadd.xlane.f32.xlu0 %v2128
        %v2130 = vpop.xlane.xlu0 %2129
        %v2131 = vld [vmem:[%s342 + $0xe0] sm:$0xff]
        %v2132 = vld [vmem:[%s342 + $0xe8] sm:$0xff]
        %v2133 = vld [vmem:[%s342 + $0xf0] sm:$0xff]
        %v2134 = vld [vmem:[%s342 + $0xf8] sm:$0xff]
        %v2135 = vadd.f32 %v977, %v2131
        %v2136 = vadd.f32 %v981, %v2132
        %v2137 = vadd.f32 %v985, %v2133
        %v2138 = vadd.f32 %v989, %v2134
        %v2139 = vadd.f32 %v993, %v2131
        %v2140 = vadd.f32 %v997, %v2132
        %v2141 = vadd.f32 %v1001, %v2133
        %v2142 = vadd.f32 %v1005, %v2134
        %v2143 = vadd.f32 %v1009, %v2131
        %v2144 = vadd.f32 %v1013, %v2132
        %v2145 = vadd.f32 %v1017, %v2133
        %v2146 = vadd.f32 %v1021, %v2134
        %v2147 = vadd.f32 %v1025, %v2131
        %v2148 = vadd.f32 %v1029, %v2132
        %v2149 = vadd.f32 %v1033, %v2133
        %v2150 = vadd.f32 %v1037, %v2134
        %v2151 = vadd.f32 %v1041, %v2131
        %v2152 = vadd.f32 %v1045, %v2132
        %v2153 = vadd.f32 %v1049, %v2133
        %v2154 = vadd.f32 %v1053, %v2134
        %v2155 = vadd.f32 %v1057, %v2131
        %v2156 = vadd.f32 %v1061, %v2132
        %v2157 = vadd.f32 %v1065, %v2133
        %v2158 = vadd.f32 %v1069, %v2134
        %v2159 = vadd.f32 %v1073, %v2131
        %v2160 = vadd.f32 %v1077, %v2132
        %v2161 = vadd.f32 %v1081, %v2133
        %v2162 = vadd.f32 %v1085, %v2134
        %v2163 = vadd.f32 %v1089, %v2131
        %v2164 = vadd.f32 %v1093, %v2132
        %v2165 = vadd.f32 %v1097, %v2133
        %v2166 = vadd.f32 %v1101, %v2134
        %v2167 = vmax.f32 %v2135, 0.0
        %v2168 = vmax.f32 %v2136, 0.0
        %v2169 = vmax.f32 %v2137, 0.0
        %v2170 = vmax.f32 %v2138, 0.0
        %v2171 = vmax.f32 %v2139, 0.0
        %v2172 = vmax.f32 %v2140, 0.0
        %v2173 = vmax.f32 %v2141, 0.0
        %v2174 = vmax.f32 %v2142, 0.0
        %v2175 = vmax.f32 %v2143, 0.0
        %v2176 = vmax.f32 %v2144, 0.0
        %v2177 = vmax.f32 %v2145, 0.0
        %v2178 = vmax.f32 %v2146, 0.0
        %v2179 = vmax.f32 %v2147, 0.0
        %v2180 = vmax.f32 %v2148, 0.0
        %v2181 = vmax.f32 %v2149, 0.0
        %v2182 = vmax.f32 %v2150, 0.0
        %v2183 = vmax.f32 %v2151, 0.0
        %v2184 = vmax.f32 %v2152, 0.0
        %v2185 = vmax.f32 %v2153, 0.0
        %v2186 = vmax.f32 %v2154, 0.0
        %v2187 = vmax.f32 %v2155, 0.0
        %v2188 = vmax.f32 %v2156, 0.0
        %v2189 = vmax.f32 %v2157, 0.0
        %v2190 = vmax.f32 %v2158, 0.0
        %v2191 = vmax.f32 %v2159, 0.0
        %v2192 = vmax.f32 %v2160, 0.0
        %v2193 = vmax.f32 %v2161, 0.0
        %v2194 = vmax.f32 %v2162, 0.0
        %v2195 = vmax.f32 %v2163, 0.0
        %v2196 = vmax.f32 %v2164, 0.0
        %v2197 = vmax.f32 %v2165, 0.0
        %v2198 = vmax.f32 %v2166, 0.0
        %v2199 = vmul.f32 %v2167, %v1202
        %v2200 = vmul.f32 %v2168, %v1206
        %v2201 = vmul.f32 %v2169, %v1210
        %v2202 = vmul.f32 %v2170, %v1214
        %v2203 = vmul.f32 %v2171, %v1202
        %v2204 = vmul.f32 %v2172, %v1206
        %v2205 = vmul.f32 %v2173, %v1210
        %v2206 = vmul.f32 %v2174, %v1214
        %v2207 = vmul.f32 %v2175, %v1202
        %v2208 = vmul.f32 %v2176, %v1206
        %v2209 = vmul.f32 %v2177, %v1210
        %v2210 = vmul.f32 %v2178, %v1214
        %v2211 = vmul.f32 %v2179, %v1202
        %v2212 = vmul.f32 %v2180, %v1206
        %v2213 = vmul.f32 %v2181, %v1210
        %v2214 = vmul.f32 %v2182, %v1214
        %v2215 = vmul.f32 %v2183, %v1202
        %v2216 = vmul.f32 %v2184, %v1206
        %v2217 = vmul.f32 %v2185, %v1210
        %v2218 = vmul.f32 %v2186, %v1214
        %v2219 = vmul.f32 %v2187, %v1202
        %v2220 = vmul.f32 %v2188, %v1206
        %v2221 = vmul.f32 %v2189, %v1210
        %v2222 = vmul.f32 %v2190, %v1214
        %v2223 = vmul.f32 %v2191, %v1202
        %v2224 = vmul.f32 %v2192, %v1206
        %v2225 = vmul.f32 %v2193, %v1210
        %v2226 = vmul.f32 %v2194, %v1214
        %v2227 = vmul.f32 %v2195, %v1202
        %v2228 = vmul.f32 %v2196, %v1206
        %v2229 = vmul.f32 %v2197, %v1210
        %v2230 = vmul.f32 %v2198, %v1214
        %v2231 = vadd.f32 %v2199, %v2200
        %v2232 = vadd.f32 %v2231, %v2201
        %v2233 = vadd.f32 %v2232, %v2202
        %2234 = vadd.xlane.f32.xlu0 %v2233
        %v2235 = vpop.xlane.xlu0 %2234
        %v2236 = vadd.f32 %v2203, %v2204
        %v2237 = vadd.f32 %v2236, %v2205
        %v2238 = vadd.f32 %v2237, %v2206
        %2239 = vadd.xlane.f32.xlu0 %v2238
        %v2240 = vpop.xlane.xlu0 %2239
        %v2241 = vadd.f32 %v2207, %v2208
        %v2242 = vadd.f32 %v2241, %v2209
        %v2243 = vadd.f32 %v2242, %v2210
        %2244 = vadd.xlane.f32.xlu0 %v2243
        %v2245 = vpop.xlane.xlu0 %2244
        %v2246 = vadd.f32 %v2211, %v2212
        %v2247 = vadd.f32 %v2246, %v2213
        %v2248 = vadd.f32 %v2247, %v2214
        %2249 = vadd.xlane.f32.xlu0 %v2248
        %v2250 = vpop.xlane.xlu0 %2249
        %v2251 = vadd.f32 %v2215, %v2216
        %v2252 = vadd.f32 %v2251, %v2217
        %v2253 = vadd.f32 %v2252, %v2218
        %2254 = vadd.xlane.f32.xlu0 %v2253
        %v2255 = vpop.xlane.xlu0 %2254
        %v2256 = vadd.f32 %v2219, %v2220
        %v2257 = vadd.f32 %v2256, %v2221
        %v2258 = vadd.f32 %v2257, %v2222
        %2259 = vadd.xlane.f32.xlu0 %v2258
        %v2260 = vpop.xlane.xlu0 %2259
        %v2261 = vadd.f32 %v2223, %v2224
        %v2262 = vadd.f32 %v2261, %v2225
        %v2263 = vadd.f32 %v2262, %v2226
        %2264 = vadd.xlane.f32.xlu0 %v2263
        %v2265 = vpop.xlane.xlu0 %2264
        %v2266 = vadd.f32 %v2227, %v2228
        %v2267 = vadd.f32 %v2266, %v2229
        %v2268 = vadd.f32 %v2267, %v2230
        %2269 = vadd.xlane.f32.xlu0 %v2268
        %v2270 = vpop.xlane.xlu0 %2269
        %v2271 = vld [vmem:[%s342 + $0x100] sm:$0xff]
        %v2272 = vld [vmem:[%s342 + $0x108] sm:$0xff]
        %v2273 = vld [vmem:[%s342 + $0x110] sm:$0xff]
        %v2274 = vld [vmem:[%s342 + $0x118] sm:$0xff]
        %v2275 = vadd.f32 %v977, %v2271
        %v2276 = vadd.f32 %v981, %v2272
        %v2277 = vadd.f32 %v985, %v2273
        %v2278 = vadd.f32 %v989, %v2274
        %v2279 = vadd.f32 %v993, %v2271
        %v2280 = vadd.f32 %v997, %v2272
        %v2281 = vadd.f32 %v1001, %v2273
        %v2282 = vadd.f32 %v1005, %v2274
        %v2283 = vadd.f32 %v1009, %v2271
        %v2284 = vadd.f32 %v1013, %v2272
        %v2285 = vadd.f32 %v1017, %v2273
        %v2286 = vadd.f32 %v1021, %v2274
        %v2287 = vadd.f32 %v1025, %v2271
        %v2288 = vadd.f32 %v1029, %v2272
        %v2289 = vadd.f32 %v1033, %v2273
        %v2290 = vadd.f32 %v1037, %v2274
        %v2291 = vadd.f32 %v1041, %v2271
        %v2292 = vadd.f32 %v1045, %v2272
        %v2293 = vadd.f32 %v1049, %v2273
        %v2294 = vadd.f32 %v1053, %v2274
        %v2295 = vadd.f32 %v1057, %v2271
        %v2296 = vadd.f32 %v1061, %v2272
        %v2297 = vadd.f32 %v1065, %v2273
        %v2298 = vadd.f32 %v1069, %v2274
        %v2299 = vadd.f32 %v1073, %v2271
        %v2300 = vadd.f32 %v1077, %v2272
        %v2301 = vadd.f32 %v1081, %v2273
        %v2302 = vadd.f32 %v1085, %v2274
        %v2303 = vadd.f32 %v1089, %v2271
        %v2304 = vadd.f32 %v1093, %v2272
        %v2305 = vadd.f32 %v1097, %v2273
        %v2306 = vadd.f32 %v1101, %v2274
        %v2307 = vmax.f32 %v2275, 0.0
        %v2308 = vmax.f32 %v2276, 0.0
        %v2309 = vmax.f32 %v2277, 0.0
        %v2310 = vmax.f32 %v2278, 0.0
        %v2311 = vmax.f32 %v2279, 0.0
        %v2312 = vmax.f32 %v2280, 0.0
        %v2313 = vmax.f32 %v2281, 0.0
        %v2314 = vmax.f32 %v2282, 0.0
        %v2315 = vmax.f32 %v2283, 0.0
        %v2316 = vmax.f32 %v2284, 0.0
        %v2317 = vmax.f32 %v2285, 0.0
        %v2318 = vmax.f32 %v2286, 0.0
        %v2319 = vmax.f32 %v2287, 0.0
        %v2320 = vmax.f32 %v2288, 0.0
        %v2321 = vmax.f32 %v2289, 0.0
        %v2322 = vmax.f32 %v2290, 0.0
        %v2323 = vmax.f32 %v2291, 0.0
        %v2324 = vmax.f32 %v2292, 0.0
        %v2325 = vmax.f32 %v2293, 0.0
        %v2326 = vmax.f32 %v2294, 0.0
        %v2327 = vmax.f32 %v2295, 0.0
        %v2328 = vmax.f32 %v2296, 0.0
        %v2329 = vmax.f32 %v2297, 0.0
        %v2330 = vmax.f32 %v2298, 0.0
        %v2331 = vmax.f32 %v2299, 0.0
        %v2332 = vmax.f32 %v2300, 0.0
        %v2333 = vmax.f32 %v2301, 0.0
        %v2334 = vmax.f32 %v2302, 0.0
        %v2335 = vmax.f32 %v2303, 0.0
        %v2336 = vmax.f32 %v2304, 0.0
        %v2337 = vmax.f32 %v2305, 0.0
        %v2338 = vmax.f32 %v2306, 0.0
        %v2339 = vmul.f32 %v2307, %v1202
        %v2340 = vmul.f32 %v2308, %v1206
        %v2341 = vmul.f32 %v2309, %v1210
        %v2342 = vmul.f32 %v2310, %v1214
        %v2343 = vmul.f32 %v2311, %v1202
        %v2344 = vmul.f32 %v2312, %v1206
        %v2345 = vmul.f32 %v2313, %v1210
        %v2346 = vmul.f32 %v2314, %v1214
        %v2347 = vmul.f32 %v2315, %v1202
        %v2348 = vmul.f32 %v2316, %v1206
        %v2349 = vmul.f32 %v2317, %v1210
        %v2350 = vmul.f32 %v2318, %v1214
        %v2351 = vmul.f32 %v2319, %v1202
        %v2352 = vmul.f32 %v2320, %v1206
        %v2353 = vmul.f32 %v2321, %v1210
        %v2354 = vmul.f32 %v2322, %v1214
        %v2355 = vmul.f32 %v2323, %v1202
        %v2356 = vmul.f32 %v2324, %v1206
        %v2357 = vmul.f32 %v2325, %v1210
        %v2358 = vmul.f32 %v2326, %v1214
        %v2359 = vmul.f32 %v2327, %v1202
        %v2360 = vmul.f32 %v2328, %v1206
        %v2361 = vmul.f32 %v2329, %v1210
        %v2362 = vmul.f32 %v2330, %v1214
        %v2363 = vmul.f32 %v2331, %v1202
        %v2364 = vmul.f32 %v2332, %v1206
        %v2365 = vmul.f32 %v2333, %v1210
        %v2366 = vmul.f32 %v2334, %v1214
        %v2367 = vmul.f32 %v2335, %v1202
        %v2368 = vmul.f32 %v2336, %v1206
        %v2369 = vmul.f32 %v2337, %v1210
        %v2370 = vmul.f32 %v2338, %v1214
        %v2371 = vadd.f32 %v2339, %v2340
        %v2372 = vadd.f32 %v2371, %v2341
        %v2373 = vadd.f32 %v2372, %v2342
        %2374 = vadd.xlane.f32.xlu0 %v2373
        %v2375 = vpop.xlane.xlu0 %2374
        %v2376 = vadd.f32 %v2343, %v2344
        %v2377 = vadd.f32 %v2376, %v2345
        %v2378 = vadd.f32 %v2377, %v2346
        %2379 = vadd.xlane.f32.xlu0 %v2378
        %v2380 = vpop.xlane.xlu0 %2379
        %v2381 = vadd.f32 %v2347, %v2348
        %v2382 = vadd.f32 %v2381, %v2349
        %v2383 = vadd.f32 %v2382, %v2350
        %2384 = vadd.xlane.f32.xlu0 %v2383
        %v2385 = vpop.xlane.xlu0 %2384
        %v2386 = vadd.f32 %v2351, %v2352
        %v2387 = vadd.f32 %v2386, %v2353
        %v2388 = vadd.f32 %v2387, %v2354
        %2389 = vadd.xlane.f32.xlu0 %v2388
        %v2390 = vpop.xlane.xlu0 %2389
        %v2391 = vadd.f32 %v2355, %v2356
        %v2392 = vadd.f32 %v2391, %v2357
        %v2393 = vadd.f32 %v2392, %v2358
        %2394 = vadd.xlane.f32.xlu0 %v2393
        %v2395 = vpop.xlane.xlu0 %2394
        %v2396 = vadd.f32 %v2359, %v2360
        %v2397 = vadd.f32 %v2396, %v2361
        %v2398 = vadd.f32 %v2397, %v2362
        %2399 = vadd.xlane.f32.xlu0 %v2398
        %v2400 = vpop.xlane.xlu0 %2399
        %v2401 = vadd.f32 %v2363, %v2364
        %v2402 = vadd.f32 %v2401, %v2365
        %v2403 = vadd.f32 %v2402, %v2366
        %2404 = vadd.xlane.f32.xlu0 %v2403
        %v2405 = vpop.xlane.xlu0 %2404
        %v2406 = vadd.f32 %v2367, %v2368
        %v2407 = vadd.f32 %v2406, %v2369
        %v2408 = vadd.f32 %v2407, %v2370
        %2409 = vadd.xlane.f32.xlu0 %v2408
        %v2410 = vpop.xlane.xlu0 %2409
        %v2411 = vld [vmem:[%s342 + $0x120] sm:$0xff]
        %v2412 = vld [vmem:[%s342 + $0x128] sm:$0xff]
        %v2413 = vld [vmem:[%s342 + $0x130] sm:$0xff]
        %v2414 = vld [vmem:[%s342 + $0x138] sm:$0xff]
        %v2415 = vadd.f32 %v977, %v2411
        %v2416 = vadd.f32 %v981, %v2412
        %v2417 = vadd.f32 %v985, %v2413
        %v2418 = vadd.f32 %v989, %v2414
        %v2419 = vadd.f32 %v993, %v2411
        %v2420 = vadd.f32 %v997, %v2412
        %v2421 = vadd.f32 %v1001, %v2413
        %v2422 = vadd.f32 %v1005, %v2414
        %v2423 = vadd.f32 %v1009, %v2411
        %v2424 = vadd.f32 %v1013, %v2412
        %v2425 = vadd.f32 %v1017, %v2413
        %v2426 = vadd.f32 %v1021, %v2414
        %v2427 = vadd.f32 %v1025, %v2411
        %v2428 = vadd.f32 %v1029, %v2412
        %v2429 = vadd.f32 %v1033, %v2413
        %v2430 = vadd.f32 %v1037, %v2414
        %v2431 = vadd.f32 %v1041, %v2411
        %v2432 = vadd.f32 %v1045, %v2412
        %v2433 = vadd.f32 %v1049, %v2413
        %v2434 = vadd.f32 %v1053, %v2414
        %v2435 = vadd.f32 %v1057, %v2411
        %v2436 = vadd.f32 %v1061, %v2412
        %v2437 = vadd.f32 %v1065, %v2413
        %v2438 = vadd.f32 %v1069, %v2414
        %v2439 = vadd.f32 %v1073, %v2411
        %v2440 = vadd.f32 %v1077, %v2412
        %v2441 = vadd.f32 %v1081, %v2413
        %v2442 = vadd.f32 %v1085, %v2414
        %v2443 = vadd.f32 %v1089, %v2411
        %v2444 = vadd.f32 %v1093, %v2412
        %v2445 = vadd.f32 %v1097, %v2413
        %v2446 = vadd.f32 %v1101, %v2414
        %v2447 = vmax.f32 %v2415, 0.0
        %v2448 = vmax.f32 %v2416, 0.0
        %v2449 = vmax.f32 %v2417, 0.0
        %v2450 = vmax.f32 %v2418, 0.0
        %v2451 = vmax.f32 %v2419, 0.0
        %v2452 = vmax.f32 %v2420, 0.0
        %v2453 = vmax.f32 %v2421, 0.0
        %v2454 = vmax.f32 %v2422, 0.0
        %v2455 = vmax.f32 %v2423, 0.0
        %v2456 = vmax.f32 %v2424, 0.0
        %v2457 = vmax.f32 %v2425, 0.0
        %v2458 = vmax.f32 %v2426, 0.0
        %v2459 = vmax.f32 %v2427, 0.0
        %v2460 = vmax.f32 %v2428, 0.0
        %v2461 = vmax.f32 %v2429, 0.0
        %v2462 = vmax.f32 %v2430, 0.0
        %v2463 = vmax.f32 %v2431, 0.0
        %v2464 = vmax.f32 %v2432, 0.0
        %v2465 = vmax.f32 %v2433, 0.0
        %v2466 = vmax.f32 %v2434, 0.0
        %v2467 = vmax.f32 %v2435, 0.0
        %v2468 = vmax.f32 %v2436, 0.0
        %v2469 = vmax.f32 %v2437, 0.0
        %v2470 = vmax.f32 %v2438, 0.0
        %v2471 = vmax.f32 %v2439, 0.0
        %v2472 = vmax.f32 %v2440, 0.0
        %v2473 = vmax.f32 %v2441, 0.0
        %v2474 = vmax.f32 %v2442, 0.0
        %v2475 = vmax.f32 %v2443, 0.0
        %v2476 = vmax.f32 %v2444, 0.0
        %v2477 = vmax.f32 %v2445, 0.0
        %v2478 = vmax.f32 %v2446, 0.0
        %v2479 = vmul.f32 %v2447, %v1202
        %v2480 = vmul.f32 %v2448, %v1206
        %v2481 = vmul.f32 %v2449, %v1210
        %v2482 = vmul.f32 %v2450, %v1214
        %v2483 = vmul.f32 %v2451, %v1202
        %v2484 = vmul.f32 %v2452, %v1206
        %v2485 = vmul.f32 %v2453, %v1210
        %v2486 = vmul.f32 %v2454, %v1214
        %v2487 = vmul.f32 %v2455, %v1202
        %v2488 = vmul.f32 %v2456, %v1206
        %v2489 = vmul.f32 %v2457, %v1210
        %v2490 = vmul.f32 %v2458, %v1214
        %v2491 = vmul.f32 %v2459, %v1202
        %v2492 = vmul.f32 %v2460, %v1206
        %v2493 = vmul.f32 %v2461, %v1210
        %v2494 = vmul.f32 %v2462, %v1214
        %v2495 = vmul.f32 %v2463, %v1202
        %v2496 = vmul.f32 %v2464, %v1206
        %v2497 = vmul.f32 %v2465, %v1210
        %v2498 = vmul.f32 %v2466, %v1214
        %v2499 = vmul.f32 %v2467, %v1202
        %v2500 = vmul.f32 %v2468, %v1206
        %v2501 = vmul.f32 %v2469, %v1210
        %v2502 = vmul.f32 %v2470, %v1214
        %v2503 = vmul.f32 %v2471, %v1202
        %v2504 = vmul.f32 %v2472, %v1206
        %v2505 = vmul.f32 %v2473, %v1210
        %v2506 = vmul.f32 %v2474, %v1214
        %v2507 = vmul.f32 %v2475, %v1202
        %v2508 = vmul.f32 %v2476, %v1206
        %v2509 = vmul.f32 %v2477, %v1210
        %v2510 = vmul.f32 %v2478, %v1214
        %v2511 = vadd.f32 %v2479, %v2480
        %v2512 = vadd.f32 %v2511, %v2481
        %v2513 = vadd.f32 %v2512, %v2482
        %2514 = vadd.xlane.f32.xlu0 %v2513
        %v2515 = vpop.xlane.xlu0 %2514
        %v2516 = vadd.f32 %v2483, %v2484
        %v2517 = vadd.f32 %v2516, %v2485
        %v2518 = vadd.f32 %v2517, %v2486
        %2519 = vadd.xlane.f32.xlu0 %v2518
        %v2520 = vpop.xlane.xlu0 %2519
        %v2521 = vadd.f32 %v2487, %v2488
        %v2522 = vadd.f32 %v2521, %v2489
        %v2523 = vadd.f32 %v2522, %v2490
        %2524 = vadd.xlane.f32.xlu0 %v2523
        %v2525 = vpop.xlane.xlu0 %2524
        %v2526 = vadd.f32 %v2491, %v2492
        %v2527 = vadd.f32 %v2526, %v2493
        %v2528 = vadd.f32 %v2527, %v2494
        %2529 = vadd.xlane.f32.xlu0 %v2528
        %v2530 = vpop.xlane.xlu0 %2529
        %v2531 = vadd.f32 %v2495, %v2496
        %v2532 = vadd.f32 %v2531, %v2497
        %v2533 = vadd.f32 %v2532, %v2498
        %2534 = vadd.xlane.f32.xlu0 %v2533
        %v2535 = vpop.xlane.xlu0 %2534
        %v2536 = vadd.f32 %v2499, %v2500
        %v2537 = vadd.f32 %v2536, %v2501
        %v2538 = vadd.f32 %v2537, %v2502
        %2539 = vadd.xlane.f32.xlu0 %v2538
        %v2540 = vpop.xlane.xlu0 %2539
        %v2541 = vadd.f32 %v2503, %v2504
        %v2542 = vadd.f32 %v2541, %v2505
        %v2543 = vadd.f32 %v2542, %v2506
        %2544 = vadd.xlane.f32.xlu0 %v2543
        %v2545 = vpop.xlane.xlu0 %2544
        %v2546 = vadd.f32 %v2507, %v2508
        %v2547 = vadd.f32 %v2546, %v2509
        %v2548 = vadd.f32 %v2547, %v2510
        %2549 = vadd.xlane.f32.xlu0 %v2548
        %v2550 = vpop.xlane.xlu0 %2549
        %v2551 = vld [vmem:[%s342 + $0x140] sm:$0xff]
        %v2552 = vld [vmem:[%s342 + $0x148] sm:$0xff]
        %v2553 = vld [vmem:[%s342 + $0x150] sm:$0xff]
        %v2554 = vld [vmem:[%s342 + $0x158] sm:$0xff]
        %v2555 = vadd.f32 %v977, %v2551
        %v2556 = vadd.f32 %v981, %v2552
        %v2557 = vadd.f32 %v985, %v2553
        %v2558 = vadd.f32 %v989, %v2554
        %v2559 = vadd.f32 %v993, %v2551
        %v2560 = vadd.f32 %v997, %v2552
        %v2561 = vadd.f32 %v1001, %v2553
        %v2562 = vadd.f32 %v1005, %v2554
        %v2563 = vadd.f32 %v1009, %v2551
        %v2564 = vadd.f32 %v1013, %v2552
        %v2565 = vadd.f32 %v1017, %v2553
        %v2566 = vadd.f32 %v1021, %v2554
        %v2567 = vadd.f32 %v1025, %v2551
        %v2568 = vadd.f32 %v1029, %v2552
        %v2569 = vadd.f32 %v1033, %v2553
        %v2570 = vadd.f32 %v1037, %v2554
        %v2571 = vadd.f32 %v1041, %v2551
        %v2572 = vadd.f32 %v1045, %v2552
        %v2573 = vadd.f32 %v1049, %v2553
        %v2574 = vadd.f32 %v1053, %v2554
        %v2575 = vadd.f32 %v1057, %v2551
        %v2576 = vadd.f32 %v1061, %v2552
        %v2577 = vadd.f32 %v1065, %v2553
        %v2578 = vadd.f32 %v1069, %v2554
        %v2579 = vadd.f32 %v1073, %v2551
        %v2580 = vadd.f32 %v1077, %v2552
        %v2581 = vadd.f32 %v1081, %v2553
        %v2582 = vadd.f32 %v1085, %v2554
        %v2583 = vadd.f32 %v1089, %v2551
        %v2584 = vadd.f32 %v1093, %v2552
        %v2585 = vadd.f32 %v1097, %v2553
        %v2586 = vadd.f32 %v1101, %v2554
        %v2587 = vmax.f32 %v2555, 0.0
        %v2588 = vmax.f32 %v2556, 0.0
        %v2589 = vmax.f32 %v2557, 0.0
        %v2590 = vmax.f32 %v2558, 0.0
        %v2591 = vmax.f32 %v2559, 0.0
        %v2592 = vmax.f32 %v2560, 0.0
        %v2593 = vmax.f32 %v2561, 0.0
        %v2594 = vmax.f32 %v2562, 0.0
        %v2595 = vmax.f32 %v2563, 0.0
        %v2596 = vmax.f32 %v2564, 0.0
        %v2597 = vmax.f32 %v2565, 0.0
        %v2598 = vmax.f32 %v2566, 0.0
        %v2599 = vmax.f32 %v2567, 0.0
        %v2600 = vmax.f32 %v2568, 0.0
        %v2601 = vmax.f32 %v2569, 0.0
        %v2602 = vmax.f32 %v2570, 0.0
        %v2603 = vmax.f32 %v2571, 0.0
        %v2604 = vmax.f32 %v2572, 0.0
        %v2605 = vmax.f32 %v2573, 0.0
        %v2606 = vmax.f32 %v2574, 0.0
        %v2607 = vmax.f32 %v2575, 0.0
        %v2608 = vmax.f32 %v2576, 0.0
        %v2609 = vmax.f32 %v2577, 0.0
        %v2610 = vmax.f32 %v2578, 0.0
        %v2611 = vmax.f32 %v2579, 0.0
        %v2612 = vmax.f32 %v2580, 0.0
        %v2613 = vmax.f32 %v2581, 0.0
        %v2614 = vmax.f32 %v2582, 0.0
        %v2615 = vmax.f32 %v2583, 0.0
        %v2616 = vmax.f32 %v2584, 0.0
        %v2617 = vmax.f32 %v2585, 0.0
        %v2618 = vmax.f32 %v2586, 0.0
        %v2619 = vmul.f32 %v2587, %v1202
        %v2620 = vmul.f32 %v2588, %v1206
        %v2621 = vmul.f32 %v2589, %v1210
        %v2622 = vmul.f32 %v2590, %v1214
        %v2623 = vmul.f32 %v2591, %v1202
        %v2624 = vmul.f32 %v2592, %v1206
        %v2625 = vmul.f32 %v2593, %v1210
        %v2626 = vmul.f32 %v2594, %v1214
        %v2627 = vmul.f32 %v2595, %v1202
        %v2628 = vmul.f32 %v2596, %v1206
        %v2629 = vmul.f32 %v2597, %v1210
        %v2630 = vmul.f32 %v2598, %v1214
        %v2631 = vmul.f32 %v2599, %v1202
        %v2632 = vmul.f32 %v2600, %v1206
        %v2633 = vmul.f32 %v2601, %v1210
        %v2634 = vmul.f32 %v2602, %v1214
        %v2635 = vmul.f32 %v2603, %v1202
        %v2636 = vmul.f32 %v2604, %v1206
        %v2637 = vmul.f32 %v2605, %v1210
        %v2638 = vmul.f32 %v2606, %v1214
        %v2639 = vmul.f32 %v2607, %v1202
        %v2640 = vmul.f32 %v2608, %v1206
        %v2641 = vmul.f32 %v2609, %v1210
        %v2642 = vmul.f32 %v2610, %v1214
        %v2643 = vmul.f32 %v2611, %v1202
        %v2644 = vmul.f32 %v2612, %v1206
        %v2645 = vmul.f32 %v2613, %v1210
        %v2646 = vmul.f32 %v2614, %v1214
        %v2647 = vmul.f32 %v2615, %v1202
        %v2648 = vmul.f32 %v2616, %v1206
        %v2649 = vmul.f32 %v2617, %v1210
        %v2650 = vmul.f32 %v2618, %v1214
        %v2651 = vadd.f32 %v2619, %v2620
        %v2652 = vadd.f32 %v2651, %v2621
        %v2653 = vadd.f32 %v2652, %v2622
        %2654 = vadd.xlane.f32.xlu0 %v2653
        %v2655 = vpop.xlane.xlu0 %2654
        %v2656 = vadd.f32 %v2623, %v2624
        %v2657 = vadd.f32 %v2656, %v2625
        %v2658 = vadd.f32 %v2657, %v2626
        %2659 = vadd.xlane.f32.xlu0 %v2658
        %v2660 = vpop.xlane.xlu0 %2659
        %v2661 = vadd.f32 %v2627, %v2628
        %v2662 = vadd.f32 %v2661, %v2629
        %v2663 = vadd.f32 %v2662, %v2630
        %2664 = vadd.xlane.f32.xlu0 %v2663
        %v2665 = vpop.xlane.xlu0 %2664
        %v2666 = vadd.f32 %v2631, %v2632
        %v2667 = vadd.f32 %v2666, %v2633
        %v2668 = vadd.f32 %v2667, %v2634
        %2669 = vadd.xlane.f32.xlu0 %v2668
        %v2670 = vpop.xlane.xlu0 %2669
        %v2671 = vadd.f32 %v2635, %v2636
        %v2672 = vadd.f32 %v2671, %v2637
        %v2673 = vadd.f32 %v2672, %v2638
        %2674 = vadd.xlane.f32.xlu0 %v2673
        %v2675 = vpop.xlane.xlu0 %2674
        %v2676 = vadd.f32 %v2639, %v2640
        %v2677 = vadd.f32 %v2676, %v2641
        %v2678 = vadd.f32 %v2677, %v2642
        %2679 = vadd.xlane.f32.xlu0 %v2678
        %v2680 = vpop.xlane.xlu0 %2679
        %v2681 = vadd.f32 %v2643, %v2644
        %v2682 = vadd.f32 %v2681, %v2645
        %v2683 = vadd.f32 %v2682, %v2646
        %2684 = vadd.xlane.f32.xlu0 %v2683
        %v2685 = vpop.xlane.xlu0 %2684
        %v2686 = vadd.f32 %v2647, %v2648
        %v2687 = vadd.f32 %v2686, %v2649
        %v2688 = vadd.f32 %v2687, %v2650
        %2689 = vadd.xlane.f32.xlu0 %v2688
        %v2690 = vpop.xlane.xlu0 %2689
        %v2691 = vld [vmem:[%s342 + $0x160] sm:$0xff]
        %v2692 = vld [vmem:[%s342 + $0x168] sm:$0xff]
        %v2693 = vld [vmem:[%s342 + $0x170] sm:$0xff]
        %v2694 = vld [vmem:[%s342 + $0x178] sm:$0xff]
        %v2695 = vadd.f32 %v977, %v2691
        %v2696 = vadd.f32 %v981, %v2692
        %v2697 = vadd.f32 %v985, %v2693
        %v2698 = vadd.f32 %v989, %v2694
        %v2699 = vadd.f32 %v993, %v2691
        %v2700 = vadd.f32 %v997, %v2692
        %v2701 = vadd.f32 %v1001, %v2693
        %v2702 = vadd.f32 %v1005, %v2694
        %v2703 = vadd.f32 %v1009, %v2691
        %v2704 = vadd.f32 %v1013, %v2692
        %v2705 = vadd.f32 %v1017, %v2693
        %v2706 = vadd.f32 %v1021, %v2694
        %v2707 = vadd.f32 %v1025, %v2691
        %v2708 = vadd.f32 %v1029, %v2692
        %v2709 = vadd.f32 %v1033, %v2693
        %v2710 = vadd.f32 %v1037, %v2694
        %v2711 = vadd.f32 %v1041, %v2691
        %v2712 = vadd.f32 %v1045, %v2692
        %v2713 = vadd.f32 %v1049, %v2693
        %v2714 = vadd.f32 %v1053, %v2694
        %v2715 = vadd.f32 %v1057, %v2691
        %v2716 = vadd.f32 %v1061, %v2692
        %v2717 = vadd.f32 %v1065, %v2693
        %v2718 = vadd.f32 %v1069, %v2694
        %v2719 = vadd.f32 %v1073, %v2691
        %v2720 = vadd.f32 %v1077, %v2692
        %v2721 = vadd.f32 %v1081, %v2693
        %v2722 = vadd.f32 %v1085, %v2694
        %v2723 = vadd.f32 %v1089, %v2691
        %v2724 = vadd.f32 %v1093, %v2692
        %v2725 = vadd.f32 %v1097, %v2693
        %v2726 = vadd.f32 %v1101, %v2694
        %v2727 = vmax.f32 %v2695, 0.0
        %v2728 = vmax.f32 %v2696, 0.0
        %v2729 = vmax.f32 %v2697, 0.0
        %v2730 = vmax.f32 %v2698, 0.0
        %v2731 = vmax.f32 %v2699, 0.0
        %v2732 = vmax.f32 %v2700, 0.0
        %v2733 = vmax.f32 %v2701, 0.0
        %v2734 = vmax.f32 %v2702, 0.0
        %v2735 = vmax.f32 %v2703, 0.0
        %v2736 = vmax.f32 %v2704, 0.0
        %v2737 = vmax.f32 %v2705, 0.0
        %v2738 = vmax.f32 %v2706, 0.0
        %v2739 = vmax.f32 %v2707, 0.0
        %v2740 = vmax.f32 %v2708, 0.0
        %v2741 = vmax.f32 %v2709, 0.0
        %v2742 = vmax.f32 %v2710, 0.0
        %v2743 = vmax.f32 %v2711, 0.0
        %v2744 = vmax.f32 %v2712, 0.0
        %v2745 = vmax.f32 %v2713, 0.0
        %v2746 = vmax.f32 %v2714, 0.0
        %v2747 = vmax.f32 %v2715, 0.0
        %v2748 = vmax.f32 %v2716, 0.0
        %v2749 = vmax.f32 %v2717, 0.0
        %v2750 = vmax.f32 %v2718, 0.0
        %v2751 = vmax.f32 %v2719, 0.0
        %v2752 = vmax.f32 %v2720, 0.0
        %v2753 = vmax.f32 %v2721, 0.0
        %v2754 = vmax.f32 %v2722, 0.0
        %v2755 = vmax.f32 %v2723, 0.0
        %v2756 = vmax.f32 %v2724, 0.0
        %v2757 = vmax.f32 %v2725, 0.0
        %v2758 = vmax.f32 %v2726, 0.0
        %v2759 = vmul.f32 %v2727, %v1202
        %v2760 = vmul.f32 %v2728, %v1206
        %v2761 = vmul.f32 %v2729, %v1210
        %v2762 = vmul.f32 %v2730, %v1214
        %v2763 = vmul.f32 %v2731, %v1202
        %v2764 = vmul.f32 %v2732, %v1206
        %v2765 = vmul.f32 %v2733, %v1210
        %v2766 = vmul.f32 %v2734, %v1214
        %v2767 = vmul.f32 %v2735, %v1202
        %v2768 = vmul.f32 %v2736, %v1206
        %v2769 = vmul.f32 %v2737, %v1210
        %v2770 = vmul.f32 %v2738, %v1214
        %v2771 = vmul.f32 %v2739, %v1202
        %v2772 = vmul.f32 %v2740, %v1206
        %v2773 = vmul.f32 %v2741, %v1210
        %v2774 = vmul.f32 %v2742, %v1214
        %v2775 = vmul.f32 %v2743, %v1202
        %v2776 = vmul.f32 %v2744, %v1206
        %v2777 = vmul.f32 %v2745, %v1210
        %v2778 = vmul.f32 %v2746, %v1214
        %v2779 = vmul.f32 %v2747, %v1202
        %v2780 = vmul.f32 %v2748, %v1206
        %v2781 = vmul.f32 %v2749, %v1210
        %v2782 = vmul.f32 %v2750, %v1214
        %v2783 = vmul.f32 %v2751, %v1202
        %v2784 = vmul.f32 %v2752, %v1206
        %v2785 = vmul.f32 %v2753, %v1210
        %v2786 = vmul.f32 %v2754, %v1214
        %v2787 = vmul.f32 %v2755, %v1202
        %v2788 = vmul.f32 %v2756, %v1206
        %v2789 = vmul.f32 %v2757, %v1210
        %v2790 = vmul.f32 %v2758, %v1214
        %v2791 = vadd.f32 %v2759, %v2760
        %v2792 = vadd.f32 %v2791, %v2761
        %v2793 = vadd.f32 %v2792, %v2762
        %2794 = vadd.xlane.f32.xlu0 %v2793
        %v2795 = vpop.xlane.xlu0 %2794
        %v2796 = vadd.f32 %v2763, %v2764
        %v2797 = vadd.f32 %v2796, %v2765
        %v2798 = vadd.f32 %v2797, %v2766
        %2799 = vadd.xlane.f32.xlu0 %v2798
        %v2800 = vpop.xlane.xlu0 %2799
        %v2801 = vadd.f32 %v2767, %v2768
        %v2802 = vadd.f32 %v2801, %v2769
        %v2803 = vadd.f32 %v2802, %v2770
        %2804 = vadd.xlane.f32.xlu0 %v2803
        %v2805 = vpop.xlane.xlu0 %2804
        %v2806 = vadd.f32 %v2771, %v2772
        %v2807 = vadd.f32 %v2806, %v2773
        %v2808 = vadd.f32 %v2807, %v2774
        %2809 = vadd.xlane.f32.xlu0 %v2808
        %v2810 = vpop.xlane.xlu0 %2809
        %v2811 = vadd.f32 %v2775, %v2776
        %v2812 = vadd.f32 %v2811, %v2777
        %v2813 = vadd.f32 %v2812, %v2778
        %2814 = vadd.xlane.f32.xlu0 %v2813
        %v2815 = vpop.xlane.xlu0 %2814
        %v2816 = vadd.f32 %v2779, %v2780
        %v2817 = vadd.f32 %v2816, %v2781
        %v2818 = vadd.f32 %v2817, %v2782
        %2819 = vadd.xlane.f32.xlu0 %v2818
        %v2820 = vpop.xlane.xlu0 %2819
        %v2821 = vadd.f32 %v2783, %v2784
        %v2822 = vadd.f32 %v2821, %v2785
        %v2823 = vadd.f32 %v2822, %v2786
        %2824 = vadd.xlane.f32.xlu0 %v2823
        %v2825 = vpop.xlane.xlu0 %2824
        %v2826 = vadd.f32 %v2787, %v2788
        %v2827 = vadd.f32 %v2826, %v2789
        %v2828 = vadd.f32 %v2827, %v2790
        %2829 = vadd.xlane.f32.xlu0 %v2828
        %v2830 = vpop.xlane.xlu0 %2829
        %v2831 = vld [vmem:[%s342 + $0x180] sm:$0xff]
        %v2832 = vld [vmem:[%s342 + $0x188] sm:$0xff]
        %v2833 = vld [vmem:[%s342 + $0x190] sm:$0xff]
        %v2834 = vld [vmem:[%s342 + $0x198] sm:$0xff]
        %v2835 = vadd.f32 %v977, %v2831
        %v2836 = vadd.f32 %v981, %v2832
        %v2837 = vadd.f32 %v985, %v2833
        %v2838 = vadd.f32 %v989, %v2834
        %v2839 = vadd.f32 %v993, %v2831
        %v2840 = vadd.f32 %v997, %v2832
        %v2841 = vadd.f32 %v1001, %v2833
        %v2842 = vadd.f32 %v1005, %v2834
        %v2843 = vadd.f32 %v1009, %v2831
        %v2844 = vadd.f32 %v1013, %v2832
        %v2845 = vadd.f32 %v1017, %v2833
        %v2846 = vadd.f32 %v1021, %v2834
        %v2847 = vadd.f32 %v1025, %v2831
        %v2848 = vadd.f32 %v1029, %v2832
        %v2849 = vadd.f32 %v1033, %v2833
        %v2850 = vadd.f32 %v1037, %v2834
        %v2851 = vadd.f32 %v1041, %v2831
        %v2852 = vadd.f32 %v1045, %v2832
        %v2853 = vadd.f32 %v1049, %v2833
        %v2854 = vadd.f32 %v1053, %v2834
        %v2855 = vadd.f32 %v1057, %v2831
        %v2856 = vadd.f32 %v1061, %v2832
        %v2857 = vadd.f32 %v1065, %v2833
        %v2858 = vadd.f32 %v1069, %v2834
        %v2859 = vadd.f32 %v1073, %v2831
        %v2860 = vadd.f32 %v1077, %v2832
        %v2861 = vadd.f32 %v1081, %v2833
        %v2862 = vadd.f32 %v1085, %v2834
        %v2863 = vadd.f32 %v1089, %v2831
        %v2864 = vadd.f32 %v1093, %v2832
        %v2865 = vadd.f32 %v1097, %v2833
        %v2866 = vadd.f32 %v1101, %v2834
        %v2867 = vmax.f32 %v2835, 0.0
        %v2868 = vmax.f32 %v2836, 0.0
        %v2869 = vmax.f32 %v2837, 0.0
        %v2870 = vmax.f32 %v2838, 0.0
        %v2871 = vmax.f32 %v2839, 0.0
        %v2872 = vmax.f32 %v2840, 0.0
        %v2873 = vmax.f32 %v2841, 0.0
        %v2874 = vmax.f32 %v2842, 0.0
        %v2875 = vmax.f32 %v2843, 0.0
        %v2876 = vmax.f32 %v2844, 0.0
        %v2877 = vmax.f32 %v2845, 0.0
        %v2878 = vmax.f32 %v2846, 0.0
        %v2879 = vmax.f32 %v2847, 0.0
        %v2880 = vmax.f32 %v2848, 0.0
        %v2881 = vmax.f32 %v2849, 0.0
        %v2882 = vmax.f32 %v2850, 0.0
        %v2883 = vmax.f32 %v2851, 0.0
        %v2884 = vmax.f32 %v2852, 0.0
        %v2885 = vmax.f32 %v2853, 0.0
        %v2886 = vmax.f32 %v2854, 0.0
        %v2887 = vmax.f32 %v2855, 0.0
        %v2888 = vmax.f32 %v2856, 0.0
        %v2889 = vmax.f32 %v2857, 0.0
        %v2890 = vmax.f32 %v2858, 0.0
        %v2891 = vmax.f32 %v2859, 0.0
        %v2892 = vmax.f32 %v2860, 0.0
        %v2893 = vmax.f32 %v2861, 0.0
        %v2894 = vmax.f32 %v2862, 0.0
        %v2895 = vmax.f32 %v2863, 0.0
        %v2896 = vmax.f32 %v2864, 0.0
        %v2897 = vmax.f32 %v2865, 0.0
        %v2898 = vmax.f32 %v2866, 0.0
        %v2899 = vmul.f32 %v2867, %v1202
        %v2900 = vmul.f32 %v2868, %v1206
        %v2901 = vmul.f32 %v2869, %v1210
        %v2902 = vmul.f32 %v2870, %v1214
        %v2903 = vmul.f32 %v2871, %v1202
        %v2904 = vmul.f32 %v2872, %v1206
        %v2905 = vmul.f32 %v2873, %v1210
        %v2906 = vmul.f32 %v2874, %v1214
        %v2907 = vmul.f32 %v2875, %v1202
        %v2908 = vmul.f32 %v2876, %v1206
        %v2909 = vmul.f32 %v2877, %v1210
        %v2910 = vmul.f32 %v2878, %v1214
        %v2911 = vmul.f32 %v2879, %v1202
        %v2912 = vmul.f32 %v2880, %v1206
        %v2913 = vmul.f32 %v2881, %v1210
        %v2914 = vmul.f32 %v2882, %v1214
        %v2915 = vmul.f32 %v2883, %v1202
        %v2916 = vmul.f32 %v2884, %v1206
        %v2917 = vmul.f32 %v2885, %v1210
        %v2918 = vmul.f32 %v2886, %v1214
        %v2919 = vmul.f32 %v2887, %v1202
        %v2920 = vmul.f32 %v2888, %v1206
        %v2921 = vmul.f32 %v2889, %v1210
        %v2922 = vmul.f32 %v2890, %v1214
        %v2923 = vmul.f32 %v2891, %v1202
        %v2924 = vmul.f32 %v2892, %v1206
        %v2925 = vmul.f32 %v2893, %v1210
        %v2926 = vmul.f32 %v2894, %v1214
        %v2927 = vmul.f32 %v2895, %v1202
        %v2928 = vmul.f32 %v2896, %v1206
        %v2929 = vmul.f32 %v2897, %v1210
        %v2930 = vmul.f32 %v2898, %v1214
        %v2931 = vadd.f32 %v2899, %v2900
        %v2932 = vadd.f32 %v2931, %v2901
        %v2933 = vadd.f32 %v2932, %v2902
        %2934 = vadd.xlane.f32.xlu0 %v2933
        %v2935 = vpop.xlane.xlu0 %2934
        %v2936 = vadd.f32 %v2903, %v2904
        %v2937 = vadd.f32 %v2936, %v2905
        %v2938 = vadd.f32 %v2937, %v2906
        %2939 = vadd.xlane.f32.xlu0 %v2938
        %v2940 = vpop.xlane.xlu0 %2939
        %v2941 = vadd.f32 %v2907, %v2908
        %v2942 = vadd.f32 %v2941, %v2909
        %v2943 = vadd.f32 %v2942, %v2910
        %2944 = vadd.xlane.f32.xlu0 %v2943
        %v2945 = vpop.xlane.xlu0 %2944
        %v2946 = vadd.f32 %v2911, %v2912
        %v2947 = vadd.f32 %v2946, %v2913
        %v2948 = vadd.f32 %v2947, %v2914
        %2949 = vadd.xlane.f32.xlu0 %v2948
        %v2950 = vpop.xlane.xlu0 %2949
        %v2951 = vadd.f32 %v2915, %v2916
        %v2952 = vadd.f32 %v2951, %v2917
        %v2953 = vadd.f32 %v2952, %v2918
        %2954 = vadd.xlane.f32.xlu0 %v2953
        %v2955 = vpop.xlane.xlu0 %2954
        %v2956 = vadd.f32 %v2919, %v2920
        %v2957 = vadd.f32 %v2956, %v2921
        %v2958 = vadd.f32 %v2957, %v2922
        %2959 = vadd.xlane.f32.xlu0 %v2958
        %v2960 = vpop.xlane.xlu0 %2959
        %v2961 = vadd.f32 %v2923, %v2924
        %v2962 = vadd.f32 %v2961, %v2925
        %v2963 = vadd.f32 %v2962, %v2926
        %2964 = vadd.xlane.f32.xlu0 %v2963
        %v2965 = vpop.xlane.xlu0 %2964
        %v2966 = vadd.f32 %v2927, %v2928
        %v2967 = vadd.f32 %v2966, %v2929
        %v2968 = vadd.f32 %v2967, %v2930
        %2969 = vadd.xlane.f32.xlu0 %v2968
        %v2970 = vpop.xlane.xlu0 %2969
        %v2971 = vld [vmem:[%s342 + $0x1a0] sm:$0xff]
        %v2972 = vld [vmem:[%s342 + $0x1a8] sm:$0xff]
        %v2973 = vld [vmem:[%s342 + $0x1b0] sm:$0xff]
        %v2974 = vld [vmem:[%s342 + $0x1b8] sm:$0xff]
        %v2975 = vadd.f32 %v977, %v2971
        %v2976 = vadd.f32 %v981, %v2972
        %v2977 = vadd.f32 %v985, %v2973
        %v2978 = vadd.f32 %v989, %v2974
        %v2979 = vadd.f32 %v993, %v2971
        %v2980 = vadd.f32 %v997, %v2972
        %v2981 = vadd.f32 %v1001, %v2973
        %v2982 = vadd.f32 %v1005, %v2974
        %v2983 = vadd.f32 %v1009, %v2971
        %v2984 = vadd.f32 %v1013, %v2972
        %v2985 = vadd.f32 %v1017, %v2973
        %v2986 = vadd.f32 %v1021, %v2974
        %v2987 = vadd.f32 %v1025, %v2971
        %v2988 = vadd.f32 %v1029, %v2972
        %v2989 = vadd.f32 %v1033, %v2973
        %v2990 = vadd.f32 %v1037, %v2974
        %v2991 = vadd.f32 %v1041, %v2971
        %v2992 = vadd.f32 %v1045, %v2972
        %v2993 = vadd.f32 %v1049, %v2973
        %v2994 = vadd.f32 %v1053, %v2974
        %v2995 = vadd.f32 %v1057, %v2971
        %v2996 = vadd.f32 %v1061, %v2972
        %v2997 = vadd.f32 %v1065, %v2973
        %v2998 = vadd.f32 %v1069, %v2974
        %v2999 = vadd.f32 %v1073, %v2971
        %v3000 = vadd.f32 %v1077, %v2972
        %v3001 = vadd.f32 %v1081, %v2973
        %v3002 = vadd.f32 %v1085, %v2974
        %v3003 = vadd.f32 %v1089, %v2971
        %v3004 = vadd.f32 %v1093, %v2972
        %v3005 = vadd.f32 %v1097, %v2973
        %v3006 = vadd.f32 %v1101, %v2974
        %v3007 = vmax.f32 %v2975, 0.0
        %v3008 = vmax.f32 %v2976, 0.0
        %v3009 = vmax.f32 %v2977, 0.0
        %v3010 = vmax.f32 %v2978, 0.0
        %v3011 = vmax.f32 %v2979, 0.0
        %v3012 = vmax.f32 %v2980, 0.0
        %v3013 = vmax.f32 %v2981, 0.0
        %v3014 = vmax.f32 %v2982, 0.0
        %v3015 = vmax.f32 %v2983, 0.0
        %v3016 = vmax.f32 %v2984, 0.0
        %v3017 = vmax.f32 %v2985, 0.0
        %v3018 = vmax.f32 %v2986, 0.0
        %v3019 = vmax.f32 %v2987, 0.0
        %v3020 = vmax.f32 %v2988, 0.0
        %v3021 = vmax.f32 %v2989, 0.0
        %v3022 = vmax.f32 %v2990, 0.0
        %v3023 = vmax.f32 %v2991, 0.0
        %v3024 = vmax.f32 %v2992, 0.0
        %v3025 = vmax.f32 %v2993, 0.0
        %v3026 = vmax.f32 %v2994, 0.0
        %v3027 = vmax.f32 %v2995, 0.0
        %v3028 = vmax.f32 %v2996, 0.0
        %v3029 = vmax.f32 %v2997, 0.0
        %v3030 = vmax.f32 %v2998, 0.0
        %v3031 = vmax.f32 %v2999, 0.0
        %v3032 = vmax.f32 %v3000, 0.0
        %v3033 = vmax.f32 %v3001, 0.0
        %v3034 = vmax.f32 %v3002, 0.0
        %v3035 = vmax.f32 %v3003, 0.0
        %v3036 = vmax.f32 %v3004, 0.0
        %v3037 = vmax.f32 %v3005, 0.0
        %v3038 = vmax.f32 %v3006, 0.0
        %v3039 = vmul.f32 %v3007, %v1202
        %v3040 = vmul.f32 %v3008, %v1206
        %v3041 = vmul.f32 %v3009, %v1210
        %v3042 = vmul.f32 %v3010, %v1214
        %v3043 = vmul.f32 %v3011, %v1202
        %v3044 = vmul.f32 %v3012, %v1206
        %v3045 = vmul.f32 %v3013, %v1210
        %v3046 = vmul.f32 %v3014, %v1214
        %v3047 = vmul.f32 %v3015, %v1202
        %v3048 = vmul.f32 %v3016, %v1206
        %v3049 = vmul.f32 %v3017, %v1210
        %v3050 = vmul.f32 %v3018, %v1214
        %v3051 = vmul.f32 %v3019, %v1202
        %v3052 = vmul.f32 %v3020, %v1206
        %v3053 = vmul.f32 %v3021, %v1210
        %v3054 = vmul.f32 %v3022, %v1214
        %v3055 = vmul.f32 %v3023, %v1202
        %v3056 = vmul.f32 %v3024, %v1206
        %v3057 = vmul.f32 %v3025, %v1210
        %v3058 = vmul.f32 %v3026, %v1214
        %v3059 = vmul.f32 %v3027, %v1202
        %v3060 = vmul.f32 %v3028, %v1206
        %v3061 = vmul.f32 %v3029, %v1210
        %v3062 = vmul.f32 %v3030, %v1214
        %v3063 = vmul.f32 %v3031, %v1202
        %v3064 = vmul.f32 %v3032, %v1206
        %v3065 = vmul.f32 %v3033, %v1210
        %v3066 = vmul.f32 %v3034, %v1214
        %v3067 = vmul.f32 %v3035, %v1202
        %v3068 = vmul.f32 %v3036, %v1206
        %v3069 = vmul.f32 %v3037, %v1210
        %v3070 = vmul.f32 %v3038, %v1214
        %v3071 = vadd.f32 %v3039, %v3040
        %v3072 = vadd.f32 %v3071, %v3041
        %v3073 = vadd.f32 %v3072, %v3042
        %3074 = vadd.xlane.f32.xlu0 %v3073
        %v3075 = vpop.xlane.xlu0 %3074
        %v3076 = vadd.f32 %v3043, %v3044
        %v3077 = vadd.f32 %v3076, %v3045
        %v3078 = vadd.f32 %v3077, %v3046
        %3079 = vadd.xlane.f32.xlu0 %v3078
        %v3080 = vpop.xlane.xlu0 %3079
        %v3081 = vadd.f32 %v3047, %v3048
        %v3082 = vadd.f32 %v3081, %v3049
        %v3083 = vadd.f32 %v3082, %v3050
        %3084 = vadd.xlane.f32.xlu0 %v3083
        %v3085 = vpop.xlane.xlu0 %3084
        %v3086 = vadd.f32 %v3051, %v3052
        %v3087 = vadd.f32 %v3086, %v3053
        %v3088 = vadd.f32 %v3087, %v3054
        %3089 = vadd.xlane.f32.xlu0 %v3088
        %v3090 = vpop.xlane.xlu0 %3089
        %v3091 = vadd.f32 %v3055, %v3056
        %v3092 = vadd.f32 %v3091, %v3057
        %v3093 = vadd.f32 %v3092, %v3058
        %3094 = vadd.xlane.f32.xlu0 %v3093
        %v3095 = vpop.xlane.xlu0 %3094
        %v3096 = vadd.f32 %v3059, %v3060
        %v3097 = vadd.f32 %v3096, %v3061
        %v3098 = vadd.f32 %v3097, %v3062
        %3099 = vadd.xlane.f32.xlu0 %v3098
        %v3100 = vpop.xlane.xlu0 %3099
        %v3101 = vadd.f32 %v3063, %v3064
        %v3102 = vadd.f32 %v3101, %v3065
        %v3103 = vadd.f32 %v3102, %v3066
        %3104 = vadd.xlane.f32.xlu0 %v3103
        %v3105 = vpop.xlane.xlu0 %3104
        %v3106 = vadd.f32 %v3067, %v3068
        %v3107 = vadd.f32 %v3106, %v3069
        %v3108 = vadd.f32 %v3107, %v3070
        %3109 = vadd.xlane.f32.xlu0 %v3108
        %v3110 = vpop.xlane.xlu0 %3109
        %v3111 = vld [vmem:[%s342 + $0x1c0] sm:$0xff]
        %v3112 = vld [vmem:[%s342 + $0x1c8] sm:$0xff]
        %v3113 = vld [vmem:[%s342 + $0x1d0] sm:$0xff]
        %v3114 = vld [vmem:[%s342 + $0x1d8] sm:$0xff]
        %v3115 = vadd.f32 %v977, %v3111
        %v3116 = vadd.f32 %v981, %v3112
        %v3117 = vadd.f32 %v985, %v3113
        %v3118 = vadd.f32 %v989, %v3114
        %v3119 = vadd.f32 %v993, %v3111
        %v3120 = vadd.f32 %v997, %v3112
        %v3121 = vadd.f32 %v1001, %v3113
        %v3122 = vadd.f32 %v1005, %v3114
        %v3123 = vadd.f32 %v1009, %v3111
        %v3124 = vadd.f32 %v1013, %v3112
        %v3125 = vadd.f32 %v1017, %v3113
        %v3126 = vadd.f32 %v1021, %v3114
        %v3127 = vadd.f32 %v1025, %v3111
        %v3128 = vadd.f32 %v1029, %v3112
        %v3129 = vadd.f32 %v1033, %v3113
        %v3130 = vadd.f32 %v1037, %v3114
        %v3131 = vadd.f32 %v1041, %v3111
        %v3132 = vadd.f32 %v1045, %v3112
        %v3133 = vadd.f32 %v1049, %v3113
        %v3134 = vadd.f32 %v1053, %v3114
        %v3135 = vadd.f32 %v1057, %v3111
        %v3136 = vadd.f32 %v1061, %v3112
        %v3137 = vadd.f32 %v1065, %v3113
        %v3138 = vadd.f32 %v1069, %v3114
        %v3139 = vadd.f32 %v1073, %v3111
        %v3140 = vadd.f32 %v1077, %v3112
        %v3141 = vadd.f32 %v1081, %v3113
        %v3142 = vadd.f32 %v1085, %v3114
        %v3143 = vadd.f32 %v1089, %v3111
        %v3144 = vadd.f32 %v1093, %v3112
        %v3145 = vadd.f32 %v1097, %v3113
        %v3146 = vadd.f32 %v1101, %v3114
        %v3147 = vmax.f32 %v3115, 0.0
        %v3148 = vmax.f32 %v3116, 0.0
        %v3149 = vmax.f32 %v3117, 0.0
        %v3150 = vmax.f32 %v3118, 0.0
        %v3151 = vmax.f32 %v3119, 0.0
        %v3152 = vmax.f32 %v3120, 0.0
        %v3153 = vmax.f32 %v3121, 0.0
        %v3154 = vmax.f32 %v3122, 0.0
        %v3155 = vmax.f32 %v3123, 0.0
        %v3156 = vmax.f32 %v3124, 0.0
        %v3157 = vmax.f32 %v3125, 0.0
        %v3158 = vmax.f32 %v3126, 0.0
        %v3159 = vmax.f32 %v3127, 0.0
        %v3160 = vmax.f32 %v3128, 0.0
        %v3161 = vmax.f32 %v3129, 0.0
        %v3162 = vmax.f32 %v3130, 0.0
        %v3163 = vmax.f32 %v3131, 0.0
        %v3164 = vmax.f32 %v3132, 0.0
        %v3165 = vmax.f32 %v3133, 0.0
        %v3166 = vmax.f32 %v3134, 0.0
        %v3167 = vmax.f32 %v3135, 0.0
        %v3168 = vmax.f32 %v3136, 0.0
        %v3169 = vmax.f32 %v3137, 0.0
        %v3170 = vmax.f32 %v3138, 0.0
        %v3171 = vmax.f32 %v3139, 0.0
        %v3172 = vmax.f32 %v3140, 0.0
        %v3173 = vmax.f32 %v3141, 0.0
        %v3174 = vmax.f32 %v3142, 0.0
        %v3175 = vmax.f32 %v3143, 0.0
        %v3176 = vmax.f32 %v3144, 0.0
        %v3177 = vmax.f32 %v3145, 0.0
        %v3178 = vmax.f32 %v3146, 0.0
        %v3179 = vmul.f32 %v3147, %v1202
        %v3180 = vmul.f32 %v3148, %v1206
        %v3181 = vmul.f32 %v3149, %v1210
        %v3182 = vmul.f32 %v3150, %v1214
        %v3183 = vmul.f32 %v3151, %v1202
        %v3184 = vmul.f32 %v3152, %v1206
        %v3185 = vmul.f32 %v3153, %v1210
        %v3186 = vmul.f32 %v3154, %v1214
        %v3187 = vmul.f32 %v3155, %v1202
        %v3188 = vmul.f32 %v3156, %v1206
        %v3189 = vmul.f32 %v3157, %v1210
        %v3190 = vmul.f32 %v3158, %v1214
        %v3191 = vmul.f32 %v3159, %v1202
        %v3192 = vmul.f32 %v3160, %v1206
        %v3193 = vmul.f32 %v3161, %v1210
        %v3194 = vmul.f32 %v3162, %v1214
        %v3195 = vmul.f32 %v3163, %v1202
        %v3196 = vmul.f32 %v3164, %v1206
        %v3197 = vmul.f32 %v3165, %v1210
        %v3198 = vmul.f32 %v3166, %v1214
        %v3199 = vmul.f32 %v3167, %v1202
        %v3200 = vmul.f32 %v3168, %v1206
        %v3201 = vmul.f32 %v3169, %v1210
        %v3202 = vmul.f32 %v3170, %v1214
        %v3203 = vmul.f32 %v3171, %v1202
        %v3204 = vmul.f32 %v3172, %v1206
        %v3205 = vmul.f32 %v3173, %v1210
        %v3206 = vmul.f32 %v3174, %v1214
        %v3207 = vmul.f32 %v3175, %v1202
        %v3208 = vmul.f32 %v3176, %v1206
        %v3209 = vmul.f32 %v3177, %v1210
        %v3210 = vmul.f32 %v3178, %v1214
        %v3211 = vadd.f32 %v3179, %v3180
        %v3212 = vadd.f32 %v3211, %v3181
        %v3213 = vadd.f32 %v3212, %v3182
        %3214 = vadd.xlane.f32.xlu0 %v3213
        %v3215 = vpop.xlane.xlu0 %3214
        %v3216 = vadd.f32 %v3183, %v3184
        %v3217 = vadd.f32 %v3216, %v3185
        %v3218 = vadd.f32 %v3217, %v3186
        %3219 = vadd.xlane.f32.xlu0 %v3218
        %v3220 = vpop.xlane.xlu0 %3219
        %v3221 = vadd.f32 %v3187, %v3188
        %v3222 = vadd.f32 %v3221, %v3189
        %v3223 = vadd.f32 %v3222, %v3190
        %3224 = vadd.xlane.f32.xlu0 %v3223
        %v3225 = vpop.xlane.xlu0 %3224
        %v3226 = vadd.f32 %v3191, %v3192
        %v3227 = vadd.f32 %v3226, %v3193
        %v3228 = vadd.f32 %v3227, %v3194
        %3229 = vadd.xlane.f32.xlu0 %v3228
        %v3230 = vpop.xlane.xlu0 %3229
        %v3231 = vadd.f32 %v3195, %v3196
        %v3232 = vadd.f32 %v3231, %v3197
        %v3233 = vadd.f32 %v3232, %v3198
        %3234 = vadd.xlane.f32.xlu0 %v3233
        %v3235 = vpop.xlane.xlu0 %3234
        %v3236 = vadd.f32 %v3199, %v3200
        %v3237 = vadd.f32 %v3236, %v3201
        %v3238 = vadd.f32 %v3237, %v3202
        %3239 = vadd.xlane.f32.xlu0 %v3238
        %v3240 = vpop.xlane.xlu0 %3239
        %v3241 = vadd.f32 %v3203, %v3204
        %v3242 = vadd.f32 %v3241, %v3205
        %v3243 = vadd.f32 %v3242, %v3206
        %3244 = vadd.xlane.f32.xlu0 %v3243
        %v3245 = vpop.xlane.xlu0 %3244
        %v3246 = vadd.f32 %v3207, %v3208
        %v3247 = vadd.f32 %v3246, %v3209
        %v3248 = vadd.f32 %v3247, %v3210
        %3249 = vadd.xlane.f32.xlu0 %v3248
        %v3250 = vpop.xlane.xlu0 %3249
        %v3251 = vld [vmem:[%s342 + $0x1e0] sm:$0xff]
        %v3252 = vld [vmem:[%s342 + $0x1e8] sm:$0xff]
        %v3253 = vld [vmem:[%s342 + $0x1f0] sm:$0xff]
        %v3254 = vld [vmem:[%s342 + $0x1f8] sm:$0xff]
        %v3255 = vadd.f32 %v977, %v3251
        %v3256 = vadd.f32 %v981, %v3252
        %v3257 = vadd.f32 %v985, %v3253
        %v3258 = vadd.f32 %v989, %v3254
        %v3259 = vadd.f32 %v993, %v3251
        %v3260 = vadd.f32 %v997, %v3252
        %v3261 = vadd.f32 %v1001, %v3253
        %v3262 = vadd.f32 %v1005, %v3254
        %v3263 = vadd.f32 %v1009, %v3251
        %v3264 = vadd.f32 %v1013, %v3252
        %v3265 = vadd.f32 %v1017, %v3253
        %v3266 = vadd.f32 %v1021, %v3254
        %v3267 = vadd.f32 %v1025, %v3251
        %v3268 = vadd.f32 %v1029, %v3252
        %v3269 = vadd.f32 %v1033, %v3253
        %v3270 = vadd.f32 %v1037, %v3254
        %v3271 = vadd.f32 %v1041, %v3251
        %v3272 = vadd.f32 %v1045, %v3252
        %v3273 = vadd.f32 %v1049, %v3253
        %v3274 = vadd.f32 %v1053, %v3254
        %v3275 = vadd.f32 %v1057, %v3251
        %v3276 = vadd.f32 %v1061, %v3252
        %v3277 = vadd.f32 %v1065, %v3253
        %v3278 = vadd.f32 %v1069, %v3254
        %v3279 = vadd.f32 %v1073, %v3251
        %v3280 = vadd.f32 %v1077, %v3252
        %v3281 = vadd.f32 %v1081, %v3253
        %v3282 = vadd.f32 %v1085, %v3254
        %v3283 = vadd.f32 %v1089, %v3251
        %v3284 = vadd.f32 %v1093, %v3252
        %v3285 = vadd.f32 %v1097, %v3253
        %v3286 = vadd.f32 %v1101, %v3254
        %v3287 = vmax.f32 %v3255, 0.0
        %v3288 = vmax.f32 %v3256, 0.0
        %v3289 = vmax.f32 %v3257, 0.0
        %v3290 = vmax.f32 %v3258, 0.0
        %v3291 = vmax.f32 %v3259, 0.0
        %v3292 = vmax.f32 %v3260, 0.0
        %v3293 = vmax.f32 %v3261, 0.0
        %v3294 = vmax.f32 %v3262, 0.0
        %v3295 = vmax.f32 %v3263, 0.0
        %v3296 = vmax.f32 %v3264, 0.0
        %v3297 = vmax.f32 %v3265, 0.0
        %v3298 = vmax.f32 %v3266, 0.0
        %v3299 = vmax.f32 %v3267, 0.0
        %v3300 = vmax.f32 %v3268, 0.0
        %v3301 = vmax.f32 %v3269, 0.0
        %v3302 = vmax.f32 %v3270, 0.0
        %v3303 = vmax.f32 %v3271, 0.0
        %v3304 = vmax.f32 %v3272, 0.0
        %v3305 = vmax.f32 %v3273, 0.0
        %v3306 = vmax.f32 %v3274, 0.0
        %v3307 = vmax.f32 %v3275, 0.0
        %v3308 = vmax.f32 %v3276, 0.0
        %v3309 = vmax.f32 %v3277, 0.0
        %v3310 = vmax.f32 %v3278, 0.0
        %v3311 = vmax.f32 %v3279, 0.0
        %v3312 = vmax.f32 %v3280, 0.0
        %v3313 = vmax.f32 %v3281, 0.0
        %v3314 = vmax.f32 %v3282, 0.0
        %v3315 = vmax.f32 %v3283, 0.0
        %v3316 = vmax.f32 %v3284, 0.0
        %v3317 = vmax.f32 %v3285, 0.0
        %v3318 = vmax.f32 %v3286, 0.0
        %v3319 = vmul.f32 %v3287, %v1202
        %v3320 = vmul.f32 %v3288, %v1206
        %v3321 = vmul.f32 %v3289, %v1210
        %v3322 = vmul.f32 %v3290, %v1214
        %v3323 = vmul.f32 %v3291, %v1202
        %v3324 = vmul.f32 %v3292, %v1206
        %v3325 = vmul.f32 %v3293, %v1210
        %v3326 = vmul.f32 %v3294, %v1214
        %v3327 = vmul.f32 %v3295, %v1202
        %v3328 = vmul.f32 %v3296, %v1206
        %v3329 = vmul.f32 %v3297, %v1210
        %v3330 = vmul.f32 %v3298, %v1214
        %v3331 = vmul.f32 %v3299, %v1202
        %v3332 = vmul.f32 %v3300, %v1206
        %v3333 = vmul.f32 %v3301, %v1210
        %v3334 = vmul.f32 %v3302, %v1214
        %v3335 = vmul.f32 %v3303, %v1202
        %v3336 = vmul.f32 %v3304, %v1206
        %v3337 = vmul.f32 %v3305, %v1210
        %v3338 = vmul.f32 %v3306, %v1214
        %v3339 = vmul.f32 %v3307, %v1202
        %v3340 = vmul.f32 %v3308, %v1206
        %v3341 = vmul.f32 %v3309, %v1210
        %v3342 = vmul.f32 %v3310, %v1214
        %v3343 = vmul.f32 %v3311, %v1202
        %v3344 = vmul.f32 %v3312, %v1206
        %v3345 = vmul.f32 %v3313, %v1210
        %v3346 = vmul.f32 %v3314, %v1214
        %v3347 = vmul.f32 %v3315, %v1202
        %v3348 = vmul.f32 %v3316, %v1206
        %v3349 = vmul.f32 %v3317, %v1210
        %v3350 = vmul.f32 %v3318, %v1214
        %v3351 = vadd.f32 %v3319, %v3320
        %v3352 = vadd.f32 %v3351, %v3321
        %v3353 = vadd.f32 %v3352, %v3322
        %3354 = vadd.xlane.f32.xlu0 %v3353
        %v3355 = vpop.xlane.xlu0 %3354
        %v3356 = vadd.f32 %v3323, %v3324
        %v3357 = vadd.f32 %v3356, %v3325
        %v3358 = vadd.f32 %v3357, %v3326
        %3359 = vadd.xlane.f32.xlu0 %v3358
        %v3360 = vpop.xlane.xlu0 %3359
        %v3361 = vadd.f32 %v3327, %v3328
        %v3362 = vadd.f32 %v3361, %v3329
        %v3363 = vadd.f32 %v3362, %v3330
        %3364 = vadd.xlane.f32.xlu0 %v3363
        %v3365 = vpop.xlane.xlu0 %3364
        %v3366 = vadd.f32 %v3331, %v3332
        %v3367 = vadd.f32 %v3366, %v3333
        %v3368 = vadd.f32 %v3367, %v3334
        %3369 = vadd.xlane.f32.xlu0 %v3368
        %v3370 = vpop.xlane.xlu0 %3369
        %v3371 = vadd.f32 %v3335, %v3336
        %v3372 = vadd.f32 %v3371, %v3337
        %v3373 = vadd.f32 %v3372, %v3338
        %3374 = vadd.xlane.f32.xlu0 %v3373
        %v3375 = vpop.xlane.xlu0 %3374
        %v3376 = vadd.f32 %v3339, %v3340
        %v3377 = vadd.f32 %v3376, %v3341
        %v3378 = vadd.f32 %v3377, %v3342
        %3379 = vadd.xlane.f32.xlu0 %v3378
        %v3380 = vpop.xlane.xlu0 %3379
        %v3381 = vadd.f32 %v3343, %v3344
        %v3382 = vadd.f32 %v3381, %v3345
        %v3383 = vadd.f32 %v3382, %v3346
        %3384 = vadd.xlane.f32.xlu0 %v3383
        %v3385 = vpop.xlane.xlu0 %3384
        %v3386 = vadd.f32 %v3347, %v3348
        %v3387 = vadd.f32 %v3386, %v3349
        %v3388 = vadd.f32 %v3387, %v3350
        %3389 = vadd.xlane.f32.xlu0 %v3388
        %v3390 = vpop.xlane.xlu0 %3389
        %v3399 = vlaneseq
        %v3400 = vand.u32 %v3399, 127
        %v3401 = vlaneseq
        %v3402 = vshrl.u32 %v3401, 7
        %v3403 = vsub.s32 %v3400, %v3402
        %v3404 = vrot.slane %v1255, %v3403
        %v3405 = vlaneseq
        %v3406 = vshrl.u32 %v3405, 7
        %v3407 = vsub.s32 %v3400, %v3406
        %v3408 = vrot.slane %v1260, %v3407
        %v3409 = vlaneseq
        %v3410 = vshrl.u32 %v3409, 7
        %v3411 = vsub.s32 %v3400, %v3410
        %v3412 = vrot.slane %v1265, %v3411
        %v3413 = vlaneseq
        %v3414 = vshrl.u32 %v3413, 7
        %v3415 = vsub.s32 %v3400, %v3414
        %v3416 = vrot.slane %v1270, %v3415
        %v3417 = vlaneseq
        %v3418 = vshrl.u32 %v3417, 7
        %v3419 = vsub.s32 %v3400, %v3418
        %v3420 = vrot.slane %v1275, %v3419
        %v3421 = vlaneseq
        %v3422 = vshrl.u32 %v3421, 7
        %v3423 = vsub.s32 %v3400, %v3422
        %v3424 = vrot.slane %v1280, %v3423
        %v3425 = vlaneseq
        %v3426 = vshrl.u32 %v3425, 7
        %v3427 = vsub.s32 %v3400, %v3426
        %v3428 = vrot.slane %v1285, %v3427
        %v3429 = vlaneseq
        %v3430 = vshrl.u32 %v3429, 7
        %v3431 = vsub.s32 %v3400, %v3430
        %v3432 = vrot.slane %v1290, %v3431
        %vm3433 = vcmask 1041409
        %v3434 = vsel %vm3433, %v3408, %v3404
        %vm3435 = vcmask 1042434
        %v3436 = vsel %vm3435, %v3412, %v3434
        %vm3437 = vcmask 1043459
        %v3438 = vsel %vm3437, %v3416, %v3436
        %vm3439 = vcmask 1044484
        %v3440 = vsel %vm3439, %v3420, %v3438
        %vm3441 = vcmask 1045509
        %v3442 = vsel %vm3441, %v3424, %v3440
        %vm3443 = vcmask 1046534
        %v3444 = vsel %vm3443, %v3428, %v3442
        %vm3445 = vcmask 1047559
        %v3446 = vsel %vm3445, %v3432, %v3444
        %v3456 = vadd.s32 %v3400, 4294967288
        %v3457 = vlaneseq
        %v3458 = vshrl.u32 %v3457, 7
        %v3459 = vsub.s32 %v3456, %v3458
        %v3460 = vrot.slane %v1395, %v3459
        %v3461 = vlaneseq
        %v3462 = vshrl.u32 %v3461, 7
        %v3463 = vsub.s32 %v3456, %v3462
        %v3464 = vrot.slane %v1400, %v3463
        %v3465 = vlaneseq
        %v3466 = vshrl.u32 %v3465, 7
        %v3467 = vsub.s32 %v3456, %v3466
        %v3468 = vrot.slane %v1405, %v3467
        %v3469 = vlaneseq
        %v3470 = vshrl.u32 %v3469, 7
        %v3471 = vsub.s32 %v3456, %v3470
        %v3472 = vrot.slane %v1410, %v3471
        %v3473 = vlaneseq
        %v3474 = vshrl.u32 %v3473, 7
        %v3475 = vsub.s32 %v3456, %v3474
        %v3476 = vrot.slane %v1415, %v3475
        %v3477 = vlaneseq
        %v3478 = vshrl.u32 %v3477, 7
        %v3479 = vsub.s32 %v3456, %v3478
        %v3480 = vrot.slane %v1420, %v3479
        %v3481 = vlaneseq
        %v3482 = vshrl.u32 %v3481, 7
        %v3483 = vsub.s32 %v3456, %v3482
        %v3484 = vrot.slane %v1425, %v3483
        %v3485 = vlaneseq
        %v3486 = vshrl.u32 %v3485, 7
        %v3487 = vsub.s32 %v3456, %v3486
        %v3488 = vrot.slane %v1430, %v3487
        %v3489 = vsel %vm3433, %v3464, %v3460
        %v3490 = vsel %vm3435, %v3468, %v3489
        %v3491 = vsel %vm3437, %v3472, %v3490
        %v3492 = vsel %vm3439, %v3476, %v3491
        %v3493 = vsel %vm3441, %v3480, %v3492
        %v3494 = vsel %vm3443, %v3484, %v3493
        %v3495 = vsel %vm3445, %v3488, %v3494
        %v3505 = vadd.s32 %v3400, 4294967280
        %v3506 = vlaneseq
        %v3507 = vshrl.u32 %v3506, 7
        %v3508 = vsub.s32 %v3505, %v3507
        %v3509 = vrot.slane %v1535, %v3508
        %v3510 = vlaneseq
        %v3511 = vshrl.u32 %v3510, 7
        %v3512 = vsub.s32 %v3505, %v3511
        %v3513 = vrot.slane %v1540, %v3512
        %v3514 = vlaneseq
        %v3515 = vshrl.u32 %v3514, 7
        %v3516 = vsub.s32 %v3505, %v3515
        %v3517 = vrot.slane %v1545, %v3516
        %v3518 = vlaneseq
        %v3519 = vshrl.u32 %v3518, 7
        %v3520 = vsub.s32 %v3505, %v3519
        %v3521 = vrot.slane %v1550, %v3520
        %v3522 = vlaneseq
        %v3523 = vshrl.u32 %v3522, 7
        %v3524 = vsub.s32 %v3505, %v3523
        %v3525 = vrot.slane %v1555, %v3524
        %v3526 = vlaneseq
        %v3527 = vshrl.u32 %v3526, 7
        %v3528 = vsub.s32 %v3505, %v3527
        %v3529 = vrot.slane %v1560, %v3528
        %v3530 = vlaneseq
        %v3531 = vshrl.u32 %v3530, 7
        %v3532 = vsub.s32 %v3505, %v3531
        %v3533 = vrot.slane %v1565, %v3532
        %v3534 = vlaneseq
        %v3535 = vshrl.u32 %v3534, 7
        %v3536 = vsub.s32 %v3505, %v3535
        %v3537 = vrot.slane %v1570, %v3536
        %v3538 = vsel %vm3433, %v3513, %v3509
        %v3539 = vsel %vm3435, %v3517, %v3538
        %v3540 = vsel %vm3437, %v3521, %v3539
        %v3541 = vsel %vm3439, %v3525, %v3540
        %v3542 = vsel %vm3441, %v3529, %v3541
        %v3543 = vsel %vm3443, %v3533, %v3542
        %v3544 = vsel %vm3445, %v3537, %v3543
        %v3554 = vadd.s32 %v3400, 4294967272
        %v3555 = vlaneseq
        %v3556 = vshrl.u32 %v3555, 7
        %v3557 = vsub.s32 %v3554, %v3556
        %v3558 = vrot.slane %v1675, %v3557
        %v3559 = vlaneseq
        %v3560 = vshrl.u32 %v3559, 7
        %v3561 = vsub.s32 %v3554, %v3560
        %v3562 = vrot.slane %v1680, %v3561
        %v3563 = vlaneseq
        %v3564 = vshrl.u32 %v3563, 7
        %v3565 = vsub.s32 %v3554, %v3564
        %v3566 = vrot.slane %v1685, %v3565
        %v3567 = vlaneseq
        %v3568 = vshrl.u32 %v3567, 7
        %v3569 = vsub.s32 %v3554, %v3568
        %v3570 = vrot.slane %v1690, %v3569
        %v3571 = vlaneseq
        %v3572 = vshrl.u32 %v3571, 7
        %v3573 = vsub.s32 %v3554, %v3572
        %v3574 = vrot.slane %v1695, %v3573
        %v3575 = vlaneseq
        %v3576 = vshrl.u32 %v3575, 7
        %v3577 = vsub.s32 %v3554, %v3576
        %v3578 = vrot.slane %v1700, %v3577
        %v3579 = vlaneseq
        %v3580 = vshrl.u32 %v3579, 7
        %v3581 = vsub.s32 %v3554, %v3580
        %v3582 = vrot.slane %v1705, %v3581
        %v3583 = vlaneseq
        %v3584 = vshrl.u32 %v3583, 7
        %v3585 = vsub.s32 %v3554, %v3584
        %v3586 = vrot.slane %v1710, %v3585
        %v3587 = vsel %vm3433, %v3562, %v3558
        %v3588 = vsel %vm3435, %v3566, %v3587
        %v3589 = vsel %vm3437, %v3570, %v3588
        %v3590 = vsel %vm3439, %v3574, %v3589
        %v3591 = vsel %vm3441, %v3578, %v3590
        %v3592 = vsel %vm3443, %v3582, %v3591
        %v3593 = vsel %vm3445, %v3586, %v3592
        %v3603 = vadd.s32 %v3400, 4294967264
        %v3604 = vlaneseq
        %v3605 = vshrl.u32 %v3604, 7
        %v3606 = vsub.s32 %v3603, %v3605
        %v3607 = vrot.slane %v1815, %v3606
        %v3608 = vlaneseq
        %v3609 = vshrl.u32 %v3608, 7
        %v3610 = vsub.s32 %v3603, %v3609
        %v3611 = vrot.slane %v1820, %v3610
        %v3612 = vlaneseq
        %v3613 = vshrl.u32 %v3612, 7
        %v3614 = vsub.s32 %v3603, %v3613
        %v3615 = vrot.slane %v1825, %v3614
        %v3616 = vlaneseq
        %v3617 = vshrl.u32 %v3616, 7
        %v3618 = vsub.s32 %v3603, %v3617
        %v3619 = vrot.slane %v1830, %v3618
        %v3620 = vlaneseq
        %v3621 = vshrl.u32 %v3620, 7
        %v3622 = vsub.s32 %v3603, %v3621
        %v3623 = vrot.slane %v1835, %v3622
        %v3624 = vlaneseq
        %v3625 = vshrl.u32 %v3624, 7
        %v3626 = vsub.s32 %v3603, %v3625
        %v3627 = vrot.slane %v1840, %v3626
        %v3628 = vlaneseq
        %v3629 = vshrl.u32 %v3628, 7
        %v3630 = vsub.s32 %v3603, %v3629
        %v3631 = vrot.slane %v1845, %v3630
        %v3632 = vlaneseq
        %v3633 = vshrl.u32 %v3632, 7
        %v3634 = vsub.s32 %v3603, %v3633
        %v3635 = vrot.slane %v1850, %v3634
        %v3636 = vsel %vm3433, %v3611, %v3607
        %v3637 = vsel %vm3435, %v3615, %v3636
        %v3638 = vsel %vm3437, %v3619, %v3637
        %v3639 = vsel %vm3439, %v3623, %v3638
        %v3640 = vsel %vm3441, %v3627, %v3639
        %v3641 = vsel %vm3443, %v3631, %v3640
        %v3642 = vsel %vm3445, %v3635, %v3641
        %v3652 = vadd.s32 %v3400, 4294967256
        %v3653 = vlaneseq
        %v3654 = vshrl.u32 %v3653, 7
        %v3655 = vsub.s32 %v3652, %v3654
        %v3656 = vrot.slane %v1955, %v3655
        %v3657 = vlaneseq
        %v3658 = vshrl.u32 %v3657, 7
        %v3659 = vsub.s32 %v3652, %v3658
        %v3660 = vrot.slane %v1960, %v3659
        %v3661 = vlaneseq
        %v3662 = vshrl.u32 %v3661, 7
        %v3663 = vsub.s32 %v3652, %v3662
        %v3664 = vrot.slane %v1965, %v3663
        %v3665 = vlaneseq
        %v3666 = vshrl.u32 %v3665, 7
        %v3667 = vsub.s32 %v3652, %v3666
        %v3668 = vrot.slane %v1970, %v3667
        %v3669 = vlaneseq
        %v3670 = vshrl.u32 %v3669, 7
        %v3671 = vsub.s32 %v3652, %v3670
        %v3672 = vrot.slane %v1975, %v3671
        %v3673 = vlaneseq
        %v3674 = vshrl.u32 %v3673, 7
        %v3675 = vsub.s32 %v3652, %v3674
        %v3676 = vrot.slane %v1980, %v3675
        %v3677 = vlaneseq
        %v3678 = vshrl.u32 %v3677, 7
        %v3679 = vsub.s32 %v3652, %v3678
        %v3680 = vrot.slane %v1985, %v3679
        %v3681 = vlaneseq
        %v3682 = vshrl.u32 %v3681, 7
        %v3683 = vsub.s32 %v3652, %v3682
        %v3684 = vrot.slane %v1990, %v3683
        %v3685 = vsel %vm3433, %v3660, %v3656
        %v3686 = vsel %vm3435, %v3664, %v3685
        %v3687 = vsel %vm3437, %v3668, %v3686
        %v3688 = vsel %vm3439, %v3672, %v3687
        %v3689 = vsel %vm3441, %v3676, %v3688
        %v3690 = vsel %vm3443, %v3680, %v3689
        %v3691 = vsel %vm3445, %v3684, %v3690
        %v3701 = vadd.s32 %v3400, 4294967248
        %v3702 = vlaneseq
        %v3703 = vshrl.u32 %v3702, 7
        %v3704 = vsub.s32 %v3701, %v3703
        %v3705 = vrot.slane %v2095, %v3704
        %v3706 = vlaneseq
        %v3707 = vshrl.u32 %v3706, 7
        %v3708 = vsub.s32 %v3701, %v3707
        %v3709 = vrot.slane %v2100, %v3708
        %v3710 = vlaneseq
        %v3711 = vshrl.u32 %v3710, 7
        %v3712 = vsub.s32 %v3701, %v3711
        %v3713 = vrot.slane %v2105, %v3712
        %v3714 = vlaneseq
        %v3715 = vshrl.u32 %v3714, 7
        %v3716 = vsub.s32 %v3701, %v3715
        %v3717 = vrot.slane %v2110, %v3716
        %v3718 = vlaneseq
        %v3719 = vshrl.u32 %v3718, 7
        %v3720 = vsub.s32 %v3701, %v3719
        %v3721 = vrot.slane %v2115, %v3720
        %v3722 = vlaneseq
        %v3723 = vshrl.u32 %v3722, 7
        %v3724 = vsub.s32 %v3701, %v3723
        %v3725 = vrot.slane %v2120, %v3724
        %v3726 = vlaneseq
        %v3727 = vshrl.u32 %v3726, 7
        %v3728 = vsub.s32 %v3701, %v3727
        %v3729 = vrot.slane %v2125, %v3728
        %v3730 = vlaneseq
        %v3731 = vshrl.u32 %v3730, 7
        %v3732 = vsub.s32 %v3701, %v3731
        %v3733 = vrot.slane %v2130, %v3732
        %v3734 = vsel %vm3433, %v3709, %v3705
        %v3735 = vsel %vm3435, %v3713, %v3734
        %v3736 = vsel %vm3437, %v3717, %v3735
        %v3737 = vsel %vm3439, %v3721, %v3736
        %v3738 = vsel %vm3441, %v3725, %v3737
        %v3739 = vsel %vm3443, %v3729, %v3738
        %v3740 = vsel %vm3445, %v3733, %v3739
        %v3750 = vadd.s32 %v3400, 4294967240
        %v3751 = vlaneseq
        %v3752 = vshrl.u32 %v3751, 7
        %v3753 = vsub.s32 %v3750, %v3752
        %v3754 = vrot.slane %v2235, %v3753
        %v3755 = vlaneseq
        %v3756 = vshrl.u32 %v3755, 7
        %v3757 = vsub.s32 %v3750, %v3756
        %v3758 = vrot.slane %v2240, %v3757
        %v3759 = vlaneseq
        %v3760 = vshrl.u32 %v3759, 7
        %v3761 = vsub.s32 %v3750, %v3760
        %v3762 = vrot.slane %v2245, %v3761
        %v3763 = vlaneseq
        %v3764 = vshrl.u32 %v3763, 7
        %v3765 = vsub.s32 %v3750, %v3764
        %v3766 = vrot.slane %v2250, %v3765
        %v3767 = vlaneseq
        %v3768 = vshrl.u32 %v3767, 7
        %v3769 = vsub.s32 %v3750, %v3768
        %v3770 = vrot.slane %v2255, %v3769
        %v3771 = vlaneseq
        %v3772 = vshrl.u32 %v3771, 7
        %v3773 = vsub.s32 %v3750, %v3772
        %v3774 = vrot.slane %v2260, %v3773
        %v3775 = vlaneseq
        %v3776 = vshrl.u32 %v3775, 7
        %v3777 = vsub.s32 %v3750, %v3776
        %v3778 = vrot.slane %v2265, %v3777
        %v3779 = vlaneseq
        %v3780 = vshrl.u32 %v3779, 7
        %v3781 = vsub.s32 %v3750, %v3780
        %v3782 = vrot.slane %v2270, %v3781
        %v3783 = vsel %vm3433, %v3758, %v3754
        %v3784 = vsel %vm3435, %v3762, %v3783
        %v3785 = vsel %vm3437, %v3766, %v3784
        %v3786 = vsel %vm3439, %v3770, %v3785
        %v3787 = vsel %vm3441, %v3774, %v3786
        %v3788 = vsel %vm3443, %v3778, %v3787
        %v3789 = vsel %vm3445, %v3782, %v3788
        %v3799 = vadd.s32 %v3400, 4294967232
        %v3800 = vlaneseq
        %v3801 = vshrl.u32 %v3800, 7
        %v3802 = vsub.s32 %v3799, %v3801
        %v3803 = vrot.slane %v2375, %v3802
        %v3804 = vlaneseq
        %v3805 = vshrl.u32 %v3804, 7
        %v3806 = vsub.s32 %v3799, %v3805
        %v3807 = vrot.slane %v2380, %v3806
        %v3808 = vlaneseq
        %v3809 = vshrl.u32 %v3808, 7
        %v3810 = vsub.s32 %v3799, %v3809
        %v3811 = vrot.slane %v2385, %v3810
        %v3812 = vlaneseq
        %v3813 = vshrl.u32 %v3812, 7
        %v3814 = vsub.s32 %v3799, %v3813
        %v3815 = vrot.slane %v2390, %v3814
        %v3816 = vlaneseq
        %v3817 = vshrl.u32 %v3816, 7
        %v3818 = vsub.s32 %v3799, %v3817
        %v3819 = vrot.slane %v2395, %v3818
        %v3820 = vlaneseq
        %v3821 = vshrl.u32 %v3820, 7
        %v3822 = vsub.s32 %v3799, %v3821
        %v3823 = vrot.slane %v2400, %v3822
        %v3824 = vlaneseq
        %v3825 = vshrl.u32 %v3824, 7
        %v3826 = vsub.s32 %v3799, %v3825
        %v3827 = vrot.slane %v2405, %v3826
        %v3828 = vlaneseq
        %v3829 = vshrl.u32 %v3828, 7
        %v3830 = vsub.s32 %v3799, %v3829
        %v3831 = vrot.slane %v2410, %v3830
        %v3832 = vsel %vm3433, %v3807, %v3803
        %v3833 = vsel %vm3435, %v3811, %v3832
        %v3834 = vsel %vm3437, %v3815, %v3833
        %v3835 = vsel %vm3439, %v3819, %v3834
        %v3836 = vsel %vm3441, %v3823, %v3835
        %v3837 = vsel %vm3443, %v3827, %v3836
        %v3838 = vsel %vm3445, %v3831, %v3837
        %v3848 = vadd.s32 %v3400, 4294967224
        %v3849 = vlaneseq
        %v3850 = vshrl.u32 %v3849, 7
        %v3851 = vsub.s32 %v3848, %v3850
        %v3852 = vrot.slane %v2515, %v3851
        %v3853 = vlaneseq
        %v3854 = vshrl.u32 %v3853, 7
        %v3855 = vsub.s32 %v3848, %v3854
        %v3856 = vrot.slane %v2520, %v3855
        %v3857 = vlaneseq
        %v3858 = vshrl.u32 %v3857, 7
        %v3859 = vsub.s32 %v3848, %v3858
        %v3860 = vrot.slane %v2525, %v3859
        %v3861 = vlaneseq
        %v3862 = vshrl.u32 %v3861, 7
        %v3863 = vsub.s32 %v3848, %v3862
        %v3864 = vrot.slane %v2530, %v3863
        %v3865 = vlaneseq
        %v3866 = vshrl.u32 %v3865, 7
        %v3867 = vsub.s32 %v3848, %v3866
        %v3868 = vrot.slane %v2535, %v3867
        %v3869 = vlaneseq
        %v3870 = vshrl.u32 %v3869, 7
        %v3871 = vsub.s32 %v3848, %v3870
        %v3872 = vrot.slane %v2540, %v3871
        %v3873 = vlaneseq
        %v3874 = vshrl.u32 %v3873, 7
        %v3875 = vsub.s32 %v3848, %v3874
        %v3876 = vrot.slane %v2545, %v3875
        %v3877 = vlaneseq
        %v3878 = vshrl.u32 %v3877, 7
        %v3879 = vsub.s32 %v3848, %v3878
        %v3880 = vrot.slane %v2550, %v3879
        %v3881 = vsel %vm3433, %v3856, %v3852
        %v3882 = vsel %vm3435, %v3860, %v3881
        %v3883 = vsel %vm3437, %v3864, %v3882
        %v3884 = vsel %vm3439, %v3868, %v3883
        %v3885 = vsel %vm3441, %v3872, %v3884
        %v3886 = vsel %vm3443, %v3876, %v3885
        %v3887 = vsel %vm3445, %v3880, %v3886
        %v3897 = vadd.s32 %v3400, 4294967216
        %v3898 = vlaneseq
        %v3899 = vshrl.u32 %v3898, 7
        %v3900 = vsub.s32 %v3897, %v3899
        %v3901 = vrot.slane %v2655, %v3900
        %v3902 = vlaneseq
        %v3903 = vshrl.u32 %v3902, 7
        %v3904 = vsub.s32 %v3897, %v3903
        %v3905 = vrot.slane %v2660, %v3904
        %v3906 = vlaneseq
        %v3907 = vshrl.u32 %v3906, 7
        %v3908 = vsub.s32 %v3897, %v3907
        %v3909 = vrot.slane %v2665, %v3908
        %v3910 = vlaneseq
        %v3911 = vshrl.u32 %v3910, 7
        %v3912 = vsub.s32 %v3897, %v3911
        %v3913 = vrot.slane %v2670, %v3912
        %v3914 = vlaneseq
        %v3915 = vshrl.u32 %v3914, 7
        %v3916 = vsub.s32 %v3897, %v3915
        %v3917 = vrot.slane %v2675, %v3916
        %v3918 = vlaneseq
        %v3919 = vshrl.u32 %v3918, 7
        %v3920 = vsub.s32 %v3897, %v3919
        %v3921 = vrot.slane %v2680, %v3920
        %v3922 = vlaneseq
        %v3923 = vshrl.u32 %v3922, 7
        %v3924 = vsub.s32 %v3897, %v3923
        %v3925 = vrot.slane %v2685, %v3924
        %v3926 = vlaneseq
        %v3927 = vshrl.u32 %v3926, 7
        %v3928 = vsub.s32 %v3897, %v3927
        %v3929 = vrot.slane %v2690, %v3928
        %v3930 = vsel %vm3433, %v3905, %v3901
        %v3931 = vsel %vm3435, %v3909, %v3930
        %v3932 = vsel %vm3437, %v3913, %v3931
        %v3933 = vsel %vm3439, %v3917, %v3932
        %v3934 = vsel %vm3441, %v3921, %v3933
        %v3935 = vsel %vm3443, %v3925, %v3934
        %v3936 = vsel %vm3445, %v3929, %v3935
        %v3946 = vadd.s32 %v3400, 4294967208
        %v3947 = vlaneseq
        %v3948 = vshrl.u32 %v3947, 7
        %v3949 = vsub.s32 %v3946, %v3948
        %v3950 = vrot.slane %v2795, %v3949
        %v3951 = vlaneseq
        %v3952 = vshrl.u32 %v3951, 7
        %v3953 = vsub.s32 %v3946, %v3952
        %v3954 = vrot.slane %v2800, %v3953
        %v3955 = vlaneseq
        %v3956 = vshrl.u32 %v3955, 7
        %v3957 = vsub.s32 %v3946, %v3956
        %v3958 = vrot.slane %v2805, %v3957
        %v3959 = vlaneseq
        %v3960 = vshrl.u32 %v3959, 7
        %v3961 = vsub.s32 %v3946, %v3960
        %v3962 = vrot.slane %v2810, %v3961
        %v3963 = vlaneseq
        %v3964 = vshrl.u32 %v3963, 7
        %v3965 = vsub.s32 %v3946, %v3964
        %v3966 = vrot.slane %v2815, %v3965
        %v3967 = vlaneseq
        %v3968 = vshrl.u32 %v3967, 7
        %v3969 = vsub.s32 %v3946, %v3968
        %v3970 = vrot.slane %v2820, %v3969
        %v3971 = vlaneseq
        %v3972 = vshrl.u32 %v3971, 7
        %v3973 = vsub.s32 %v3946, %v3972
        %v3974 = vrot.slane %v2825, %v3973
        %v3975 = vlaneseq
        %v3976 = vshrl.u32 %v3975, 7
        %v3977 = vsub.s32 %v3946, %v3976
        %v3978 = vrot.slane %v2830, %v3977
        %v3979 = vsel %vm3433, %v3954, %v3950
        %v3980 = vsel %vm3435, %v3958, %v3979
        %v3981 = vsel %vm3437, %v3962, %v3980
        %v3982 = vsel %vm3439, %v3966, %v3981
        %v3983 = vsel %vm3441, %v3970, %v3982
        %v3984 = vsel %vm3443, %v3974, %v3983
        %v3985 = vsel %vm3445, %v3978, %v3984
        %v3995 = vadd.s32 %v3400, 4294967200
        %v3996 = vlaneseq
        %v3997 = vshrl.u32 %v3996, 7
        %v3998 = vsub.s32 %v3995, %v3997
        %v3999 = vrot.slane %v2935, %v3998
        %v4000 = vlaneseq
        %v4001 = vshrl.u32 %v4000, 7
        %v4002 = vsub.s32 %v3995, %v4001
        %v4003 = vrot.slane %v2940, %v4002
        %v4004 = vlaneseq
        %v4005 = vshrl.u32 %v4004, 7
        %v4006 = vsub.s32 %v3995, %v4005
        %v4007 = vrot.slane %v2945, %v4006
        %v4008 = vlaneseq
        %v4009 = vshrl.u32 %v4008, 7
        %v4010 = vsub.s32 %v3995, %v4009
        %v4011 = vrot.slane %v2950, %v4010
        %v4012 = vlaneseq
        %v4013 = vshrl.u32 %v4012, 7
        %v4014 = vsub.s32 %v3995, %v4013
        %v4015 = vrot.slane %v2955, %v4014
        %v4016 = vlaneseq
        %v4017 = vshrl.u32 %v4016, 7
        %v4018 = vsub.s32 %v3995, %v4017
        %v4019 = vrot.slane %v2960, %v4018
        %v4020 = vlaneseq
        %v4021 = vshrl.u32 %v4020, 7
        %v4022 = vsub.s32 %v3995, %v4021
        %v4023 = vrot.slane %v2965, %v4022
        %v4024 = vlaneseq
        %v4025 = vshrl.u32 %v4024, 7
        %v4026 = vsub.s32 %v3995, %v4025
        %v4027 = vrot.slane %v2970, %v4026
        %v4028 = vsel %vm3433, %v4003, %v3999
        %v4029 = vsel %vm3435, %v4007, %v4028
        %v4030 = vsel %vm3437, %v4011, %v4029
        %v4031 = vsel %vm3439, %v4015, %v4030
        %v4032 = vsel %vm3441, %v4019, %v4031
        %v4033 = vsel %vm3443, %v4023, %v4032
        %v4034 = vsel %vm3445, %v4027, %v4033
        %v4044 = vadd.s32 %v3400, 4294967192
        %v4045 = vlaneseq
        %v4046 = vshrl.u32 %v4045, 7
        %v4047 = vsub.s32 %v4044, %v4046
        %v4048 = vrot.slane %v3075, %v4047
        %v4049 = vlaneseq
        %v4050 = vshrl.u32 %v4049, 7
        %v4051 = vsub.s32 %v4044, %v4050
        %v4052 = vrot.slane %v3080, %v4051
        %v4053 = vlaneseq
        %v4054 = vshrl.u32 %v4053, 7
        %v4055 = vsub.s32 %v4044, %v4054
        %v4056 = vrot.slane %v3085, %v4055
        %v4057 = vlaneseq
        %v4058 = vshrl.u32 %v4057, 7
        %v4059 = vsub.s32 %v4044, %v4058
        %v4060 = vrot.slane %v3090, %v4059
        %v4061 = vlaneseq
        %v4062 = vshrl.u32 %v4061, 7
        %v4063 = vsub.s32 %v4044, %v4062
        %v4064 = vrot.slane %v3095, %v4063
        %v4065 = vlaneseq
        %v4066 = vshrl.u32 %v4065, 7
        %v4067 = vsub.s32 %v4044, %v4066
        %v4068 = vrot.slane %v3100, %v4067
        %v4069 = vlaneseq
        %v4070 = vshrl.u32 %v4069, 7
        %v4071 = vsub.s32 %v4044, %v4070
        %v4072 = vrot.slane %v3105, %v4071
        %v4073 = vlaneseq
        %v4074 = vshrl.u32 %v4073, 7
        %v4075 = vsub.s32 %v4044, %v4074
        %v4076 = vrot.slane %v3110, %v4075
        %v4077 = vsel %vm3433, %v4052, %v4048
        %v4078 = vsel %vm3435, %v4056, %v4077
        %v4079 = vsel %vm3437, %v4060, %v4078
        %v4080 = vsel %vm3439, %v4064, %v4079
        %v4081 = vsel %vm3441, %v4068, %v4080
        %v4082 = vsel %vm3443, %v4072, %v4081
        %v4083 = vsel %vm3445, %v4076, %v4082
        %v4093 = vadd.s32 %v3400, 4294967184
        %v4094 = vlaneseq
        %v4095 = vshrl.u32 %v4094, 7
        %v4096 = vsub.s32 %v4093, %v4095
        %v4097 = vrot.slane %v3215, %v4096
        %v4098 = vlaneseq
        %v4099 = vshrl.u32 %v4098, 7
        %v4100 = vsub.s32 %v4093, %v4099
        %v4101 = vrot.slane %v3220, %v4100
        %v4102 = vlaneseq
        %v4103 = vshrl.u32 %v4102, 7
        %v4104 = vsub.s32 %v4093, %v4103
        %v4105 = vrot.slane %v3225, %v4104
        %v4106 = vlaneseq
        %v4107 = vshrl.u32 %v4106, 7
        %v4108 = vsub.s32 %v4093, %v4107
        %v4109 = vrot.slane %v3230, %v4108
        %v4110 = vlaneseq
        %v4111 = vshrl.u32 %v4110, 7
        %v4112 = vsub.s32 %v4093, %v4111
        %v4113 = vrot.slane %v3235, %v4112
        %v4114 = vlaneseq
        %v4115 = vshrl.u32 %v4114, 7
        %v4116 = vsub.s32 %v4093, %v4115
        %v4117 = vrot.slane %v3240, %v4116
        %v4118 = vlaneseq
        %v4119 = vshrl.u32 %v4118, 7
        %v4120 = vsub.s32 %v4093, %v4119
        %v4121 = vrot.slane %v3245, %v4120
        %v4122 = vlaneseq
        %v4123 = vshrl.u32 %v4122, 7
        %v4124 = vsub.s32 %v4093, %v4123
        %v4125 = vrot.slane %v3250, %v4124
        %v4126 = vsel %vm3433, %v4101, %v4097
        %v4127 = vsel %vm3435, %v4105, %v4126
        %v4128 = vsel %vm3437, %v4109, %v4127
        %v4129 = vsel %vm3439, %v4113, %v4128
        %v4130 = vsel %vm3441, %v4117, %v4129
        %v4131 = vsel %vm3443, %v4121, %v4130
        %v4132 = vsel %vm3445, %v4125, %v4131
        %v4142 = vadd.s32 %v3400, 4294967176
        %v4143 = vlaneseq
        %v4144 = vshrl.u32 %v4143, 7
        %v4145 = vsub.s32 %v4142, %v4144
        %v4146 = vrot.slane %v3355, %v4145
        %v4147 = vlaneseq
        %v4148 = vshrl.u32 %v4147, 7
        %v4149 = vsub.s32 %v4142, %v4148
        %v4150 = vrot.slane %v3360, %v4149
        %v4151 = vlaneseq
        %v4152 = vshrl.u32 %v4151, 7
        %v4153 = vsub.s32 %v4142, %v4152
        %v4154 = vrot.slane %v3365, %v4153
        %v4155 = vlaneseq
        %v4156 = vshrl.u32 %v4155, 7
        %v4157 = vsub.s32 %v4142, %v4156
        %v4158 = vrot.slane %v3370, %v4157
        %v4159 = vlaneseq
        %v4160 = vshrl.u32 %v4159, 7
        %v4161 = vsub.s32 %v4142, %v4160
        %v4162 = vrot.slane %v3375, %v4161
        %v4163 = vlaneseq
        %v4164 = vshrl.u32 %v4163, 7
        %v4165 = vsub.s32 %v4142, %v4164
        %v4166 = vrot.slane %v3380, %v4165
        %v4167 = vlaneseq
        %v4168 = vshrl.u32 %v4167, 7
        %v4169 = vsub.s32 %v4142, %v4168
        %v4170 = vrot.slane %v3385, %v4169
        %v4171 = vlaneseq
        %v4172 = vshrl.u32 %v4171, 7
        %v4173 = vsub.s32 %v4142, %v4172
        %v4174 = vrot.slane %v3390, %v4173
        %v4175 = vsel %vm3433, %v4150, %v4146
        %v4176 = vsel %vm3435, %v4154, %v4175
        %v4177 = vsel %vm3437, %v4158, %v4176
        %v4178 = vsel %vm3439, %v4162, %v4177
        %v4179 = vsel %vm3441, %v4166, %v4178
        %v4180 = vsel %vm3443, %v4170, %v4179
        %v4181 = vsel %vm3445, %v4174, %v4180
        %vm4183 = vcmask 64512
        %v4184 = vsel %vm4183, %v3446, %v3495
        %vm4185 = vcmask 130048
        %v4186 = vsel %vm4185, %v4184, %v3544
        %vm4187 = vcmask 195584
        %v4188 = vsel %vm4187, %v4186, %v3593
        %vm4189 = vcmask 261120
        %v4190 = vsel %vm4189, %v4188, %v3642
        %vm4191 = vcmask 326656
        %v4192 = vsel %vm4191, %v4190, %v3691
        %vm4193 = vcmask 392192
        %v4194 = vsel %vm4193, %v4192, %v3740
        %vm4195 = vcmask 457728
        %v4196 = vsel %vm4195, %v4194, %v3789
        %vm4197 = vcmask 523264
        %v4198 = vsel %vm4197, %v4196, %v3838
        %vm4199 = vcmask 588800
        %v4200 = vsel %vm4199, %v4198, %v3887
        %vm4201 = vcmask 654336
        %v4202 = vsel %vm4201, %v4200, %v3936
        %vm4203 = vcmask 719872
        %v4204 = vsel %vm4203, %v4202, %v3985
        %vm4205 = vcmask 785408
        %v4206 = vsel %vm4205, %v4204, %v4034
        %vm4207 = vcmask 850944
        %v4208 = vsel %vm4207, %v4206, %v4083
        %vm4209 = vcmask 916480
        %v4210 = vsel %vm4209, %v4208, %v4132
        %vm4211 = vcmask 982016
        %v4212 = vsel %vm4211, %v4210, %v4181
        %v4214 = vlaneseq
        %v4215 = vshrl.u32 %v4214, 7
        %v4216 = vsub.s32 0, %v4215
        %v4217 = vrot.slane %v881, %v4216
        %4218 = vset.pattern.permute.xlu0 0
        %4219 = vperm.xlu0 %4218, %v4217
        %v4220 = vpop.permute.xlu0 %4219
        %v4222 = vadd.f32 %v4212, %v4220
        %v4223 = vxor.u32 %v4222, 2147483648
        %v4224 = vmul.f32 %v4223, 1.442695
        %v4225 = vpow.pop %v4224
        %v4226 = vadd.f32 %v4225, 1.0
        %v4227 = vrcp.pop %v4226
        %v4228 = vmul.f32 1.0, %v4227
        %s4229 = scalar_lea.vmem %s367, %s888
        %4230 = vst [vmem:[%s4229] sm:$0xff] %v4228
      $region49: #{_lambda_.7} parent=39 // loop_footer
        %s887 = sadd.s32 1, %s883
      $region50: #{_lambda_.7} parent=39 // loop_footer_branch
        %882 = sbr.rel target = $region46
      $region51: #{_lambda_.7} parent=39 // loop_exit
        _
      %s4231 = smul.u32 16, %s22
      %p4232 = scmp.lt.s32.totalorder %s21, 1
      %s4233 = scalar_select %p4232, %s21, 1
      %p4234 = scmp.lt.s32.totalorder %s4231, 15
      %s4235 = scalar_select %p4234, %s4231, 15
      %p4236 = scmp.lt.s32.totalorder %s23, 0
      %s4237 = scalar_select %p4236, %s23, 0
      %s4238 = sadd.s32 %s4237, %s4235
      %s4239 = smul.addr %s4233, 16
      %s4240 = sadd.s32 %s4238, %s4239
      %s4241 = smul.addr %s4240, 8
      %s4242 = scalar_lea.vmem %s5, %s4241
      // Predicated region
      $region52: #{_lambda_.7} parent=39 // pred_check
        %p4243 = pneg %p191
      $region53: #{_lambda_.7} parent=39 // pred_check_branch
        %4245 = sbr.rel (%p4243) target = $region55
      $region54: #{_lambda_.7} parent=39 // pred_region
        %s4246 = smul.u32 16, %s22
      $region55: #{_lambda_.7} parent=39 // pred_fallthru
        _
    $region40: #{_lambda_.7} parent=5 // pred_fallthru
      _
    %p4247 = scmp.le.s32.totalorder 2, %s11
    // Predicated region
    $region56: #{_lambda_.7} parent=5 // pred_check
      %p4248 = pneg %p4247
    $region57: #{_lambda_.7} parent=5 // pred_check_branch
      %4250 = sbr.rel (%p4248) target = $region59
    $region58: #{_lambda_.7} parent=5 // pred_region
      %s4251 = ssub.s32 %s11, 2
      // Predicated region
      $region60: #{_lambda_.7} parent=58 // pred_check
        %p4252 = pneg %p197
      $region61: #{_lambda_.7} parent=58 // pred_check_branch
        %4254 = sbr.rel (%p4252) target = $region63
      $region62: #{_lambda_.7} parent=58 // pred_region
        %s4255 = smul.u32 16, %s25
        %p4256 = scmp.lt.s32.totalorder %s24, 1
        %s4257 = scalar_select %p4256, %s24, 1
        %p4258 = scmp.lt.s32.totalorder %s4255, 15
        %s4259 = scalar_select %p4258, %s4255, 15
        %p4260 = scmp.lt.s32.totalorder %s26, 0
        %s4261 = scalar_select %p4260, %s26, 0
        %s4262 = sadd.s32 %s4261, %s4259
        %s4263 = smul.addr %s4257, 16
        %s4264 = sadd.s32 %s4262, %s4263
        %s4265 = smul.addr %s4264, 8
        %s4266 = scalar_lea.vmem %s5, %s4265
      $region63: #{_lambda_.7} parent=58 // pred_fallthru
        _
    $region59: #{_lambda_.7} parent=5 // pred_fallthru
      _
  $region6: #{_lambda_.7} parent=0 // loop_footer
    %s15 = sadd.s32 1, %s11
  $region7: #{_lambda_.7} parent=0 // loop_footer_branch
    %10 = sbr.rel target = $region3
  $region8: #{_lambda_.7} parent=0 // loop_exit
    _

</llo_original>
